<compile_context>
chip_gen: v7x
topology: tpu7x:2x2x1
jax: 0.10.0
libtpu: 0.0.40
codegen_flags: <defaults>
</compile_context>

<pallas_src>
import jax
import jax.numpy as jnp
from jax.experimental import pallas as pl
from jax.experimental.pallas import tpu as pltpu


def _vmem():
    return pl.BlockSpec(memory_space=pltpu.MemorySpace.VMEM)


# ---------------------------------------------------------------------------
# Fused kernel: conv1+bn1+sig -> conv2+bn2+sig -> conv3+bn3+sig -> pool+linear1
# ---------------------------------------------------------------------------
def _fused_kernel(x_ref,
                  w1_ref, g1_ref, bt1_ref,
                  w2_ref, g2_ref, bt2_ref,
                  w3_ref, g3_ref, bt3_ref,
                  lw_ref, lb_ref,
                  o1_ref, o2_ref, o3_ref, o4_ref,
                  p1_ref, p2_ref, p3_ref):
    EPS = 1e-5
    PAD = 2
    n_batch = x_ref.shape[0]

    def conv_bn_sig(pad_ref, w_ref, g_ref, bt_ref, o_ref):
        """pad_ref: (N, Cin, L_pad) zero-padded input (CL layout per sample).
        w_ref: (K, Cout, Cin) tap-major conv weight.  Writes o_ref
        (N, Cout, L_out) and returns the per-sample activation values so the
        next layer can consume them straight from vregs."""
        k_taps = w_ref.shape[0]
        l_out = o_ref.shape[2]

        # Hoist the per-tap weight slabs out of the batch loop (loaded once).
        w_taps = [w_ref[k] for k in range(k_taps)]

        # --- conv: K accumulated (Cout, Cin) @ (Cin, L_out) MXU matmuls/sample
        accs = []
        for n in range(n_batch):
            xp = pad_ref[n]                               # (Cin, L_pad)
            acc = None
            for k in range(k_taps):
                part = jnp.dot(w_taps[k], xp[:, k:k + l_out],
                               preferred_element_type=jnp.float32)
                acc = part if acc is None else acc + part
            accs.append(acc)                              # (Cout, L_out) f32

        # --- train-mode BatchNorm1d over (N, L_out) per channel (biased var).
        # Conv bias cancels exactly under batch-stat normalization -> omitted.
        cnt = jnp.float32(n_batch * l_out)
        mean = sum(jnp.sum(a, axis=1, keepdims=True) for a in accs) / cnt
        diffs = [a - mean for a in accs]                  # centered (stable)
        var = sum(jnp.sum(d * d, axis=1, keepdims=True) for d in diffs) / cnt
        scale = jax.lax.rsqrt(var + EPS) * g_ref[...]     # (Cout, 1)
        shift = bt_ref[...]                               # (Cout, 1)

        # --- normalize + sigmoid (EUP), write NCL output directly
        outs = []
        for n in range(n_batch):
            y = jax.nn.sigmoid(diffs[n] * scale + shift)  # (Cout, L_out)
            o_ref[n] = y
            outs.append(y)
        return outs

    # Zero the padded staging buffers once (edge columns must read as zeros).
    p1_ref[...] = jnp.zeros_like(p1_ref)
    p2_ref[...] = jnp.zeros_like(p2_ref)
    p3_ref[...] = jnp.zeros_like(p3_ref)

    # Layer 1: stage the NCL input into its padded VMEM buffer (whole batch).
    l_in = x_ref.shape[2]
    p1_ref[:, :, pl.ds(PAD, l_in)] = x_ref[...]
    y1 = conv_bn_sig(p1_ref, w1_ref, g1_ref, bt1_ref, o1_ref)

    # Layer 2: stage relu1 (still in vregs) into its padded buffer.
    l1 = o1_ref.shape[2]
    for n in range(n_batch):
        p2_ref[n, :, pl.ds(PAD, l1)] = y1[n]
    y2 = conv_bn_sig(p2_ref, w2_ref, g2_ref, bt2_ref, o2_ref)

    # Layer 3.
    l2 = o2_ref.shape[2]
    for n in range(n_batch):
        p3_ref[n, :, pl.ds(PAD, l2)] = y2[n]
    y3 = conv_bn_sig(p3_ref, w3_ref, g3_ref, bt3_ref, o3_ref)

    # AdaptiveAvgPool1d(1) + Linear(128 -> 128): rhs-transposed matmuls, one
    # batched (N, 128) x (128, 128)^T matmul and one unmasked lane-dense store.
    l3 = o3_ref.shape[2]
    c3 = o3_ref.shape[1]
    nt_dims = (((1,), (1,)), ((), ()))                    # contract minor dims
    pool_w = jnp.full((1, l3), 1.0 / l3, dtype=jnp.float32)
    row_sel = jax.lax.broadcasted_iota(jnp.int32, (n_batch, c3), 0)
    pooled = None
    for n in range(n_batch):
        row = jax.lax.dot_general(pool_w, y3[n], nt_dims,
                                  preferred_element_type=jnp.float32)  # (1, C3)
        contrib = jnp.where(row_sel == n, row, 0.0)       # place as row n
        pooled = contrib if pooled is None else pooled + contrib       # (N, C3)
    ful1 = jax.lax.dot_general(pooled, lw_ref[...], nt_dims,
                               preferred_element_type=jnp.float32) + lb_ref[...]
    o4_ref[...] = ful1
    # NOTE: linear2(ful1) in the PyTorch forward is dead (never returned) -> skipped.


# ---------------------------------------------------------------------------
# Wrapper
# ---------------------------------------------------------------------------
def ordinary_kd_te_fcn_forward(params, x_ncl):
    """x_ncl: (N, Cin, L) float32 in PyTorch Conv1d layout.
    Returns [relu1 (N,128,L-2), relu2 (N,256,L-2), relu3 (N,128,L), ful1 (N,128)]."""
    n, c_in, l_in = x_ncl.shape
    w1, w2, w3 = params['conv1_w'], params['conv2_w'], params['conv3_w']
    c1, c2, c3 = w1.shape[0], w2.shape[0], w3.shape[0]
    k1, k2, k3 = w1.shape[2], w2.shape[2], w3.shape[2]
    pad = 2
    l1 = l_in + 2 * pad - k1 + 1
    l2 = l1 + 2 * pad - k2 + 1
    l3 = l2 + 2 * pad - k3 + 1
    cfc = params['lin1_w'].shape[0]

    # One-time weight re-layout (tap-major conv weights, per-channel BN params
    # as (C,1) columns).  These touch parameters only, never activations.
    w1t = jnp.transpose(w1, (2, 0, 1)).astype(jnp.float32)   # (K, Cout, Cin)
    w2t = jnp.transpose(w2, (2, 0, 1)).astype(jnp.float32)
    w3t = jnp.transpose(w3, (2, 0, 1)).astype(jnp.float32)
    g1 = params['bn1_g'].reshape(c1, 1).astype(jnp.float32)
    b1 = params['bn1_b'].reshape(c1, 1).astype(jnp.float32)
    g2 = params['bn2_g'].reshape(c2, 1).astype(jnp.float32)
    b2 = params['bn2_b'].reshape(c2, 1).astype(jnp.float32)
    g3 = params['bn3_g'].reshape(c3, 1).astype(jnp.float32)
    b3 = params['bn3_b'].reshape(c3, 1).astype(jnp.float32)
    lw = params['lin1_w'].astype(jnp.float32)                # (out, in)
    lb = params['lin1_b'].reshape(1, cfc).astype(jnp.float32)

    out_shapes = (
        jax.ShapeDtypeStruct((n, c1, l1), jnp.float32),
        jax.ShapeDtypeStruct((n, c2, l2), jnp.float32),
        jax.ShapeDtypeStruct((n, c3, l3), jnp.float32),
        jax.ShapeDtypeStruct((n, cfc), jnp.float32),
    )
    relu1, relu2, relu3, ful1 = pl.pallas_call(
        _fused_kernel,
        out_shape=out_shapes,
        in_specs=[_vmem()] * 12,
        out_specs=(_vmem(), _vmem(), _vmem(), _vmem()),
        scratch_shapes=[
            pltpu.VMEM((n, c_in, l_in + 2 * pad), jnp.float32),  # padded x
            pltpu.VMEM((n, c1, l1 + 2 * pad), jnp.float32),      # padded relu1
            pltpu.VMEM((n, c2, l2 + 2 * pad), jnp.float32),      # padded relu2
        ],
        # TODO(synk): if N or L grows beyond toy sizes, add a batch grid axis
        # (dimension_semantics=("parallel",)) with a cross-tile BN-stats pass
        # and set pltpu.CompilerParams(vmem_limit_bytes=...) for v7x's 64 MiB;
        # on v6e/v7x the conv matmuls could also take bf16 operands.
    )(x_ncl.astype(jnp.float32), w1t, g1, b1, w2t, g2, b2, w3t, g3, b3, lw, lb)
    return [relu1, relu2, relu3, ful1]


# ---------------------------------------------------------------------------
# Pure-JAX reference (exact PyTorch semantics, incl. the conv biases which
# cancel under train-mode BN) — used only for a correctness self-check.
# ---------------------------------------------------------------------------
def _reference_forward(params, x):
    def conv1d(h, w, b):
        out = jax.lax.conv_general_dilated(
            h, w, window_strides=(1,), padding=[(2, 2)],
            dimension_numbers=('NCH', 'OIH', 'NCH'))
        return out + b[None, :, None]

    def bn_sig(h, g, b, eps=1e-5):
        mean = jnp.mean(h, axis=(0, 2), keepdims=True)
        var = jnp.mean((h - mean) ** 2, axis=(0, 2), keepdims=True)
        y = (h - mean) * jax.lax.rsqrt(var + eps)
        return jax.nn.sigmoid(y * g[None, :, None] + b[None, :, None])

    r1 = bn_sig(conv1d(x, params['conv1_w'], params['conv1_b']),
                params['bn1_g'], params['bn1_b'])
    r2 = bn_sig(conv1d(r1, params['conv2_w'], params['conv2_b']),
                params['bn2_g'], params['bn2_b'])
    r3 = bn_sig(conv1d(r2, params['conv3_w'], params['conv3_b']),
                params['bn3_g'], params['bn3_b'])
    ful1 = jnp.mean(r3, axis=2) @ params['lin1_w'].T + params['lin1_b']
    return [r1, r2, r3, ful1]


def init_params(key, input_dims, num_classes):
    ks = jax.random.split(key, 16)

    def nrm(k, shape, scale=0.1):
        return scale * jax.random.normal(k, shape, jnp.float32)

    return dict(
        conv1_w=nrm(ks[0], (128, input_dims, 7)),
        conv1_b=nrm(ks[1], (128,)),
        bn1_g=1.0 + nrm(ks[2], (128,)),
        bn1_b=nrm(ks[3], (128,)),
        conv2_w=nrm(ks[4], (256, 128, 5)),
        conv2_b=nrm(ks[5], (256,)),
        bn2_g=1.0 + nrm(ks[6], (256,)),
        bn2_b=nrm(ks[7], (256,)),
        conv3_w=nrm(ks[8], (128, 256, 3)),
        conv3_b=nrm(ks[9], (128,)),
        bn3_g=1.0 + nrm(ks[10], (128,)),
        bn3_b=nrm(ks[11], (128,)),
        lin1_w=nrm(ks[12], (128, 128)),
        lin1_b=nrm(ks[13], (128,)),
        lin2_w=nrm(ks[14], (num_classes, 128)),   # present in module; dead output
        lin2_b=nrm(ks[15], (num_classes,)),
    )


if __name__ == "__main__":
    key = jax.random.PRNGKey(0)
    input_dims, num_classes, length, batch = 4, 3, 16, 2

    params = init_params(key, input_dims, num_classes)
    x = jax.random.normal(jax.random.fold_in(key, 1),
                          (batch, input_dims, length), jnp.float32)

    outs = jax.jit(ordinary_kd_te_fcn_forward)(params, x)
    outs = jax.block_until_ready(outs)

    assert outs[0].shape == (batch, 128, length - 2)
    assert outs[1].shape == (batch, 256, length - 2)
    assert outs[2].shape == (batch, 128, length)
    assert outs[3].shape == (batch, 128)
    assert all(bool(jnp.all(jnp.isfinite(o))) for o in outs)

    # Correctness self-check against the pure-JAX reference.  Tolerance covers
    # MXU default-precision differences between Pallas dots and XLA conv.
    refs = jax.block_until_ready(jax.jit(_reference_forward)(params, x))
    for got, want in zip(outs, refs):
        assert bool(jnp.allclose(got, want, rtol=2e-2, atol=2e-2)), \
            float(jnp.max(jnp.abs(got - want)))

    print("KERNEL_OK")
</pallas_src>

<mosaic_0001>
module attributes {stable_mosaic.version = 11 : i64} {
  func.func @_fused_kernel(%arg0: memref<2x4x16xf32, #tpu.memory_space<vmem>>, %arg1: memref<7x128x4xf32, #tpu.memory_space<vmem>>, %arg2: memref<128x1xf32, #tpu.memory_space<vmem>>, %arg3: memref<128x1xf32, #tpu.memory_space<vmem>>, %arg4: memref<5x256x128xf32, #tpu.memory_space<vmem>>, %arg5: memref<256x1xf32, #tpu.memory_space<vmem>>, %arg6: memref<256x1xf32, #tpu.memory_space<vmem>>, %arg7: memref<3x128x256xf32, #tpu.memory_space<vmem>>, %arg8: memref<128x1xf32, #tpu.memory_space<vmem>>, %arg9: memref<128x1xf32, #tpu.memory_space<vmem>>, %arg10: memref<128x128xf32, #tpu.memory_space<vmem>>, %arg11: memref<1x128xf32, #tpu.memory_space<vmem>>, %arg12: memref<2x128x14xf32, #tpu.memory_space<vmem>>, %arg13: memref<2x256x14xf32, #tpu.memory_space<vmem>>, %arg14: memref<2x128x16xf32, #tpu.memory_space<vmem>>, %arg15: memref<2x128xf32, #tpu.memory_space<vmem>>, %arg16: memref<2x4x20xf32, #tpu.memory_space<vmem>>, %arg17: memref<2x128x18xf32, #tpu.memory_space<vmem>>, %arg18: memref<2x256x18xf32, #tpu.memory_space<vmem>>) attributes {dimension_semantics = [], scalar_prefetch = 0 : i64, scratch_operands = 3 : i64, tpu.core_type = #tpu.core_type<tc>} {
    %cst = arith.constant 0.000000e+00 : f32
    %0 = vector.broadcast %cst : f32 to vector<2x4x20xf32>
    %c0 = arith.constant 0 : index
    %c0_0 = arith.constant 0 : index
    %c0_1 = arith.constant 0 : index
    %1 = vector.load %arg16[%c0, %c0_0, %c0_1] : memref<2x4x20xf32, #tpu.memory_space<vmem>>, vector<2x4x20xf32>
    tpu.vector_store %arg16[%c0, %c0_0, %c0_1], %0 {strides = array<i32>} : memref<2x4x20xf32, #tpu.memory_space<vmem>>, vector<2x4x20xf32>,
    %cst_2 = arith.constant 0.000000e+00 : f32
    %2 = vector.broadcast %cst_2 : f32 to vector<2x128x18xf32>
    %c0_3 = arith.constant 0 : index
    %c0_4 = arith.constant 0 : index
    %c0_5 = arith.constant 0 : index
    %3 = vector.load %arg17[%c0_3, %c0_4, %c0_5] : memref<2x128x18xf32, #tpu.memory_space<vmem>>, vector<2x128x18xf32>
    tpu.vector_store %arg17[%c0_3, %c0_4, %c0_5], %2 {strides = array<i32>} : memref<2x128x18xf32, #tpu.memory_space<vmem>>, vector<2x128x18xf32>,
    %cst_6 = arith.constant 0.000000e+00 : f32
    %4 = vector.broadcast %cst_6 : f32 to vector<2x256x18xf32>
    %c0_7 = arith.constant 0 : index
    %c0_8 = arith.constant 0 : index
    %c0_9 = arith.constant 0 : index
    %5 = vector.load %arg18[%c0_7, %c0_8, %c0_9] : memref<2x256x18xf32, #tpu.memory_space<vmem>>, vector<2x256x18xf32>
    tpu.vector_store %arg18[%c0_7, %c0_8, %c0_9], %4 {strides = array<i32>} : memref<2x256x18xf32, #tpu.memory_space<vmem>>, vector<2x256x18xf32>,
    %c0_10 = arith.constant 0 : index
    %c0_11 = arith.constant 0 : index
    %c0_12 = arith.constant 0 : index
    %6 = vector.load %arg0[%c0_10, %c0_11, %c0_12] : memref<2x4x16xf32, #tpu.memory_space<vmem>>, vector<2x4x16xf32>
    %c0_13 = arith.constant 0 : index
    %c0_14 = arith.constant 0 : index
    %c2 = arith.constant 2 : index
    %7 = vector.load %arg16[%c0_13, %c0_14, %c2] : memref<2x4x20xf32, #tpu.memory_space<vmem>>, vector<2x4x16xf32>
    tpu.vector_store %arg16[%c0_13, %c0_14, %c2], %6 {strides = array<i32>} : memref<2x4x20xf32, #tpu.memory_space<vmem>>, vector<2x4x16xf32>,
    %c0_15 = arith.constant 0 : index
    %c0_16 = arith.constant 0 : index
    %c0_17 = arith.constant 0 : index
    %8 = vector.load %arg1[%c0_15, %c0_16, %c0_17] : memref<7x128x4xf32, #tpu.memory_space<vmem>>, vector<1x128x4xf32>
    %9 = vector.shape_cast %8 : vector<1x128x4xf32> to vector<128x4xf32>
    %c1 = arith.constant 1 : index
    %c0_18 = arith.constant 0 : index
    %c0_19 = arith.constant 0 : index
    %10 = vector.load %arg1[%c1, %c0_18, %c0_19] : memref<7x128x4xf32, #tpu.memory_space<vmem>>, vector<1x128x4xf32>
    %11 = vector.shape_cast %10 : vector<1x128x4xf32> to vector<128x4xf32>
    %c2_20 = arith.constant 2 : index
    %c0_21 = arith.constant 0 : index
    %c0_22 = arith.constant 0 : index
    %12 = vector.load %arg1[%c2_20, %c0_21, %c0_22] : memref<7x128x4xf32, #tpu.memory_space<vmem>>, vector<1x128x4xf32>
    %13 = vector.shape_cast %12 : vector<1x128x4xf32> to vector<128x4xf32>
    %c3 = arith.constant 3 : index
    %c0_23 = arith.constant 0 : index
    %c0_24 = arith.constant 0 : index
    %14 = vector.load %arg1[%c3, %c0_23, %c0_24] : memref<7x128x4xf32, #tpu.memory_space<vmem>>, vector<1x128x4xf32>
    %15 = vector.shape_cast %14 : vector<1x128x4xf32> to vector<128x4xf32>
    %c4 = arith.constant 4 : index
    %c0_25 = arith.constant 0 : index
    %c0_26 = arith.constant 0 : index
    %16 = vector.load %arg1[%c4, %c0_25, %c0_26] : memref<7x128x4xf32, #tpu.memory_space<vmem>>, vector<1x128x4xf32>
    %17 = vector.shape_cast %16 : vector<1x128x4xf32> to vector<128x4xf32>
    %c5 = arith.constant 5 : index
    %c0_27 = arith.constant 0 : index
    %c0_28 = arith.constant 0 : index
    %18 = vector.load %arg1[%c5, %c0_27, %c0_28] : memref<7x128x4xf32, #tpu.memory_space<vmem>>, vector<1x128x4xf32>
    %19 = vector.shape_cast %18 : vector<1x128x4xf32> to vector<128x4xf32>
    %c6 = arith.constant 6 : index
    %c0_29 = arith.constant 0 : index
    %c0_30 = arith.constant 0 : index
    %20 = vector.load %arg1[%c6, %c0_29, %c0_30] : memref<7x128x4xf32, #tpu.memory_space<vmem>>, vector<1x128x4xf32>
    %21 = vector.shape_cast %20 : vector<1x128x4xf32> to vector<128x4xf32>
    %c0_31 = arith.constant 0 : index
    %c0_32 = arith.constant 0 : index
    %c0_33 = arith.constant 0 : index
    %22 = vector.load %arg16[%c0_31, %c0_32, %c0_33] : memref<2x4x20xf32, #tpu.memory_space<vmem>>, vector<1x4x20xf32>
    %23 = vector.shape_cast %22 : vector<1x4x20xf32> to vector<4x20xf32>
    %24 = vector.extract_strided_slice %23 {offsets = [0, 0], sizes = [4, 14], strides = [1, 1]} : vector<4x20xf32> to vector<4x14xf32>
    %cst_34 = arith.constant dense<0.000000e+00> : vector<128x14xf32>
    %25 = tpu.matmul %9, %24, %cst_34 {dimension_numbers = #tpu.dot_dimension_numbers<[1], [0], [0], [1], [0, 0, 1, 1], [], []>} : vector<128x4xf32>, vector<4x14xf32>, vector<128x14xf32> -> vector<128x14xf32>
    %26 = vector.extract_strided_slice %23 {offsets = [0, 1], sizes = [4, 14], strides = [1, 1]} : vector<4x20xf32> to vector<4x14xf32>
    %cst_35 = arith.constant dense<0.000000e+00> : vector<128x14xf32>
    %27 = tpu.matmul %11, %26, %cst_35 {dimension_numbers = #tpu.dot_dimension_numbers<[1], [0], [0], [1], [0, 0, 1, 1], [], []>} : vector<128x4xf32>, vector<4x14xf32>, vector<128x14xf32> -> vector<128x14xf32>
    %28 = arith.addf %25, %27 : vector<128x14xf32>
    %29 = vector.extract_strided_slice %23 {offsets = [0, 2], sizes = [4, 14], strides = [1, 1]} : vector<4x20xf32> to vector<4x14xf32>
    %cst_36 = arith.constant dense<0.000000e+00> : vector<128x14xf32>
    %30 = tpu.matmul %13, %29, %cst_36 {dimension_numbers = #tpu.dot_dimension_numbers<[1], [0], [0], [1], [0, 0, 1, 1], [], []>} : vector<128x4xf32>, vector<4x14xf32>, vector<128x14xf32> -> vector<128x14xf32>
    %31 = arith.addf %28, %30 : vector<128x14xf32>
    %32 = vector.extract_strided_slice %23 {offsets = [0, 3], sizes = [4, 14], strides = [1, 1]} : vector<4x20xf32> to vector<4x14xf32>
    %cst_37 = arith.constant dense<0.000000e+00> : vector<128x14xf32>
    %33 = tpu.matmul %15, %32, %cst_37 {dimension_numbers = #tpu.dot_dimension_numbers<[1], [0], [0], [1], [0, 0, 1, 1], [], []>} : vector<128x4xf32>, vector<4x14xf32>, vector<128x14xf32> -> vector<128x14xf32>
    %34 = arith.addf %31, %33 : vector<128x14xf32>
    %35 = vector.extract_strided_slice %23 {offsets = [0, 4], sizes = [4, 14], strides = [1, 1]} : vector<4x20xf32> to vector<4x14xf32>
    %cst_38 = arith.constant dense<0.000000e+00> : vector<128x14xf32>
    %36 = tpu.matmul %17, %35, %cst_38 {dimension_numbers = #tpu.dot_dimension_numbers<[1], [0], [0], [1], [0, 0, 1, 1], [], []>} : vector<128x4xf32>, vector<4x14xf32>, vector<128x14xf32> -> vector<128x14xf32>
    %37 = arith.addf %34, %36 : vector<128x14xf32>
    %38 = vector.extract_strided_slice %23 {offsets = [0, 5], sizes = [4, 14], strides = [1, 1]} : vector<4x20xf32> to vector<4x14xf32>
    %cst_39 = arith.constant dense<0.000000e+00> : vector<128x14xf32>
    %39 = tpu.matmul %19, %38, %cst_39 {dimension_numbers = #tpu.dot_dimension_numbers<[1], [0], [0], [1], [0, 0, 1, 1], [], []>} : vector<128x4xf32>, vector<4x14xf32>, vector<128x14xf32> -> vector<128x14xf32>
    %40 = arith.addf %37, %39 : vector<128x14xf32>
    %41 = vector.extract_strided_slice %23 {offsets = [0, 6], sizes = [4, 14], strides = [1, 1]} : vector<4x20xf32> to vector<4x14xf32>
    %cst_40 = arith.constant dense<0.000000e+00> : vector<128x14xf32>
    %42 = tpu.matmul %21, %41, %cst_40 {dimension_numbers = #tpu.dot_dimension_numbers<[1], [0], [0], [1], [0, 0, 1, 1], [], []>} : vector<128x4xf32>, vector<4x14xf32>, vector<128x14xf32> -> vector<128x14xf32>
    %43 = arith.addf %40, %42 : vector<128x14xf32>
    %c1_41 = arith.constant 1 : index
    %c0_42 = arith.constant 0 : index
    %c0_43 = arith.constant 0 : index
    %44 = vector.load %arg16[%c1_41, %c0_42, %c0_43] : memref<2x4x20xf32, #tpu.memory_space<vmem>>, vector<1x4x20xf32>
    %45 = vector.shape_cast %44 : vector<1x4x20xf32> to vector<4x20xf32>
    %46 = vector.extract_strided_slice %45 {offsets = [0, 0], sizes = [4, 14], strides = [1, 1]} : vector<4x20xf32> to vector<4x14xf32>
    %cst_44 = arith.constant dense<0.000000e+00> : vector<128x14xf32>
    %47 = tpu.matmul %9, %46, %cst_44 {dimension_numbers = #tpu.dot_dimension_numbers<[1], [0], [0], [1], [0, 0, 1, 1], [], []>} : vector<128x4xf32>, vector<4x14xf32>, vector<128x14xf32> -> vector<128x14xf32>
    %48 = vector.extract_strided_slice %45 {offsets = [0, 1], sizes = [4, 14], strides = [1, 1]} : vector<4x20xf32> to vector<4x14xf32>
    %cst_45 = arith.constant dense<0.000000e+00> : vector<128x14xf32>
    %49 = tpu.matmul %11, %48, %cst_45 {dimension_numbers = #tpu.dot_dimension_numbers<[1], [0], [0], [1], [0, 0, 1, 1], [], []>} : vector<128x4xf32>, vector<4x14xf32>, vector<128x14xf32> -> vector<128x14xf32>
    %50 = arith.addf %47, %49 : vector<128x14xf32>
    %51 = vector.extract_strided_slice %45 {offsets = [0, 2], sizes = [4, 14], strides = [1, 1]} : vector<4x20xf32> to vector<4x14xf32>
    %cst_46 = arith.constant dense<0.000000e+00> : vector<128x14xf32>
    %52 = tpu.matmul %13, %51, %cst_46 {dimension_numbers = #tpu.dot_dimension_numbers<[1], [0], [0], [1], [0, 0, 1, 1], [], []>} : vector<128x4xf32>, vector<4x14xf32>, vector<128x14xf32> -> vector<128x14xf32>
    %53 = arith.addf %50, %52 : vector<128x14xf32>
    %54 = vector.extract_strided_slice %45 {offsets = [0, 3], sizes = [4, 14], strides = [1, 1]} : vector<4x20xf32> to vector<4x14xf32>
    %cst_47 = arith.constant dense<0.000000e+00> : vector<128x14xf32>
    %55 = tpu.matmul %15, %54, %cst_47 {dimension_numbers = #tpu.dot_dimension_numbers<[1], [0], [0], [1], [0, 0, 1, 1], [], []>} : vector<128x4xf32>, vector<4x14xf32>, vector<128x14xf32> -> vector<128x14xf32>
    %56 = arith.addf %53, %55 : vector<128x14xf32>
    %57 = vector.extract_strided_slice %45 {offsets = [0, 4], sizes = [4, 14], strides = [1, 1]} : vector<4x20xf32> to vector<4x14xf32>
    %cst_48 = arith.constant dense<0.000000e+00> : vector<128x14xf32>
    %58 = tpu.matmul %17, %57, %cst_48 {dimension_numbers = #tpu.dot_dimension_numbers<[1], [0], [0], [1], [0, 0, 1, 1], [], []>} : vector<128x4xf32>, vector<4x14xf32>, vector<128x14xf32> -> vector<128x14xf32>
    %59 = arith.addf %56, %58 : vector<128x14xf32>
    %60 = vector.extract_strided_slice %45 {offsets = [0, 5], sizes = [4, 14], strides = [1, 1]} : vector<4x20xf32> to vector<4x14xf32>
    %cst_49 = arith.constant dense<0.000000e+00> : vector<128x14xf32>
    %61 = tpu.matmul %19, %60, %cst_49 {dimension_numbers = #tpu.dot_dimension_numbers<[1], [0], [0], [1], [0, 0, 1, 1], [], []>} : vector<128x4xf32>, vector<4x14xf32>, vector<128x14xf32> -> vector<128x14xf32>
    %62 = arith.addf %59, %61 : vector<128x14xf32>
    %63 = vector.extract_strided_slice %45 {offsets = [0, 6], sizes = [4, 14], strides = [1, 1]} : vector<4x20xf32> to vector<4x14xf32>
    %cst_50 = arith.constant dense<0.000000e+00> : vector<128x14xf32>
    %64 = tpu.matmul %21, %63, %cst_50 {dimension_numbers = #tpu.dot_dimension_numbers<[1], [0], [0], [1], [0, 0, 1, 1], [], []>} : vector<128x4xf32>, vector<4x14xf32>, vector<128x14xf32> -> vector<128x14xf32>
    %65 = arith.addf %62, %64 : vector<128x14xf32>
    %cst_51 = arith.constant dense<0.000000e+00> : vector<128xf32>
    %66 = vector.multi_reduction <add>, %43, %cst_51 [1] : vector<128x14xf32> to vector<128xf32>
    %67 = vector.shape_cast %66 : vector<128xf32> to vector<128x1xf32>
    %cst_52 = arith.constant 0.000000e+00 : f32
    %68 = vector.broadcast %cst_52 : f32 to vector<128x1xf32>
    %69 = arith.addf %68, %67 : vector<128x1xf32>
    %cst_53 = arith.constant dense<0.000000e+00> : vector<128xf32>
    %70 = vector.multi_reduction <add>, %65, %cst_53 [1] : vector<128x14xf32> to vector<128xf32>
    %71 = vector.shape_cast %70 : vector<128xf32> to vector<128x1xf32>
    %72 = arith.addf %69, %71 : vector<128x1xf32>
    %cst_54 = arith.constant 2.800000e+01 : f32
    %73 = vector.broadcast %cst_54 : f32 to vector<128x1xf32>
    %74 = arith.divf %72, %73 : vector<128x1xf32>
    %75 = vector.broadcast %74 : vector<128x1xf32> to vector<128x14xf32>
    %76 = arith.subf %43, %75 : vector<128x14xf32>
    %77 = vector.broadcast %74 : vector<128x1xf32> to vector<128x14xf32>
    %78 = arith.subf %65, %77 : vector<128x14xf32>
    %79 = arith.mulf %76, %76 : vector<128x14xf32>
    %cst_55 = arith.constant dense<0.000000e+00> : vector<128xf32>
    %80 = vector.multi_reduction <add>, %79, %cst_55 [1] : vector<128x14xf32> to vector<128xf32>
    %81 = vector.shape_cast %80 : vector<128xf32> to vector<128x1xf32>
    %cst_56 = arith.constant 0.000000e+00 : f32
    %82 = vector.broadcast %cst_56 : f32 to vector<128x1xf32>
    %83 = arith.addf %82, %81 : vector<128x1xf32>
    %84 = arith.mulf %78, %78 : vector<128x14xf32>
    %cst_57 = arith.constant dense<0.000000e+00> : vector<128xf32>
    %85 = vector.multi_reduction <add>, %84, %cst_57 [1] : vector<128x14xf32> to vector<128xf32>
    %86 = vector.shape_cast %85 : vector<128xf32> to vector<128x1xf32>
    %87 = arith.addf %83, %86 : vector<128x1xf32>
    %cst_58 = arith.constant 2.800000e+01 : f32
    %88 = vector.broadcast %cst_58 : f32 to vector<128x1xf32>
    %89 = arith.divf %87, %88 : vector<128x1xf32>
    %cst_59 = arith.constant 9.99999974E-6 : f32
    %90 = vector.broadcast %cst_59 : f32 to vector<128x1xf32>
    %91 = arith.addf %89, %90 : vector<128x1xf32>
    %92 = math.rsqrt %91 : vector<128x1xf32>
    %c0_60 = arith.constant 0 : index
    %c0_61 = arith.constant 0 : index
    %93 = vector.load %arg2[%c0_60, %c0_61] : memref<128x1xf32, #tpu.memory_space<vmem>>, vector<128x1xf32>
    %94 = arith.mulf %92, %93 : vector<128x1xf32>
    %c0_62 = arith.constant 0 : index
    %c0_63 = arith.constant 0 : index
    %95 = vector.load %arg3[%c0_62, %c0_63] : memref<128x1xf32, #tpu.memory_space<vmem>>, vector<128x1xf32>
    %96 = vector.broadcast %94 : vector<128x1xf32> to vector<128x14xf32>
    %97 = arith.mulf %76, %96 : vector<128x14xf32>
    %98 = vector.broadcast %95 : vector<128x1xf32> to vector<128x14xf32>
    %99 = arith.addf %97, %98 : vector<128x14xf32>
    %100 = arith.negf %99 : vector<128x14xf32>
    %101 = math.exp %100 : vector<128x14xf32>
    %cst_64 = arith.constant 1.000000e+00 : f32
    %102 = vector.broadcast %cst_64 : f32 to vector<128x14xf32>
    %103 = arith.addf %102, %101 : vector<128x14xf32>
    %104 = arith.divf %102, %103 : vector<128x14xf32>
    %c0_65 = arith.constant 0 : index
    %c0_66 = arith.constant 0 : index
    %c0_67 = arith.constant 0 : index
    %105 = vector.load %arg12[%c0_65, %c0_66, %c0_67] : memref<2x128x14xf32, #tpu.memory_space<vmem>>, vector<1x128x14xf32>
    %106 = vector.shape_cast %105 : vector<1x128x14xf32> to vector<128x14xf32>
    %107 = vector.shape_cast %104 : vector<128x14xf32> to vector<1x128x14xf32>
    tpu.vector_store %arg12[%c0_65, %c0_66, %c0_67], %107 {strides = array<i32>} : memref<2x128x14xf32, #tpu.memory_space<vmem>>, vector<1x128x14xf32>,
    %108 = vector.broadcast %94 : vector<128x1xf32> to vector<128x14xf32>
    %109 = arith.mulf %78, %108 : vector<128x14xf32>
    %110 = vector.broadcast %95 : vector<128x1xf32> to vector<128x14xf32>
    %111 = arith.addf %109, %110 : vector<128x14xf32>
    %112 = arith.negf %111 : vector<128x14xf32>
    %113 = math.exp %112 : vector<128x14xf32>
    %cst_68 = arith.constant 1.000000e+00 : f32
    %114 = vector.broadcast %cst_68 : f32 to vector<128x14xf32>
    %115 = arith.addf %114, %113 : vector<128x14xf32>
    %116 = arith.divf %114, %115 : vector<128x14xf32>
    %c1_69 = arith.constant 1 : index
    %c0_70 = arith.constant 0 : index
    %c0_71 = arith.constant 0 : index
    %117 = vector.load %arg12[%c1_69, %c0_70, %c0_71] : memref<2x128x14xf32, #tpu.memory_space<vmem>>, vector<1x128x14xf32>
    %118 = vector.shape_cast %117 : vector<1x128x14xf32> to vector<128x14xf32>
    %119 = vector.shape_cast %116 : vector<128x14xf32> to vector<1x128x14xf32>
    tpu.vector_store %arg12[%c1_69, %c0_70, %c0_71], %119 {strides = array<i32>} : memref<2x128x14xf32, #tpu.memory_space<vmem>>, vector<1x128x14xf32>,
    %c0_72 = arith.constant 0 : index
    %c0_73 = arith.constant 0 : index
    %c2_74 = arith.constant 2 : index
    %120 = vector.load %arg17[%c0_72, %c0_73, %c2_74] : memref<2x128x18xf32, #tpu.memory_space<vmem>>, vector<1x128x14xf32>
    %121 = vector.shape_cast %120 : vector<1x128x14xf32> to vector<128x14xf32>
    %122 = vector.shape_cast %104 : vector<128x14xf32> to vector<1x128x14xf32>
    tpu.vector_store %arg17[%c0_72, %c0_73, %c2_74], %122 {strides = array<i32>} : memref<2x128x18xf32, #tpu.memory_space<vmem>>, vector<1x128x14xf32>,
    %c1_75 = arith.constant 1 : index
    %c0_76 = arith.constant 0 : index
    %c2_77 = arith.constant 2 : index
    %123 = vector.load %arg17[%c1_75, %c0_76, %c2_77] : memref<2x128x18xf32, #tpu.memory_space<vmem>>, vector<1x128x14xf32>
    %124 = vector.shape_cast %123 : vector<1x128x14xf32> to vector<128x14xf32>
    %125 = vector.shape_cast %116 : vector<128x14xf32> to vector<1x128x14xf32>
    tpu.vector_store %arg17[%c1_75, %c0_76, %c2_77], %125 {strides = array<i32>} : memref<2x128x18xf32, #tpu.memory_space<vmem>>, vector<1x128x14xf32>,
    %c0_78 = arith.constant 0 : index
    %c0_79 = arith.constant 0 : index
    %c0_80 = arith.constant 0 : index
    %126 = vector.load %arg4[%c0_78, %c0_79, %c0_80] : memref<5x256x128xf32, #tpu.memory_space<vmem>>, vector<1x256x128xf32>
    %127 = vector.shape_cast %126 : vector<1x256x128xf32> to vector<256x128xf32>
    %c1_81 = arith.constant 1 : index
    %c0_82 = arith.constant 0 : index
    %c0_83 = arith.constant 0 : index
    %128 = vector.load %arg4[%c1_81, %c0_82, %c0_83] : memref<5x256x128xf32, #tpu.memory_space<vmem>>, vector<1x256x128xf32>
    %129 = vector.shape_cast %128 : vector<1x256x128xf32> to vector<256x128xf32>
    %c2_84 = arith.constant 2 : index
    %c0_85 = arith.constant 0 : index
    %c0_86 = arith.constant 0 : index
    %130 = vector.load %arg4[%c2_84, %c0_85, %c0_86] : memref<5x256x128xf32, #tpu.memory_space<vmem>>, vector<1x256x128xf32>
    %131 = vector.shape_cast %130 : vector<1x256x128xf32> to vector<256x128xf32>
    %c3_87 = arith.constant 3 : index
    %c0_88 = arith.constant 0 : index
    %c0_89 = arith.constant 0 : index
    %132 = vector.load %arg4[%c3_87, %c0_88, %c0_89] : memref<5x256x128xf32, #tpu.memory_space<vmem>>, vector<1x256x128xf32>
    %133 = vector.shape_cast %132 : vector<1x256x128xf32> to vector<256x128xf32>
    %c4_90 = arith.constant 4 : index
    %c0_91 = arith.constant 0 : index
    %c0_92 = arith.constant 0 : index
    %134 = vector.load %arg4[%c4_90, %c0_91, %c0_92] : memref<5x256x128xf32, #tpu.memory_space<vmem>>, vector<1x256x128xf32>
    %135 = vector.shape_cast %134 : vector<1x256x128xf32> to vector<256x128xf32>
    %c0_93 = arith.constant 0 : index
    %c0_94 = arith.constant 0 : index
    %c0_95 = arith.constant 0 : index
    %136 = vector.load %arg17[%c0_93, %c0_94, %c0_95] : memref<2x128x18xf32, #tpu.memory_space<vmem>>, vector<1x128x18xf32>
    %137 = vector.shape_cast %136 : vector<1x128x18xf32> to vector<128x18xf32>
    %138 = vector.extract_strided_slice %137 {offsets = [0, 0], sizes = [128, 14], strides = [1, 1]} : vector<128x18xf32> to vector<128x14xf32>
    %cst_96 = arith.constant dense<0.000000e+00> : vector<256x14xf32>
    %139 = tpu.matmul %127, %138, %cst_96 {dimension_numbers = #tpu.dot_dimension_numbers<[1], [0], [0], [1], [0, 0, 1, 1], [], []>} : vector<256x128xf32>, vector<128x14xf32>, vector<256x14xf32> -> vector<256x14xf32>
    %140 = vector.extract_strided_slice %137 {offsets = [0, 1], sizes = [128, 14], strides = [1, 1]} : vector<128x18xf32> to vector<128x14xf32>
    %cst_97 = arith.constant dense<0.000000e+00> : vector<256x14xf32>
    %141 = tpu.matmul %129, %140, %cst_97 {dimension_numbers = #tpu.dot_dimension_numbers<[1], [0], [0], [1], [0, 0, 1, 1], [], []>} : vector<256x128xf32>, vector<128x14xf32>, vector<256x14xf32> -> vector<256x14xf32>
    %142 = arith.addf %139, %141 : vector<256x14xf32>
    %143 = vector.extract_strided_slice %137 {offsets = [0, 2], sizes = [128, 14], strides = [1, 1]} : vector<128x18xf32> to vector<128x14xf32>
    %cst_98 = arith.constant dense<0.000000e+00> : vector<256x14xf32>
    %144 = tpu.matmul %131, %143, %cst_98 {dimension_numbers = #tpu.dot_dimension_numbers<[1], [0], [0], [1], [0, 0, 1, 1], [], []>} : vector<256x128xf32>, vector<128x14xf32>, vector<256x14xf32> -> vector<256x14xf32>
    %145 = arith.addf %142, %144 : vector<256x14xf32>
    %146 = vector.extract_strided_slice %137 {offsets = [0, 3], sizes = [128, 14], strides = [1, 1]} : vector<128x18xf32> to vector<128x14xf32>
    %cst_99 = arith.constant dense<0.000000e+00> : vector<256x14xf32>
    %147 = tpu.matmul %133, %146, %cst_99 {dimension_numbers = #tpu.dot_dimension_numbers<[1], [0], [0], [1], [0, 0, 1, 1], [], []>} : vector<256x128xf32>, vector<128x14xf32>, vector<256x14xf32> -> vector<256x14xf32>
    %148 = arith.addf %145, %147 : vector<256x14xf32>
    %149 = vector.extract_strided_slice %137 {offsets = [0, 4], sizes = [128, 14], strides = [1, 1]} : vector<128x18xf32> to vector<128x14xf32>
    %cst_100 = arith.constant dense<0.000000e+00> : vector<256x14xf32>
    %150 = tpu.matmul %135, %149, %cst_100 {dimension_numbers = #tpu.dot_dimension_numbers<[1], [0], [0], [1], [0, 0, 1, 1], [], []>} : vector<256x128xf32>, vector<128x14xf32>, vector<256x14xf32> -> vector<256x14xf32>
    %151 = arith.addf %148, %150 : vector<256x14xf32>
    %c1_101 = arith.constant 1 : index
    %c0_102 = arith.constant 0 : index
    %c0_103 = arith.constant 0 : index
    %152 = vector.load %arg17[%c1_101, %c0_102, %c0_103] : memref<2x128x18xf32, #tpu.memory_space<vmem>>, vector<1x128x18xf32>
    %153 = vector.shape_cast %152 : vector<1x128x18xf32> to vector<128x18xf32>
    %154 = vector.extract_strided_slice %153 {offsets = [0, 0], sizes = [128, 14], strides = [1, 1]} : vector<128x18xf32> to vector<128x14xf32>
    %cst_104 = arith.constant dense<0.000000e+00> : vector<256x14xf32>
    %155 = tpu.matmul %127, %154, %cst_104 {dimension_numbers = #tpu.dot_dimension_numbers<[1], [0], [0], [1], [0, 0, 1, 1], [], []>} : vector<256x128xf32>, vector<128x14xf32>, vector<256x14xf32> -> vector<256x14xf32>
    %156 = vector.extract_strided_slice %153 {offsets = [0, 1], sizes = [128, 14], strides = [1, 1]} : vector<128x18xf32> to vector<128x14xf32>
    %cst_105 = arith.constant dense<0.000000e+00> : vector<256x14xf32>
    %157 = tpu.matmul %129, %156, %cst_105 {dimension_numbers = #tpu.dot_dimension_numbers<[1], [0], [0], [1], [0, 0, 1, 1], [], []>} : vector<256x128xf32>, vector<128x14xf32>, vector<256x14xf32> -> vector<256x14xf32>
    %158 = arith.addf %155, %157 : vector<256x14xf32>
    %159 = vector.extract_strided_slice %153 {offsets = [0, 2], sizes = [128, 14], strides = [1, 1]} : vector<128x18xf32> to vector<128x14xf32>
    %cst_106 = arith.constant dense<0.000000e+00> : vector<256x14xf32>
    %160 = tpu.matmul %131, %159, %cst_106 {dimension_numbers = #tpu.dot_dimension_numbers<[1], [0], [0], [1], [0, 0, 1, 1], [], []>} : vector<256x128xf32>, vector<128x14xf32>, vector<256x14xf32> -> vector<256x14xf32>
    %161 = arith.addf %158, %160 : vector<256x14xf32>
    %162 = vector.extract_strided_slice %153 {offsets = [0, 3], sizes = [128, 14], strides = [1, 1]} : vector<128x18xf32> to vector<128x14xf32>
    %cst_107 = arith.constant dense<0.000000e+00> : vector<256x14xf32>
    %163 = tpu.matmul %133, %162, %cst_107 {dimension_numbers = #tpu.dot_dimension_numbers<[1], [0], [0], [1], [0, 0, 1, 1], [], []>} : vector<256x128xf32>, vector<128x14xf32>, vector<256x14xf32> -> vector<256x14xf32>
    %164 = arith.addf %161, %163 : vector<256x14xf32>
    %165 = vector.extract_strided_slice %153 {offsets = [0, 4], sizes = [128, 14], strides = [1, 1]} : vector<128x18xf32> to vector<128x14xf32>
    %cst_108 = arith.constant dense<0.000000e+00> : vector<256x14xf32>
    %166 = tpu.matmul %135, %165, %cst_108 {dimension_numbers = #tpu.dot_dimension_numbers<[1], [0], [0], [1], [0, 0, 1, 1], [], []>} : vector<256x128xf32>, vector<128x14xf32>, vector<256x14xf32> -> vector<256x14xf32>
    %167 = arith.addf %164, %166 : vector<256x14xf32>
    %cst_109 = arith.constant dense<0.000000e+00> : vector<256xf32>
    %168 = vector.multi_reduction <add>, %151, %cst_109 [1] : vector<256x14xf32> to vector<256xf32>
    %169 = vector.shape_cast %168 : vector<256xf32> to vector<256x1xf32>
    %cst_110 = arith.constant 0.000000e+00 : f32
    %170 = vector.broadcast %cst_110 : f32 to vector<256x1xf32>
    %171 = arith.addf %170, %169 : vector<256x1xf32>
    %cst_111 = arith.constant dense<0.000000e+00> : vector<256xf32>
    %172 = vector.multi_reduction <add>, %167, %cst_111 [1] : vector<256x14xf32> to vector<256xf32>
    %173 = vector.shape_cast %172 : vector<256xf32> to vector<256x1xf32>
    %174 = arith.addf %171, %173 : vector<256x1xf32>
    %cst_112 = arith.constant 2.800000e+01 : f32
    %175 = vector.broadcast %cst_112 : f32 to vector<256x1xf32>
    %176 = arith.divf %174, %175 : vector<256x1xf32>
    %177 = vector.broadcast %176 : vector<256x1xf32> to vector<256x14xf32>
    %178 = arith.subf %151, %177 : vector<256x14xf32>
    %179 = vector.broadcast %176 : vector<256x1xf32> to vector<256x14xf32>
    %180 = arith.subf %167, %179 : vector<256x14xf32>
    %181 = arith.mulf %178, %178 : vector<256x14xf32>
    %cst_113 = arith.constant dense<0.000000e+00> : vector<256xf32>
    %182 = vector.multi_reduction <add>, %181, %cst_113 [1] : vector<256x14xf32> to vector<256xf32>
    %183 = vector.shape_cast %182 : vector<256xf32> to vector<256x1xf32>
    %cst_114 = arith.constant 0.000000e+00 : f32
    %184 = vector.broadcast %cst_114 : f32 to vector<256x1xf32>
    %185 = arith.addf %184, %183 : vector<256x1xf32>
    %186 = arith.mulf %180, %180 : vector<256x14xf32>
    %cst_115 = arith.constant dense<0.000000e+00> : vector<256xf32>
    %187 = vector.multi_reduction <add>, %186, %cst_115 [1] : vector<256x14xf32> to vector<256xf32>
    %188 = vector.shape_cast %187 : vector<256xf32> to vector<256x1xf32>
    %189 = arith.addf %185, %188 : vector<256x1xf32>
    %cst_116 = arith.constant 2.800000e+01 : f32
    %190 = vector.broadcast %cst_116 : f32 to vector<256x1xf32>
    %191 = arith.divf %189, %190 : vector<256x1xf32>
    %cst_117 = arith.constant 9.99999974E-6 : f32
    %192 = vector.broadcast %cst_117 : f32 to vector<256x1xf32>
    %193 = arith.addf %191, %192 : vector<256x1xf32>
    %194 = math.rsqrt %193 : vector<256x1xf32>
    %c0_118 = arith.constant 0 : index
    %c0_119 = arith.constant 0 : index
    %195 = vector.load %arg5[%c0_118, %c0_119] : memref<256x1xf32, #tpu.memory_space<vmem>>, vector<256x1xf32>
    %196 = arith.mulf %194, %195 : vector<256x1xf32>
    %c0_120 = arith.constant 0 : index
    %c0_121 = arith.constant 0 : index
    %197 = vector.load %arg6[%c0_120, %c0_121] : memref<256x1xf32, #tpu.memory_space<vmem>>, vector<256x1xf32>
    %198 = vector.broadcast %196 : vector<256x1xf32> to vector<256x14xf32>
    %199 = arith.mulf %178, %198 : vector<256x14xf32>
    %200 = vector.broadcast %197 : vector<256x1xf32> to vector<256x14xf32>
    %201 = arith.addf %199, %200 : vector<256x14xf32>
    %202 = arith.negf %201 : vector<256x14xf32>
    %203 = math.exp %202 : vector<256x14xf32>
    %cst_122 = arith.constant 1.000000e+00 : f32
    %204 = vector.broadcast %cst_122 : f32 to vector<256x14xf32>
    %205 = arith.addf %204, %203 : vector<256x14xf32>
    %206 = arith.divf %204, %205 : vector<256x14xf32>
    %c0_123 = arith.constant 0 : index
    %c0_124 = arith.constant 0 : index
    %c0_125 = arith.constant 0 : index
    %207 = vector.load %arg13[%c0_123, %c0_124, %c0_125] : memref<2x256x14xf32, #tpu.memory_space<vmem>>, vector<1x256x14xf32>
    %208 = vector.shape_cast %207 : vector<1x256x14xf32> to vector<256x14xf32>
    %209 = vector.shape_cast %206 : vector<256x14xf32> to vector<1x256x14xf32>
    tpu.vector_store %arg13[%c0_123, %c0_124, %c0_125], %209 {strides = array<i32>} : memref<2x256x14xf32, #tpu.memory_space<vmem>>, vector<1x256x14xf32>,
    %210 = vector.broadcast %196 : vector<256x1xf32> to vector<256x14xf32>
    %211 = arith.mulf %180, %210 : vector<256x14xf32>
    %212 = vector.broadcast %197 : vector<256x1xf32> to vector<256x14xf32>
    %213 = arith.addf %211, %212 : vector<256x14xf32>
    %214 = arith.negf %213 : vector<256x14xf32>
    %215 = math.exp %214 : vector<256x14xf32>
    %cst_126 = arith.constant 1.000000e+00 : f32
    %216 = vector.broadcast %cst_126 : f32 to vector<256x14xf32>
    %217 = arith.addf %216, %215 : vector<256x14xf32>
    %218 = arith.divf %216, %217 : vector<256x14xf32>
    %c1_127 = arith.constant 1 : index
    %c0_128 = arith.constant 0 : index
    %c0_129 = arith.constant 0 : index
    %219 = vector.load %arg13[%c1_127, %c0_128, %c0_129] : memref<2x256x14xf32, #tpu.memory_space<vmem>>, vector<1x256x14xf32>
    %220 = vector.shape_cast %219 : vector<1x256x14xf32> to vector<256x14xf32>
    %221 = vector.shape_cast %218 : vector<256x14xf32> to vector<1x256x14xf32>
    tpu.vector_store %arg13[%c1_127, %c0_128, %c0_129], %221 {strides = array<i32>} : memref<2x256x14xf32, #tpu.memory_space<vmem>>, vector<1x256x14xf32>,
    %c0_130 = arith.constant 0 : index
    %c0_131 = arith.constant 0 : index
    %c2_132 = arith.constant 2 : index
    %222 = vector.load %arg18[%c0_130, %c0_131, %c2_132] : memref<2x256x18xf32, #tpu.memory_space<vmem>>, vector<1x256x14xf32>
    %223 = vector.shape_cast %222 : vector<1x256x14xf32> to vector<256x14xf32>
    %224 = vector.shape_cast %206 : vector<256x14xf32> to vector<1x256x14xf32>
    tpu.vector_store %arg18[%c0_130, %c0_131, %c2_132], %224 {strides = array<i32>} : memref<2x256x18xf32, #tpu.memory_space<vmem>>, vector<1x256x14xf32>,
    %c1_133 = arith.constant 1 : index
    %c0_134 = arith.constant 0 : index
    %c2_135 = arith.constant 2 : index
    %225 = vector.load %arg18[%c1_133, %c0_134, %c2_135] : memref<2x256x18xf32, #tpu.memory_space<vmem>>, vector<1x256x14xf32>
    %226 = vector.shape_cast %225 : vector<1x256x14xf32> to vector<256x14xf32>
    %227 = vector.shape_cast %218 : vector<256x14xf32> to vector<1x256x14xf32>
    tpu.vector_store %arg18[%c1_133, %c0_134, %c2_135], %227 {strides = array<i32>} : memref<2x256x18xf32, #tpu.memory_space<vmem>>, vector<1x256x14xf32>,
    %c0_136 = arith.constant 0 : index
    %c0_137 = arith.constant 0 : index
    %c0_138 = arith.constant 0 : index
    %228 = vector.load %arg7[%c0_136, %c0_137, %c0_138] : memref<3x128x256xf32, #tpu.memory_space<vmem>>, vector<1x128x256xf32>
    %229 = vector.shape_cast %228 : vector<1x128x256xf32> to vector<128x256xf32>
    %c1_139 = arith.constant 1 : index
    %c0_140 = arith.constant 0 : index
    %c0_141 = arith.constant 0 : index
    %230 = vector.load %arg7[%c1_139, %c0_140, %c0_141] : memref<3x128x256xf32, #tpu.memory_space<vmem>>, vector<1x128x256xf32>
    %231 = vector.shape_cast %230 : vector<1x128x256xf32> to vector<128x256xf32>
    %c2_142 = arith.constant 2 : index
    %c0_143 = arith.constant 0 : index
    %c0_144 = arith.constant 0 : index
    %232 = vector.load %arg7[%c2_142, %c0_143, %c0_144] : memref<3x128x256xf32, #tpu.memory_space<vmem>>, vector<1x128x256xf32>
    %233 = vector.shape_cast %232 : vector<1x128x256xf32> to vector<128x256xf32>
    %c0_145 = arith.constant 0 : index
    %c0_146 = arith.constant 0 : index
    %c0_147 = arith.constant 0 : index
    %234 = vector.load %arg18[%c0_145, %c0_146, %c0_147] : memref<2x256x18xf32, #tpu.memory_space<vmem>>, vector<1x256x18xf32>
    %235 = vector.shape_cast %234 : vector<1x256x18xf32> to vector<256x18xf32>
    %236 = vector.extract_strided_slice %235 {offsets = [0, 0], sizes = [256, 16], strides = [1, 1]} : vector<256x18xf32> to vector<256x16xf32>
    %cst_148 = arith.constant dense<0.000000e+00> : vector<128x16xf32>
    %237 = tpu.matmul %229, %236, %cst_148 {dimension_numbers = #tpu.dot_dimension_numbers<[1], [0], [0], [1], [0, 0, 1, 1], [], []>} : vector<128x256xf32>, vector<256x16xf32>, vector<128x16xf32> -> vector<128x16xf32>
    %238 = vector.extract_strided_slice %235 {offsets = [0, 1], sizes = [256, 16], strides = [1, 1]} : vector<256x18xf32> to vector<256x16xf32>
    %cst_149 = arith.constant dense<0.000000e+00> : vector<128x16xf32>
    %239 = tpu.matmul %231, %238, %cst_149 {dimension_numbers = #tpu.dot_dimension_numbers<[1], [0], [0], [1], [0, 0, 1, 1], [], []>} : vector<128x256xf32>, vector<256x16xf32>, vector<128x16xf32> -> vector<128x16xf32>
    %240 = arith.addf %237, %239 : vector<128x16xf32>
    %241 = vector.extract_strided_slice %235 {offsets = [0, 2], sizes = [256, 16], strides = [1, 1]} : vector<256x18xf32> to vector<256x16xf32>
    %cst_150 = arith.constant dense<0.000000e+00> : vector<128x16xf32>
    %242 = tpu.matmul %233, %241, %cst_150 {dimension_numbers = #tpu.dot_dimension_numbers<[1], [0], [0], [1], [0, 0, 1, 1], [], []>} : vector<128x256xf32>, vector<256x16xf32>, vector<128x16xf32> -> vector<128x16xf32>
    %243 = arith.addf %240, %242 : vector<128x16xf32>
    %c1_151 = arith.constant 1 : index
    %c0_152 = arith.constant 0 : index
    %c0_153 = arith.constant 0 : index
    %244 = vector.load %arg18[%c1_151, %c0_152, %c0_153] : memref<2x256x18xf32, #tpu.memory_space<vmem>>, vector<1x256x18xf32>
    %245 = vector.shape_cast %244 : vector<1x256x18xf32> to vector<256x18xf32>
    %246 = vector.extract_strided_slice %245 {offsets = [0, 0], sizes = [256, 16], strides = [1, 1]} : vector<256x18xf32> to vector<256x16xf32>
    %cst_154 = arith.constant dense<0.000000e+00> : vector<128x16xf32>
    %247 = tpu.matmul %229, %246, %cst_154 {dimension_numbers = #tpu.dot_dimension_numbers<[1], [0], [0], [1], [0, 0, 1, 1], [], []>} : vector<128x256xf32>, vector<256x16xf32>, vector<128x16xf32> -> vector<128x16xf32>
    %248 = vector.extract_strided_slice %245 {offsets = [0, 1], sizes = [256, 16], strides = [1, 1]} : vector<256x18xf32> to vector<256x16xf32>
    %cst_155 = arith.constant dense<0.000000e+00> : vector<128x16xf32>
    %249 = tpu.matmul %231, %248, %cst_155 {dimension_numbers = #tpu.dot_dimension_numbers<[1], [0], [0], [1], [0, 0, 1, 1], [], []>} : vector<128x256xf32>, vector<256x16xf32>, vector<128x16xf32> -> vector<128x16xf32>
    %250 = arith.addf %247, %249 : vector<128x16xf32>
    %251 = vector.extract_strided_slice %245 {offsets = [0, 2], sizes = [256, 16], strides = [1, 1]} : vector<256x18xf32> to vector<256x16xf32>
    %cst_156 = arith.constant dense<0.000000e+00> : vector<128x16xf32>
    %252 = tpu.matmul %233, %251, %cst_156 {dimension_numbers = #tpu.dot_dimension_numbers<[1], [0], [0], [1], [0, 0, 1, 1], [], []>} : vector<128x256xf32>, vector<256x16xf32>, vector<128x16xf32> -> vector<128x16xf32>
    %253 = arith.addf %250, %252 : vector<128x16xf32>
    %cst_157 = arith.constant dense<0.000000e+00> : vector<128xf32>
    %254 = vector.multi_reduction <add>, %243, %cst_157 [1] : vector<128x16xf32> to vector<128xf32>
    %255 = vector.shape_cast %254 : vector<128xf32> to vector<128x1xf32>
    %cst_158 = arith.constant 0.000000e+00 : f32
    %256 = vector.broadcast %cst_158 : f32 to vector<128x1xf32>
    %257 = arith.addf %256, %255 : vector<128x1xf32>
    %cst_159 = arith.constant dense<0.000000e+00> : vector<128xf32>
    %258 = vector.multi_reduction <add>, %253, %cst_159 [1] : vector<128x16xf32> to vector<128xf32>
    %259 = vector.shape_cast %258 : vector<128xf32> to vector<128x1xf32>
    %260 = arith.addf %257, %259 : vector<128x1xf32>
    %cst_160 = arith.constant 3.200000e+01 : f32
    %261 = vector.broadcast %cst_160 : f32 to vector<128x1xf32>
    %262 = arith.divf %260, %261 : vector<128x1xf32>
    %263 = vector.broadcast %262 : vector<128x1xf32> to vector<128x16xf32>
    %264 = arith.subf %243, %263 : vector<128x16xf32>
    %265 = vector.broadcast %262 : vector<128x1xf32> to vector<128x16xf32>
    %266 = arith.subf %253, %265 : vector<128x16xf32>
    %267 = arith.mulf %264, %264 : vector<128x16xf32>
    %cst_161 = arith.constant dense<0.000000e+00> : vector<128xf32>
    %268 = vector.multi_reduction <add>, %267, %cst_161 [1] : vector<128x16xf32> to vector<128xf32>
    %269 = vector.shape_cast %268 : vector<128xf32> to vector<128x1xf32>
    %cst_162 = arith.constant 0.000000e+00 : f32
    %270 = vector.broadcast %cst_162 : f32 to vector<128x1xf32>
    %271 = arith.addf %270, %269 : vector<128x1xf32>
    %272 = arith.mulf %266, %266 : vector<128x16xf32>
    %cst_163 = arith.constant dense<0.000000e+00> : vector<128xf32>
    %273 = vector.multi_reduction <add>, %272, %cst_163 [1] : vector<128x16xf32> to vector<128xf32>
    %274 = vector.shape_cast %273 : vector<128xf32> to vector<128x1xf32>
    %275 = arith.addf %271, %274 : vector<128x1xf32>
    %cst_164 = arith.constant 3.200000e+01 : f32
    %276 = vector.broadcast %cst_164 : f32 to vector<128x1xf32>
    %277 = arith.divf %275, %276 : vector<128x1xf32>
    %cst_165 = arith.constant 9.99999974E-6 : f32
    %278 = vector.broadcast %cst_165 : f32 to vector<128x1xf32>
    %279 = arith.addf %277, %278 : vector<128x1xf32>
    %280 = math.rsqrt %279 : vector<128x1xf32>
    %c0_166 = arith.constant 0 : index
    %c0_167 = arith.constant 0 : index
    %281 = vector.load %arg8[%c0_166, %c0_167] : memref<128x1xf32, #tpu.memory_space<vmem>>, vector<128x1xf32>
    %282 = arith.mulf %280, %281 : vector<128x1xf32>
    %c0_168 = arith.constant 0 : index
    %c0_169 = arith.constant 0 : index
    %283 = vector.load %arg9[%c0_168, %c0_169] : memref<128x1xf32, #tpu.memory_space<vmem>>, vector<128x1xf32>
    %284 = vector.broadcast %282 : vector<128x1xf32> to vector<128x16xf32>
    %285 = arith.mulf %264, %284 : vector<128x16xf32>
    %286 = vector.broadcast %283 : vector<128x1xf32> to vector<128x16xf32>
    %287 = arith.addf %285, %286 : vector<128x16xf32>
    %288 = arith.negf %287 : vector<128x16xf32>
    %289 = math.exp %288 : vector<128x16xf32>
    %cst_170 = arith.constant 1.000000e+00 : f32
    %290 = vector.broadcast %cst_170 : f32 to vector<128x16xf32>
    %291 = arith.addf %290, %289 : vector<128x16xf32>
    %292 = arith.divf %290, %291 : vector<128x16xf32>
    %c0_171 = arith.constant 0 : index
    %c0_172 = arith.constant 0 : index
    %c0_173 = arith.constant 0 : index
    %293 = vector.load %arg14[%c0_171, %c0_172, %c0_173] : memref<2x128x16xf32, #tpu.memory_space<vmem>>, vector<1x128x16xf32>
    %294 = vector.shape_cast %293 : vector<1x128x16xf32> to vector<128x16xf32>
    %295 = vector.shape_cast %292 : vector<128x16xf32> to vector<1x128x16xf32>
    tpu.vector_store %arg14[%c0_171, %c0_172, %c0_173], %295 {strides = array<i32>} : memref<2x128x16xf32, #tpu.memory_space<vmem>>, vector<1x128x16xf32>,
    %296 = vector.broadcast %282 : vector<128x1xf32> to vector<128x16xf32>
    %297 = arith.mulf %266, %296 : vector<128x16xf32>
    %298 = vector.broadcast %283 : vector<128x1xf32> to vector<128x16xf32>
    %299 = arith.addf %297, %298 : vector<128x16xf32>
    %300 = arith.negf %299 : vector<128x16xf32>
    %301 = math.exp %300 : vector<128x16xf32>
    %cst_174 = arith.constant 1.000000e+00 : f32
    %302 = vector.broadcast %cst_174 : f32 to vector<128x16xf32>
    %303 = arith.addf %302, %301 : vector<128x16xf32>
    %304 = arith.divf %302, %303 : vector<128x16xf32>
    %c1_175 = arith.constant 1 : index
    %c0_176 = arith.constant 0 : index
    %c0_177 = arith.constant 0 : index
    %305 = vector.load %arg14[%c1_175, %c0_176, %c0_177] : memref<2x128x16xf32, #tpu.memory_space<vmem>>, vector<1x128x16xf32>
    %306 = vector.shape_cast %305 : vector<1x128x16xf32> to vector<128x16xf32>
    %307 = vector.shape_cast %304 : vector<128x16xf32> to vector<1x128x16xf32>
    tpu.vector_store %arg14[%c1_175, %c0_176, %c0_177], %307 {strides = array<i32>} : memref<2x128x16xf32, #tpu.memory_space<vmem>>, vector<1x128x16xf32>,
    %cst_178 = arith.constant 6.250000e-02 : f32
    %308 = vector.broadcast %cst_178 : f32 to vector<1x16xf32>
    %309 = tpu.iota {dimensions = array<i32: 0>} : vector<2x128xi32>
    %cst_179 = arith.constant dense<0.000000e+00> : vector<1x128xf32>
    %310 = tpu.matmul %308, %292, %cst_179 {dimension_numbers = #tpu.dot_dimension_numbers<[1], [1], [0], [0], [0, 0, 1, 0], [], []>} : vector<1x16xf32>, vector<128x16xf32>, vector<1x128xf32> -> vector<1x128xf32>
    %c0_i32 = arith.constant 0 : i32
    %311 = vector.broadcast %c0_i32 : i32 to vector<2x128xi32>
    %312 = arith.cmpi eq, %309, %311 : vector<2x128xi32>
    %cst_180 = arith.constant 0.000000e+00 : f32
    %313 = vector.shape_cast %310 : vector<1x128xf32> to vector<1x128xf32>
    %314 = vector.broadcast %313 : vector<1x128xf32> to vector<2x128xf32>
    %315 = vector.broadcast %cst_180 : f32 to vector<2x128xf32>
    %316 = arith.select %312, %314, %315 : vector<2x128xi1>, vector<2x128xf32>
    %cst_181 = arith.constant dense<0.000000e+00> : vector<1x128xf32>
    %317 = tpu.matmul %308, %304, %cst_181 {dimension_numbers = #tpu.dot_dimension_numbers<[1], [1], [0], [0], [0, 0, 1, 0], [], []>} : vector<1x16xf32>, vector<128x16xf32>, vector<1x128xf32> -> vector<1x128xf32>
    %c1_i32 = arith.constant 1 : i32
    %318 = vector.broadcast %c1_i32 : i32 to vector<2x128xi32>
    %319 = arith.cmpi eq, %309, %318 : vector<2x128xi32>
    %cst_182 = arith.constant 0.000000e+00 : f32
    %320 = vector.shape_cast %317 : vector<1x128xf32> to vector<1x128xf32>
    %321 = vector.broadcast %320 : vector<1x128xf32> to vector<2x128xf32>
    %322 = vector.broadcast %cst_182 : f32 to vector<2x128xf32>
    %323 = arith.select %319, %321, %322 : vector<2x128xi1>, vector<2x128xf32>
    %324 = arith.addf %316, %323 : vector<2x128xf32>
    %c0_183 = arith.constant 0 : index
    %c0_184 = arith.constant 0 : index
    %325 = vector.load %arg10[%c0_183, %c0_184] : memref<128x128xf32, #tpu.memory_space<vmem>>, vector<128x128xf32>
    %cst_185 = arith.constant dense<0.000000e+00> : vector<2x128xf32>
    %326 = tpu.matmul %324, %325, %cst_185 {dimension_numbers = #tpu.dot_dimension_numbers<[1], [1], [0], [0], [0, 0, 1, 0], [], []>} : vector<2x128xf32>, vector<128x128xf32>, vector<2x128xf32> -> vector<2x128xf32>
    %c0_186 = arith.constant 0 : index
    %c0_187 = arith.constant 0 : index
    %327 = vector.load %arg11[%c0_186, %c0_187] : memref<1x128xf32, #tpu.memory_space<vmem>>, vector<1x128xf32>
    %328 = vector.broadcast %327 : vector<1x128xf32> to vector<2x128xf32>
    %329 = arith.addf %326, %328 : vector<2x128xf32>
    %c0_188 = arith.constant 0 : index
    %c0_189 = arith.constant 0 : index
    %330 = vector.load %arg15[%c0_188, %c0_189] : memref<2x128xf32, #tpu.memory_space<vmem>>, vector<2x128xf32>
    tpu.vector_store %arg15[%c0_188, %c0_189], %329 {strides = array<i32>} : memref<2x128xf32, #tpu.memory_space<vmem>>, vector<2x128xf32>,
    return
  }
}

</mosaic_0001>

<llo_original>
// kernel: ordinary_kd_te_fcn_forward.1
$region0: #{ordinary_kd_te_fcn_forward.1}
  #allocation0 [shape = 'u32[]', space=smem, size = 0x4, offset = 0x4, fixed_abs, tag = 'smem constant byte address 0x4 - core index']
  #allocation1 [shape = 'u32[144,128]{1,0:T(1,128)}', space=vmem, size = 0x12000, scoped, tag = 'internal scratch']
  #allocation2 [shape = 'f32[2,4,20]{2,1,0:T(4,128)}', space=vmem, size = 0x1000, scoped, tag = 'scratch operand']
  #allocation3 [shape = 'f32[2,128,18]{2,1,0:T(8,128)}', space=vmem, size = 0x20000, scoped, tag = 'scratch operand']
  #allocation4 [shape = 'f32[2,256,18]{2,1,0:T(8,128)}', space=vmem, size = 0x40000, scoped, tag = 'scratch operand']
  %s0 = inlined_call_operand.vmem [shape: f32[2,4,16], index: 0, kind: input, shape index: {}]
  %s1 = inlined_call_operand.vmem [shape: f32[7,128,4], index: 1, kind: input, shape index: {}]
  %s2 = inlined_call_operand.vmem [shape: f32[128,1], index: 2, kind: input, shape index: {}]
  %s3 = inlined_call_operand.vmem [shape: f32[128,1], index: 3, kind: input, shape index: {}]
  %s4 = inlined_call_operand.vmem [shape: f32[5,256,128], index: 4, kind: input, shape index: {}]
  %s5 = inlined_call_operand.vmem [shape: f32[256,1], index: 5, kind: input, shape index: {}]
  %s6 = inlined_call_operand.vmem [shape: f32[256,1], index: 6, kind: input, shape index: {}]
  %s7 = inlined_call_operand.hbm [shape: f32[3,128,256], index: 7, kind: input, shape index: {}]
  %s8 = inlined_call_operand.vmem [shape: f32[128,1], index: 8, kind: input, shape index: {}]
  %s9 = inlined_call_operand.vmem [shape: f32[128,1], index: 9, kind: input, shape index: {}]
  %s10 = inlined_call_operand.vmem [shape: f32[128,128], index: 10, kind: input, shape index: {}]
  %s11 = inlined_call_operand.vmem [shape: f32[1,128], index: 11, kind: input, shape index: {}]
  %s12 = inlined_call_operand.vmem [shape: f32[2,128,14], index: 12, kind: output, shape index: {0}]
  %s13 = inlined_call_operand.vmem [shape: f32[2,256,14], index: 13, kind: output, shape index: {1}]
  %s14 = inlined_call_operand.vmem [shape: f32[2,128,16], index: 14, kind: output, shape index: {2}]
  %s15 = inlined_call_operand.hbm [shape: f32[2,128], index: 15, kind: output, shape index: {3}]
  %16 = xla_tuple %s12, %s13, %s14, %s15
  %s17 = sld [smem:[#allocation0]]
  $region86: #{ordinary_kd_te_fcn_forward.1} parent=0
    _
  %s19 = ssub.s32 1, %s17
  %s20 = scalar_select 0, %s19, %s17
  $region1: #{ordinary_kd_te_fcn_forward.1} parent=0
    #allocation5 [shape = 'u8[393216]{0}', space=vmem, size = 0x60000, scoped, tag = 'input window, operand 7, single buffered']
    #allocation6 [shape = 's32[1]{0}', space=sflag, size = 0x4, scoped, tag = 'scoped memory for ordinary_kd_te_fcn_forward.1']
    #allocation7 [shape = 's32[1]{0}', space=sflag, size = 0x4, scoped, tag = 'scoped memory for ordinary_kd_te_fcn_forward.1']
    #allocation8 [shape = 'u8[1024]{0}', space=vmem, size = 0x400, scoped, tag = 'output window, operand 3, single buffered']
    %21 = vsyncpa [#allocation6], 0
    %22 = vsyncpa [#allocation7], 0
    // Predicated region
    $region2: #{ordinary_kd_te_fcn_forward.1} parent=1 // pred_check
      _
    $region3: #{ordinary_kd_te_fcn_forward.1} parent=1 // pred_check_branch
      %24 = sbr.rel (0) target = $region5
    $region4: #{ordinary_kd_te_fcn_forward.1} parent=1 // pred_region
      _
    $region5: #{ordinary_kd_te_fcn_forward.1} parent=1 // pred_fallthru
      _
    // Predicated region
    $region6: #{ordinary_kd_te_fcn_forward.1} parent=1 // pred_check
      _
    $region7: #{ordinary_kd_te_fcn_forward.1} parent=1 // pred_check_branch
      %26 = sbr.rel (0) target = $region9
    $region8: #{ordinary_kd_te_fcn_forward.1} parent=1 // pred_region
      _
    $region9: #{ordinary_kd_te_fcn_forward.1} parent=1 // pred_fallthru
      _
    // Predicated region
    $region10: #{ordinary_kd_te_fcn_forward.1} parent=1 // pred_check
      _
    $region11: #{ordinary_kd_te_fcn_forward.1} parent=1 // pred_check_branch
      %28 = sbr.rel (0) target = $region13
    $region12: #{ordinary_kd_te_fcn_forward.1} parent=1 // pred_region
      _
    $region13: #{ordinary_kd_te_fcn_forward.1} parent=1 // pred_fallthru
      _
    // Predicated region
    $region14: #{ordinary_kd_te_fcn_forward.1} parent=1 // pred_check
      _
    $region15: #{ordinary_kd_te_fcn_forward.1} parent=1 // pred_check_branch
      %30 = sbr.rel (0) target = $region17
    $region16: #{ordinary_kd_te_fcn_forward.1} parent=1 // pred_region
      _
    $region17: #{ordinary_kd_te_fcn_forward.1} parent=1 // pred_fallthru
      _
    // Predicated region
    $region18: #{ordinary_kd_te_fcn_forward.1} parent=1 // pred_check
      _
    $region19: #{ordinary_kd_te_fcn_forward.1} parent=1 // pred_check_branch
      %32 = sbr.rel (0) target = $region21
    $region20: #{ordinary_kd_te_fcn_forward.1} parent=1 // pred_region
      _
    $region21: #{ordinary_kd_te_fcn_forward.1} parent=1 // pred_fallthru
      _
    // Predicated region
    $region22: #{ordinary_kd_te_fcn_forward.1} parent=1 // pred_check
      _
    $region23: #{ordinary_kd_te_fcn_forward.1} parent=1 // pred_check_branch
      %34 = sbr.rel (0) target = $region25
    $region24: #{ordinary_kd_te_fcn_forward.1} parent=1 // pred_region
      _
    $region25: #{ordinary_kd_te_fcn_forward.1} parent=1 // pred_fallthru
      _
    // Predicated region
    $region26: #{ordinary_kd_te_fcn_forward.1} parent=1 // pred_check
      _
    $region27: #{ordinary_kd_te_fcn_forward.1} parent=1 // pred_check_branch
      %36 = sbr.rel (0) target = $region29
    $region28: #{ordinary_kd_te_fcn_forward.1} parent=1 // pred_region
      _
    $region29: #{ordinary_kd_te_fcn_forward.1} parent=1 // pred_fallthru
      _
    // Predicated region
    $region30: #{ordinary_kd_te_fcn_forward.1} parent=1 // pred_check
      _
    $region31: #{ordinary_kd_te_fcn_forward.1} parent=1 // pred_check_branch
      %38 = sbr.rel (0) target = $region33
    $region32: #{ordinary_kd_te_fcn_forward.1} parent=1 // pred_region
      %s40 = ssub.s32 12288, 12288
      %41 = vsyncadd [#allocation6], %s40
      %s42 = sshll.u32 [#allocation5], 4
      %s43 = int_to_ptr.vmem [resolvable:$true] %s42
      %48 = dma.hbm_to_vmem [thread:$0]  %s7, 12288, %s43, [#allocation6], 256, 256, 16
    $region33: #{ordinary_kd_te_fcn_forward.1} parent=1 // pred_fallthru
      _
    // Predicated region
    $region34: #{ordinary_kd_te_fcn_forward.1} parent=1 // pred_check
      _
    $region35: #{ordinary_kd_te_fcn_forward.1} parent=1 // pred_check_branch
      %50 = sbr.rel (0) target = $region37
    $region36: #{ordinary_kd_te_fcn_forward.1} parent=1 // pred_region
      _
    $region37: #{ordinary_kd_te_fcn_forward.1} parent=1 // pred_fallthru
      _
    // Predicated region
    $region38: #{ordinary_kd_te_fcn_forward.1} parent=1 // pred_check
      _
    $region39: #{ordinary_kd_te_fcn_forward.1} parent=1 // pred_check_branch
      %52 = sbr.rel (0) target = $region41
    $region40: #{ordinary_kd_te_fcn_forward.1} parent=1 // pred_region
      _
    $region41: #{ordinary_kd_te_fcn_forward.1} parent=1 // pred_fallthru
      _
    // Predicated region
    $region42: #{ordinary_kd_te_fcn_forward.1} parent=1 // pred_check
      _
    $region43: #{ordinary_kd_te_fcn_forward.1} parent=1 // pred_check_branch
      %54 = sbr.rel (0) target = $region45
    $region44: #{ordinary_kd_te_fcn_forward.1} parent=1 // pred_region
      _
    $region45: #{ordinary_kd_te_fcn_forward.1} parent=1 // pred_fallthru
      _
    // Predicated region
    $region46: #{ordinary_kd_te_fcn_forward.1} parent=1 // pred_check
      _
    $region47: #{ordinary_kd_te_fcn_forward.1} parent=1 // pred_check_branch
      %56 = sbr.rel (0) target = $region49
    $region48: #{ordinary_kd_te_fcn_forward.1} parent=1 // pred_region
      _
    $region49: #{ordinary_kd_te_fcn_forward.1} parent=1 // pred_fallthru
      _
    // Predicated region
    $region50: #{ordinary_kd_te_fcn_forward.1} parent=1 // pred_check
      _
    $region51: #{ordinary_kd_te_fcn_forward.1} parent=1 // pred_check_branch
      %58 = sbr.rel (0) target = $region53
    $region52: #{ordinary_kd_te_fcn_forward.1} parent=1 // pred_region
      %59 = dma.done [#allocation6], 12288
    $region53: #{ordinary_kd_te_fcn_forward.1} parent=1 // pred_fallthru
      _
    %vm60 = vcmask 158720
    %61 = vst.msk [vmem:[#allocation2] sm:$0xf] %vm60, 0.0
    %62 = vst.msk [vmem:[#allocation2 + $0x4] sm:$0xf] %vm60, 0.0
    %vm63 = vcmask 146432
    %64 = vst.msk [vmem:[#allocation3] sm:$0xff] %vm63, 0.0
    %65 = vst.msk [vmem:[#allocation3 + $0x8] sm:$0xff] %vm63, 0.0
    %66 = vst.msk [vmem:[#allocation3 + $0x10] sm:$0xff] %vm63, 0.0
    %67 = vst.msk [vmem:[#allocation3 + $0x18] sm:$0xff] %vm63, 0.0
    %68 = vst.msk [vmem:[#allocation3 + $0x20] sm:$0xff] %vm63, 0.0
    %69 = vst.msk [vmem:[#allocation3 + $0x28] sm:$0xff] %vm63, 0.0
    %70 = vst.msk [vmem:[#allocation3 + $0x30] sm:$0xff] %vm63, 0.0
    %71 = vst.msk [vmem:[#allocation3 + $0x38] sm:$0xff] %vm63, 0.0
    %72 = vst.msk [vmem:[#allocation3 + $0x40] sm:$0xff] %vm63, 0.0
    %73 = vst.msk [vmem:[#allocation3 + $0x48] sm:$0xff] %vm63, 0.0
    %74 = vst.msk [vmem:[#allocation3 + $0x50] sm:$0xff] %vm63, 0.0
    %75 = vst.msk [vmem:[#allocation3 + $0x58] sm:$0xff] %vm63, 0.0
    %76 = vst.msk [vmem:[#allocation3 + $0x60] sm:$0xff] %vm63, 0.0
    %77 = vst.msk [vmem:[#allocation3 + $0x68] sm:$0xff] %vm63, 0.0
    %78 = vst.msk [vmem:[#allocation3 + $0x70] sm:$0xff] %vm63, 0.0
    %79 = vst.msk [vmem:[#allocation3 + $0x78] sm:$0xff] %vm63, 0.0
    %80 = vst.msk [vmem:[#allocation3 + $0x80] sm:$0xff] %vm63, 0.0
    %81 = vst.msk [vmem:[#allocation3 + $0x88] sm:$0xff] %vm63, 0.0
    %82 = vst.msk [vmem:[#allocation3 + $0x90] sm:$0xff] %vm63, 0.0
    %83 = vst.msk [vmem:[#allocation3 + $0x98] sm:$0xff] %vm63, 0.0
    %84 = vst.msk [vmem:[#allocation3 + $0xa0] sm:$0xff] %vm63, 0.0
    %85 = vst.msk [vmem:[#allocation3 + $0xa8] sm:$0xff] %vm63, 0.0
    %86 = vst.msk [vmem:[#allocation3 + $0xb0] sm:$0xff] %vm63, 0.0
    %87 = vst.msk [vmem:[#allocation3 + $0xb8] sm:$0xff] %vm63, 0.0
    %88 = vst.msk [vmem:[#allocation3 + $0xc0] sm:$0xff] %vm63, 0.0
    %89 = vst.msk [vmem:[#allocation3 + $0xc8] sm:$0xff] %vm63, 0.0
    %90 = vst.msk [vmem:[#allocation3 + $0xd0] sm:$0xff] %vm63, 0.0
    %91 = vst.msk [vmem:[#allocation3 + $0xd8] sm:$0xff] %vm63, 0.0
    %92 = vst.msk [vmem:[#allocation3 + $0xe0] sm:$0xff] %vm63, 0.0
    %93 = vst.msk [vmem:[#allocation3 + $0xe8] sm:$0xff] %vm63, 0.0
    %94 = vst.msk [vmem:[#allocation3 + $0xf0] sm:$0xff] %vm63, 0.0
    %95 = vst.msk [vmem:[#allocation3 + $0xf8] sm:$0xff] %vm63, 0.0
    %96 = vst.msk [vmem:[#allocation4] sm:$0xff] %vm63, 0.0
    %97 = vst.msk [vmem:[#allocation4 + $0x8] sm:$0xff] %vm63, 0.0
    %98 = vst.msk [vmem:[#allocation4 + $0x10] sm:$0xff] %vm63, 0.0
    %99 = vst.msk [vmem:[#allocation4 + $0x18] sm:$0xff] %vm63, 0.0
    %100 = vst.msk [vmem:[#allocation4 + $0x20] sm:$0xff] %vm63, 0.0
    %101 = vst.msk [vmem:[#allocation4 + $0x28] sm:$0xff] %vm63, 0.0
    %102 = vst.msk [vmem:[#allocation4 + $0x30] sm:$0xff] %vm63, 0.0
    %103 = vst.msk [vmem:[#allocation4 + $0x38] sm:$0xff] %vm63, 0.0
    %104 = vst.msk [vmem:[#allocation4 + $0x40] sm:$0xff] %vm63, 0.0
    %105 = vst.msk [vmem:[#allocation4 + $0x48] sm:$0xff] %vm63, 0.0
    %106 = vst.msk [vmem:[#allocation4 + $0x50] sm:$0xff] %vm63, 0.0
    %107 = vst.msk [vmem:[#allocation4 + $0x58] sm:$0xff] %vm63, 0.0
    %108 = vst.msk [vmem:[#allocation4 + $0x60] sm:$0xff] %vm63, 0.0
    %109 = vst.msk [vmem:[#allocation4 + $0x68] sm:$0xff] %vm63, 0.0
    %110 = vst.msk [vmem:[#allocation4 + $0x70] sm:$0xff] %vm63, 0.0
    %111 = vst.msk [vmem:[#allocation4 + $0x78] sm:$0xff] %vm63, 0.0
    %112 = vst.msk [vmem:[#allocation4 + $0x80] sm:$0xff] %vm63, 0.0
    %113 = vst.msk [vmem:[#allocation4 + $0x88] sm:$0xff] %vm63, 0.0
    %114 = vst.msk [vmem:[#allocation4 + $0x90] sm:$0xff] %vm63, 0.0
    %115 = vst.msk [vmem:[#allocation4 + $0x98] sm:$0xff] %vm63, 0.0
    %116 = vst.msk [vmem:[#allocation4 + $0xa0] sm:$0xff] %vm63, 0.0
    %117 = vst.msk [vmem:[#allocation4 + $0xa8] sm:$0xff] %vm63, 0.0
    %118 = vst.msk [vmem:[#allocation4 + $0xb0] sm:$0xff] %vm63, 0.0
    %119 = vst.msk [vmem:[#allocation4 + $0xb8] sm:$0xff] %vm63, 0.0
    %120 = vst.msk [vmem:[#allocation4 + $0xc0] sm:$0xff] %vm63, 0.0
    %121 = vst.msk [vmem:[#allocation4 + $0xc8] sm:$0xff] %vm63, 0.0
    %122 = vst.msk [vmem:[#allocation4 + $0xd0] sm:$0xff] %vm63, 0.0
    %123 = vst.msk [vmem:[#allocation4 + $0xd8] sm:$0xff] %vm63, 0.0
    %124 = vst.msk [vmem:[#allocation4 + $0xe0] sm:$0xff] %vm63, 0.0
    %125 = vst.msk [vmem:[#allocation4 + $0xe8] sm:$0xff] %vm63, 0.0
    %126 = vst.msk [vmem:[#allocation4 + $0xf0] sm:$0xff] %vm63, 0.0
    %127 = vst.msk [vmem:[#allocation4 + $0xf8] sm:$0xff] %vm63, 0.0
    %128 = vst.msk [vmem:[#allocation4 + $0x100] sm:$0xff] %vm63, 0.0
    %129 = vst.msk [vmem:[#allocation4 + $0x108] sm:$0xff] %vm63, 0.0
    %130 = vst.msk [vmem:[#allocation4 + $0x110] sm:$0xff] %vm63, 0.0
    %131 = vst.msk [vmem:[#allocation4 + $0x118] sm:$0xff] %vm63, 0.0
    %132 = vst.msk [vmem:[#allocation4 + $0x120] sm:$0xff] %vm63, 0.0
    %133 = vst.msk [vmem:[#allocation4 + $0x128] sm:$0xff] %vm63, 0.0
    %134 = vst.msk [vmem:[#allocation4 + $0x130] sm:$0xff] %vm63, 0.0
    %135 = vst.msk [vmem:[#allocation4 + $0x138] sm:$0xff] %vm63, 0.0
    %136 = vst.msk [vmem:[#allocation4 + $0x140] sm:$0xff] %vm63, 0.0
    %137 = vst.msk [vmem:[#allocation4 + $0x148] sm:$0xff] %vm63, 0.0
    %138 = vst.msk [vmem:[#allocation4 + $0x150] sm:$0xff] %vm63, 0.0
    %139 = vst.msk [vmem:[#allocation4 + $0x158] sm:$0xff] %vm63, 0.0
    %140 = vst.msk [vmem:[#allocation4 + $0x160] sm:$0xff] %vm63, 0.0
    %141 = vst.msk [vmem:[#allocation4 + $0x168] sm:$0xff] %vm63, 0.0
    %142 = vst.msk [vmem:[#allocation4 + $0x170] sm:$0xff] %vm63, 0.0
    %143 = vst.msk [vmem:[#allocation4 + $0x178] sm:$0xff] %vm63, 0.0
    %144 = vst.msk [vmem:[#allocation4 + $0x180] sm:$0xff] %vm63, 0.0
    %145 = vst.msk [vmem:[#allocation4 + $0x188] sm:$0xff] %vm63, 0.0
    %146 = vst.msk [vmem:[#allocation4 + $0x190] sm:$0xff] %vm63, 0.0
    %147 = vst.msk [vmem:[#allocation4 + $0x198] sm:$0xff] %vm63, 0.0
    %148 = vst.msk [vmem:[#allocation4 + $0x1a0] sm:$0xff] %vm63, 0.0
    %149 = vst.msk [vmem:[#allocation4 + $0x1a8] sm:$0xff] %vm63, 0.0
    %150 = vst.msk [vmem:[#allocation4 + $0x1b0] sm:$0xff] %vm63, 0.0
    %151 = vst.msk [vmem:[#allocation4 + $0x1b8] sm:$0xff] %vm63, 0.0
    %152 = vst.msk [vmem:[#allocation4 + $0x1c0] sm:$0xff] %vm63, 0.0
    %153 = vst.msk [vmem:[#allocation4 + $0x1c8] sm:$0xff] %vm63, 0.0
    %154 = vst.msk [vmem:[#allocation4 + $0x1d0] sm:$0xff] %vm63, 0.0
    %155 = vst.msk [vmem:[#allocation4 + $0x1d8] sm:$0xff] %vm63, 0.0
    %156 = vst.msk [vmem:[#allocation4 + $0x1e0] sm:$0xff] %vm63, 0.0
    %157 = vst.msk [vmem:[#allocation4 + $0x1e8] sm:$0xff] %vm63, 0.0
    %158 = vst.msk [vmem:[#allocation4 + $0x1f0] sm:$0xff] %vm63, 0.0
    %159 = vst.msk [vmem:[#allocation4 + $0x1f8] sm:$0xff] %vm63, 0.0
    %v160 = vld [vmem:[%s0] sm:$0xf]
    %v161 = vld [vmem:[%s0 + $0x4] sm:$0xf]
    %164 = vrot.lane.b32.xlu0 %v160, 2
    %v165 = vpop.permute.xlu0 %164
    %166 = vrot.lane.b32.xlu0 %v161, 2
    %v167 = vpop.permute.xlu0 %166
    %vm170 = vcmask 142352
    %171 = vst.msk [vmem:[#allocation2] sm:$0xf] %vm170, %v165
    %172 = vst.msk [vmem:[#allocation2 + $0x4] sm:$0xf] %vm170, %v167
    %v173 = vld [vmem:[%s1] sm:$0xff]
    %v174 = vld [vmem:[%s1 + $0x8] sm:$0xff]
    %v175 = vld [vmem:[%s1 + $0x10] sm:$0xff]
    %v176 = vld [vmem:[%s1 + $0x18] sm:$0xff]
    %v177 = vld [vmem:[%s1 + $0x20] sm:$0xff]
    %v178 = vld [vmem:[%s1 + $0x28] sm:$0xff]
    %v179 = vld [vmem:[%s1 + $0x30] sm:$0xff]
    %v180 = vld [vmem:[%s1 + $0x38] sm:$0xff]
    %v181 = vld [vmem:[%s1 + $0x40] sm:$0xff]
    %v182 = vld [vmem:[%s1 + $0x48] sm:$0xff]
    %v183 = vld [vmem:[%s1 + $0x50] sm:$0xff]
    %v184 = vld [vmem:[%s1 + $0x58] sm:$0xff]
    %v185 = vld [vmem:[%s1 + $0x60] sm:$0xff]
    %v186 = vld [vmem:[%s1 + $0x68] sm:$0xff]
    %v187 = vld [vmem:[%s1 + $0x70] sm:$0xff]
    %v188 = vld [vmem:[%s1 + $0x78] sm:$0xff]
    %s189 = scalar_lea.vmem %s1, 128
    %v190 = vld [vmem:[%s189] sm:$0xff]
    %v191 = vld [vmem:[%s189 + $0x8] sm:$0xff]
    %v192 = vld [vmem:[%s189 + $0x10] sm:$0xff]
    %v193 = vld [vmem:[%s189 + $0x18] sm:$0xff]
    %v194 = vld [vmem:[%s189 + $0x20] sm:$0xff]
    %v195 = vld [vmem:[%s189 + $0x28] sm:$0xff]
    %v196 = vld [vmem:[%s189 + $0x30] sm:$0xff]
    %v197 = vld [vmem:[%s189 + $0x38] sm:$0xff]
    %v198 = vld [vmem:[%s189 + $0x40] sm:$0xff]
    %v199 = vld [vmem:[%s189 + $0x48] sm:$0xff]
    %v200 = vld [vmem:[%s189 + $0x50] sm:$0xff]
    %v201 = vld [vmem:[%s189 + $0x58] sm:$0xff]
    %v202 = vld [vmem:[%s189 + $0x60] sm:$0xff]
    %v203 = vld [vmem:[%s189 + $0x68] sm:$0xff]
    %v204 = vld [vmem:[%s189 + $0x70] sm:$0xff]
    %v205 = vld [vmem:[%s189 + $0x78] sm:$0xff]
    %s206 = scalar_lea.vmem %s1, 256
    %v207 = vld [vmem:[%s206] sm:$0xff]
    %v208 = vld [vmem:[%s206 + $0x8] sm:$0xff]
    %v209 = vld [vmem:[%s206 + $0x10] sm:$0xff]
    %v210 = vld [vmem:[%s206 + $0x18] sm:$0xff]
    %v211 = vld [vmem:[%s206 + $0x20] sm:$0xff]
    %v212 = vld [vmem:[%s206 + $0x28] sm:$0xff]
    %v213 = vld [vmem:[%s206 + $0x30] sm:$0xff]
    %v214 = vld [vmem:[%s206 + $0x38] sm:$0xff]
    %v215 = vld [vmem:[%s206 + $0x40] sm:$0xff]
    %v216 = vld [vmem:[%s206 + $0x48] sm:$0xff]
    %v217 = vld [vmem:[%s206 + $0x50] sm:$0xff]
    %v218 = vld [vmem:[%s206 + $0x58] sm:$0xff]
    %v219 = vld [vmem:[%s206 + $0x60] sm:$0xff]
    %v220 = vld [vmem:[%s206 + $0x68] sm:$0xff]
    %v221 = vld [vmem:[%s206 + $0x70] sm:$0xff]
    %v222 = vld [vmem:[%s206 + $0x78] sm:$0xff]
    %s223 = scalar_lea.vmem %s1, 384
    %v224 = vld [vmem:[%s223] sm:$0xff]
    %v225 = vld [vmem:[%s223 + $0x8] sm:$0xff]
    %v226 = vld [vmem:[%s223 + $0x10] sm:$0xff]
    %v227 = vld [vmem:[%s223 + $0x18] sm:$0xff]
    %v228 = vld [vmem:[%s223 + $0x20] sm:$0xff]
    %v229 = vld [vmem:[%s223 + $0x28] sm:$0xff]
    %v230 = vld [vmem:[%s223 + $0x30] sm:$0xff]
    %v231 = vld [vmem:[%s223 + $0x38] sm:$0xff]
    %v232 = vld [vmem:[%s223 + $0x40] sm:$0xff]
    %v233 = vld [vmem:[%s223 + $0x48] sm:$0xff]
    %v234 = vld [vmem:[%s223 + $0x50] sm:$0xff]
    %v235 = vld [vmem:[%s223 + $0x58] sm:$0xff]
    %v236 = vld [vmem:[%s223 + $0x60] sm:$0xff]
    %v237 = vld [vmem:[%s223 + $0x68] sm:$0xff]
    %v238 = vld [vmem:[%s223 + $0x70] sm:$0xff]
    %v239 = vld [vmem:[%s223 + $0x78] sm:$0xff]
    %s240 = scalar_lea.vmem %s1, 512
    %v241 = vld [vmem:[%s240] sm:$0xff]
    %v242 = vld [vmem:[%s240 + $0x8] sm:$0xff]
    %v243 = vld [vmem:[%s240 + $0x10] sm:$0xff]
    %v244 = vld [vmem:[%s240 + $0x18] sm:$0xff]
    %v245 = vld [vmem:[%s240 + $0x20] sm:$0xff]
    %v246 = vld [vmem:[%s240 + $0x28] sm:$0xff]
    %v247 = vld [vmem:[%s240 + $0x30] sm:$0xff]
    %v248 = vld [vmem:[%s240 + $0x38] sm:$0xff]
    %v249 = vld [vmem:[%s240 + $0x40] sm:$0xff]
    %v250 = vld [vmem:[%s240 + $0x48] sm:$0xff]
    %v251 = vld [vmem:[%s240 + $0x50] sm:$0xff]
    %v252 = vld [vmem:[%s240 + $0x58] sm:$0xff]
    %v253 = vld [vmem:[%s240 + $0x60] sm:$0xff]
    %v254 = vld [vmem:[%s240 + $0x68] sm:$0xff]
    %v255 = vld [vmem:[%s240 + $0x70] sm:$0xff]
    %v256 = vld [vmem:[%s240 + $0x78] sm:$0xff]
    %s257 = scalar_lea.vmem %s1, 640
    %v258 = vld [vmem:[%s257] sm:$0xff]
    %v259 = vld [vmem:[%s257 + $0x8] sm:$0xff]
    %v260 = vld [vmem:[%s257 + $0x10] sm:$0xff]
    %v261 = vld [vmem:[%s257 + $0x18] sm:$0xff]
    %v262 = vld [vmem:[%s257 + $0x20] sm:$0xff]
    %v263 = vld [vmem:[%s257 + $0x28] sm:$0xff]
    %v264 = vld [vmem:[%s257 + $0x30] sm:$0xff]
    %v265 = vld [vmem:[%s257 + $0x38] sm:$0xff]
    %v266 = vld [vmem:[%s257 + $0x40] sm:$0xff]
    %v267 = vld [vmem:[%s257 + $0x48] sm:$0xff]
    %v268 = vld [vmem:[%s257 + $0x50] sm:$0xff]
    %v269 = vld [vmem:[%s257 + $0x58] sm:$0xff]
    %v270 = vld [vmem:[%s257 + $0x60] sm:$0xff]
    %v271 = vld [vmem:[%s257 + $0x68] sm:$0xff]
    %v272 = vld [vmem:[%s257 + $0x70] sm:$0xff]
    %v273 = vld [vmem:[%s257 + $0x78] sm:$0xff]
    %s274 = scalar_lea.vmem %s1, 768
    %v275 = vld [vmem:[%s274] sm:$0xff]
    %v276 = vld [vmem:[%s274 + $0x8] sm:$0xff]
    %v277 = vld [vmem:[%s274 + $0x10] sm:$0xff]
    %v278 = vld [vmem:[%s274 + $0x18] sm:$0xff]
    %v279 = vld [vmem:[%s274 + $0x20] sm:$0xff]
    %v280 = vld [vmem:[%s274 + $0x28] sm:$0xff]
    %v281 = vld [vmem:[%s274 + $0x30] sm:$0xff]
    %v282 = vld [vmem:[%s274 + $0x38] sm:$0xff]
    %v283 = vld [vmem:[%s274 + $0x40] sm:$0xff]
    %v284 = vld [vmem:[%s274 + $0x48] sm:$0xff]
    %v285 = vld [vmem:[%s274 + $0x50] sm:$0xff]
    %v286 = vld [vmem:[%s274 + $0x58] sm:$0xff]
    %v287 = vld [vmem:[%s274 + $0x60] sm:$0xff]
    %v288 = vld [vmem:[%s274 + $0x68] sm:$0xff]
    %v289 = vld [vmem:[%s274 + $0x70] sm:$0xff]
    %v290 = vld [vmem:[%s274 + $0x78] sm:$0xff]
    %v291 = vld [vmem:[#allocation2] sm:$0xf]
    %293 = vrot.lane.b32.xlu0 %v291, 127
    %v294 = vpop.permute.xlu0 %293
    %vm295 = vcmask 31744
    %v297 = vsel %vm295, %v190, 0
    %v300 = vsel %vm295, %v191, 0
    %v303 = vsel %vm295, %v192, 0
    %v306 = vsel %vm295, %v193, 0
    %v309 = vsel %vm295, %v194, 0
    %v312 = vsel %vm295, %v195, 0
    %v315 = vsel %vm295, %v196, 0
    %v318 = vsel %vm295, %v197, 0
    %v321 = vsel %vm295, %v198, 0
    %v324 = vsel %vm295, %v199, 0
    %v327 = vsel %vm295, %v200, 0
    %v330 = vsel %vm295, %v201, 0
    %v333 = vsel %vm295, %v202, 0
    %v336 = vsel %vm295, %v203, 0
    %v339 = vsel %vm295, %v204, 0
    %v342 = vsel %vm295, %v205, 0
    %vm344 = vcmask 1043456
    %v345 = vsel %vm344, %v294, 0
    %347 = vmatprep.subr.mxu0 0.0
    %348 = vmatpush1.msra.mxu0 %v345
    %349 = vmatprep.subr.mxu0 0.0
    %350 = vmatpush1.msra.mxu0 0.0
    %351 = vmatprep.subr.mxu0 0.0
    %352 = vmatpush1.msra.mxu0 0.0
    %353 = vmatprep.subr.mxu0 0.0
    %354 = vmatpush1.msra.mxu0 0.0
    %355 = vmatprep.subr.mxu0 0.0
    %356 = vmatpush1.msra.mxu0 0.0
    %357 = vmatprep.subr.mxu0 0.0
    %358 = vmatpush1.msra.mxu0 0.0
    %359 = vmatprep.subr.mxu0 0.0
    %360 = vmatpush1.msra.mxu0 0.0
    %361 = vmatprep.subr.mxu0 0.0
    %362 = vmatpush1.msra.mxu0 0.0
    %363 = vmatprep.subr.mxu0 0.0
    %364 = vmatpush1.msra.mxu0 0.0
    %365 = vmatprep.subr.mxu0 0.0
    %366 = vmatpush1.msra.mxu0 0.0
    %367 = vmatprep.subr.mxu0 0.0
    %368 = vmatpush1.msra.mxu0 0.0
    %369 = vmatprep.subr.mxu0 0.0
    %370 = vmatpush1.msra.mxu0 0.0
    %371 = vmatprep.subr.mxu0 0.0
    %372 = vmatpush1.msra.mxu0 0.0
    %373 = vmatprep.subr.mxu0 0.0
    %374 = vmatpush1.msra.mxu0 0.0
    %375 = vmatprep.subr.mxu0 0.0
    %376 = vmatpush1.msra.mxu0 0.0
    %377 = vmatprep.subr.mxu0 0.0
    %378 = vmatpush1.msra.mxu0 0.0
    %379 = vmatprep.subr.mxu0 0.0
    %380 = vmatpush1.msra.mxu0 0.0
    %381 = vmatprep.subr.mxu0 0.0
    %382 = vmatpush1.msra.mxu0 0.0
    %383 = vmatprep.subr.mxu0 0.0
    %384 = vmatpush1.msra.mxu0 0.0
    %385 = vmatprep.subr.mxu0 0.0
    %386 = vmatpush1.msra.mxu0 0.0
    %387 = vmatprep.subr.mxu0 0.0
    %388 = vmatpush1.msra.mxu0 0.0
    %389 = vmatprep.subr.mxu0 0.0
    %390 = vmatpush1.msra.mxu0 0.0
    %391 = vmatprep.subr.mxu0 0.0
    %392 = vmatpush1.msra.mxu0 0.0
    %393 = vmatprep.subr.mxu0 0.0
    %394 = vmatpush1.msra.mxu0 0.0
    %395 = vmatprep.subr.mxu0 0.0
    %396 = vmatpush1.msra.mxu0 0.0
    %397 = vmatprep.subr.mxu0 0.0
    %398 = vmatpush1.msra.mxu0 0.0
    %399 = vmatprep.subr.mxu0 0.0
    %400 = vmatpush1.msra.mxu0 0.0
    %401 = vmatprep.subr.mxu0 0.0
    %402 = vmatpush1.msra.mxu0 0.0
    %403 = vmatprep.subr.mxu0 0.0
    %404 = vmatpush1.msra.mxu0 0.0
    %405 = vmatprep.subr.mxu0 0.0
    %406 = vmatpush1.msra.mxu0 0.0
    %407 = vmatprep.subr.mxu0 0.0
    %408 = vmatpush1.msra.mxu0 0.0
    %409 = vmatprep.subr.mxu0 0.0
    %410 = vmatpush1.msra.mxu0 0.0
    %411 = vmatprep.mubr.f32.mxu0 0.0
    %412 = vmatmul.mubr.f32.gmra.mrb[0].mxu0 %v297
    %v413 = vpop.f32.mrb[0].mxu0
    %v414 = vadd.f32 0.0, %v413
    %v415 = vpop.f32.mrb[0].mxu0
    %416 = vmatprep.mubr.f32.mxu0 0.0
    %417 = vmatmul.mubr.f32.gmra.mrb[0].mxu0 %v300
    %v418 = vpop.f32.mrb[0].mxu0
    %v419 = vadd.f32 0.0, %v418
    %v420 = vpop.f32.mrb[0].mxu0
    %421 = vmatprep.mubr.f32.mxu0 0.0
    %422 = vmatmul.mubr.f32.gmra.mrb[0].mxu0 %v303
    %v423 = vpop.f32.mrb[0].mxu0
    %v424 = vadd.f32 0.0, %v423
    %v425 = vpop.f32.mrb[0].mxu0
    %426 = vmatprep.mubr.f32.mxu0 0.0
    %427 = vmatmul.mubr.f32.gmra.mrb[0].mxu0 %v306
    %v428 = vpop.f32.mrb[0].mxu0
    %v429 = vadd.f32 0.0, %v428
    %v430 = vpop.f32.mrb[0].mxu0
    %431 = vmatprep.mubr.f32.mxu0 0.0
    %432 = vmatmul.mubr.f32.gmra.mrb[0].mxu0 %v309
    %v433 = vpop.f32.mrb[0].mxu0
    %v434 = vadd.f32 0.0, %v433
    %v435 = vpop.f32.mrb[0].mxu0
    %436 = vmatprep.mubr.f32.mxu0 0.0
    %437 = vmatmul.mubr.f32.gmra.mrb[0].mxu0 %v312
    %v438 = vpop.f32.mrb[0].mxu0
    %v439 = vadd.f32 0.0, %v438
    %v440 = vpop.f32.mrb[0].mxu0
    %441 = vmatprep.mubr.f32.mxu0 0.0
    %442 = vmatmul.mubr.f32.gmra.mrb[0].mxu0 %v315
    %v443 = vpop.f32.mrb[0].mxu0
    %v444 = vadd.f32 0.0, %v443
    %v445 = vpop.f32.mrb[0].mxu0
    %446 = vmatprep.mubr.f32.mxu0 0.0
    %447 = vmatmul.mubr.f32.gmra.mrb[0].mxu0 %v318
    %v448 = vpop.f32.mrb[0].mxu0
    %v449 = vadd.f32 0.0, %v448
    %v450 = vpop.f32.mrb[0].mxu0
    %451 = vmatprep.mubr.f32.mxu0 0.0
    %452 = vmatmul.mubr.f32.gmra.mrb[0].mxu0 %v321
    %v453 = vpop.f32.mrb[0].mxu0
    %v454 = vadd.f32 0.0, %v453
    %v455 = vpop.f32.mrb[0].mxu0
    %456 = vmatprep.mubr.f32.mxu0 0.0
    %457 = vmatmul.mubr.f32.gmra.mrb[0].mxu0 %v324
    %v458 = vpop.f32.mrb[0].mxu0
    %v459 = vadd.f32 0.0, %v458
    %v460 = vpop.f32.mrb[0].mxu0
    %461 = vmatprep.mubr.f32.mxu0 0.0
    %462 = vmatmul.mubr.f32.gmra.mrb[0].mxu0 %v327
    %v463 = vpop.f32.mrb[0].mxu0
    %v464 = vadd.f32 0.0, %v463
    %v465 = vpop.f32.mrb[0].mxu0
    %466 = vmatprep.mubr.f32.mxu0 0.0
    %467 = vmatmul.mubr.f32.gmra.mrb[0].mxu0 %v330
    %v468 = vpop.f32.mrb[0].mxu0
    %v469 = vadd.f32 0.0, %v468
    %v470 = vpop.f32.mrb[0].mxu0
    %471 = vmatprep.mubr.f32.mxu0 0.0
    %472 = vmatmul.mubr.f32.gmra.mrb[0].mxu0 %v333
    %v473 = vpop.f32.mrb[0].mxu0
    %v474 = vadd.f32 0.0, %v473
    %v475 = vpop.f32.mrb[0].mxu0
    %476 = vmatprep.mubr.f32.mxu0 0.0
    %477 = vmatmul.mubr.f32.gmra.mrb[0].mxu0 %v336
    %v478 = vpop.f32.mrb[0].mxu0
    %v479 = vadd.f32 0.0, %v478
    %v480 = vpop.f32.mrb[0].mxu0
    %481 = vmatprep.mubr.f32.mxu0 0.0
    %482 = vmatmul.mubr.f32.gmra.mrb[0].mxu0 %v339
    %v483 = vpop.f32.mrb[0].mxu0
    %v484 = vadd.f32 0.0, %v483
    %v485 = vpop.f32.mrb[0].mxu0
    %486 = vmatprep.mubr.f32.mxu0 0.0
    %487 = vmatmul.mubr.f32.gmra.mrb[0].mxu0 %v342
    %v488 = vpop.f32.mrb[0].mxu0
    %v489 = vadd.f32 0.0, %v488
    %v490 = vpop.f32.mrb[0].mxu0
    %491 = vdwg.mxu0
    %v493 = vsel %vm295, %v173, 0
    %v496 = vsel %vm295, %v174, 0
    %v499 = vsel %vm295, %v175, 0
    %v502 = vsel %vm295, %v176, 0
    %v505 = vsel %vm295, %v177, 0
    %v508 = vsel %vm295, %v178, 0
    %v511 = vsel %vm295, %v179, 0
    %v514 = vsel %vm295, %v180, 0
    %v517 = vsel %vm295, %v181, 0
    %v520 = vsel %vm295, %v182, 0
    %v523 = vsel %vm295, %v183, 0
    %v526 = vsel %vm295, %v184, 0
    %v529 = vsel %vm295, %v185, 0
    %v532 = vsel %vm295, %v186, 0
    %v535 = vsel %vm295, %v187, 0
    %v538 = vsel %vm295, %v188, 0
    %v540 = vsel %vm344, %v291, 0
    %542 = vmatprep.subr.mxu0 0.0
    %543 = vmatpush1.msra.mxu0 %v540
    %544 = vmatprep.subr.mxu0 0.0
    %545 = vmatpush1.msra.mxu0 0.0
    %546 = vmatprep.subr.mxu0 0.0
    %547 = vmatpush1.msra.mxu0 0.0
    %548 = vmatprep.subr.mxu0 0.0
    %549 = vmatpush1.msra.mxu0 0.0
    %550 = vmatprep.subr.mxu0 0.0
    %551 = vmatpush1.msra.mxu0 0.0
    %552 = vmatprep.subr.mxu0 0.0
    %553 = vmatpush1.msra.mxu0 0.0
    %554 = vmatprep.subr.mxu0 0.0
    %555 = vmatpush1.msra.mxu0 0.0
    %556 = vmatprep.subr.mxu0 0.0
    %557 = vmatpush1.msra.mxu0 0.0
    %558 = vmatprep.subr.mxu0 0.0
    %559 = vmatpush1.msra.mxu0 0.0
    %560 = vmatprep.subr.mxu0 0.0
    %561 = vmatpush1.msra.mxu0 0.0
    %562 = vmatprep.subr.mxu0 0.0
    %563 = vmatpush1.msra.mxu0 0.0
    %564 = vmatprep.subr.mxu0 0.0
    %565 = vmatpush1.msra.mxu0 0.0
    %566 = vmatprep.subr.mxu0 0.0
    %567 = vmatpush1.msra.mxu0 0.0
    %568 = vmatprep.subr.mxu0 0.0
    %569 = vmatpush1.msra.mxu0 0.0
    %570 = vmatprep.subr.mxu0 0.0
    %571 = vmatpush1.msra.mxu0 0.0
    %572 = vmatprep.subr.mxu0 0.0
    %573 = vmatpush1.msra.mxu0 0.0
    %574 = vmatprep.subr.mxu0 0.0
    %575 = vmatpush1.msra.mxu0 0.0
    %576 = vmatprep.subr.mxu0 0.0
    %577 = vmatpush1.msra.mxu0 0.0
    %578 = vmatprep.subr.mxu0 0.0
    %579 = vmatpush1.msra.mxu0 0.0
    %580 = vmatprep.subr.mxu0 0.0
    %581 = vmatpush1.msra.mxu0 0.0
    %582 = vmatprep.subr.mxu0 0.0
    %583 = vmatpush1.msra.mxu0 0.0
    %584 = vmatprep.subr.mxu0 0.0
    %585 = vmatpush1.msra.mxu0 0.0
    %586 = vmatprep.subr.mxu0 0.0
    %587 = vmatpush1.msra.mxu0 0.0
    %588 = vmatprep.subr.mxu0 0.0
    %589 = vmatpush1.msra.mxu0 0.0
    %590 = vmatprep.subr.mxu0 0.0
    %591 = vmatpush1.msra.mxu0 0.0
    %592 = vmatprep.subr.mxu0 0.0
    %593 = vmatpush1.msra.mxu0 0.0
    %594 = vmatprep.subr.mxu0 0.0
    %595 = vmatpush1.msra.mxu0 0.0
    %596 = vmatprep.subr.mxu0 0.0
    %597 = vmatpush1.msra.mxu0 0.0
    %598 = vmatprep.subr.mxu0 0.0
    %599 = vmatpush1.msra.mxu0 0.0
    %600 = vmatprep.subr.mxu0 0.0
    %601 = vmatpush1.msra.mxu0 0.0
    %602 = vmatprep.subr.mxu0 0.0
    %603 = vmatpush1.msra.mxu0 0.0
    %604 = vmatprep.subr.mxu0 0.0
    %605 = vmatpush1.msra.mxu0 0.0
    %606 = vmatprep.mubr.f32.mxu0 0.0
    %607 = vmatmul.mubr.f32.gmra.mrb[0].mxu0 %v493
    %v608 = vpop.f32.mrb[0].mxu0
    %v609 = vadd.f32 %v414, %v608
    %v610 = vpop.f32.mrb[0].mxu0
    %611 = vmatprep.mubr.f32.mxu0 0.0
    %612 = vmatmul.mubr.f32.gmra.mrb[0].mxu0 %v496
    %v613 = vpop.f32.mrb[0].mxu0
    %v614 = vadd.f32 %v419, %v613
    %v615 = vpop.f32.mrb[0].mxu0
    %616 = vmatprep.mubr.f32.mxu0 0.0
    %617 = vmatmul.mubr.f32.gmra.mrb[0].mxu0 %v499
    %v618 = vpop.f32.mrb[0].mxu0
    %v619 = vadd.f32 %v424, %v618
    %v620 = vpop.f32.mrb[0].mxu0
    %621 = vmatprep.mubr.f32.mxu0 0.0
    %622 = vmatmul.mubr.f32.gmra.mrb[0].mxu0 %v502
    %v623 = vpop.f32.mrb[0].mxu0
    %v624 = vadd.f32 %v429, %v623
    %v625 = vpop.f32.mrb[0].mxu0
    %626 = vmatprep.mubr.f32.mxu0 0.0
    %627 = vmatmul.mubr.f32.gmra.mrb[0].mxu0 %v505
    %v628 = vpop.f32.mrb[0].mxu0
    %v629 = vadd.f32 %v434, %v628
    %v630 = vpop.f32.mrb[0].mxu0
    %631 = vmatprep.mubr.f32.mxu0 0.0
    %632 = vmatmul.mubr.f32.gmra.mrb[0].mxu0 %v508
    %v633 = vpop.f32.mrb[0].mxu0
    %v634 = vadd.f32 %v439, %v633
    %v635 = vpop.f32.mrb[0].mxu0
    %636 = vmatprep.mubr.f32.mxu0 0.0
    %637 = vmatmul.mubr.f32.gmra.mrb[0].mxu0 %v511
    %v638 = vpop.f32.mrb[0].mxu0
    %v639 = vadd.f32 %v444, %v638
    %v640 = vpop.f32.mrb[0].mxu0
    %641 = vmatprep.mubr.f32.mxu0 0.0
    %642 = vmatmul.mubr.f32.gmra.mrb[0].mxu0 %v514
    %v643 = vpop.f32.mrb[0].mxu0
    %v644 = vadd.f32 %v449, %v643
    %v645 = vpop.f32.mrb[0].mxu0
    %646 = vmatprep.mubr.f32.mxu0 0.0
    %647 = vmatmul.mubr.f32.gmra.mrb[0].mxu0 %v517
    %v648 = vpop.f32.mrb[0].mxu0
    %v649 = vadd.f32 %v454, %v648
    %v650 = vpop.f32.mrb[0].mxu0
    %651 = vmatprep.mubr.f32.mxu0 0.0
    %652 = vmatmul.mubr.f32.gmra.mrb[0].mxu0 %v520
    %v653 = vpop.f32.mrb[0].mxu0
    %v654 = vadd.f32 %v459, %v653
    %v655 = vpop.f32.mrb[0].mxu0
    %656 = vmatprep.mubr.f32.mxu0 0.0
    %657 = vmatmul.mubr.f32.gmra.mrb[0].mxu0 %v523
    %v658 = vpop.f32.mrb[0].mxu0
    %v659 = vadd.f32 %v464, %v658
    %v660 = vpop.f32.mrb[0].mxu0
    %661 = vmatprep.mubr.f32.mxu0 0.0
    %662 = vmatmul.mubr.f32.gmra.mrb[0].mxu0 %v526
    %v663 = vpop.f32.mrb[0].mxu0
    %v664 = vadd.f32 %v469, %v663
    %v665 = vpop.f32.mrb[0].mxu0
    %666 = vmatprep.mubr.f32.mxu0 0.0
    %667 = vmatmul.mubr.f32.gmra.mrb[0].mxu0 %v529
    %v668 = vpop.f32.mrb[0].mxu0
    %v669 = vadd.f32 %v474, %v668
    %v670 = vpop.f32.mrb[0].mxu0
    %671 = vmatprep.mubr.f32.mxu0 0.0
    %672 = vmatmul.mubr.f32.gmra.mrb[0].mxu0 %v532
    %v673 = vpop.f32.mrb[0].mxu0
    %v674 = vadd.f32 %v479, %v673
    %v675 = vpop.f32.mrb[0].mxu0
    %676 = vmatprep.mubr.f32.mxu0 0.0
    %677 = vmatmul.mubr.f32.gmra.mrb[0].mxu0 %v535
    %v678 = vpop.f32.mrb[0].mxu0
    %v679 = vadd.f32 %v484, %v678
    %v680 = vpop.f32.mrb[0].mxu0
    %681 = vmatprep.mubr.f32.mxu0 0.0
    %682 = vmatmul.mubr.f32.gmra.mrb[0].mxu0 %v538
    %v683 = vpop.f32.mrb[0].mxu0
    %v684 = vadd.f32 %v489, %v683
    %v685 = vpop.f32.mrb[0].mxu0
    %686 = vdwg.mxu0
    %687 = vrot.lane.b32.xlu0 %v291, 126
    %v688 = vpop.permute.xlu0 %687
    %v690 = vsel %vm295, %v207, 0
    %v693 = vsel %vm295, %v208, 0
    %v696 = vsel %vm295, %v209, 0
    %v699 = vsel %vm295, %v210, 0
    %v702 = vsel %vm295, %v211, 0
    %v705 = vsel %vm295, %v212, 0
    %v708 = vsel %vm295, %v213, 0
    %v711 = vsel %vm295, %v214, 0
    %v714 = vsel %vm295, %v215, 0
    %v717 = vsel %vm295, %v216, 0
    %v720 = vsel %vm295, %v217, 0
    %v723 = vsel %vm295, %v218, 0
    %v726 = vsel %vm295, %v219, 0
    %v729 = vsel %vm295, %v220, 0
    %v732 = vsel %vm295, %v221, 0
    %v735 = vsel %vm295, %v222, 0
    %v737 = vsel %vm344, %v688, 0
    %739 = vmatprep.subr.mxu0 0.0
    %740 = vmatpush1.msra.mxu0 %v737
    %741 = vmatprep.subr.mxu0 0.0
    %742 = vmatpush1.msra.mxu0 0.0
    %743 = vmatprep.subr.mxu0 0.0
    %744 = vmatpush1.msra.mxu0 0.0
    %745 = vmatprep.subr.mxu0 0.0
    %746 = vmatpush1.msra.mxu0 0.0
    %747 = vmatprep.subr.mxu0 0.0
    %748 = vmatpush1.msra.mxu0 0.0
    %749 = vmatprep.subr.mxu0 0.0
    %750 = vmatpush1.msra.mxu0 0.0
    %751 = vmatprep.subr.mxu0 0.0
    %752 = vmatpush1.msra.mxu0 0.0
    %753 = vmatprep.subr.mxu0 0.0
    %754 = vmatpush1.msra.mxu0 0.0
    %755 = vmatprep.subr.mxu0 0.0
    %756 = vmatpush1.msra.mxu0 0.0
    %757 = vmatprep.subr.mxu0 0.0
    %758 = vmatpush1.msra.mxu0 0.0
    %759 = vmatprep.subr.mxu0 0.0
    %760 = vmatpush1.msra.mxu0 0.0
    %761 = vmatprep.subr.mxu0 0.0
    %762 = vmatpush1.msra.mxu0 0.0
    %763 = vmatprep.subr.mxu0 0.0
    %764 = vmatpush1.msra.mxu0 0.0
    %765 = vmatprep.subr.mxu0 0.0
    %766 = vmatpush1.msra.mxu0 0.0
    %767 = vmatprep.subr.mxu0 0.0
    %768 = vmatpush1.msra.mxu0 0.0
    %769 = vmatprep.subr.mxu0 0.0
    %770 = vmatpush1.msra.mxu0 0.0
    %771 = vmatprep.subr.mxu0 0.0
    %772 = vmatpush1.msra.mxu0 0.0
    %773 = vmatprep.subr.mxu0 0.0
    %774 = vmatpush1.msra.mxu0 0.0
    %775 = vmatprep.subr.mxu0 0.0
    %776 = vmatpush1.msra.mxu0 0.0
    %777 = vmatprep.subr.mxu0 0.0
    %778 = vmatpush1.msra.mxu0 0.0
    %779 = vmatprep.subr.mxu0 0.0
    %780 = vmatpush1.msra.mxu0 0.0
    %781 = vmatprep.subr.mxu0 0.0
    %782 = vmatpush1.msra.mxu0 0.0
    %783 = vmatprep.subr.mxu0 0.0
    %784 = vmatpush1.msra.mxu0 0.0
    %785 = vmatprep.subr.mxu0 0.0
    %786 = vmatpush1.msra.mxu0 0.0
    %787 = vmatprep.subr.mxu0 0.0
    %788 = vmatpush1.msra.mxu0 0.0
    %789 = vmatprep.subr.mxu0 0.0
    %790 = vmatpush1.msra.mxu0 0.0
    %791 = vmatprep.subr.mxu0 0.0
    %792 = vmatpush1.msra.mxu0 0.0
    %793 = vmatprep.subr.mxu0 0.0
    %794 = vmatpush1.msra.mxu0 0.0
    %795 = vmatprep.subr.mxu0 0.0
    %796 = vmatpush1.msra.mxu0 0.0
    %797 = vmatprep.subr.mxu0 0.0
    %798 = vmatpush1.msra.mxu0 0.0
    %799 = vmatprep.subr.mxu0 0.0
    %800 = vmatpush1.msra.mxu0 0.0
    %801 = vmatprep.subr.mxu0 0.0
    %802 = vmatpush1.msra.mxu0 0.0
    %803 = vmatprep.mubr.f32.mxu0 0.0
    %804 = vmatmul.mubr.f32.gmra.mrb[0].mxu0 %v690
    %v805 = vpop.f32.mrb[0].mxu0
    %v806 = vadd.f32 0.0, %v805
    %v807 = vpop.f32.mrb[0].mxu0
    %808 = vmatprep.mubr.f32.mxu0 0.0
    %809 = vmatmul.mubr.f32.gmra.mrb[0].mxu0 %v693
    %v810 = vpop.f32.mrb[0].mxu0
    %v811 = vadd.f32 0.0, %v810
    %v812 = vpop.f32.mrb[0].mxu0
    %813 = vmatprep.mubr.f32.mxu0 0.0
    %814 = vmatmul.mubr.f32.gmra.mrb[0].mxu0 %v696
    %v815 = vpop.f32.mrb[0].mxu0
    %v816 = vadd.f32 0.0, %v815
    %v817 = vpop.f32.mrb[0].mxu0
    %818 = vmatprep.mubr.f32.mxu0 0.0
    %819 = vmatmul.mubr.f32.gmra.mrb[0].mxu0 %v699
    %v820 = vpop.f32.mrb[0].mxu0
    %v821 = vadd.f32 0.0, %v820
    %v822 = vpop.f32.mrb[0].mxu0
    %823 = vmatprep.mubr.f32.mxu0 0.0
    %824 = vmatmul.mubr.f32.gmra.mrb[0].mxu0 %v702
    %v825 = vpop.f32.mrb[0].mxu0
    %v826 = vadd.f32 0.0, %v825
    %v827 = vpop.f32.mrb[0].mxu0
    %828 = vmatprep.mubr.f32.mxu0 0.0
    %829 = vmatmul.mubr.f32.gmra.mrb[0].mxu0 %v705
    %v830 = vpop.f32.mrb[0].mxu0
    %v831 = vadd.f32 0.0, %v830
    %v832 = vpop.f32.mrb[0].mxu0
    %833 = vmatprep.mubr.f32.mxu0 0.0
    %834 = vmatmul.mubr.f32.gmra.mrb[0].mxu0 %v708
    %v835 = vpop.f32.mrb[0].mxu0
    %v836 = vadd.f32 0.0, %v835
    %v837 = vpop.f32.mrb[0].mxu0
    %838 = vmatprep.mubr.f32.mxu0 0.0
    %839 = vmatmul.mubr.f32.gmra.mrb[0].mxu0 %v711
    %v840 = vpop.f32.mrb[0].mxu0
    %v841 = vadd.f32 0.0, %v840
    %v842 = vpop.f32.mrb[0].mxu0
    %843 = vmatprep.mubr.f32.mxu0 0.0
    %844 = vmatmul.mubr.f32.gmra.mrb[0].mxu0 %v714
    %v845 = vpop.f32.mrb[0].mxu0
    %v846 = vadd.f32 0.0, %v845
    %v847 = vpop.f32.mrb[0].mxu0
    %848 = vmatprep.mubr.f32.mxu0 0.0
    %849 = vmatmul.mubr.f32.gmra.mrb[0].mxu0 %v717
    %v850 = vpop.f32.mrb[0].mxu0
    %v851 = vadd.f32 0.0, %v850
    %v852 = vpop.f32.mrb[0].mxu0
    %853 = vmatprep.mubr.f32.mxu0 0.0
    %854 = vmatmul.mubr.f32.gmra.mrb[0].mxu0 %v720
    %v855 = vpop.f32.mrb[0].mxu0
    %v856 = vadd.f32 0.0, %v855
    %v857 = vpop.f32.mrb[0].mxu0
    %858 = vmatprep.mubr.f32.mxu0 0.0
    %859 = vmatmul.mubr.f32.gmra.mrb[0].mxu0 %v723
    %v860 = vpop.f32.mrb[0].mxu0
    %v861 = vadd.f32 0.0, %v860
    %v862 = vpop.f32.mrb[0].mxu0
    %863 = vmatprep.mubr.f32.mxu0 0.0
    %864 = vmatmul.mubr.f32.gmra.mrb[0].mxu0 %v726
    %v865 = vpop.f32.mrb[0].mxu0
    %v866 = vadd.f32 0.0, %v865
    %v867 = vpop.f32.mrb[0].mxu0
    %868 = vmatprep.mubr.f32.mxu0 0.0
    %869 = vmatmul.mubr.f32.gmra.mrb[0].mxu0 %v729
    %v870 = vpop.f32.mrb[0].mxu0
    %v871 = vadd.f32 0.0, %v870
    %v872 = vpop.f32.mrb[0].mxu0
    %873 = vmatprep.mubr.f32.mxu0 0.0
    %874 = vmatmul.mubr.f32.gmra.mrb[0].mxu0 %v732
    %v875 = vpop.f32.mrb[0].mxu0
    %v876 = vadd.f32 0.0, %v875
    %v877 = vpop.f32.mrb[0].mxu0
    %878 = vmatprep.mubr.f32.mxu0 0.0
    %879 = vmatmul.mubr.f32.gmra.mrb[0].mxu0 %v735
    %v880 = vpop.f32.mrb[0].mxu0
    %v881 = vadd.f32 0.0, %v880
    %v882 = vpop.f32.mrb[0].mxu0
    %883 = vdwg.mxu0
    %v884 = vadd.f32 %v609, %v806
    %v885 = vadd.f32 %v614, %v811
    %v886 = vadd.f32 %v619, %v816
    %v887 = vadd.f32 %v624, %v821
    %v888 = vadd.f32 %v629, %v826
    %v889 = vadd.f32 %v634, %v831
    %v890 = vadd.f32 %v639, %v836
    %v891 = vadd.f32 %v644, %v841
    %v892 = vadd.f32 %v649, %v846
    %v893 = vadd.f32 %v654, %v851
    %v894 = vadd.f32 %v659, %v856
    %v895 = vadd.f32 %v664, %v861
    %v896 = vadd.f32 %v669, %v866
    %v897 = vadd.f32 %v674, %v871
    %v898 = vadd.f32 %v679, %v876
    %v899 = vadd.f32 %v684, %v881
    %900 = vrot.lane.b32.xlu0 %v291, 125
    %v901 = vpop.permute.xlu0 %900
    %v903 = vsel %vm295, %v224, 0
    %v906 = vsel %vm295, %v225, 0
    %v909 = vsel %vm295, %v226, 0
    %v912 = vsel %vm295, %v227, 0
    %v915 = vsel %vm295, %v228, 0
    %v918 = vsel %vm295, %v229, 0
    %v921 = vsel %vm295, %v230, 0
    %v924 = vsel %vm295, %v231, 0
    %v927 = vsel %vm295, %v232, 0
    %v930 = vsel %vm295, %v233, 0
    %v933 = vsel %vm295, %v234, 0
    %v936 = vsel %vm295, %v235, 0
    %v939 = vsel %vm295, %v236, 0
    %v942 = vsel %vm295, %v237, 0
    %v945 = vsel %vm295, %v238, 0
    %v948 = vsel %vm295, %v239, 0
    %v950 = vsel %vm344, %v901, 0
    %952 = vmatprep.subr.mxu0 0.0
    %953 = vmatpush1.msra.mxu0 %v950
    %954 = vmatprep.subr.mxu0 0.0
    %955 = vmatpush1.msra.mxu0 0.0
    %956 = vmatprep.subr.mxu0 0.0
    %957 = vmatpush1.msra.mxu0 0.0
    %958 = vmatprep.subr.mxu0 0.0
    %959 = vmatpush1.msra.mxu0 0.0
    %960 = vmatprep.subr.mxu0 0.0
    %961 = vmatpush1.msra.mxu0 0.0
    %962 = vmatprep.subr.mxu0 0.0
    %963 = vmatpush1.msra.mxu0 0.0
    %964 = vmatprep.subr.mxu0 0.0
    %965 = vmatpush1.msra.mxu0 0.0
    %966 = vmatprep.subr.mxu0 0.0
    %967 = vmatpush1.msra.mxu0 0.0
    %968 = vmatprep.subr.mxu0 0.0
    %969 = vmatpush1.msra.mxu0 0.0
    %970 = vmatprep.subr.mxu0 0.0
    %971 = vmatpush1.msra.mxu0 0.0
    %972 = vmatprep.subr.mxu0 0.0
    %973 = vmatpush1.msra.mxu0 0.0
    %974 = vmatprep.subr.mxu0 0.0
    %975 = vmatpush1.msra.mxu0 0.0
    %976 = vmatprep.subr.mxu0 0.0
    %977 = vmatpush1.msra.mxu0 0.0
    %978 = vmatprep.subr.mxu0 0.0
    %979 = vmatpush1.msra.mxu0 0.0
    %980 = vmatprep.subr.mxu0 0.0
    %981 = vmatpush1.msra.mxu0 0.0
    %982 = vmatprep.subr.mxu0 0.0
    %983 = vmatpush1.msra.mxu0 0.0
    %984 = vmatprep.subr.mxu0 0.0
    %985 = vmatpush1.msra.mxu0 0.0
    %986 = vmatprep.subr.mxu0 0.0
    %987 = vmatpush1.msra.mxu0 0.0
    %988 = vmatprep.subr.mxu0 0.0
    %989 = vmatpush1.msra.mxu0 0.0
    %990 = vmatprep.subr.mxu0 0.0
    %991 = vmatpush1.msra.mxu0 0.0
    %992 = vmatprep.subr.mxu0 0.0
    %993 = vmatpush1.msra.mxu0 0.0
    %994 = vmatprep.subr.mxu0 0.0
    %995 = vmatpush1.msra.mxu0 0.0
    %996 = vmatprep.subr.mxu0 0.0
    %997 = vmatpush1.msra.mxu0 0.0
    %998 = vmatprep.subr.mxu0 0.0
    %999 = vmatpush1.msra.mxu0 0.0
    %1000 = vmatprep.subr.mxu0 0.0
    %1001 = vmatpush1.msra.mxu0 0.0
    %1002 = vmatprep.subr.mxu0 0.0
    %1003 = vmatpush1.msra.mxu0 0.0
    %1004 = vmatprep.subr.mxu0 0.0
    %1005 = vmatpush1.msra.mxu0 0.0
    %1006 = vmatprep.subr.mxu0 0.0
    %1007 = vmatpush1.msra.mxu0 0.0
    %1008 = vmatprep.subr.mxu0 0.0
    %1009 = vmatpush1.msra.mxu0 0.0
    %1010 = vmatprep.subr.mxu0 0.0
    %1011 = vmatpush1.msra.mxu0 0.0
    %1012 = vmatprep.subr.mxu0 0.0
    %1013 = vmatpush1.msra.mxu0 0.0
    %1014 = vmatprep.subr.mxu0 0.0
    %1015 = vmatpush1.msra.mxu0 0.0
    %1016 = vmatprep.mubr.f32.mxu0 0.0
    %1017 = vmatmul.mubr.f32.gmra.mrb[0].mxu0 %v903
    %v1018 = vpop.f32.mrb[0].mxu0
    %v1019 = vadd.f32 0.0, %v1018
    %v1020 = vpop.f32.mrb[0].mxu0
    %1021 = vmatprep.mubr.f32.mxu0 0.0
    %1022 = vmatmul.mubr.f32.gmra.mrb[0].mxu0 %v906
    %v1023 = vpop.f32.mrb[0].mxu0
    %v1024 = vadd.f32 0.0, %v1023
    %v1025 = vpop.f32.mrb[0].mxu0
    %1026 = vmatprep.mubr.f32.mxu0 0.0
    %1027 = vmatmul.mubr.f32.gmra.mrb[0].mxu0 %v909
    %v1028 = vpop.f32.mrb[0].mxu0
    %v1029 = vadd.f32 0.0, %v1028
    %v1030 = vpop.f32.mrb[0].mxu0
    %1031 = vmatprep.mubr.f32.mxu0 0.0
    %1032 = vmatmul.mubr.f32.gmra.mrb[0].mxu0 %v912
    %v1033 = vpop.f32.mrb[0].mxu0
    %v1034 = vadd.f32 0.0, %v1033
    %v1035 = vpop.f32.mrb[0].mxu0
    %1036 = vmatprep.mubr.f32.mxu0 0.0
    %1037 = vmatmul.mubr.f32.gmra.mrb[0].mxu0 %v915
    %v1038 = vpop.f32.mrb[0].mxu0
    %v1039 = vadd.f32 0.0, %v1038
    %v1040 = vpop.f32.mrb[0].mxu0
    %1041 = vmatprep.mubr.f32.mxu0 0.0
    %1042 = vmatmul.mubr.f32.gmra.mrb[0].mxu0 %v918
    %v1043 = vpop.f32.mrb[0].mxu0
    %v1044 = vadd.f32 0.0, %v1043
    %v1045 = vpop.f32.mrb[0].mxu0
    %1046 = vmatprep.mubr.f32.mxu0 0.0
    %1047 = vmatmul.mubr.f32.gmra.mrb[0].mxu0 %v921
    %v1048 = vpop.f32.mrb[0].mxu0
    %v1049 = vadd.f32 0.0, %v1048
    %v1050 = vpop.f32.mrb[0].mxu0
    %1051 = vmatprep.mubr.f32.mxu0 0.0
    %1052 = vmatmul.mubr.f32.gmra.mrb[0].mxu0 %v924
    %v1053 = vpop.f32.mrb[0].mxu0
    %v1054 = vadd.f32 0.0, %v1053
    %v1055 = vpop.f32.mrb[0].mxu0
    %1056 = vmatprep.mubr.f32.mxu0 0.0
    %1057 = vmatmul.mubr.f32.gmra.mrb[0].mxu0 %v927
    %v1058 = vpop.f32.mrb[0].mxu0
    %v1059 = vadd.f32 0.0, %v1058
    %v1060 = vpop.f32.mrb[0].mxu0
    %1061 = vmatprep.mubr.f32.mxu0 0.0
    %1062 = vmatmul.mubr.f32.gmra.mrb[0].mxu0 %v930
    %v1063 = vpop.f32.mrb[0].mxu0
    %v1064 = vadd.f32 0.0, %v1063
    %v1065 = vpop.f32.mrb[0].mxu0
    %1066 = vmatprep.mubr.f32.mxu0 0.0
    %1067 = vmatmul.mubr.f32.gmra.mrb[0].mxu0 %v933
    %v1068 = vpop.f32.mrb[0].mxu0
    %v1069 = vadd.f32 0.0, %v1068
    %v1070 = vpop.f32.mrb[0].mxu0
    %1071 = vmatprep.mubr.f32.mxu0 0.0
    %1072 = vmatmul.mubr.f32.gmra.mrb[0].mxu0 %v936
    %v1073 = vpop.f32.mrb[0].mxu0
    %v1074 = vadd.f32 0.0, %v1073
    %v1075 = vpop.f32.mrb[0].mxu0
    %1076 = vmatprep.mubr.f32.mxu0 0.0
    %1077 = vmatmul.mubr.f32.gmra.mrb[0].mxu0 %v939
    %v1078 = vpop.f32.mrb[0].mxu0
    %v1079 = vadd.f32 0.0, %v1078
    %v1080 = vpop.f32.mrb[0].mxu0
    %1081 = vmatprep.mubr.f32.mxu0 0.0
    %1082 = vmatmul.mubr.f32.gmra.mrb[0].mxu0 %v942
    %v1083 = vpop.f32.mrb[0].mxu0
    %v1084 = vadd.f32 0.0, %v1083
    %v1085 = vpop.f32.mrb[0].mxu0
    %1086 = vmatprep.mubr.f32.mxu0 0.0
    %1087 = vmatmul.mubr.f32.gmra.mrb[0].mxu0 %v945
    %v1088 = vpop.f32.mrb[0].mxu0
    %v1089 = vadd.f32 0.0, %v1088
    %v1090 = vpop.f32.mrb[0].mxu0
    %1091 = vmatprep.mubr.f32.mxu0 0.0
    %1092 = vmatmul.mubr.f32.gmra.mrb[0].mxu0 %v948
    %v1093 = vpop.f32.mrb[0].mxu0
    %v1094 = vadd.f32 0.0, %v1093
    %v1095 = vpop.f32.mrb[0].mxu0
    %1096 = vdwg.mxu0
    %v1097 = vadd.f32 %v884, %v1019
    %v1098 = vadd.f32 %v885, %v1024
    %v1099 = vadd.f32 %v886, %v1029
    %v1100 = vadd.f32 %v887, %v1034
    %v1101 = vadd.f32 %v888, %v1039
    %v1102 = vadd.f32 %v889, %v1044
    %v1103 = vadd.f32 %v890, %v1049
    %v1104 = vadd.f32 %v891, %v1054
    %v1105 = vadd.f32 %v892, %v1059
    %v1106 = vadd.f32 %v893, %v1064
    %v1107 = vadd.f32 %v894, %v1069
    %v1108 = vadd.f32 %v895, %v1074
    %v1109 = vadd.f32 %v896, %v1079
    %v1110 = vadd.f32 %v897, %v1084
    %v1111 = vadd.f32 %v898, %v1089
    %v1112 = vadd.f32 %v899, %v1094
    %1113 = vrot.lane.b32.xlu0 %v291, 124
    %v1114 = vpop.permute.xlu0 %1113
    %v1116 = vsel %vm295, %v241, 0
    %v1119 = vsel %vm295, %v242, 0
    %v1122 = vsel %vm295, %v243, 0
    %v1125 = vsel %vm295, %v244, 0
    %v1128 = vsel %vm295, %v245, 0
    %v1131 = vsel %vm295, %v246, 0
    %v1134 = vsel %vm295, %v247, 0
    %v1137 = vsel %vm295, %v248, 0
    %v1140 = vsel %vm295, %v249, 0
    %v1143 = vsel %vm295, %v250, 0
    %v1146 = vsel %vm295, %v251, 0
    %v1149 = vsel %vm295, %v252, 0
    %v1152 = vsel %vm295, %v253, 0
    %v1155 = vsel %vm295, %v254, 0
    %v1158 = vsel %vm295, %v255, 0
    %v1161 = vsel %vm295, %v256, 0
    %v1163 = vsel %vm344, %v1114, 0
    %1165 = vmatprep.subr.mxu0 0.0
    %1166 = vmatpush1.msra.mxu0 %v1163
    %1167 = vmatprep.subr.mxu0 0.0
    %1168 = vmatpush1.msra.mxu0 0.0
    %1169 = vmatprep.subr.mxu0 0.0
    %1170 = vmatpush1.msra.mxu0 0.0
    %1171 = vmatprep.subr.mxu0 0.0
    %1172 = vmatpush1.msra.mxu0 0.0
    %1173 = vmatprep.subr.mxu0 0.0
    %1174 = vmatpush1.msra.mxu0 0.0
    %1175 = vmatprep.subr.mxu0 0.0
    %1176 = vmatpush1.msra.mxu0 0.0
    %1177 = vmatprep.subr.mxu0 0.0
    %1178 = vmatpush1.msra.mxu0 0.0
    %1179 = vmatprep.subr.mxu0 0.0
    %1180 = vmatpush1.msra.mxu0 0.0
    %1181 = vmatprep.subr.mxu0 0.0
    %1182 = vmatpush1.msra.mxu0 0.0
    %1183 = vmatprep.subr.mxu0 0.0
    %1184 = vmatpush1.msra.mxu0 0.0
    %1185 = vmatprep.subr.mxu0 0.0
    %1186 = vmatpush1.msra.mxu0 0.0
    %1187 = vmatprep.subr.mxu0 0.0
    %1188 = vmatpush1.msra.mxu0 0.0
    %1189 = vmatprep.subr.mxu0 0.0
    %1190 = vmatpush1.msra.mxu0 0.0
    %1191 = vmatprep.subr.mxu0 0.0
    %1192 = vmatpush1.msra.mxu0 0.0
    %1193 = vmatprep.subr.mxu0 0.0
    %1194 = vmatpush1.msra.mxu0 0.0
    %1195 = vmatprep.subr.mxu0 0.0
    %1196 = vmatpush1.msra.mxu0 0.0
    %1197 = vmatprep.subr.mxu0 0.0
    %1198 = vmatpush1.msra.mxu0 0.0
    %1199 = vmatprep.subr.mxu0 0.0
    %1200 = vmatpush1.msra.mxu0 0.0
    %1201 = vmatprep.subr.mxu0 0.0
    %1202 = vmatpush1.msra.mxu0 0.0
    %1203 = vmatprep.subr.mxu0 0.0
    %1204 = vmatpush1.msra.mxu0 0.0
    %1205 = vmatprep.subr.mxu0 0.0
    %1206 = vmatpush1.msra.mxu0 0.0
    %1207 = vmatprep.subr.mxu0 0.0
    %1208 = vmatpush1.msra.mxu0 0.0
    %1209 = vmatprep.subr.mxu0 0.0
    %1210 = vmatpush1.msra.mxu0 0.0
    %1211 = vmatprep.subr.mxu0 0.0
    %1212 = vmatpush1.msra.mxu0 0.0
    %1213 = vmatprep.subr.mxu0 0.0
    %1214 = vmatpush1.msra.mxu0 0.0
    %1215 = vmatprep.subr.mxu0 0.0
    %1216 = vmatpush1.msra.mxu0 0.0
    %1217 = vmatprep.subr.mxu0 0.0
    %1218 = vmatpush1.msra.mxu0 0.0
    %1219 = vmatprep.subr.mxu0 0.0
    %1220 = vmatpush1.msra.mxu0 0.0
    %1221 = vmatprep.subr.mxu0 0.0
    %1222 = vmatpush1.msra.mxu0 0.0
    %1223 = vmatprep.subr.mxu0 0.0
    %1224 = vmatpush1.msra.mxu0 0.0
    %1225 = vmatprep.subr.mxu0 0.0
    %1226 = vmatpush1.msra.mxu0 0.0
    %1227 = vmatprep.subr.mxu0 0.0
    %1228 = vmatpush1.msra.mxu0 0.0
    %1229 = vmatprep.mubr.f32.mxu0 0.0
    %1230 = vmatmul.mubr.f32.gmra.mrb[0].mxu0 %v1116
    %v1231 = vpop.f32.mrb[0].mxu0
    %v1232 = vadd.f32 0.0, %v1231
    %v1233 = vpop.f32.mrb[0].mxu0
    %1234 = vmatprep.mubr.f32.mxu0 0.0
    %1235 = vmatmul.mubr.f32.gmra.mrb[0].mxu0 %v1119
    %v1236 = vpop.f32.mrb[0].mxu0
    %v1237 = vadd.f32 0.0, %v1236
    %v1238 = vpop.f32.mrb[0].mxu0
    %1239 = vmatprep.mubr.f32.mxu0 0.0
    %1240 = vmatmul.mubr.f32.gmra.mrb[0].mxu0 %v1122
    %v1241 = vpop.f32.mrb[0].mxu0
    %v1242 = vadd.f32 0.0, %v1241
    %v1243 = vpop.f32.mrb[0].mxu0
    %1244 = vmatprep.mubr.f32.mxu0 0.0
    %1245 = vmatmul.mubr.f32.gmra.mrb[0].mxu0 %v1125
    %v1246 = vpop.f32.mrb[0].mxu0
    %v1247 = vadd.f32 0.0, %v1246
    %v1248 = vpop.f32.mrb[0].mxu0
    %1249 = vmatprep.mubr.f32.mxu0 0.0
    %1250 = vmatmul.mubr.f32.gmra.mrb[0].mxu0 %v1128
    %v1251 = vpop.f32.mrb[0].mxu0
    %v1252 = vadd.f32 0.0, %v1251
    %v1253 = vpop.f32.mrb[0].mxu0
    %1254 = vmatprep.mubr.f32.mxu0 0.0
    %1255 = vmatmul.mubr.f32.gmra.mrb[0].mxu0 %v1131
    %v1256 = vpop.f32.mrb[0].mxu0
    %v1257 = vadd.f32 0.0, %v1256
    %v1258 = vpop.f32.mrb[0].mxu0
    %1259 = vmatprep.mubr.f32.mxu0 0.0
    %1260 = vmatmul.mubr.f32.gmra.mrb[0].mxu0 %v1134
    %v1261 = vpop.f32.mrb[0].mxu0
    %v1262 = vadd.f32 0.0, %v1261
    %v1263 = vpop.f32.mrb[0].mxu0
    %1264 = vmatprep.mubr.f32.mxu0 0.0
    %1265 = vmatmul.mubr.f32.gmra.mrb[0].mxu0 %v1137
    %v1266 = vpop.f32.mrb[0].mxu0
    %v1267 = vadd.f32 0.0, %v1266
    %v1268 = vpop.f32.mrb[0].mxu0
    %1269 = vmatprep.mubr.f32.mxu0 0.0
    %1270 = vmatmul.mubr.f32.gmra.mrb[0].mxu0 %v1140
    %v1271 = vpop.f32.mrb[0].mxu0
    %v1272 = vadd.f32 0.0, %v1271
    %v1273 = vpop.f32.mrb[0].mxu0
    %1274 = vmatprep.mubr.f32.mxu0 0.0
    %1275 = vmatmul.mubr.f32.gmra.mrb[0].mxu0 %v1143
    %v1276 = vpop.f32.mrb[0].mxu0
    %v1277 = vadd.f32 0.0, %v1276
    %v1278 = vpop.f32.mrb[0].mxu0
    %1279 = vmatprep.mubr.f32.mxu0 0.0
    %1280 = vmatmul.mubr.f32.gmra.mrb[0].mxu0 %v1146
    %v1281 = vpop.f32.mrb[0].mxu0
    %v1282 = vadd.f32 0.0, %v1281
    %v1283 = vpop.f32.mrb[0].mxu0
    %1284 = vmatprep.mubr.f32.mxu0 0.0
    %1285 = vmatmul.mubr.f32.gmra.mrb[0].mxu0 %v1149
    %v1286 = vpop.f32.mrb[0].mxu0
    %v1287 = vadd.f32 0.0, %v1286
    %v1288 = vpop.f32.mrb[0].mxu0
    %1289 = vmatprep.mubr.f32.mxu0 0.0
    %1290 = vmatmul.mubr.f32.gmra.mrb[0].mxu0 %v1152
    %v1291 = vpop.f32.mrb[0].mxu0
    %v1292 = vadd.f32 0.0, %v1291
    %v1293 = vpop.f32.mrb[0].mxu0
    %1294 = vmatprep.mubr.f32.mxu0 0.0
    %1295 = vmatmul.mubr.f32.gmra.mrb[0].mxu0 %v1155
    %v1296 = vpop.f32.mrb[0].mxu0
    %v1297 = vadd.f32 0.0, %v1296
    %v1298 = vpop.f32.mrb[0].mxu0
    %1299 = vmatprep.mubr.f32.mxu0 0.0
    %1300 = vmatmul.mubr.f32.gmra.mrb[0].mxu0 %v1158
    %v1301 = vpop.f32.mrb[0].mxu0
    %v1302 = vadd.f32 0.0, %v1301
    %v1303 = vpop.f32.mrb[0].mxu0
    %1304 = vmatprep.mubr.f32.mxu0 0.0
    %1305 = vmatmul.mubr.f32.gmra.mrb[0].mxu0 %v1161
    %v1306 = vpop.f32.mrb[0].mxu0
    %v1307 = vadd.f32 0.0, %v1306
    %v1308 = vpop.f32.mrb[0].mxu0
    %1309 = vdwg.mxu0
    %v1310 = vadd.f32 %v1097, %v1232
    %v1311 = vadd.f32 %v1098, %v1237
    %v1312 = vadd.f32 %v1099, %v1242
    %v1313 = vadd.f32 %v1100, %v1247
    %v1314 = vadd.f32 %v1101, %v1252
    %v1315 = vadd.f32 %v1102, %v1257
    %v1316 = vadd.f32 %v1103, %v1262
    %v1317 = vadd.f32 %v1104, %v1267
    %v1318 = vadd.f32 %v1105, %v1272
    %v1319 = vadd.f32 %v1106, %v1277
    %v1320 = vadd.f32 %v1107, %v1282
    %v1321 = vadd.f32 %v1108, %v1287
    %v1322 = vadd.f32 %v1109, %v1292
    %v1323 = vadd.f32 %v1110, %v1297
    %v1324 = vadd.f32 %v1111, %v1302
    %v1325 = vadd.f32 %v1112, %v1307
    %1326 = vrot.lane.b32.xlu0 %v291, 123
    %v1327 = vpop.permute.xlu0 %1326
    %v1329 = vsel %vm295, %v258, 0
    %v1332 = vsel %vm295, %v259, 0
    %v1335 = vsel %vm295, %v260, 0
    %v1338 = vsel %vm295, %v261, 0
    %v1341 = vsel %vm295, %v262, 0
    %v1344 = vsel %vm295, %v263, 0
    %v1347 = vsel %vm295, %v264, 0
    %v1350 = vsel %vm295, %v265, 0
    %v1353 = vsel %vm295, %v266, 0
    %v1356 = vsel %vm295, %v267, 0
    %v1359 = vsel %vm295, %v268, 0
    %v1362 = vsel %vm295, %v269, 0
    %v1365 = vsel %vm295, %v270, 0
    %v1368 = vsel %vm295, %v271, 0
    %v1371 = vsel %vm295, %v272, 0
    %v1374 = vsel %vm295, %v273, 0
    %v1376 = vsel %vm344, %v1327, 0
    %1378 = vmatprep.subr.mxu0 0.0
    %1379 = vmatpush1.msra.mxu0 %v1376
    %1380 = vmatprep.subr.mxu0 0.0
    %1381 = vmatpush1.msra.mxu0 0.0
    %1382 = vmatprep.subr.mxu0 0.0
    %1383 = vmatpush1.msra.mxu0 0.0
    %1384 = vmatprep.subr.mxu0 0.0
    %1385 = vmatpush1.msra.mxu0 0.0
    %1386 = vmatprep.subr.mxu0 0.0
    %1387 = vmatpush1.msra.mxu0 0.0
    %1388 = vmatprep.subr.mxu0 0.0
    %1389 = vmatpush1.msra.mxu0 0.0
    %1390 = vmatprep.subr.mxu0 0.0
    %1391 = vmatpush1.msra.mxu0 0.0
    %1392 = vmatprep.subr.mxu0 0.0
    %1393 = vmatpush1.msra.mxu0 0.0
    %1394 = vmatprep.subr.mxu0 0.0
    %1395 = vmatpush1.msra.mxu0 0.0
    %1396 = vmatprep.subr.mxu0 0.0
    %1397 = vmatpush1.msra.mxu0 0.0
    %1398 = vmatprep.subr.mxu0 0.0
    %1399 = vmatpush1.msra.mxu0 0.0
    %1400 = vmatprep.subr.mxu0 0.0
    %1401 = vmatpush1.msra.mxu0 0.0
    %1402 = vmatprep.subr.mxu0 0.0
    %1403 = vmatpush1.msra.mxu0 0.0
    %1404 = vmatprep.subr.mxu0 0.0
    %1405 = vmatpush1.msra.mxu0 0.0
    %1406 = vmatprep.subr.mxu0 0.0
    %1407 = vmatpush1.msra.mxu0 0.0
    %1408 = vmatprep.subr.mxu0 0.0
    %1409 = vmatpush1.msra.mxu0 0.0
    %1410 = vmatprep.subr.mxu0 0.0
    %1411 = vmatpush1.msra.mxu0 0.0
    %1412 = vmatprep.subr.mxu0 0.0
    %1413 = vmatpush1.msra.mxu0 0.0
    %1414 = vmatprep.subr.mxu0 0.0
    %1415 = vmatpush1.msra.mxu0 0.0
    %1416 = vmatprep.subr.mxu0 0.0
    %1417 = vmatpush1.msra.mxu0 0.0
    %1418 = vmatprep.subr.mxu0 0.0
    %1419 = vmatpush1.msra.mxu0 0.0
    %1420 = vmatprep.subr.mxu0 0.0
    %1421 = vmatpush1.msra.mxu0 0.0
    %1422 = vmatprep.subr.mxu0 0.0
    %1423 = vmatpush1.msra.mxu0 0.0
    %1424 = vmatprep.subr.mxu0 0.0
    %1425 = vmatpush1.msra.mxu0 0.0
    %1426 = vmatprep.subr.mxu0 0.0
    %1427 = vmatpush1.msra.mxu0 0.0
    %1428 = vmatprep.subr.mxu0 0.0
    %1429 = vmatpush1.msra.mxu0 0.0
    %1430 = vmatprep.subr.mxu0 0.0
    %1431 = vmatpush1.msra.mxu0 0.0
    %1432 = vmatprep.subr.mxu0 0.0
    %1433 = vmatpush1.msra.mxu0 0.0
    %1434 = vmatprep.subr.mxu0 0.0
    %1435 = vmatpush1.msra.mxu0 0.0
    %1436 = vmatprep.subr.mxu0 0.0
    %1437 = vmatpush1.msra.mxu0 0.0
    %1438 = vmatprep.subr.mxu0 0.0
    %1439 = vmatpush1.msra.mxu0 0.0
    %1440 = vmatprep.subr.mxu0 0.0
    %1441 = vmatpush1.msra.mxu0 0.0
    %1442 = vmatprep.mubr.f32.mxu0 0.0
    %1443 = vmatmul.mubr.f32.gmra.mrb[0].mxu0 %v1329
    %v1444 = vpop.f32.mrb[0].mxu0
    %v1445 = vadd.f32 0.0, %v1444
    %v1446 = vpop.f32.mrb[0].mxu0
    %1447 = vmatprep.mubr.f32.mxu0 0.0
    %1448 = vmatmul.mubr.f32.gmra.mrb[0].mxu0 %v1332
    %v1449 = vpop.f32.mrb[0].mxu0
    %v1450 = vadd.f32 0.0, %v1449
    %v1451 = vpop.f32.mrb[0].mxu0
    %1452 = vmatprep.mubr.f32.mxu0 0.0
    %1453 = vmatmul.mubr.f32.gmra.mrb[0].mxu0 %v1335
    %v1454 = vpop.f32.mrb[0].mxu0
    %v1455 = vadd.f32 0.0, %v1454
    %v1456 = vpop.f32.mrb[0].mxu0
    %1457 = vmatprep.mubr.f32.mxu0 0.0
    %1458 = vmatmul.mubr.f32.gmra.mrb[0].mxu0 %v1338
    %v1459 = vpop.f32.mrb[0].mxu0
    %v1460 = vadd.f32 0.0, %v1459
    %v1461 = vpop.f32.mrb[0].mxu0
    %1462 = vmatprep.mubr.f32.mxu0 0.0
    %1463 = vmatmul.mubr.f32.gmra.mrb[0].mxu0 %v1341
    %v1464 = vpop.f32.mrb[0].mxu0
    %v1465 = vadd.f32 0.0, %v1464
    %v1466 = vpop.f32.mrb[0].mxu0
    %1467 = vmatprep.mubr.f32.mxu0 0.0
    %1468 = vmatmul.mubr.f32.gmra.mrb[0].mxu0 %v1344
    %v1469 = vpop.f32.mrb[0].mxu0
    %v1470 = vadd.f32 0.0, %v1469
    %v1471 = vpop.f32.mrb[0].mxu0
    %1472 = vmatprep.mubr.f32.mxu0 0.0
    %1473 = vmatmul.mubr.f32.gmra.mrb[0].mxu0 %v1347
    %v1474 = vpop.f32.mrb[0].mxu0
    %v1475 = vadd.f32 0.0, %v1474
    %v1476 = vpop.f32.mrb[0].mxu0
    %1477 = vmatprep.mubr.f32.mxu0 0.0
    %1478 = vmatmul.mubr.f32.gmra.mrb[0].mxu0 %v1350
    %v1479 = vpop.f32.mrb[0].mxu0
    %v1480 = vadd.f32 0.0, %v1479
    %v1481 = vpop.f32.mrb[0].mxu0
    %1482 = vmatprep.mubr.f32.mxu0 0.0
    %1483 = vmatmul.mubr.f32.gmra.mrb[0].mxu0 %v1353
    %v1484 = vpop.f32.mrb[0].mxu0
    %v1485 = vadd.f32 0.0, %v1484
    %v1486 = vpop.f32.mrb[0].mxu0
    %1487 = vmatprep.mubr.f32.mxu0 0.0
    %1488 = vmatmul.mubr.f32.gmra.mrb[0].mxu0 %v1356
    %v1489 = vpop.f32.mrb[0].mxu0
    %v1490 = vadd.f32 0.0, %v1489
    %v1491 = vpop.f32.mrb[0].mxu0
    %1492 = vmatprep.mubr.f32.mxu0 0.0
    %1493 = vmatmul.mubr.f32.gmra.mrb[0].mxu0 %v1359
    %v1494 = vpop.f32.mrb[0].mxu0
    %v1495 = vadd.f32 0.0, %v1494
    %v1496 = vpop.f32.mrb[0].mxu0
    %1497 = vmatprep.mubr.f32.mxu0 0.0
    %1498 = vmatmul.mubr.f32.gmra.mrb[0].mxu0 %v1362
    %v1499 = vpop.f32.mrb[0].mxu0
    %v1500 = vadd.f32 0.0, %v1499
    %v1501 = vpop.f32.mrb[0].mxu0
    %1502 = vmatprep.mubr.f32.mxu0 0.0
    %1503 = vmatmul.mubr.f32.gmra.mrb[0].mxu0 %v1365
    %v1504 = vpop.f32.mrb[0].mxu0
    %v1505 = vadd.f32 0.0, %v1504
    %v1506 = vpop.f32.mrb[0].mxu0
    %1507 = vmatprep.mubr.f32.mxu0 0.0
    %1508 = vmatmul.mubr.f32.gmra.mrb[0].mxu0 %v1368
    %v1509 = vpop.f32.mrb[0].mxu0
    %v1510 = vadd.f32 0.0, %v1509
    %v1511 = vpop.f32.mrb[0].mxu0
    %1512 = vmatprep.mubr.f32.mxu0 0.0
    %1513 = vmatmul.mubr.f32.gmra.mrb[0].mxu0 %v1371
    %v1514 = vpop.f32.mrb[0].mxu0
    %v1515 = vadd.f32 0.0, %v1514
    %v1516 = vpop.f32.mrb[0].mxu0
    %1517 = vmatprep.mubr.f32.mxu0 0.0
    %1518 = vmatmul.mubr.f32.gmra.mrb[0].mxu0 %v1374
    %v1519 = vpop.f32.mrb[0].mxu0
    %v1520 = vadd.f32 0.0, %v1519
    %v1521 = vpop.f32.mrb[0].mxu0
    %1522 = vdwg.mxu0
    %v1523 = vadd.f32 %v1310, %v1445
    %v1524 = vadd.f32 %v1311, %v1450
    %v1525 = vadd.f32 %v1312, %v1455
    %v1526 = vadd.f32 %v1313, %v1460
    %v1527 = vadd.f32 %v1314, %v1465
    %v1528 = vadd.f32 %v1315, %v1470
    %v1529 = vadd.f32 %v1316, %v1475
    %v1530 = vadd.f32 %v1317, %v1480
    %v1531 = vadd.f32 %v1318, %v1485
    %v1532 = vadd.f32 %v1319, %v1490
    %v1533 = vadd.f32 %v1320, %v1495
    %v1534 = vadd.f32 %v1321, %v1500
    %v1535 = vadd.f32 %v1322, %v1505
    %v1536 = vadd.f32 %v1323, %v1510
    %v1537 = vadd.f32 %v1324, %v1515
    %v1538 = vadd.f32 %v1325, %v1520
    %1539 = vrot.lane.b32.xlu0 %v291, 122
    %v1540 = vpop.permute.xlu0 %1539
    %v1542 = vsel %vm295, %v275, 0
    %v1545 = vsel %vm295, %v276, 0
    %v1548 = vsel %vm295, %v277, 0
    %v1551 = vsel %vm295, %v278, 0
    %v1554 = vsel %vm295, %v279, 0
    %v1557 = vsel %vm295, %v280, 0
    %v1560 = vsel %vm295, %v281, 0
    %v1563 = vsel %vm295, %v282, 0
    %v1566 = vsel %vm295, %v283, 0
    %v1569 = vsel %vm295, %v284, 0
    %v1572 = vsel %vm295, %v285, 0
    %v1575 = vsel %vm295, %v286, 0
    %v1578 = vsel %vm295, %v287, 0
    %v1581 = vsel %vm295, %v288, 0
    %v1584 = vsel %vm295, %v289, 0
    %v1587 = vsel %vm295, %v290, 0
    %v1589 = vsel %vm344, %v1540, 0
    %1591 = vmatprep.subr.mxu0 0.0
    %1592 = vmatpush1.msra.mxu0 %v1589
    %1593 = vmatprep.subr.mxu0 0.0
    %1594 = vmatpush1.msra.mxu0 0.0
    %1595 = vmatprep.subr.mxu0 0.0
    %1596 = vmatpush1.msra.mxu0 0.0
    %1597 = vmatprep.subr.mxu0 0.0
    %1598 = vmatpush1.msra.mxu0 0.0
    %1599 = vmatprep.subr.mxu0 0.0
    %1600 = vmatpush1.msra.mxu0 0.0
    %1601 = vmatprep.subr.mxu0 0.0
    %1602 = vmatpush1.msra.mxu0 0.0
    %1603 = vmatprep.subr.mxu0 0.0
    %1604 = vmatpush1.msra.mxu0 0.0
    %1605 = vmatprep.subr.mxu0 0.0
    %1606 = vmatpush1.msra.mxu0 0.0
    %1607 = vmatprep.subr.mxu0 0.0
    %1608 = vmatpush1.msra.mxu0 0.0
    %1609 = vmatprep.subr.mxu0 0.0
    %1610 = vmatpush1.msra.mxu0 0.0
    %1611 = vmatprep.subr.mxu0 0.0
    %1612 = vmatpush1.msra.mxu0 0.0
    %1613 = vmatprep.subr.mxu0 0.0
    %1614 = vmatpush1.msra.mxu0 0.0
    %1615 = vmatprep.subr.mxu0 0.0
    %1616 = vmatpush1.msra.mxu0 0.0
    %1617 = vmatprep.subr.mxu0 0.0
    %1618 = vmatpush1.msra.mxu0 0.0
    %1619 = vmatprep.subr.mxu0 0.0
    %1620 = vmatpush1.msra.mxu0 0.0
    %1621 = vmatprep.subr.mxu0 0.0
    %1622 = vmatpush1.msra.mxu0 0.0
    %1623 = vmatprep.subr.mxu0 0.0
    %1624 = vmatpush1.msra.mxu0 0.0
    %1625 = vmatprep.subr.mxu0 0.0
    %1626 = vmatpush1.msra.mxu0 0.0
    %1627 = vmatprep.subr.mxu0 0.0
    %1628 = vmatpush1.msra.mxu0 0.0
    %1629 = vmatprep.subr.mxu0 0.0
    %1630 = vmatpush1.msra.mxu0 0.0
    %1631 = vmatprep.subr.mxu0 0.0
    %1632 = vmatpush1.msra.mxu0 0.0
    %1633 = vmatprep.subr.mxu0 0.0
    %1634 = vmatpush1.msra.mxu0 0.0
    %1635 = vmatprep.subr.mxu0 0.0
    %1636 = vmatpush1.msra.mxu0 0.0
    %1637 = vmatprep.subr.mxu0 0.0
    %1638 = vmatpush1.msra.mxu0 0.0
    %1639 = vmatprep.subr.mxu0 0.0
    %1640 = vmatpush1.msra.mxu0 0.0
    %1641 = vmatprep.subr.mxu0 0.0
    %1642 = vmatpush1.msra.mxu0 0.0
    %1643 = vmatprep.subr.mxu0 0.0
    %1644 = vmatpush1.msra.mxu0 0.0
    %1645 = vmatprep.subr.mxu0 0.0
    %1646 = vmatpush1.msra.mxu0 0.0
    %1647 = vmatprep.subr.mxu0 0.0
    %1648 = vmatpush1.msra.mxu0 0.0
    %1649 = vmatprep.subr.mxu0 0.0
    %1650 = vmatpush1.msra.mxu0 0.0
    %1651 = vmatprep.subr.mxu0 0.0
    %1652 = vmatpush1.msra.mxu0 0.0
    %1653 = vmatprep.subr.mxu0 0.0
    %1654 = vmatpush1.msra.mxu0 0.0
    %1655 = vmatprep.mubr.f32.mxu0 0.0
    %1656 = vmatmul.mubr.f32.gmra.mrb[0].mxu0 %v1542
    %v1657 = vpop.f32.mrb[0].mxu0
    %v1658 = vadd.f32 0.0, %v1657
    %v1659 = vpop.f32.mrb[0].mxu0
    %1660 = vmatprep.mubr.f32.mxu0 0.0
    %1661 = vmatmul.mubr.f32.gmra.mrb[0].mxu0 %v1545
    %v1662 = vpop.f32.mrb[0].mxu0
    %v1663 = vadd.f32 0.0, %v1662
    %v1664 = vpop.f32.mrb[0].mxu0
    %1665 = vmatprep.mubr.f32.mxu0 0.0
    %1666 = vmatmul.mubr.f32.gmra.mrb[0].mxu0 %v1548
    %v1667 = vpop.f32.mrb[0].mxu0
    %v1668 = vadd.f32 0.0, %v1667
    %v1669 = vpop.f32.mrb[0].mxu0
    %1670 = vmatprep.mubr.f32.mxu0 0.0
    %1671 = vmatmul.mubr.f32.gmra.mrb[0].mxu0 %v1551
    %v1672 = vpop.f32.mrb[0].mxu0
    %v1673 = vadd.f32 0.0, %v1672
    %v1674 = vpop.f32.mrb[0].mxu0
    %1675 = vmatprep.mubr.f32.mxu0 0.0
    %1676 = vmatmul.mubr.f32.gmra.mrb[0].mxu0 %v1554
    %v1677 = vpop.f32.mrb[0].mxu0
    %v1678 = vadd.f32 0.0, %v1677
    %v1679 = vpop.f32.mrb[0].mxu0
    %1680 = vmatprep.mubr.f32.mxu0 0.0
    %1681 = vmatmul.mubr.f32.gmra.mrb[0].mxu0 %v1557
    %v1682 = vpop.f32.mrb[0].mxu0
    %v1683 = vadd.f32 0.0, %v1682
    %v1684 = vpop.f32.mrb[0].mxu0
    %1685 = vmatprep.mubr.f32.mxu0 0.0
    %1686 = vmatmul.mubr.f32.gmra.mrb[0].mxu0 %v1560
    %v1687 = vpop.f32.mrb[0].mxu0
    %v1688 = vadd.f32 0.0, %v1687
    %v1689 = vpop.f32.mrb[0].mxu0
    %1690 = vmatprep.mubr.f32.mxu0 0.0
    %1691 = vmatmul.mubr.f32.gmra.mrb[0].mxu0 %v1563
    %v1692 = vpop.f32.mrb[0].mxu0
    %v1693 = vadd.f32 0.0, %v1692
    %v1694 = vpop.f32.mrb[0].mxu0
    %1695 = vmatprep.mubr.f32.mxu0 0.0
    %1696 = vmatmul.mubr.f32.gmra.mrb[0].mxu0 %v1566
    %v1697 = vpop.f32.mrb[0].mxu0
    %v1698 = vadd.f32 0.0, %v1697
    %v1699 = vpop.f32.mrb[0].mxu0
    %1700 = vmatprep.mubr.f32.mxu0 0.0
    %1701 = vmatmul.mubr.f32.gmra.mrb[0].mxu0 %v1569
    %v1702 = vpop.f32.mrb[0].mxu0
    %v1703 = vadd.f32 0.0, %v1702
    %v1704 = vpop.f32.mrb[0].mxu0
    %1705 = vmatprep.mubr.f32.mxu0 0.0
    %1706 = vmatmul.mubr.f32.gmra.mrb[0].mxu0 %v1572
    %v1707 = vpop.f32.mrb[0].mxu0
    %v1708 = vadd.f32 0.0, %v1707
    %v1709 = vpop.f32.mrb[0].mxu0
    %1710 = vmatprep.mubr.f32.mxu0 0.0
    %1711 = vmatmul.mubr.f32.gmra.mrb[0].mxu0 %v1575
    %v1712 = vpop.f32.mrb[0].mxu0
    %v1713 = vadd.f32 0.0, %v1712
    %v1714 = vpop.f32.mrb[0].mxu0
    %1715 = vmatprep.mubr.f32.mxu0 0.0
    %1716 = vmatmul.mubr.f32.gmra.mrb[0].mxu0 %v1578
    %v1717 = vpop.f32.mrb[0].mxu0
    %v1718 = vadd.f32 0.0, %v1717
    %v1719 = vpop.f32.mrb[0].mxu0
    %1720 = vmatprep.mubr.f32.mxu0 0.0
    %1721 = vmatmul.mubr.f32.gmra.mrb[0].mxu0 %v1581
    %v1722 = vpop.f32.mrb[0].mxu0
    %v1723 = vadd.f32 0.0, %v1722
    %v1724 = vpop.f32.mrb[0].mxu0
    %1725 = vmatprep.mubr.f32.mxu0 0.0
    %1726 = vmatmul.mubr.f32.gmra.mrb[0].mxu0 %v1584
    %v1727 = vpop.f32.mrb[0].mxu0
    %v1728 = vadd.f32 0.0, %v1727
    %v1729 = vpop.f32.mrb[0].mxu0
    %1730 = vmatprep.mubr.f32.mxu0 0.0
    %1731 = vmatmul.mubr.f32.gmra.mrb[0].mxu0 %v1587
    %v1732 = vpop.f32.mrb[0].mxu0
    %v1733 = vadd.f32 0.0, %v1732
    %v1734 = vpop.f32.mrb[0].mxu0
    %1735 = vdwg.mxu0
    %v1736 = vadd.f32 %v1523, %v1658
    %v1737 = vadd.f32 %v1524, %v1663
    %v1738 = vadd.f32 %v1525, %v1668
    %v1739 = vadd.f32 %v1526, %v1673
    %v1740 = vadd.f32 %v1527, %v1678
    %v1741 = vadd.f32 %v1528, %v1683
    %v1742 = vadd.f32 %v1529, %v1688
    %v1743 = vadd.f32 %v1530, %v1693
    %v1744 = vadd.f32 %v1531, %v1698
    %v1745 = vadd.f32 %v1532, %v1703
    %v1746 = vadd.f32 %v1533, %v1708
    %v1747 = vadd.f32 %v1534, %v1713
    %v1748 = vadd.f32 %v1535, %v1718
    %v1749 = vadd.f32 %v1536, %v1723
    %v1750 = vadd.f32 %v1537, %v1728
    %v1751 = vadd.f32 %v1538, %v1733
    %s1752 = scalar_lea.vmem [#allocation2], 4
    %v1753 = vld [vmem:[%s1752] sm:$0xf]
    %1755 = vrot.lane.b32.xlu0 %v1753, 127
    %v1756 = vpop.permute.xlu0 %1755
    %v1757 = vsel %vm344, %v1756, 0
    %1759 = vmatprep.subr.mxu0 0.0
    %1760 = vmatpush1.msra.mxu0 %v1757
    %1761 = vmatprep.subr.mxu0 0.0
    %1762 = vmatpush1.msra.mxu0 0.0
    %1763 = vmatprep.subr.mxu0 0.0
    %1764 = vmatpush1.msra.mxu0 0.0
    %1765 = vmatprep.subr.mxu0 0.0
    %1766 = vmatpush1.msra.mxu0 0.0
    %1767 = vmatprep.subr.mxu0 0.0
    %1768 = vmatpush1.msra.mxu0 0.0
    %1769 = vmatprep.subr.mxu0 0.0
    %1770 = vmatpush1.msra.mxu0 0.0
    %1771 = vmatprep.subr.mxu0 0.0
    %1772 = vmatpush1.msra.mxu0 0.0
    %1773 = vmatprep.subr.mxu0 0.0
    %1774 = vmatpush1.msra.mxu0 0.0
    %1775 = vmatprep.subr.mxu0 0.0
    %1776 = vmatpush1.msra.mxu0 0.0
    %1777 = vmatprep.subr.mxu0 0.0
    %1778 = vmatpush1.msra.mxu0 0.0
    %1779 = vmatprep.subr.mxu0 0.0
    %1780 = vmatpush1.msra.mxu0 0.0
    %1781 = vmatprep.subr.mxu0 0.0
    %1782 = vmatpush1.msra.mxu0 0.0
    %1783 = vmatprep.subr.mxu0 0.0
    %1784 = vmatpush1.msra.mxu0 0.0
    %1785 = vmatprep.subr.mxu0 0.0
    %1786 = vmatpush1.msra.mxu0 0.0
    %1787 = vmatprep.subr.mxu0 0.0
    %1788 = vmatpush1.msra.mxu0 0.0
    %1789 = vmatprep.subr.mxu0 0.0
    %1790 = vmatpush1.msra.mxu0 0.0
    %1791 = vmatprep.subr.mxu0 0.0
    %1792 = vmatpush1.msra.mxu0 0.0
    %1793 = vmatprep.subr.mxu0 0.0
    %1794 = vmatpush1.msra.mxu0 0.0
    %1795 = vmatprep.subr.mxu0 0.0
    %1796 = vmatpush1.msra.mxu0 0.0
    %1797 = vmatprep.subr.mxu0 0.0
    %1798 = vmatpush1.msra.mxu0 0.0
    %1799 = vmatprep.subr.mxu0 0.0
    %1800 = vmatpush1.msra.mxu0 0.0
    %1801 = vmatprep.subr.mxu0 0.0
    %1802 = vmatpush1.msra.mxu0 0.0
    %1803 = vmatprep.subr.mxu0 0.0
    %1804 = vmatpush1.msra.mxu0 0.0
    %1805 = vmatprep.subr.mxu0 0.0
    %1806 = vmatpush1.msra.mxu0 0.0
    %1807 = vmatprep.subr.mxu0 0.0
    %1808 = vmatpush1.msra.mxu0 0.0
    %1809 = vmatprep.subr.mxu0 0.0
    %1810 = vmatpush1.msra.mxu0 0.0
    %1811 = vmatprep.subr.mxu0 0.0
    %1812 = vmatpush1.msra.mxu0 0.0
    %1813 = vmatprep.subr.mxu0 0.0
    %1814 = vmatpush1.msra.mxu0 0.0
    %1815 = vmatprep.subr.mxu0 0.0
    %1816 = vmatpush1.msra.mxu0 0.0
    %1817 = vmatprep.subr.mxu0 0.0
    %1818 = vmatpush1.msra.mxu0 0.0
    %1819 = vmatprep.subr.mxu0 0.0
    %1820 = vmatpush1.msra.mxu0 0.0
    %1821 = vmatprep.subr.mxu0 0.0
    %1822 = vmatpush1.msra.mxu0 0.0
    %1823 = vmatprep.mubr.f32.mxu0 0.0
    %1824 = vmatmul.mubr.f32.gmra.mrb[0].mxu0 %v297
    %v1825 = vpop.f32.mrb[0].mxu0
    %v1826 = vadd.f32 0.0, %v1825
    %v1827 = vpop.f32.mrb[0].mxu0
    %1828 = vmatprep.mubr.f32.mxu0 0.0
    %1829 = vmatmul.mubr.f32.gmra.mrb[0].mxu0 %v300
    %v1830 = vpop.f32.mrb[0].mxu0
    %v1831 = vadd.f32 0.0, %v1830
    %v1832 = vpop.f32.mrb[0].mxu0
    %1833 = vmatprep.mubr.f32.mxu0 0.0
    %1834 = vmatmul.mubr.f32.gmra.mrb[0].mxu0 %v303
    %v1835 = vpop.f32.mrb[0].mxu0
    %v1836 = vadd.f32 0.0, %v1835
    %v1837 = vpop.f32.mrb[0].mxu0
    %1838 = vmatprep.mubr.f32.mxu0 0.0
    %1839 = vmatmul.mubr.f32.gmra.mrb[0].mxu0 %v306
    %v1840 = vpop.f32.mrb[0].mxu0
    %v1841 = vadd.f32 0.0, %v1840
    %v1842 = vpop.f32.mrb[0].mxu0
    %1843 = vmatprep.mubr.f32.mxu0 0.0
    %1844 = vmatmul.mubr.f32.gmra.mrb[0].mxu0 %v309
    %v1845 = vpop.f32.mrb[0].mxu0
    %v1846 = vadd.f32 0.0, %v1845
    %v1847 = vpop.f32.mrb[0].mxu0
    %1848 = vmatprep.mubr.f32.mxu0 0.0
    %1849 = vmatmul.mubr.f32.gmra.mrb[0].mxu0 %v312
    %v1850 = vpop.f32.mrb[0].mxu0
    %v1851 = vadd.f32 0.0, %v1850
    %v1852 = vpop.f32.mrb[0].mxu0
    %1853 = vmatprep.mubr.f32.mxu0 0.0
    %1854 = vmatmul.mubr.f32.gmra.mrb[0].mxu0 %v315
    %v1855 = vpop.f32.mrb[0].mxu0
    %v1856 = vadd.f32 0.0, %v1855
    %v1857 = vpop.f32.mrb[0].mxu0
    %1858 = vmatprep.mubr.f32.mxu0 0.0
    %1859 = vmatmul.mubr.f32.gmra.mrb[0].mxu0 %v318
    %v1860 = vpop.f32.mrb[0].mxu0
    %v1861 = vadd.f32 0.0, %v1860
    %v1862 = vpop.f32.mrb[0].mxu0
    %1863 = vmatprep.mubr.f32.mxu0 0.0
    %1864 = vmatmul.mubr.f32.gmra.mrb[0].mxu0 %v321
    %v1865 = vpop.f32.mrb[0].mxu0
    %v1866 = vadd.f32 0.0, %v1865
    %v1867 = vpop.f32.mrb[0].mxu0
    %1868 = vmatprep.mubr.f32.mxu0 0.0
    %1869 = vmatmul.mubr.f32.gmra.mrb[0].mxu0 %v324
    %v1870 = vpop.f32.mrb[0].mxu0
    %v1871 = vadd.f32 0.0, %v1870
    %v1872 = vpop.f32.mrb[0].mxu0
    %1873 = vmatprep.mubr.f32.mxu0 0.0
    %1874 = vmatmul.mubr.f32.gmra.mrb[0].mxu0 %v327
    %v1875 = vpop.f32.mrb[0].mxu0
    %v1876 = vadd.f32 0.0, %v1875
    %v1877 = vpop.f32.mrb[0].mxu0
    %1878 = vmatprep.mubr.f32.mxu0 0.0
    %1879 = vmatmul.mubr.f32.gmra.mrb[0].mxu0 %v330
    %v1880 = vpop.f32.mrb[0].mxu0
    %v1881 = vadd.f32 0.0, %v1880
    %v1882 = vpop.f32.mrb[0].mxu0
    %1883 = vmatprep.mubr.f32.mxu0 0.0
    %1884 = vmatmul.mubr.f32.gmra.mrb[0].mxu0 %v333
    %v1885 = vpop.f32.mrb[0].mxu0
    %v1886 = vadd.f32 0.0, %v1885
    %v1887 = vpop.f32.mrb[0].mxu0
    %1888 = vmatprep.mubr.f32.mxu0 0.0
    %1889 = vmatmul.mubr.f32.gmra.mrb[0].mxu0 %v336
    %v1890 = vpop.f32.mrb[0].mxu0
    %v1891 = vadd.f32 0.0, %v1890
    %v1892 = vpop.f32.mrb[0].mxu0
    %1893 = vmatprep.mubr.f32.mxu0 0.0
    %1894 = vmatmul.mubr.f32.gmra.mrb[0].mxu0 %v339
    %v1895 = vpop.f32.mrb[0].mxu0
    %v1896 = vadd.f32 0.0, %v1895
    %v1897 = vpop.f32.mrb[0].mxu0
    %1898 = vmatprep.mubr.f32.mxu0 0.0
    %1899 = vmatmul.mubr.f32.gmra.mrb[0].mxu0 %v342
    %v1900 = vpop.f32.mrb[0].mxu0
    %v1901 = vadd.f32 0.0, %v1900
    %v1902 = vpop.f32.mrb[0].mxu0
    %1903 = vdwg.mxu0
    %v1904 = vsel %vm344, %v1753, 0
    %1906 = vmatprep.subr.mxu0 0.0
    %1907 = vmatpush1.msra.mxu0 %v1904
    %1908 = vmatprep.subr.mxu0 0.0
    %1909 = vmatpush1.msra.mxu0 0.0
    %1910 = vmatprep.subr.mxu0 0.0
    %1911 = vmatpush1.msra.mxu0 0.0
    %1912 = vmatprep.subr.mxu0 0.0
    %1913 = vmatpush1.msra.mxu0 0.0
    %1914 = vmatprep.subr.mxu0 0.0
    %1915 = vmatpush1.msra.mxu0 0.0
    %1916 = vmatprep.subr.mxu0 0.0
    %1917 = vmatpush1.msra.mxu0 0.0
    %1918 = vmatprep.subr.mxu0 0.0
    %1919 = vmatpush1.msra.mxu0 0.0
    %1920 = vmatprep.subr.mxu0 0.0
    %1921 = vmatpush1.msra.mxu0 0.0
    %1922 = vmatprep.subr.mxu0 0.0
    %1923 = vmatpush1.msra.mxu0 0.0
    %1924 = vmatprep.subr.mxu0 0.0
    %1925 = vmatpush1.msra.mxu0 0.0
    %1926 = vmatprep.subr.mxu0 0.0
    %1927 = vmatpush1.msra.mxu0 0.0
    %1928 = vmatprep.subr.mxu0 0.0
    %1929 = vmatpush1.msra.mxu0 0.0
    %1930 = vmatprep.subr.mxu0 0.0
    %1931 = vmatpush1.msra.mxu0 0.0
    %1932 = vmatprep.subr.mxu0 0.0
    %1933 = vmatpush1.msra.mxu0 0.0
    %1934 = vmatprep.subr.mxu0 0.0
    %1935 = vmatpush1.msra.mxu0 0.0
    %1936 = vmatprep.subr.mxu0 0.0
    %1937 = vmatpush1.msra.mxu0 0.0
    %1938 = vmatprep.subr.mxu0 0.0
    %1939 = vmatpush1.msra.mxu0 0.0
    %1940 = vmatprep.subr.mxu0 0.0
    %1941 = vmatpush1.msra.mxu0 0.0
    %1942 = vmatprep.subr.mxu0 0.0
    %1943 = vmatpush1.msra.mxu0 0.0
    %1944 = vmatprep.subr.mxu0 0.0
    %1945 = vmatpush1.msra.mxu0 0.0
    %1946 = vmatprep.subr.mxu0 0.0
    %1947 = vmatpush1.msra.mxu0 0.0
    %1948 = vmatprep.subr.mxu0 0.0
    %1949 = vmatpush1.msra.mxu0 0.0
    %1950 = vmatprep.subr.mxu0 0.0
    %1951 = vmatpush1.msra.mxu0 0.0
    %1952 = vmatprep.subr.mxu0 0.0
    %1953 = vmatpush1.msra.mxu0 0.0
    %1954 = vmatprep.subr.mxu0 0.0
    %1955 = vmatpush1.msra.mxu0 0.0
    %1956 = vmatprep.subr.mxu0 0.0
    %1957 = vmatpush1.msra.mxu0 0.0
    %1958 = vmatprep.subr.mxu0 0.0
    %1959 = vmatpush1.msra.mxu0 0.0
    %1960 = vmatprep.subr.mxu0 0.0
    %1961 = vmatpush1.msra.mxu0 0.0
    %1962 = vmatprep.subr.mxu0 0.0
    %1963 = vmatpush1.msra.mxu0 0.0
    %1964 = vmatprep.subr.mxu0 0.0
    %1965 = vmatpush1.msra.mxu0 0.0
    %1966 = vmatprep.subr.mxu0 0.0
    %1967 = vmatpush1.msra.mxu0 0.0
    %1968 = vmatprep.subr.mxu0 0.0
    %1969 = vmatpush1.msra.mxu0 0.0
    %1970 = vmatprep.mubr.f32.mxu0 0.0
    %1971 = vmatmul.mubr.f32.gmra.mrb[0].mxu0 %v493
    %v1972 = vpop.f32.mrb[0].mxu0
    %v1973 = vadd.f32 %v1826, %v1972
    %v1974 = vpop.f32.mrb[0].mxu0
    %1975 = vmatprep.mubr.f32.mxu0 0.0
    %1976 = vmatmul.mubr.f32.gmra.mrb[0].mxu0 %v496
    %v1977 = vpop.f32.mrb[0].mxu0
    %v1978 = vadd.f32 %v1831, %v1977
    %v1979 = vpop.f32.mrb[0].mxu0
    %1980 = vmatprep.mubr.f32.mxu0 0.0
    %1981 = vmatmul.mubr.f32.gmra.mrb[0].mxu0 %v499
    %v1982 = vpop.f32.mrb[0].mxu0
    %v1983 = vadd.f32 %v1836, %v1982
    %v1984 = vpop.f32.mrb[0].mxu0
    %1985 = vmatprep.mubr.f32.mxu0 0.0
    %1986 = vmatmul.mubr.f32.gmra.mrb[0].mxu0 %v502
    %v1987 = vpop.f32.mrb[0].mxu0
    %v1988 = vadd.f32 %v1841, %v1987
    %v1989 = vpop.f32.mrb[0].mxu0
    %1990 = vmatprep.mubr.f32.mxu0 0.0
    %1991 = vmatmul.mubr.f32.gmra.mrb[0].mxu0 %v505
    %v1992 = vpop.f32.mrb[0].mxu0
    %v1993 = vadd.f32 %v1846, %v1992
    %v1994 = vpop.f32.mrb[0].mxu0
    %1995 = vmatprep.mubr.f32.mxu0 0.0
    %1996 = vmatmul.mubr.f32.gmra.mrb[0].mxu0 %v508
    %v1997 = vpop.f32.mrb[0].mxu0
    %v1998 = vadd.f32 %v1851, %v1997
    %v1999 = vpop.f32.mrb[0].mxu0
    %2000 = vmatprep.mubr.f32.mxu0 0.0
    %2001 = vmatmul.mubr.f32.gmra.mrb[0].mxu0 %v511
    %v2002 = vpop.f32.mrb[0].mxu0
    %v2003 = vadd.f32 %v1856, %v2002
    %v2004 = vpop.f32.mrb[0].mxu0
    %2005 = vmatprep.mubr.f32.mxu0 0.0
    %2006 = vmatmul.mubr.f32.gmra.mrb[0].mxu0 %v514
    %v2007 = vpop.f32.mrb[0].mxu0
    %v2008 = vadd.f32 %v1861, %v2007
    %v2009 = vpop.f32.mrb[0].mxu0
    %2010 = vmatprep.mubr.f32.mxu0 0.0
    %2011 = vmatmul.mubr.f32.gmra.mrb[0].mxu0 %v517
    %v2012 = vpop.f32.mrb[0].mxu0
    %v2013 = vadd.f32 %v1866, %v2012
    %v2014 = vpop.f32.mrb[0].mxu0
    %2015 = vmatprep.mubr.f32.mxu0 0.0
    %2016 = vmatmul.mubr.f32.gmra.mrb[0].mxu0 %v520
    %v2017 = vpop.f32.mrb[0].mxu0
    %v2018 = vadd.f32 %v1871, %v2017
    %v2019 = vpop.f32.mrb[0].mxu0
    %2020 = vmatprep.mubr.f32.mxu0 0.0
    %2021 = vmatmul.mubr.f32.gmra.mrb[0].mxu0 %v523
    %v2022 = vpop.f32.mrb[0].mxu0
    %v2023 = vadd.f32 %v1876, %v2022
    %v2024 = vpop.f32.mrb[0].mxu0
    %2025 = vmatprep.mubr.f32.mxu0 0.0
    %2026 = vmatmul.mubr.f32.gmra.mrb[0].mxu0 %v526
    %v2027 = vpop.f32.mrb[0].mxu0
    %v2028 = vadd.f32 %v1881, %v2027
    %v2029 = vpop.f32.mrb[0].mxu0
    %2030 = vmatprep.mubr.f32.mxu0 0.0
    %2031 = vmatmul.mubr.f32.gmra.mrb[0].mxu0 %v529
    %v2032 = vpop.f32.mrb[0].mxu0
    %v2033 = vadd.f32 %v1886, %v2032
    %v2034 = vpop.f32.mrb[0].mxu0
    %2035 = vmatprep.mubr.f32.mxu0 0.0
    %2036 = vmatmul.mubr.f32.gmra.mrb[0].mxu0 %v532
    %v2037 = vpop.f32.mrb[0].mxu0
    %v2038 = vadd.f32 %v1891, %v2037
    %v2039 = vpop.f32.mrb[0].mxu0
    %2040 = vmatprep.mubr.f32.mxu0 0.0
    %2041 = vmatmul.mubr.f32.gmra.mrb[0].mxu0 %v535
    %v2042 = vpop.f32.mrb[0].mxu0
    %v2043 = vadd.f32 %v1896, %v2042
    %v2044 = vpop.f32.mrb[0].mxu0
    %2045 = vmatprep.mubr.f32.mxu0 0.0
    %2046 = vmatmul.mubr.f32.gmra.mrb[0].mxu0 %v538
    %v2047 = vpop.f32.mrb[0].mxu0
    %v2048 = vadd.f32 %v1901, %v2047
    %v2049 = vpop.f32.mrb[0].mxu0
    %2050 = vdwg.mxu0
    %2051 = vrot.lane.b32.xlu0 %v1753, 126
    %v2052 = vpop.permute.xlu0 %2051
    %v2053 = vsel %vm344, %v2052, 0
    %2055 = vmatprep.subr.mxu0 0.0
    %2056 = vmatpush1.msra.mxu0 %v2053
    %2057 = vmatprep.subr.mxu0 0.0
    %2058 = vmatpush1.msra.mxu0 0.0
    %2059 = vmatprep.subr.mxu0 0.0
    %2060 = vmatpush1.msra.mxu0 0.0
    %2061 = vmatprep.subr.mxu0 0.0
    %2062 = vmatpush1.msra.mxu0 0.0
    %2063 = vmatprep.subr.mxu0 0.0
    %2064 = vmatpush1.msra.mxu0 0.0
    %2065 = vmatprep.subr.mxu0 0.0
    %2066 = vmatpush1.msra.mxu0 0.0
    %2067 = vmatprep.subr.mxu0 0.0
    %2068 = vmatpush1.msra.mxu0 0.0
    %2069 = vmatprep.subr.mxu0 0.0
    %2070 = vmatpush1.msra.mxu0 0.0
    %2071 = vmatprep.subr.mxu0 0.0
    %2072 = vmatpush1.msra.mxu0 0.0
    %2073 = vmatprep.subr.mxu0 0.0
    %2074 = vmatpush1.msra.mxu0 0.0
    %2075 = vmatprep.subr.mxu0 0.0
    %2076 = vmatpush1.msra.mxu0 0.0
    %2077 = vmatprep.subr.mxu0 0.0
    %2078 = vmatpush1.msra.mxu0 0.0
    %2079 = vmatprep.subr.mxu0 0.0
    %2080 = vmatpush1.msra.mxu0 0.0
    %2081 = vmatprep.subr.mxu0 0.0
    %2082 = vmatpush1.msra.mxu0 0.0
    %2083 = vmatprep.subr.mxu0 0.0
    %2084 = vmatpush1.msra.mxu0 0.0
    %2085 = vmatprep.subr.mxu0 0.0
    %2086 = vmatpush1.msra.mxu0 0.0
    %2087 = vmatprep.subr.mxu0 0.0
    %2088 = vmatpush1.msra.mxu0 0.0
    %2089 = vmatprep.subr.mxu0 0.0
    %2090 = vmatpush1.msra.mxu0 0.0
    %2091 = vmatprep.subr.mxu0 0.0
    %2092 = vmatpush1.msra.mxu0 0.0
    %2093 = vmatprep.subr.mxu0 0.0
    %2094 = vmatpush1.msra.mxu0 0.0
    %2095 = vmatprep.subr.mxu0 0.0
    %2096 = vmatpush1.msra.mxu0 0.0
    %2097 = vmatprep.subr.mxu0 0.0
    %2098 = vmatpush1.msra.mxu0 0.0
    %2099 = vmatprep.subr.mxu0 0.0
    %2100 = vmatpush1.msra.mxu0 0.0
    %2101 = vmatprep.subr.mxu0 0.0
    %2102 = vmatpush1.msra.mxu0 0.0
    %2103 = vmatprep.subr.mxu0 0.0
    %2104 = vmatpush1.msra.mxu0 0.0
    %2105 = vmatprep.subr.mxu0 0.0
    %2106 = vmatpush1.msra.mxu0 0.0
    %2107 = vmatprep.subr.mxu0 0.0
    %2108 = vmatpush1.msra.mxu0 0.0
    %2109 = vmatprep.subr.mxu0 0.0
    %2110 = vmatpush1.msra.mxu0 0.0
    %2111 = vmatprep.subr.mxu0 0.0
    %2112 = vmatpush1.msra.mxu0 0.0
    %2113 = vmatprep.subr.mxu0 0.0
    %2114 = vmatpush1.msra.mxu0 0.0
    %2115 = vmatprep.subr.mxu0 0.0
    %2116 = vmatpush1.msra.mxu0 0.0
    %2117 = vmatprep.subr.mxu0 0.0
    %2118 = vmatpush1.msra.mxu0 0.0
    %2119 = vmatprep.mubr.f32.mxu0 0.0
    %2120 = vmatmul.mubr.f32.gmra.mrb[0].mxu0 %v690
    %v2121 = vpop.f32.mrb[0].mxu0
    %v2122 = vadd.f32 0.0, %v2121
    %v2123 = vpop.f32.mrb[0].mxu0
    %2124 = vmatprep.mubr.f32.mxu0 0.0
    %2125 = vmatmul.mubr.f32.gmra.mrb[0].mxu0 %v693
    %v2126 = vpop.f32.mrb[0].mxu0
    %v2127 = vadd.f32 0.0, %v2126
    %v2128 = vpop.f32.mrb[0].mxu0
    %2129 = vmatprep.mubr.f32.mxu0 0.0
    %2130 = vmatmul.mubr.f32.gmra.mrb[0].mxu0 %v696
    %v2131 = vpop.f32.mrb[0].mxu0
    %v2132 = vadd.f32 0.0, %v2131
    %v2133 = vpop.f32.mrb[0].mxu0
    %2134 = vmatprep.mubr.f32.mxu0 0.0
    %2135 = vmatmul.mubr.f32.gmra.mrb[0].mxu0 %v699
    %v2136 = vpop.f32.mrb[0].mxu0
    %v2137 = vadd.f32 0.0, %v2136
    %v2138 = vpop.f32.mrb[0].mxu0
    %2139 = vmatprep.mubr.f32.mxu0 0.0
    %2140 = vmatmul.mubr.f32.gmra.mrb[0].mxu0 %v702
    %v2141 = vpop.f32.mrb[0].mxu0
    %v2142 = vadd.f32 0.0, %v2141
    %v2143 = vpop.f32.mrb[0].mxu0
    %2144 = vmatprep.mubr.f32.mxu0 0.0
    %2145 = vmatmul.mubr.f32.gmra.mrb[0].mxu0 %v705
    %v2146 = vpop.f32.mrb[0].mxu0
    %v2147 = vadd.f32 0.0, %v2146
    %v2148 = vpop.f32.mrb[0].mxu0
    %2149 = vmatprep.mubr.f32.mxu0 0.0
    %2150 = vmatmul.mubr.f32.gmra.mrb[0].mxu0 %v708
    %v2151 = vpop.f32.mrb[0].mxu0
    %v2152 = vadd.f32 0.0, %v2151
    %v2153 = vpop.f32.mrb[0].mxu0
    %2154 = vmatprep.mubr.f32.mxu0 0.0
    %2155 = vmatmul.mubr.f32.gmra.mrb[0].mxu0 %v711
    %v2156 = vpop.f32.mrb[0].mxu0
    %v2157 = vadd.f32 0.0, %v2156
    %v2158 = vpop.f32.mrb[0].mxu0
    %2159 = vmatprep.mubr.f32.mxu0 0.0
    %2160 = vmatmul.mubr.f32.gmra.mrb[0].mxu0 %v714
    %v2161 = vpop.f32.mrb[0].mxu0
    %v2162 = vadd.f32 0.0, %v2161
    %v2163 = vpop.f32.mrb[0].mxu0
    %2164 = vmatprep.mubr.f32.mxu0 0.0
    %2165 = vmatmul.mubr.f32.gmra.mrb[0].mxu0 %v717
    %v2166 = vpop.f32.mrb[0].mxu0
    %v2167 = vadd.f32 0.0, %v2166
    %v2168 = vpop.f32.mrb[0].mxu0
    %2169 = vmatprep.mubr.f32.mxu0 0.0
    %2170 = vmatmul.mubr.f32.gmra.mrb[0].mxu0 %v720
    %v2171 = vpop.f32.mrb[0].mxu0
    %v2172 = vadd.f32 0.0, %v2171
    %v2173 = vpop.f32.mrb[0].mxu0
    %2174 = vmatprep.mubr.f32.mxu0 0.0
    %2175 = vmatmul.mubr.f32.gmra.mrb[0].mxu0 %v723
    %v2176 = vpop.f32.mrb[0].mxu0
    %v2177 = vadd.f32 0.0, %v2176
    %v2178 = vpop.f32.mrb[0].mxu0
    %2179 = vmatprep.mubr.f32.mxu0 0.0
    %2180 = vmatmul.mubr.f32.gmra.mrb[0].mxu0 %v726
    %v2181 = vpop.f32.mrb[0].mxu0
    %v2182 = vadd.f32 0.0, %v2181
    %v2183 = vpop.f32.mrb[0].mxu0
    %2184 = vmatprep.mubr.f32.mxu0 0.0
    %2185 = vmatmul.mubr.f32.gmra.mrb[0].mxu0 %v729
    %v2186 = vpop.f32.mrb[0].mxu0
    %v2187 = vadd.f32 0.0, %v2186
    %v2188 = vpop.f32.mrb[0].mxu0
    %2189 = vmatprep.mubr.f32.mxu0 0.0
    %2190 = vmatmul.mubr.f32.gmra.mrb[0].mxu0 %v732
    %v2191 = vpop.f32.mrb[0].mxu0
    %v2192 = vadd.f32 0.0, %v2191
    %v2193 = vpop.f32.mrb[0].mxu0
    %2194 = vmatprep.mubr.f32.mxu0 0.0
    %2195 = vmatmul.mubr.f32.gmra.mrb[0].mxu0 %v735
    %v2196 = vpop.f32.mrb[0].mxu0
    %v2197 = vadd.f32 0.0, %v2196
    %v2198 = vpop.f32.mrb[0].mxu0
    %2199 = vdwg.mxu0
    %v2200 = vadd.f32 %v1973, %v2122
    %v2201 = vadd.f32 %v1978, %v2127
    %v2202 = vadd.f32 %v1983, %v2132
    %v2203 = vadd.f32 %v1988, %v2137
    %v2204 = vadd.f32 %v1993, %v2142
    %v2205 = vadd.f32 %v1998, %v2147
    %v2206 = vadd.f32 %v2003, %v2152
    %v2207 = vadd.f32 %v2008, %v2157
    %v2208 = vadd.f32 %v2013, %v2162
    %v2209 = vadd.f32 %v2018, %v2167
    %v2210 = vadd.f32 %v2023, %v2172
    %v2211 = vadd.f32 %v2028, %v2177
    %v2212 = vadd.f32 %v2033, %v2182
    %v2213 = vadd.f32 %v2038, %v2187
    %v2214 = vadd.f32 %v2043, %v2192
    %v2215 = vadd.f32 %v2048, %v2197
    %2216 = vrot.lane.b32.xlu0 %v1753, 125
    %v2217 = vpop.permute.xlu0 %2216
    %v2218 = vsel %vm344, %v2217, 0
    %2220 = vmatprep.subr.mxu0 0.0
    %2221 = vmatpush1.msra.mxu0 %v2218
    %2222 = vmatprep.subr.mxu0 0.0
    %2223 = vmatpush1.msra.mxu0 0.0
    %2224 = vmatprep.subr.mxu0 0.0
    %2225 = vmatpush1.msra.mxu0 0.0
    %2226 = vmatprep.subr.mxu0 0.0
    %2227 = vmatpush1.msra.mxu0 0.0
    %2228 = vmatprep.subr.mxu0 0.0
    %2229 = vmatpush1.msra.mxu0 0.0
    %2230 = vmatprep.subr.mxu0 0.0
    %2231 = vmatpush1.msra.mxu0 0.0
    %2232 = vmatprep.subr.mxu0 0.0
    %2233 = vmatpush1.msra.mxu0 0.0
    %2234 = vmatprep.subr.mxu0 0.0
    %2235 = vmatpush1.msra.mxu0 0.0
    %2236 = vmatprep.subr.mxu0 0.0
    %2237 = vmatpush1.msra.mxu0 0.0
    %2238 = vmatprep.subr.mxu0 0.0
    %2239 = vmatpush1.msra.mxu0 0.0
    %2240 = vmatprep.subr.mxu0 0.0
    %2241 = vmatpush1.msra.mxu0 0.0
    %2242 = vmatprep.subr.mxu0 0.0
    %2243 = vmatpush1.msra.mxu0 0.0
    %2244 = vmatprep.subr.mxu0 0.0
    %2245 = vmatpush1.msra.mxu0 0.0
    %2246 = vmatprep.subr.mxu0 0.0
    %2247 = vmatpush1.msra.mxu0 0.0
    %2248 = vmatprep.subr.mxu0 0.0
    %2249 = vmatpush1.msra.mxu0 0.0
    %2250 = vmatprep.subr.mxu0 0.0
    %2251 = vmatpush1.msra.mxu0 0.0
    %2252 = vmatprep.subr.mxu0 0.0
    %2253 = vmatpush1.msra.mxu0 0.0
    %2254 = vmatprep.subr.mxu0 0.0
    %2255 = vmatpush1.msra.mxu0 0.0
    %2256 = vmatprep.subr.mxu0 0.0
    %2257 = vmatpush1.msra.mxu0 0.0
    %2258 = vmatprep.subr.mxu0 0.0
    %2259 = vmatpush1.msra.mxu0 0.0
    %2260 = vmatprep.subr.mxu0 0.0
    %2261 = vmatpush1.msra.mxu0 0.0
    %2262 = vmatprep.subr.mxu0 0.0
    %2263 = vmatpush1.msra.mxu0 0.0
    %2264 = vmatprep.subr.mxu0 0.0
    %2265 = vmatpush1.msra.mxu0 0.0
    %2266 = vmatprep.subr.mxu0 0.0
    %2267 = vmatpush1.msra.mxu0 0.0
    %2268 = vmatprep.subr.mxu0 0.0
    %2269 = vmatpush1.msra.mxu0 0.0
    %2270 = vmatprep.subr.mxu0 0.0
    %2271 = vmatpush1.msra.mxu0 0.0
    %2272 = vmatprep.subr.mxu0 0.0
    %2273 = vmatpush1.msra.mxu0 0.0
    %2274 = vmatprep.subr.mxu0 0.0
    %2275 = vmatpush1.msra.mxu0 0.0
    %2276 = vmatprep.subr.mxu0 0.0
    %2277 = vmatpush1.msra.mxu0 0.0
    %2278 = vmatprep.subr.mxu0 0.0
    %2279 = vmatpush1.msra.mxu0 0.0
    %2280 = vmatprep.subr.mxu0 0.0
    %2281 = vmatpush1.msra.mxu0 0.0
    %2282 = vmatprep.subr.mxu0 0.0
    %2283 = vmatpush1.msra.mxu0 0.0
    %2284 = vmatprep.mubr.f32.mxu0 0.0
    %2285 = vmatmul.mubr.f32.gmra.mrb[0].mxu0 %v903
    %v2286 = vpop.f32.mrb[0].mxu0
    %v2287 = vadd.f32 0.0, %v2286
    %v2288 = vpop.f32.mrb[0].mxu0
    %2289 = vmatprep.mubr.f32.mxu0 0.0
    %2290 = vmatmul.mubr.f32.gmra.mrb[0].mxu0 %v906
    %v2291 = vpop.f32.mrb[0].mxu0
    %v2292 = vadd.f32 0.0, %v2291
    %v2293 = vpop.f32.mrb[0].mxu0
    %2294 = vmatprep.mubr.f32.mxu0 0.0
    %2295 = vmatmul.mubr.f32.gmra.mrb[0].mxu0 %v909
    %v2296 = vpop.f32.mrb[0].mxu0
    %v2297 = vadd.f32 0.0, %v2296
    %v2298 = vpop.f32.mrb[0].mxu0
    %2299 = vmatprep.mubr.f32.mxu0 0.0
    %2300 = vmatmul.mubr.f32.gmra.mrb[0].mxu0 %v912
    %v2301 = vpop.f32.mrb[0].mxu0
    %v2302 = vadd.f32 0.0, %v2301
    %v2303 = vpop.f32.mrb[0].mxu0
    %2304 = vmatprep.mubr.f32.mxu0 0.0
    %2305 = vmatmul.mubr.f32.gmra.mrb[0].mxu0 %v915
    %v2306 = vpop.f32.mrb[0].mxu0
    %v2307 = vadd.f32 0.0, %v2306
    %v2308 = vpop.f32.mrb[0].mxu0
    %2309 = vmatprep.mubr.f32.mxu0 0.0
    %2310 = vmatmul.mubr.f32.gmra.mrb[0].mxu0 %v918
    %v2311 = vpop.f32.mrb[0].mxu0
    %v2312 = vadd.f32 0.0, %v2311
    %v2313 = vpop.f32.mrb[0].mxu0
    %2314 = vmatprep.mubr.f32.mxu0 0.0
    %2315 = vmatmul.mubr.f32.gmra.mrb[0].mxu0 %v921
    %v2316 = vpop.f32.mrb[0].mxu0
    %v2317 = vadd.f32 0.0, %v2316
    %v2318 = vpop.f32.mrb[0].mxu0
    %2319 = vmatprep.mubr.f32.mxu0 0.0
    %2320 = vmatmul.mubr.f32.gmra.mrb[0].mxu0 %v924
    %v2321 = vpop.f32.mrb[0].mxu0
    %v2322 = vadd.f32 0.0, %v2321
    %v2323 = vpop.f32.mrb[0].mxu0
    %2324 = vmatprep.mubr.f32.mxu0 0.0
    %2325 = vmatmul.mubr.f32.gmra.mrb[0].mxu0 %v927
    %v2326 = vpop.f32.mrb[0].mxu0
    %v2327 = vadd.f32 0.0, %v2326
    %v2328 = vpop.f32.mrb[0].mxu0
    %2329 = vmatprep.mubr.f32.mxu0 0.0
    %2330 = vmatmul.mubr.f32.gmra.mrb[0].mxu0 %v930
    %v2331 = vpop.f32.mrb[0].mxu0
    %v2332 = vadd.f32 0.0, %v2331
    %v2333 = vpop.f32.mrb[0].mxu0
    %2334 = vmatprep.mubr.f32.mxu0 0.0
    %2335 = vmatmul.mubr.f32.gmra.mrb[0].mxu0 %v933
    %v2336 = vpop.f32.mrb[0].mxu0
    %v2337 = vadd.f32 0.0, %v2336
    %v2338 = vpop.f32.mrb[0].mxu0
    %2339 = vmatprep.mubr.f32.mxu0 0.0
    %2340 = vmatmul.mubr.f32.gmra.mrb[0].mxu0 %v936
    %v2341 = vpop.f32.mrb[0].mxu0
    %v2342 = vadd.f32 0.0, %v2341
    %v2343 = vpop.f32.mrb[0].mxu0
    %2344 = vmatprep.mubr.f32.mxu0 0.0
    %2345 = vmatmul.mubr.f32.gmra.mrb[0].mxu0 %v939
    %v2346 = vpop.f32.mrb[0].mxu0
    %v2347 = vadd.f32 0.0, %v2346
    %v2348 = vpop.f32.mrb[0].mxu0
    %2349 = vmatprep.mubr.f32.mxu0 0.0
    %2350 = vmatmul.mubr.f32.gmra.mrb[0].mxu0 %v942
    %v2351 = vpop.f32.mrb[0].mxu0
    %v2352 = vadd.f32 0.0, %v2351
    %v2353 = vpop.f32.mrb[0].mxu0
    %2354 = vmatprep.mubr.f32.mxu0 0.0
    %2355 = vmatmul.mubr.f32.gmra.mrb[0].mxu0 %v945
    %v2356 = vpop.f32.mrb[0].mxu0
    %v2357 = vadd.f32 0.0, %v2356
    %v2358 = vpop.f32.mrb[0].mxu0
    %2359 = vmatprep.mubr.f32.mxu0 0.0
    %2360 = vmatmul.mubr.f32.gmra.mrb[0].mxu0 %v948
    %v2361 = vpop.f32.mrb[0].mxu0
    %v2362 = vadd.f32 0.0, %v2361
    %v2363 = vpop.f32.mrb[0].mxu0
    %2364 = vdwg.mxu0
    %v2365 = vadd.f32 %v2200, %v2287
    %v2366 = vadd.f32 %v2201, %v2292
    %v2367 = vadd.f32 %v2202, %v2297
    %v2368 = vadd.f32 %v2203, %v2302
    %v2369 = vadd.f32 %v2204, %v2307
    %v2370 = vadd.f32 %v2205, %v2312
    %v2371 = vadd.f32 %v2206, %v2317
    %v2372 = vadd.f32 %v2207, %v2322
    %v2373 = vadd.f32 %v2208, %v2327
    %v2374 = vadd.f32 %v2209, %v2332
    %v2375 = vadd.f32 %v2210, %v2337
    %v2376 = vadd.f32 %v2211, %v2342
    %v2377 = vadd.f32 %v2212, %v2347
    %v2378 = vadd.f32 %v2213, %v2352
    %v2379 = vadd.f32 %v2214, %v2357
    %v2380 = vadd.f32 %v2215, %v2362
    %2381 = vrot.lane.b32.xlu0 %v1753, 124
    %v2382 = vpop.permute.xlu0 %2381
    %v2383 = vsel %vm344, %v2382, 0
    %2385 = vmatprep.subr.mxu0 0.0
    %2386 = vmatpush1.msra.mxu0 %v2383
    %2387 = vmatprep.subr.mxu0 0.0
    %2388 = vmatpush1.msra.mxu0 0.0
    %2389 = vmatprep.subr.mxu0 0.0
    %2390 = vmatpush1.msra.mxu0 0.0
    %2391 = vmatprep.subr.mxu0 0.0
    %2392 = vmatpush1.msra.mxu0 0.0
    %2393 = vmatprep.subr.mxu0 0.0
    %2394 = vmatpush1.msra.mxu0 0.0
    %2395 = vmatprep.subr.mxu0 0.0
    %2396 = vmatpush1.msra.mxu0 0.0
    %2397 = vmatprep.subr.mxu0 0.0
    %2398 = vmatpush1.msra.mxu0 0.0
    %2399 = vmatprep.subr.mxu0 0.0
    %2400 = vmatpush1.msra.mxu0 0.0
    %2401 = vmatprep.subr.mxu0 0.0
    %2402 = vmatpush1.msra.mxu0 0.0
    %2403 = vmatprep.subr.mxu0 0.0
    %2404 = vmatpush1.msra.mxu0 0.0
    %2405 = vmatprep.subr.mxu0 0.0
    %2406 = vmatpush1.msra.mxu0 0.0
    %2407 = vmatprep.subr.mxu0 0.0
    %2408 = vmatpush1.msra.mxu0 0.0
    %2409 = vmatprep.subr.mxu0 0.0
    %2410 = vmatpush1.msra.mxu0 0.0
    %2411 = vmatprep.subr.mxu0 0.0
    %2412 = vmatpush1.msra.mxu0 0.0
    %2413 = vmatprep.subr.mxu0 0.0
    %2414 = vmatpush1.msra.mxu0 0.0
    %2415 = vmatprep.subr.mxu0 0.0
    %2416 = vmatpush1.msra.mxu0 0.0
    %2417 = vmatprep.subr.mxu0 0.0
    %2418 = vmatpush1.msra.mxu0 0.0
    %2419 = vmatprep.subr.mxu0 0.0
    %2420 = vmatpush1.msra.mxu0 0.0
    %2421 = vmatprep.subr.mxu0 0.0
    %2422 = vmatpush1.msra.mxu0 0.0
    %2423 = vmatprep.subr.mxu0 0.0
    %2424 = vmatpush1.msra.mxu0 0.0
    %2425 = vmatprep.subr.mxu0 0.0
    %2426 = vmatpush1.msra.mxu0 0.0
    %2427 = vmatprep.subr.mxu0 0.0
    %2428 = vmatpush1.msra.mxu0 0.0
    %2429 = vmatprep.subr.mxu0 0.0
    %2430 = vmatpush1.msra.mxu0 0.0
    %2431 = vmatprep.subr.mxu0 0.0
    %2432 = vmatpush1.msra.mxu0 0.0
    %2433 = vmatprep.subr.mxu0 0.0
    %2434 = vmatpush1.msra.mxu0 0.0
    %2435 = vmatprep.subr.mxu0 0.0
    %2436 = vmatpush1.msra.mxu0 0.0
    %2437 = vmatprep.subr.mxu0 0.0
    %2438 = vmatpush1.msra.mxu0 0.0
    %2439 = vmatprep.subr.mxu0 0.0
    %2440 = vmatpush1.msra.mxu0 0.0
    %2441 = vmatprep.subr.mxu0 0.0
    %2442 = vmatpush1.msra.mxu0 0.0
    %2443 = vmatprep.subr.mxu0 0.0
    %2444 = vmatpush1.msra.mxu0 0.0
    %2445 = vmatprep.subr.mxu0 0.0
    %2446 = vmatpush1.msra.mxu0 0.0
    %2447 = vmatprep.subr.mxu0 0.0
    %2448 = vmatpush1.msra.mxu0 0.0
    %2449 = vmatprep.mubr.f32.mxu0 0.0
    %2450 = vmatmul.mubr.f32.gmra.mrb[0].mxu0 %v1116
    %v2451 = vpop.f32.mrb[0].mxu0
    %v2452 = vadd.f32 0.0, %v2451
    %v2453 = vpop.f32.mrb[0].mxu0
    %2454 = vmatprep.mubr.f32.mxu0 0.0
    %2455 = vmatmul.mubr.f32.gmra.mrb[0].mxu0 %v1119
    %v2456 = vpop.f32.mrb[0].mxu0
    %v2457 = vadd.f32 0.0, %v2456
    %v2458 = vpop.f32.mrb[0].mxu0
    %2459 = vmatprep.mubr.f32.mxu0 0.0
    %2460 = vmatmul.mubr.f32.gmra.mrb[0].mxu0 %v1122
    %v2461 = vpop.f32.mrb[0].mxu0
    %v2462 = vadd.f32 0.0, %v2461
    %v2463 = vpop.f32.mrb[0].mxu0
    %2464 = vmatprep.mubr.f32.mxu0 0.0
    %2465 = vmatmul.mubr.f32.gmra.mrb[0].mxu0 %v1125
    %v2466 = vpop.f32.mrb[0].mxu0
    %v2467 = vadd.f32 0.0, %v2466
    %v2468 = vpop.f32.mrb[0].mxu0
    %2469 = vmatprep.mubr.f32.mxu0 0.0
    %2470 = vmatmul.mubr.f32.gmra.mrb[0].mxu0 %v1128
    %v2471 = vpop.f32.mrb[0].mxu0
    %v2472 = vadd.f32 0.0, %v2471
    %v2473 = vpop.f32.mrb[0].mxu0
    %2474 = vmatprep.mubr.f32.mxu0 0.0
    %2475 = vmatmul.mubr.f32.gmra.mrb[0].mxu0 %v1131
    %v2476 = vpop.f32.mrb[0].mxu0
    %v2477 = vadd.f32 0.0, %v2476
    %v2478 = vpop.f32.mrb[0].mxu0
    %2479 = vmatprep.mubr.f32.mxu0 0.0
    %2480 = vmatmul.mubr.f32.gmra.mrb[0].mxu0 %v1134
    %v2481 = vpop.f32.mrb[0].mxu0
    %v2482 = vadd.f32 0.0, %v2481
    %v2483 = vpop.f32.mrb[0].mxu0
    %2484 = vmatprep.mubr.f32.mxu0 0.0
    %2485 = vmatmul.mubr.f32.gmra.mrb[0].mxu0 %v1137
    %v2486 = vpop.f32.mrb[0].mxu0
    %v2487 = vadd.f32 0.0, %v2486
    %v2488 = vpop.f32.mrb[0].mxu0
    %2489 = vmatprep.mubr.f32.mxu0 0.0
    %2490 = vmatmul.mubr.f32.gmra.mrb[0].mxu0 %v1140
    %v2491 = vpop.f32.mrb[0].mxu0
    %v2492 = vadd.f32 0.0, %v2491
    %v2493 = vpop.f32.mrb[0].mxu0
    %2494 = vmatprep.mubr.f32.mxu0 0.0
    %2495 = vmatmul.mubr.f32.gmra.mrb[0].mxu0 %v1143
    %v2496 = vpop.f32.mrb[0].mxu0
    %v2497 = vadd.f32 0.0, %v2496
    %v2498 = vpop.f32.mrb[0].mxu0
    %2499 = vmatprep.mubr.f32.mxu0 0.0
    %2500 = vmatmul.mubr.f32.gmra.mrb[0].mxu0 %v1146
    %v2501 = vpop.f32.mrb[0].mxu0
    %v2502 = vadd.f32 0.0, %v2501
    %v2503 = vpop.f32.mrb[0].mxu0
    %2504 = vmatprep.mubr.f32.mxu0 0.0
    %2505 = vmatmul.mubr.f32.gmra.mrb[0].mxu0 %v1149
    %v2506 = vpop.f32.mrb[0].mxu0
    %v2507 = vadd.f32 0.0, %v2506
    %v2508 = vpop.f32.mrb[0].mxu0
    %2509 = vmatprep.mubr.f32.mxu0 0.0
    %2510 = vmatmul.mubr.f32.gmra.mrb[0].mxu0 %v1152
    %v2511 = vpop.f32.mrb[0].mxu0
    %v2512 = vadd.f32 0.0, %v2511
    %v2513 = vpop.f32.mrb[0].mxu0
    %2514 = vmatprep.mubr.f32.mxu0 0.0
    %2515 = vmatmul.mubr.f32.gmra.mrb[0].mxu0 %v1155
    %v2516 = vpop.f32.mrb[0].mxu0
    %v2517 = vadd.f32 0.0, %v2516
    %v2518 = vpop.f32.mrb[0].mxu0
    %2519 = vmatprep.mubr.f32.mxu0 0.0
    %2520 = vmatmul.mubr.f32.gmra.mrb[0].mxu0 %v1158
    %v2521 = vpop.f32.mrb[0].mxu0
    %v2522 = vadd.f32 0.0, %v2521
    %v2523 = vpop.f32.mrb[0].mxu0
    %2524 = vmatprep.mubr.f32.mxu0 0.0
    %2525 = vmatmul.mubr.f32.gmra.mrb[0].mxu0 %v1161
    %v2526 = vpop.f32.mrb[0].mxu0
    %v2527 = vadd.f32 0.0, %v2526
    %v2528 = vpop.f32.mrb[0].mxu0
    %2529 = vdwg.mxu0
    %v2530 = vadd.f32 %v2365, %v2452
    %v2531 = vadd.f32 %v2366, %v2457
    %v2532 = vadd.f32 %v2367, %v2462
    %v2533 = vadd.f32 %v2368, %v2467
    %v2534 = vadd.f32 %v2369, %v2472
    %v2535 = vadd.f32 %v2370, %v2477
    %v2536 = vadd.f32 %v2371, %v2482
    %v2537 = vadd.f32 %v2372, %v2487
    %v2538 = vadd.f32 %v2373, %v2492
    %v2539 = vadd.f32 %v2374, %v2497
    %v2540 = vadd.f32 %v2375, %v2502
    %v2541 = vadd.f32 %v2376, %v2507
    %v2542 = vadd.f32 %v2377, %v2512
    %v2543 = vadd.f32 %v2378, %v2517
    %v2544 = vadd.f32 %v2379, %v2522
    %v2545 = vadd.f32 %v2380, %v2527
    %2546 = vrot.lane.b32.xlu0 %v1753, 123
    %v2547 = vpop.permute.xlu0 %2546
    %v2548 = vsel %vm344, %v2547, 0
    %2550 = vmatprep.subr.mxu0 0.0
    %2551 = vmatpush1.msra.mxu0 %v2548
    %2552 = vmatprep.subr.mxu0 0.0
    %2553 = vmatpush1.msra.mxu0 0.0
    %2554 = vmatprep.subr.mxu0 0.0
    %2555 = vmatpush1.msra.mxu0 0.0
    %2556 = vmatprep.subr.mxu0 0.0
    %2557 = vmatpush1.msra.mxu0 0.0
    %2558 = vmatprep.subr.mxu0 0.0
    %2559 = vmatpush1.msra.mxu0 0.0
    %2560 = vmatprep.subr.mxu0 0.0
    %2561 = vmatpush1.msra.mxu0 0.0
    %2562 = vmatprep.subr.mxu0 0.0
    %2563 = vmatpush1.msra.mxu0 0.0
    %2564 = vmatprep.subr.mxu0 0.0
    %2565 = vmatpush1.msra.mxu0 0.0
    %2566 = vmatprep.subr.mxu0 0.0
    %2567 = vmatpush1.msra.mxu0 0.0
    %2568 = vmatprep.subr.mxu0 0.0
    %2569 = vmatpush1.msra.mxu0 0.0
    %2570 = vmatprep.subr.mxu0 0.0
    %2571 = vmatpush1.msra.mxu0 0.0
    %2572 = vmatprep.subr.mxu0 0.0
    %2573 = vmatpush1.msra.mxu0 0.0
    %2574 = vmatprep.subr.mxu0 0.0
    %2575 = vmatpush1.msra.mxu0 0.0
    %2576 = vmatprep.subr.mxu0 0.0
    %2577 = vmatpush1.msra.mxu0 0.0
    %2578 = vmatprep.subr.mxu0 0.0
    %2579 = vmatpush1.msra.mxu0 0.0
    %2580 = vmatprep.subr.mxu0 0.0
    %2581 = vmatpush1.msra.mxu0 0.0
    %2582 = vmatprep.subr.mxu0 0.0
    %2583 = vmatpush1.msra.mxu0 0.0
    %2584 = vmatprep.subr.mxu0 0.0
    %2585 = vmatpush1.msra.mxu0 0.0
    %2586 = vmatprep.subr.mxu0 0.0
    %2587 = vmatpush1.msra.mxu0 0.0
    %2588 = vmatprep.subr.mxu0 0.0
    %2589 = vmatpush1.msra.mxu0 0.0
    %2590 = vmatprep.subr.mxu0 0.0
    %2591 = vmatpush1.msra.mxu0 0.0
    %2592 = vmatprep.subr.mxu0 0.0
    %2593 = vmatpush1.msra.mxu0 0.0
    %2594 = vmatprep.subr.mxu0 0.0
    %2595 = vmatpush1.msra.mxu0 0.0
    %2596 = vmatprep.subr.mxu0 0.0
    %2597 = vmatpush1.msra.mxu0 0.0
    %2598 = vmatprep.subr.mxu0 0.0
    %2599 = vmatpush1.msra.mxu0 0.0
    %2600 = vmatprep.subr.mxu0 0.0
    %2601 = vmatpush1.msra.mxu0 0.0
    %2602 = vmatprep.subr.mxu0 0.0
    %2603 = vmatpush1.msra.mxu0 0.0
    %2604 = vmatprep.subr.mxu0 0.0
    %2605 = vmatpush1.msra.mxu0 0.0
    %2606 = vmatprep.subr.mxu0 0.0
    %2607 = vmatpush1.msra.mxu0 0.0
    %2608 = vmatprep.subr.mxu0 0.0
    %2609 = vmatpush1.msra.mxu0 0.0
    %2610 = vmatprep.subr.mxu0 0.0
    %2611 = vmatpush1.msra.mxu0 0.0
    %2612 = vmatprep.subr.mxu0 0.0
    %2613 = vmatpush1.msra.mxu0 0.0
    %2614 = vmatprep.mubr.f32.mxu0 0.0
    %2615 = vmatmul.mubr.f32.gmra.mrb[0].mxu0 %v1329
    %v2616 = vpop.f32.mrb[0].mxu0
    %v2617 = vadd.f32 0.0, %v2616
    %v2618 = vpop.f32.mrb[0].mxu0
    %2619 = vmatprep.mubr.f32.mxu0 0.0
    %2620 = vmatmul.mubr.f32.gmra.mrb[0].mxu0 %v1332
    %v2621 = vpop.f32.mrb[0].mxu0
    %v2622 = vadd.f32 0.0, %v2621
    %v2623 = vpop.f32.mrb[0].mxu0
    %2624 = vmatprep.mubr.f32.mxu0 0.0
    %2625 = vmatmul.mubr.f32.gmra.mrb[0].mxu0 %v1335
    %v2626 = vpop.f32.mrb[0].mxu0
    %v2627 = vadd.f32 0.0, %v2626
    %v2628 = vpop.f32.mrb[0].mxu0
    %2629 = vmatprep.mubr.f32.mxu0 0.0
    %2630 = vmatmul.mubr.f32.gmra.mrb[0].mxu0 %v1338
    %v2631 = vpop.f32.mrb[0].mxu0
    %v2632 = vadd.f32 0.0, %v2631
    %v2633 = vpop.f32.mrb[0].mxu0
    %2634 = vmatprep.mubr.f32.mxu0 0.0
    %2635 = vmatmul.mubr.f32.gmra.mrb[0].mxu0 %v1341
    %v2636 = vpop.f32.mrb[0].mxu0
    %v2637 = vadd.f32 0.0, %v2636
    %v2638 = vpop.f32.mrb[0].mxu0
    %2639 = vmatprep.mubr.f32.mxu0 0.0
    %2640 = vmatmul.mubr.f32.gmra.mrb[0].mxu0 %v1344
    %v2641 = vpop.f32.mrb[0].mxu0
    %v2642 = vadd.f32 0.0, %v2641
    %v2643 = vpop.f32.mrb[0].mxu0
    %2644 = vmatprep.mubr.f32.mxu0 0.0
    %2645 = vmatmul.mubr.f32.gmra.mrb[0].mxu0 %v1347
    %v2646 = vpop.f32.mrb[0].mxu0
    %v2647 = vadd.f32 0.0, %v2646
    %v2648 = vpop.f32.mrb[0].mxu0
    %2649 = vmatprep.mubr.f32.mxu0 0.0
    %2650 = vmatmul.mubr.f32.gmra.mrb[0].mxu0 %v1350
    %v2651 = vpop.f32.mrb[0].mxu0
    %v2652 = vadd.f32 0.0, %v2651
    %v2653 = vpop.f32.mrb[0].mxu0
    %2654 = vmatprep.mubr.f32.mxu0 0.0
    %2655 = vmatmul.mubr.f32.gmra.mrb[0].mxu0 %v1353
    %v2656 = vpop.f32.mrb[0].mxu0
    %v2657 = vadd.f32 0.0, %v2656
    %v2658 = vpop.f32.mrb[0].mxu0
    %2659 = vmatprep.mubr.f32.mxu0 0.0
    %2660 = vmatmul.mubr.f32.gmra.mrb[0].mxu0 %v1356
    %v2661 = vpop.f32.mrb[0].mxu0
    %v2662 = vadd.f32 0.0, %v2661
    %v2663 = vpop.f32.mrb[0].mxu0
    %2664 = vmatprep.mubr.f32.mxu0 0.0
    %2665 = vmatmul.mubr.f32.gmra.mrb[0].mxu0 %v1359
    %v2666 = vpop.f32.mrb[0].mxu0
    %v2667 = vadd.f32 0.0, %v2666
    %v2668 = vpop.f32.mrb[0].mxu0
    %2669 = vmatprep.mubr.f32.mxu0 0.0
    %2670 = vmatmul.mubr.f32.gmra.mrb[0].mxu0 %v1362
    %v2671 = vpop.f32.mrb[0].mxu0
    %v2672 = vadd.f32 0.0, %v2671
    %v2673 = vpop.f32.mrb[0].mxu0
    %2674 = vmatprep.mubr.f32.mxu0 0.0
    %2675 = vmatmul.mubr.f32.gmra.mrb[0].mxu0 %v1365
    %v2676 = vpop.f32.mrb[0].mxu0
    %v2677 = vadd.f32 0.0, %v2676
    %v2678 = vpop.f32.mrb[0].mxu0
    %2679 = vmatprep.mubr.f32.mxu0 0.0
    %2680 = vmatmul.mubr.f32.gmra.mrb[0].mxu0 %v1368
    %v2681 = vpop.f32.mrb[0].mxu0
    %v2682 = vadd.f32 0.0, %v2681
    %v2683 = vpop.f32.mrb[0].mxu0
    %2684 = vmatprep.mubr.f32.mxu0 0.0
    %2685 = vmatmul.mubr.f32.gmra.mrb[0].mxu0 %v1371
    %v2686 = vpop.f32.mrb[0].mxu0
    %v2687 = vadd.f32 0.0, %v2686
    %v2688 = vpop.f32.mrb[0].mxu0
    %2689 = vmatprep.mubr.f32.mxu0 0.0
    %2690 = vmatmul.mubr.f32.gmra.mrb[0].mxu0 %v1374
    %v2691 = vpop.f32.mrb[0].mxu0
    %v2692 = vadd.f32 0.0, %v2691
    %v2693 = vpop.f32.mrb[0].mxu0
    %2694 = vdwg.mxu0
    %v2695 = vadd.f32 %v2530, %v2617
    %v2696 = vadd.f32 %v2531, %v2622
    %v2697 = vadd.f32 %v2532, %v2627
    %v2698 = vadd.f32 %v2533, %v2632
    %v2699 = vadd.f32 %v2534, %v2637
    %v2700 = vadd.f32 %v2535, %v2642
    %v2701 = vadd.f32 %v2536, %v2647
    %v2702 = vadd.f32 %v2537, %v2652
    %v2703 = vadd.f32 %v2538, %v2657
    %v2704 = vadd.f32 %v2539, %v2662
    %v2705 = vadd.f32 %v2540, %v2667
    %v2706 = vadd.f32 %v2541, %v2672
    %v2707 = vadd.f32 %v2542, %v2677
    %v2708 = vadd.f32 %v2543, %v2682
    %v2709 = vadd.f32 %v2544, %v2687
    %v2710 = vadd.f32 %v2545, %v2692
    %2711 = vrot.lane.b32.xlu0 %v1753, 122
    %v2712 = vpop.permute.xlu0 %2711
    %v2713 = vsel %vm344, %v2712, 0
    %2715 = vmatprep.subr.mxu0 0.0
    %2716 = vmatpush1.msra.mxu0 %v2713
    %2717 = vmatprep.subr.mxu0 0.0
    %2718 = vmatpush1.msra.mxu0 0.0
    %2719 = vmatprep.subr.mxu0 0.0
    %2720 = vmatpush1.msra.mxu0 0.0
    %2721 = vmatprep.subr.mxu0 0.0
    %2722 = vmatpush1.msra.mxu0 0.0
    %2723 = vmatprep.subr.mxu0 0.0
    %2724 = vmatpush1.msra.mxu0 0.0
    %2725 = vmatprep.subr.mxu0 0.0
    %2726 = vmatpush1.msra.mxu0 0.0
    %2727 = vmatprep.subr.mxu0 0.0
    %2728 = vmatpush1.msra.mxu0 0.0
    %2729 = vmatprep.subr.mxu0 0.0
    %2730 = vmatpush1.msra.mxu0 0.0
    %2731 = vmatprep.subr.mxu0 0.0
    %2732 = vmatpush1.msra.mxu0 0.0
    %2733 = vmatprep.subr.mxu0 0.0
    %2734 = vmatpush1.msra.mxu0 0.0
    %2735 = vmatprep.subr.mxu0 0.0
    %2736 = vmatpush1.msra.mxu0 0.0
    %2737 = vmatprep.subr.mxu0 0.0
    %2738 = vmatpush1.msra.mxu0 0.0
    %2739 = vmatprep.subr.mxu0 0.0
    %2740 = vmatpush1.msra.mxu0 0.0
    %2741 = vmatprep.subr.mxu0 0.0
    %2742 = vmatpush1.msra.mxu0 0.0
    %2743 = vmatprep.subr.mxu0 0.0
    %2744 = vmatpush1.msra.mxu0 0.0
    %2745 = vmatprep.subr.mxu0 0.0
    %2746 = vmatpush1.msra.mxu0 0.0
    %2747 = vmatprep.subr.mxu0 0.0
    %2748 = vmatpush1.msra.mxu0 0.0
    %2749 = vmatprep.subr.mxu0 0.0
    %2750 = vmatpush1.msra.mxu0 0.0
    %2751 = vmatprep.subr.mxu0 0.0
    %2752 = vmatpush1.msra.mxu0 0.0
    %2753 = vmatprep.subr.mxu0 0.0
    %2754 = vmatpush1.msra.mxu0 0.0
    %2755 = vmatprep.subr.mxu0 0.0
    %2756 = vmatpush1.msra.mxu0 0.0
    %2757 = vmatprep.subr.mxu0 0.0
    %2758 = vmatpush1.msra.mxu0 0.0
    %2759 = vmatprep.subr.mxu0 0.0
    %2760 = vmatpush1.msra.mxu0 0.0
    %2761 = vmatprep.subr.mxu0 0.0
    %2762 = vmatpush1.msra.mxu0 0.0
    %2763 = vmatprep.subr.mxu0 0.0
    %2764 = vmatpush1.msra.mxu0 0.0
    %2765 = vmatprep.subr.mxu0 0.0
    %2766 = vmatpush1.msra.mxu0 0.0
    %2767 = vmatprep.subr.mxu0 0.0
    %2768 = vmatpush1.msra.mxu0 0.0
    %2769 = vmatprep.subr.mxu0 0.0
    %2770 = vmatpush1.msra.mxu0 0.0
    %2771 = vmatprep.subr.mxu0 0.0
    %2772 = vmatpush1.msra.mxu0 0.0
    %2773 = vmatprep.subr.mxu0 0.0
    %2774 = vmatpush1.msra.mxu0 0.0
    %2775 = vmatprep.subr.mxu0 0.0
    %2776 = vmatpush1.msra.mxu0 0.0
    %2777 = vmatprep.subr.mxu0 0.0
    %2778 = vmatpush1.msra.mxu0 0.0
    %2779 = vmatprep.mubr.f32.mxu0 0.0
    %2780 = vmatmul.mubr.f32.gmra.mrb[0].mxu0 %v1542
    %v2781 = vpop.f32.mrb[0].mxu0
    %v2782 = vadd.f32 0.0, %v2781
    %v2783 = vpop.f32.mrb[0].mxu0
    %2784 = vmatprep.mubr.f32.mxu0 0.0
    %2785 = vmatmul.mubr.f32.gmra.mrb[0].mxu0 %v1545
    %v2786 = vpop.f32.mrb[0].mxu0
    %v2787 = vadd.f32 0.0, %v2786
    %v2788 = vpop.f32.mrb[0].mxu0
    %2789 = vmatprep.mubr.f32.mxu0 0.0
    %2790 = vmatmul.mubr.f32.gmra.mrb[0].mxu0 %v1548
    %v2791 = vpop.f32.mrb[0].mxu0
    %v2792 = vadd.f32 0.0, %v2791
    %v2793 = vpop.f32.mrb[0].mxu0
    %2794 = vmatprep.mubr.f32.mxu0 0.0
    %2795 = vmatmul.mubr.f32.gmra.mrb[0].mxu0 %v1551
    %v2796 = vpop.f32.mrb[0].mxu0
    %v2797 = vadd.f32 0.0, %v2796
    %v2798 = vpop.f32.mrb[0].mxu0
    %2799 = vmatprep.mubr.f32.mxu0 0.0
    %2800 = vmatmul.mubr.f32.gmra.mrb[0].mxu0 %v1554
    %v2801 = vpop.f32.mrb[0].mxu0
    %v2802 = vadd.f32 0.0, %v2801
    %v2803 = vpop.f32.mrb[0].mxu0
    %2804 = vmatprep.mubr.f32.mxu0 0.0
    %2805 = vmatmul.mubr.f32.gmra.mrb[0].mxu0 %v1557
    %v2806 = vpop.f32.mrb[0].mxu0
    %v2807 = vadd.f32 0.0, %v2806
    %v2808 = vpop.f32.mrb[0].mxu0
    %2809 = vmatprep.mubr.f32.mxu0 0.0
    %2810 = vmatmul.mubr.f32.gmra.mrb[0].mxu0 %v1560
    %v2811 = vpop.f32.mrb[0].mxu0
    %v2812 = vadd.f32 0.0, %v2811
    %v2813 = vpop.f32.mrb[0].mxu0
    %2814 = vmatprep.mubr.f32.mxu0 0.0
    %2815 = vmatmul.mubr.f32.gmra.mrb[0].mxu0 %v1563
    %v2816 = vpop.f32.mrb[0].mxu0
    %v2817 = vadd.f32 0.0, %v2816
    %v2818 = vpop.f32.mrb[0].mxu0
    %2819 = vmatprep.mubr.f32.mxu0 0.0
    %2820 = vmatmul.mubr.f32.gmra.mrb[0].mxu0 %v1566
    %v2821 = vpop.f32.mrb[0].mxu0
    %v2822 = vadd.f32 0.0, %v2821
    %v2823 = vpop.f32.mrb[0].mxu0
    %2824 = vmatprep.mubr.f32.mxu0 0.0
    %2825 = vmatmul.mubr.f32.gmra.mrb[0].mxu0 %v1569
    %v2826 = vpop.f32.mrb[0].mxu0
    %v2827 = vadd.f32 0.0, %v2826
    %v2828 = vpop.f32.mrb[0].mxu0
    %2829 = vmatprep.mubr.f32.mxu0 0.0
    %2830 = vmatmul.mubr.f32.gmra.mrb[0].mxu0 %v1572
    %v2831 = vpop.f32.mrb[0].mxu0
    %v2832 = vadd.f32 0.0, %v2831
    %v2833 = vpop.f32.mrb[0].mxu0
    %2834 = vmatprep.mubr.f32.mxu0 0.0
    %2835 = vmatmul.mubr.f32.gmra.mrb[0].mxu0 %v1575
    %v2836 = vpop.f32.mrb[0].mxu0
    %v2837 = vadd.f32 0.0, %v2836
    %v2838 = vpop.f32.mrb[0].mxu0
    %2839 = vmatprep.mubr.f32.mxu0 0.0
    %2840 = vmatmul.mubr.f32.gmra.mrb[0].mxu0 %v1578
    %v2841 = vpop.f32.mrb[0].mxu0
    %v2842 = vadd.f32 0.0, %v2841
    %v2843 = vpop.f32.mrb[0].mxu0
    %2844 = vmatprep.mubr.f32.mxu0 0.0
    %2845 = vmatmul.mubr.f32.gmra.mrb[0].mxu0 %v1581
    %v2846 = vpop.f32.mrb[0].mxu0
    %v2847 = vadd.f32 0.0, %v2846
    %v2848 = vpop.f32.mrb[0].mxu0
    %2849 = vmatprep.mubr.f32.mxu0 0.0
    %2850 = vmatmul.mubr.f32.gmra.mrb[0].mxu0 %v1584
    %v2851 = vpop.f32.mrb[0].mxu0
    %v2852 = vadd.f32 0.0, %v2851
    %v2853 = vpop.f32.mrb[0].mxu0
    %2854 = vmatprep.mubr.f32.mxu0 0.0
    %2855 = vmatmul.mubr.f32.gmra.mrb[0].mxu0 %v1587
    %v2856 = vpop.f32.mrb[0].mxu0
    %v2857 = vadd.f32 0.0, %v2856
    %v2858 = vpop.f32.mrb[0].mxu0
    %2859 = vdwg.mxu0
    %v2860 = vadd.f32 %v2695, %v2782
    %v2861 = vadd.f32 %v2696, %v2787
    %v2862 = vadd.f32 %v2697, %v2792
    %v2863 = vadd.f32 %v2698, %v2797
    %v2864 = vadd.f32 %v2699, %v2802
    %v2865 = vadd.f32 %v2700, %v2807
    %v2866 = vadd.f32 %v2701, %v2812
    %v2867 = vadd.f32 %v2702, %v2817
    %v2868 = vadd.f32 %v2703, %v2822
    %v2869 = vadd.f32 %v2704, %v2827
    %v2870 = vadd.f32 %v2705, %v2832
    %v2871 = vadd.f32 %v2706, %v2837
    %v2872 = vadd.f32 %v2707, %v2842
    %v2873 = vadd.f32 %v2708, %v2847
    %v2874 = vadd.f32 %v2709, %v2852
    %v2875 = vadd.f32 %v2710, %v2857
    %vm2876 = vcmask 113664
    %v2877 = vsel %vm2876, %v1736, 0.0
    %2878 = vadd.xlane.f32.xlu0 %v2877
    %v2879 = vpop.xlane.xlu0 %2878
    %v2880 = vsel %vm2876, %v1737, 0.0
    %2881 = vadd.xlane.f32.xlu0 %v2880
    %v2882 = vpop.xlane.xlu0 %2881
    %v2883 = vsel %vm2876, %v1738, 0.0
    %2884 = vadd.xlane.f32.xlu0 %v2883
    %v2885 = vpop.xlane.xlu0 %2884
    %v2886 = vsel %vm2876, %v1739, 0.0
    %2887 = vadd.xlane.f32.xlu0 %v2886
    %v2888 = vpop.xlane.xlu0 %2887
    %v2889 = vsel %vm2876, %v1740, 0.0
    %2890 = vadd.xlane.f32.xlu0 %v2889
    %v2891 = vpop.xlane.xlu0 %2890
    %v2892 = vsel %vm2876, %v1741, 0.0
    %2893 = vadd.xlane.f32.xlu0 %v2892
    %v2894 = vpop.xlane.xlu0 %2893
    %v2895 = vsel %vm2876, %v1742, 0.0
    %2896 = vadd.xlane.f32.xlu0 %v2895
    %v2897 = vpop.xlane.xlu0 %2896
    %v2898 = vsel %vm2876, %v1743, 0.0
    %2899 = vadd.xlane.f32.xlu0 %v2898
    %v2900 = vpop.xlane.xlu0 %2899
    %v2901 = vsel %vm2876, %v1744, 0.0
    %2902 = vadd.xlane.f32.xlu0 %v2901
    %v2903 = vpop.xlane.xlu0 %2902
    %v2904 = vsel %vm2876, %v1745, 0.0
    %2905 = vadd.xlane.f32.xlu0 %v2904
    %v2906 = vpop.xlane.xlu0 %2905
    %v2907 = vsel %vm2876, %v1746, 0.0
    %2908 = vadd.xlane.f32.xlu0 %v2907
    %v2909 = vpop.xlane.xlu0 %2908
    %v2910 = vsel %vm2876, %v1747, 0.0
    %2911 = vadd.xlane.f32.xlu0 %v2910
    %v2912 = vpop.xlane.xlu0 %2911
    %v2913 = vsel %vm2876, %v1748, 0.0
    %2914 = vadd.xlane.f32.xlu0 %v2913
    %v2915 = vpop.xlane.xlu0 %2914
    %v2916 = vsel %vm2876, %v1749, 0.0
    %2917 = vadd.xlane.f32.xlu0 %v2916
    %v2918 = vpop.xlane.xlu0 %2917
    %v2919 = vsel %vm2876, %v1750, 0.0
    %2920 = vadd.xlane.f32.xlu0 %v2919
    %v2921 = vpop.xlane.xlu0 %2920
    %v2922 = vsel %vm2876, %v1751, 0.0
    %2923 = vadd.xlane.f32.xlu0 %v2922
    %v2924 = vpop.xlane.xlu0 %2923
    %v2925 = vadd.f32 %v2879, 0.0
    %v2926 = vadd.f32 %v2882, 0.0
    %v2927 = vadd.f32 %v2885, 0.0
    %v2928 = vadd.f32 %v2888, 0.0
    %v2929 = vadd.f32 %v2891, 0.0
    %v2930 = vadd.f32 %v2894, 0.0
    %v2931 = vadd.f32 %v2897, 0.0
    %v2932 = vadd.f32 %v2900, 0.0
    %v2933 = vadd.f32 %v2903, 0.0
    %v2934 = vadd.f32 %v2906, 0.0
    %v2935 = vadd.f32 %v2909, 0.0
    %v2936 = vadd.f32 %v2912, 0.0
    %v2937 = vadd.f32 %v2915, 0.0
    %v2938 = vadd.f32 %v2918, 0.0
    %v2939 = vadd.f32 %v2921, 0.0
    %v2940 = vadd.f32 %v2924, 0.0
    %v2941 = vsel %vm2876, %v2860, 0.0
    %2942 = vadd.xlane.f32.xlu0 %v2941
    %v2943 = vpop.xlane.xlu0 %2942
    %v2944 = vsel %vm2876, %v2861, 0.0
    %2945 = vadd.xlane.f32.xlu0 %v2944
    %v2946 = vpop.xlane.xlu0 %2945
    %v2947 = vsel %vm2876, %v2862, 0.0
    %2948 = vadd.xlane.f32.xlu0 %v2947
    %v2949 = vpop.xlane.xlu0 %2948
    %v2950 = vsel %vm2876, %v2863, 0.0
    %2951 = vadd.xlane.f32.xlu0 %v2950
    %v2952 = vpop.xlane.xlu0 %2951
    %v2953 = vsel %vm2876, %v2864, 0.0
    %2954 = vadd.xlane.f32.xlu0 %v2953
    %v2955 = vpop.xlane.xlu0 %2954
    %v2956 = vsel %vm2876, %v2865, 0.0
    %2957 = vadd.xlane.f32.xlu0 %v2956
    %v2958 = vpop.xlane.xlu0 %2957
    %v2959 = vsel %vm2876, %v2866, 0.0
    %2960 = vadd.xlane.f32.xlu0 %v2959
    %v2961 = vpop.xlane.xlu0 %2960
    %v2962 = vsel %vm2876, %v2867, 0.0
    %2963 = vadd.xlane.f32.xlu0 %v2962
    %v2964 = vpop.xlane.xlu0 %2963
    %v2965 = vsel %vm2876, %v2868, 0.0
    %2966 = vadd.xlane.f32.xlu0 %v2965
    %v2967 = vpop.xlane.xlu0 %2966
    %v2968 = vsel %vm2876, %v2869, 0.0
    %2969 = vadd.xlane.f32.xlu0 %v2968
    %v2970 = vpop.xlane.xlu0 %2969
    %v2971 = vsel %vm2876, %v2870, 0.0
    %2972 = vadd.xlane.f32.xlu0 %v2971
    %v2973 = vpop.xlane.xlu0 %2972
    %v2974 = vsel %vm2876, %v2871, 0.0
    %2975 = vadd.xlane.f32.xlu0 %v2974
    %v2976 = vpop.xlane.xlu0 %2975
    %v2977 = vsel %vm2876, %v2872, 0.0
    %2978 = vadd.xlane.f32.xlu0 %v2977
    %v2979 = vpop.xlane.xlu0 %2978
    %v2980 = vsel %vm2876, %v2873, 0.0
    %2981 = vadd.xlane.f32.xlu0 %v2980
    %v2982 = vpop.xlane.xlu0 %2981
    %v2983 = vsel %vm2876, %v2874, 0.0
    %2984 = vadd.xlane.f32.xlu0 %v2983
    %v2985 = vpop.xlane.xlu0 %2984
    %v2986 = vsel %vm2876, %v2875, 0.0
    %2987 = vadd.xlane.f32.xlu0 %v2986
    %v2988 = vpop.xlane.xlu0 %2987
    %v2989 = vadd.f32 %v2925, %v2943
    %v2990 = vadd.f32 %v2926, %v2946
    %v2991 = vadd.f32 %v2927, %v2949
    %v2992 = vadd.f32 %v2928, %v2952
    %v2993 = vadd.f32 %v2929, %v2955
    %v2994 = vadd.f32 %v2930, %v2958
    %v2995 = vadd.f32 %v2931, %v2961
    %v2996 = vadd.f32 %v2932, %v2964
    %v2997 = vadd.f32 %v2933, %v2967
    %v2998 = vadd.f32 %v2934, %v2970
    %v2999 = vadd.f32 %v2935, %v2973
    %v3000 = vadd.f32 %v2936, %v2976
    %v3001 = vadd.f32 %v2937, %v2979
    %v3002 = vadd.f32 %v2938, %v2982
    %v3003 = vadd.f32 %v2939, %v2985
    %v3004 = vadd.f32 %v2940, %v2988
    %v3005 = vrcp.pop 28.0
    %v3006 = vmul.f32 %v2989, %v3005
    %v3007 = vmul.f32 %v2990, %v3005
    %v3008 = vmul.f32 %v2991, %v3005
    %v3009 = vmul.f32 %v2992, %v3005
    %v3010 = vmul.f32 %v2993, %v3005
    %v3011 = vmul.f32 %v2994, %v3005
    %v3012 = vmul.f32 %v2995, %v3005
    %v3013 = vmul.f32 %v2996, %v3005
    %v3014 = vmul.f32 %v2997, %v3005
    %v3015 = vmul.f32 %v2998, %v3005
    %v3016 = vmul.f32 %v2999, %v3005
    %v3017 = vmul.f32 %v3000, %v3005
    %v3018 = vmul.f32 %v3001, %v3005
    %v3019 = vmul.f32 %v3002, %v3005
    %v3020 = vmul.f32 %v3003, %v3005
    %v3021 = vmul.f32 %v3004, %v3005
    %v3022 = vsub.f32 %v1736, %v3006
    %v3023 = vsub.f32 %v1737, %v3007
    %v3024 = vsub.f32 %v1738, %v3008
    %v3025 = vsub.f32 %v1739, %v3009
    %v3026 = vsub.f32 %v1740, %v3010
    %v3027 = vsub.f32 %v1741, %v3011
    %v3028 = vsub.f32 %v1742, %v3012
    %v3029 = vsub.f32 %v1743, %v3013
    %v3030 = vsub.f32 %v1744, %v3014
    %v3031 = vsub.f32 %v1745, %v3015
    %v3032 = vsub.f32 %v1746, %v3016
    %v3033 = vsub.f32 %v1747, %v3017
    %v3034 = vsub.f32 %v1748, %v3018
    %v3035 = vsub.f32 %v1749, %v3019
    %v3036 = vsub.f32 %v1750, %v3020
    %v3037 = vsub.f32 %v1751, %v3021
    %v3038 = vsub.f32 %v2860, %v3006
    %v3039 = vsub.f32 %v2861, %v3007
    %v3040 = vsub.f32 %v2862, %v3008
    %v3041 = vsub.f32 %v2863, %v3009
    %v3042 = vsub.f32 %v2864, %v3010
    %v3043 = vsub.f32 %v2865, %v3011
    %v3044 = vsub.f32 %v2866, %v3012
    %v3045 = vsub.f32 %v2867, %v3013
    %v3046 = vsub.f32 %v2868, %v3014
    %v3047 = vsub.f32 %v2869, %v3015
    %v3048 = vsub.f32 %v2870, %v3016
    %v3049 = vsub.f32 %v2871, %v3017
    %v3050 = vsub.f32 %v2872, %v3018
    %v3051 = vsub.f32 %v2873, %v3019
    %v3052 = vsub.f32 %v2874, %v3020
    %v3053 = vsub.f32 %v2875, %v3021
    %v3054 = vmul.f32 %v3022, %v3022
    %v3055 = vmul.f32 %v3023, %v3023
    %v3056 = vmul.f32 %v3024, %v3024
    %v3057 = vmul.f32 %v3025, %v3025
    %v3058 = vmul.f32 %v3026, %v3026
    %v3059 = vmul.f32 %v3027, %v3027
    %v3060 = vmul.f32 %v3028, %v3028
    %v3061 = vmul.f32 %v3029, %v3029
    %v3062 = vmul.f32 %v3030, %v3030
    %v3063 = vmul.f32 %v3031, %v3031
    %v3064 = vmul.f32 %v3032, %v3032
    %v3065 = vmul.f32 %v3033, %v3033
    %v3066 = vmul.f32 %v3034, %v3034
    %v3067 = vmul.f32 %v3035, %v3035
    %v3068 = vmul.f32 %v3036, %v3036
    %v3069 = vmul.f32 %v3037, %v3037
    %v3070 = vsel %vm2876, %v3054, 0.0
    %3071 = vadd.xlane.f32.xlu0 %v3070
    %v3072 = vpop.xlane.xlu0 %3071
    %v3073 = vsel %vm2876, %v3055, 0.0
    %3074 = vadd.xlane.f32.xlu0 %v3073
    %v3075 = vpop.xlane.xlu0 %3074
    %v3076 = vsel %vm2876, %v3056, 0.0
    %3077 = vadd.xlane.f32.xlu0 %v3076
    %v3078 = vpop.xlane.xlu0 %3077
    %v3079 = vsel %vm2876, %v3057, 0.0
    %3080 = vadd.xlane.f32.xlu0 %v3079
    %v3081 = vpop.xlane.xlu0 %3080
    %v3082 = vsel %vm2876, %v3058, 0.0
    %3083 = vadd.xlane.f32.xlu0 %v3082
    %v3084 = vpop.xlane.xlu0 %3083
    %v3085 = vsel %vm2876, %v3059, 0.0
    %3086 = vadd.xlane.f32.xlu0 %v3085
    %v3087 = vpop.xlane.xlu0 %3086
    %v3088 = vsel %vm2876, %v3060, 0.0
    %3089 = vadd.xlane.f32.xlu0 %v3088
    %v3090 = vpop.xlane.xlu0 %3089
    %v3091 = vsel %vm2876, %v3061, 0.0
    %3092 = vadd.xlane.f32.xlu0 %v3091
    %v3093 = vpop.xlane.xlu0 %3092
    %v3094 = vsel %vm2876, %v3062, 0.0
    %3095 = vadd.xlane.f32.xlu0 %v3094
    %v3096 = vpop.xlane.xlu0 %3095
    %v3097 = vsel %vm2876, %v3063, 0.0
    %3098 = vadd.xlane.f32.xlu0 %v3097
    %v3099 = vpop.xlane.xlu0 %3098
    %v3100 = vsel %vm2876, %v3064, 0.0
    %3101 = vadd.xlane.f32.xlu0 %v3100
    %v3102 = vpop.xlane.xlu0 %3101
    %v3103 = vsel %vm2876, %v3065, 0.0
    %3104 = vadd.xlane.f32.xlu0 %v3103
    %v3105 = vpop.xlane.xlu0 %3104
    %v3106 = vsel %vm2876, %v3066, 0.0
    %3107 = vadd.xlane.f32.xlu0 %v3106
    %v3108 = vpop.xlane.xlu0 %3107
    %v3109 = vsel %vm2876, %v3067, 0.0
    %3110 = vadd.xlane.f32.xlu0 %v3109
    %v3111 = vpop.xlane.xlu0 %3110
    %v3112 = vsel %vm2876, %v3068, 0.0
    %3113 = vadd.xlane.f32.xlu0 %v3112
    %v3114 = vpop.xlane.xlu0 %3113
    %v3115 = vsel %vm2876, %v3069, 0.0
    %3116 = vadd.xlane.f32.xlu0 %v3115
    %v3117 = vpop.xlane.xlu0 %3116
    %v3118 = vadd.f32 %v3072, 0.0
    %v3119 = vadd.f32 %v3075, 0.0
    %v3120 = vadd.f32 %v3078, 0.0
    %v3121 = vadd.f32 %v3081, 0.0
    %v3122 = vadd.f32 %v3084, 0.0
    %v3123 = vadd.f32 %v3087, 0.0
    %v3124 = vadd.f32 %v3090, 0.0
    %v3125 = vadd.f32 %v3093, 0.0
    %v3126 = vadd.f32 %v3096, 0.0
    %v3127 = vadd.f32 %v3099, 0.0
    %v3128 = vadd.f32 %v3102, 0.0
    %v3129 = vadd.f32 %v3105, 0.0
    %v3130 = vadd.f32 %v3108, 0.0
    %v3131 = vadd.f32 %v3111, 0.0
    %v3132 = vadd.f32 %v3114, 0.0
    %v3133 = vadd.f32 %v3117, 0.0
    %v3134 = vmul.f32 %v3038, %v3038
    %v3135 = vmul.f32 %v3039, %v3039
    %v3136 = vmul.f32 %v3040, %v3040
    %v3137 = vmul.f32 %v3041, %v3041
    %v3138 = vmul.f32 %v3042, %v3042
    %v3139 = vmul.f32 %v3043, %v3043
    %v3140 = vmul.f32 %v3044, %v3044
    %v3141 = vmul.f32 %v3045, %v3045
    %v3142 = vmul.f32 %v3046, %v3046
    %v3143 = vmul.f32 %v3047, %v3047
    %v3144 = vmul.f32 %v3048, %v3048
    %v3145 = vmul.f32 %v3049, %v3049
    %v3146 = vmul.f32 %v3050, %v3050
    %v3147 = vmul.f32 %v3051, %v3051
    %v3148 = vmul.f32 %v3052, %v3052
    %v3149 = vmul.f32 %v3053, %v3053
    %v3150 = vsel %vm2876, %v3134, 0.0
    %3151 = vadd.xlane.f32.xlu0 %v3150
    %v3152 = vpop.xlane.xlu0 %3151
    %v3153 = vsel %vm2876, %v3135, 0.0
    %3154 = vadd.xlane.f32.xlu0 %v3153
    %v3155 = vpop.xlane.xlu0 %3154
    %v3156 = vsel %vm2876, %v3136, 0.0
    %3157 = vadd.xlane.f32.xlu0 %v3156
    %v3158 = vpop.xlane.xlu0 %3157
    %v3159 = vsel %vm2876, %v3137, 0.0
    %3160 = vadd.xlane.f32.xlu0 %v3159
    %v3161 = vpop.xlane.xlu0 %3160
    %v3162 = vsel %vm2876, %v3138, 0.0
    %3163 = vadd.xlane.f32.xlu0 %v3162
    %v3164 = vpop.xlane.xlu0 %3163
    %v3165 = vsel %vm2876, %v3139, 0.0
    %3166 = vadd.xlane.f32.xlu0 %v3165
    %v3167 = vpop.xlane.xlu0 %3166
    %v3168 = vsel %vm2876, %v3140, 0.0
    %3169 = vadd.xlane.f32.xlu0 %v3168
    %v3170 = vpop.xlane.xlu0 %3169
    %v3171 = vsel %vm2876, %v3141, 0.0
    %3172 = vadd.xlane.f32.xlu0 %v3171
    %v3173 = vpop.xlane.xlu0 %3172
    %v3174 = vsel %vm2876, %v3142, 0.0
    %3175 = vadd.xlane.f32.xlu0 %v3174
    %v3176 = vpop.xlane.xlu0 %3175
    %v3177 = vsel %vm2876, %v3143, 0.0
    %3178 = vadd.xlane.f32.xlu0 %v3177
    %v3179 = vpop.xlane.xlu0 %3178
    %v3180 = vsel %vm2876, %v3144, 0.0
    %3181 = vadd.xlane.f32.xlu0 %v3180
    %v3182 = vpop.xlane.xlu0 %3181
    %v3183 = vsel %vm2876, %v3145, 0.0
    %3184 = vadd.xlane.f32.xlu0 %v3183
    %v3185 = vpop.xlane.xlu0 %3184
    %v3186 = vsel %vm2876, %v3146, 0.0
    %3187 = vadd.xlane.f32.xlu0 %v3186
    %v3188 = vpop.xlane.xlu0 %3187
    %v3189 = vsel %vm2876, %v3147, 0.0
    %3190 = vadd.xlane.f32.xlu0 %v3189
    %v3191 = vpop.xlane.xlu0 %3190
    %v3192 = vsel %vm2876, %v3148, 0.0
    %3193 = vadd.xlane.f32.xlu0 %v3192
    %v3194 = vpop.xlane.xlu0 %3193
    %v3195 = vsel %vm2876, %v3149, 0.0
    %3196 = vadd.xlane.f32.xlu0 %v3195
    %v3197 = vpop.xlane.xlu0 %3196
    %v3198 = vadd.f32 %v3118, %v3152
    %v3199 = vadd.f32 %v3119, %v3155
    %v3200 = vadd.f32 %v3120, %v3158
    %v3201 = vadd.f32 %v3121, %v3161
    %v3202 = vadd.f32 %v3122, %v3164
    %v3203 = vadd.f32 %v3123, %v3167
    %v3204 = vadd.f32 %v3124, %v3170
    %v3205 = vadd.f32 %v3125, %v3173
    %v3206 = vadd.f32 %v3126, %v3176
    %v3207 = vadd.f32 %v3127, %v3179
    %v3208 = vadd.f32 %v3128, %v3182
    %v3209 = vadd.f32 %v3129, %v3185
    %v3210 = vadd.f32 %v3130, %v3188
    %v3211 = vadd.f32 %v3131, %v3191
    %v3212 = vadd.f32 %v3132, %v3194
    %v3213 = vadd.f32 %v3133, %v3197
    %v3214 = vmul.f32 %v3198, %v3005
    %v3215 = vmul.f32 %v3199, %v3005
    %v3216 = vmul.f32 %v3200, %v3005
    %v3217 = vmul.f32 %v3201, %v3005
    %v3218 = vmul.f32 %v3202, %v3005
    %v3219 = vmul.f32 %v3203, %v3005
    %v3220 = vmul.f32 %v3204, %v3005
    %v3221 = vmul.f32 %v3205, %v3005
    %v3222 = vmul.f32 %v3206, %v3005
    %v3223 = vmul.f32 %v3207, %v3005
    %v3224 = vmul.f32 %v3208, %v3005
    %v3225 = vmul.f32 %v3209, %v3005
    %v3226 = vmul.f32 %v3210, %v3005
    %v3227 = vmul.f32 %v3211, %v3005
    %v3228 = vmul.f32 %v3212, %v3005
    %v3229 = vmul.f32 %v3213, %v3005
    %v3230 = vadd.f32 %v3214, 1e-05
    %v3231 = vadd.f32 %v3215, 1e-05
    %v3232 = vadd.f32 %v3216, 1e-05
    %v3233 = vadd.f32 %v3217, 1e-05
    %v3234 = vadd.f32 %v3218, 1e-05
    %v3235 = vadd.f32 %v3219, 1e-05
    %v3236 = vadd.f32 %v3220, 1e-05
    %v3237 = vadd.f32 %v3221, 1e-05
    %v3238 = vadd.f32 %v3222, 1e-05
    %v3239 = vadd.f32 %v3223, 1e-05
    %v3240 = vadd.f32 %v3224, 1e-05
    %v3241 = vadd.f32 %v3225, 1e-05
    %v3242 = vadd.f32 %v3226, 1e-05
    %v3243 = vadd.f32 %v3227, 1e-05
    %v3244 = vadd.f32 %v3228, 1e-05
    %v3245 = vadd.f32 %v3229, 1e-05
    %v3246 = vrsqrt.pop %v3230
    %v3247 = vrsqrt.pop %v3231
    %v3248 = vrsqrt.pop %v3232
    %v3249 = vrsqrt.pop %v3233
    %v3250 = vrsqrt.pop %v3234
    %v3251 = vrsqrt.pop %v3235
    %v3252 = vrsqrt.pop %v3236
    %v3253 = vrsqrt.pop %v3237
    %v3254 = vrsqrt.pop %v3238
    %v3255 = vrsqrt.pop %v3239
    %v3256 = vrsqrt.pop %v3240
    %v3257 = vrsqrt.pop %v3241
    %v3258 = vrsqrt.pop %v3242
    %v3259 = vrsqrt.pop %v3243
    %v3260 = vrsqrt.pop %v3244
    %v3261 = vrsqrt.pop %v3245
    %v3262 = vld [vmem:[%s2] sm:$0xff]
    %v3263 = vld [vmem:[%s2 + $0x8] sm:$0xff]
    %v3264 = vld [vmem:[%s2 + $0x10] sm:$0xff]
    %v3265 = vld [vmem:[%s2 + $0x18] sm:$0xff]
    %v3266 = vld [vmem:[%s2 + $0x20] sm:$0xff]
    %v3267 = vld [vmem:[%s2 + $0x28] sm:$0xff]
    %v3268 = vld [vmem:[%s2 + $0x30] sm:$0xff]
    %v3269 = vld [vmem:[%s2 + $0x38] sm:$0xff]
    %v3270 = vld [vmem:[%s2 + $0x40] sm:$0xff]
    %v3271 = vld [vmem:[%s2 + $0x48] sm:$0xff]
    %v3272 = vld [vmem:[%s2 + $0x50] sm:$0xff]
    %v3273 = vld [vmem:[%s2 + $0x58] sm:$0xff]
    %v3274 = vld [vmem:[%s2 + $0x60] sm:$0xff]
    %v3275 = vld [vmem:[%s2 + $0x68] sm:$0xff]
    %v3276 = vld [vmem:[%s2 + $0x70] sm:$0xff]
    %v3277 = vld [vmem:[%s2 + $0x78] sm:$0xff]
    %v3278 = vmul.f32 %v3246, %v3262
    %v3279 = vmul.f32 %v3247, %v3263
    %v3280 = vmul.f32 %v3248, %v3264
    %v3281 = vmul.f32 %v3249, %v3265
    %v3282 = vmul.f32 %v3250, %v3266
    %v3283 = vmul.f32 %v3251, %v3267
    %v3284 = vmul.f32 %v3252, %v3268
    %v3285 = vmul.f32 %v3253, %v3269
    %v3286 = vmul.f32 %v3254, %v3270
    %v3287 = vmul.f32 %v3255, %v3271
    %v3288 = vmul.f32 %v3256, %v3272
    %v3289 = vmul.f32 %v3257, %v3273
    %v3290 = vmul.f32 %v3258, %v3274
    %v3291 = vmul.f32 %v3259, %v3275
    %v3292 = vmul.f32 %v3260, %v3276
    %v3293 = vmul.f32 %v3261, %v3277
    %v3294 = vld [vmem:[%s3] sm:$0xff]
    %v3295 = vld [vmem:[%s3 + $0x8] sm:$0xff]
    %v3296 = vld [vmem:[%s3 + $0x10] sm:$0xff]
    %v3297 = vld [vmem:[%s3 + $0x18] sm:$0xff]
    %v3298 = vld [vmem:[%s3 + $0x20] sm:$0xff]
    %v3299 = vld [vmem:[%s3 + $0x28] sm:$0xff]
    %v3300 = vld [vmem:[%s3 + $0x30] sm:$0xff]
    %v3301 = vld [vmem:[%s3 + $0x38] sm:$0xff]
    %v3302 = vld [vmem:[%s3 + $0x40] sm:$0xff]
    %v3303 = vld [vmem:[%s3 + $0x48] sm:$0xff]
    %v3304 = vld [vmem:[%s3 + $0x50] sm:$0xff]
    %v3305 = vld [vmem:[%s3 + $0x58] sm:$0xff]
    %v3306 = vld [vmem:[%s3 + $0x60] sm:$0xff]
    %v3307 = vld [vmem:[%s3 + $0x68] sm:$0xff]
    %v3308 = vld [vmem:[%s3 + $0x70] sm:$0xff]
    %v3309 = vld [vmem:[%s3 + $0x78] sm:$0xff]
    %3311 = vset.pattern.permute.xlu0 0
    %3312 = vperm.xlu0 %3311, %v3278
    %v3313 = vpop.permute.xlu0 %3312
    %3316 = vset.pattern.permute.xlu0 0
    %3317 = vperm.xlu0 %3316, %v3279
    %v3318 = vpop.permute.xlu0 %3317
    %3321 = vset.pattern.permute.xlu0 0
    %3322 = vperm.xlu0 %3321, %v3280
    %v3323 = vpop.permute.xlu0 %3322
    %3326 = vset.pattern.permute.xlu0 0
    %3327 = vperm.xlu0 %3326, %v3281
    %v3328 = vpop.permute.xlu0 %3327
    %3331 = vset.pattern.permute.xlu0 0
    %3332 = vperm.xlu0 %3331, %v3282
    %v3333 = vpop.permute.xlu0 %3332
    %3336 = vset.pattern.permute.xlu0 0
    %3337 = vperm.xlu0 %3336, %v3283
    %v3338 = vpop.permute.xlu0 %3337
    %3341 = vset.pattern.permute.xlu0 0
    %3342 = vperm.xlu0 %3341, %v3284
    %v3343 = vpop.permute.xlu0 %3342
    %3346 = vset.pattern.permute.xlu0 0
    %3347 = vperm.xlu0 %3346, %v3285
    %v3348 = vpop.permute.xlu0 %3347
    %3351 = vset.pattern.permute.xlu0 0
    %3352 = vperm.xlu0 %3351, %v3286
    %v3353 = vpop.permute.xlu0 %3352
    %3356 = vset.pattern.permute.xlu0 0
    %3357 = vperm.xlu0 %3356, %v3287
    %v3358 = vpop.permute.xlu0 %3357
    %3361 = vset.pattern.permute.xlu0 0
    %3362 = vperm.xlu0 %3361, %v3288
    %v3363 = vpop.permute.xlu0 %3362
    %3366 = vset.pattern.permute.xlu0 0
    %3367 = vperm.xlu0 %3366, %v3289
    %v3368 = vpop.permute.xlu0 %3367
    %3371 = vset.pattern.permute.xlu0 0
    %3372 = vperm.xlu0 %3371, %v3290
    %v3373 = vpop.permute.xlu0 %3372
    %3376 = vset.pattern.permute.xlu0 0
    %3377 = vperm.xlu0 %3376, %v3291
    %v3378 = vpop.permute.xlu0 %3377
    %3381 = vset.pattern.permute.xlu0 0
    %3382 = vperm.xlu0 %3381, %v3292
    %v3383 = vpop.permute.xlu0 %3382
    %3386 = vset.pattern.permute.xlu0 0
    %3387 = vperm.xlu0 %3386, %v3293
    %v3388 = vpop.permute.xlu0 %3387
    %v3390 = vmul.f32 %v3022, %v3313
    %v3391 = vmul.f32 %v3023, %v3318
    %v3392 = vmul.f32 %v3024, %v3323
    %v3393 = vmul.f32 %v3025, %v3328
    %v3394 = vmul.f32 %v3026, %v3333
    %v3395 = vmul.f32 %v3027, %v3338
    %v3396 = vmul.f32 %v3028, %v3343
    %v3397 = vmul.f32 %v3029, %v3348
    %v3398 = vmul.f32 %v3030, %v3353
    %v3399 = vmul.f32 %v3031, %v3358
    %v3400 = vmul.f32 %v3032, %v3363
    %v3401 = vmul.f32 %v3033, %v3368
    %v3402 = vmul.f32 %v3034, %v3373
    %v3403 = vmul.f32 %v3035, %v3378
    %v3404 = vmul.f32 %v3036, %v3383
    %v3405 = vmul.f32 %v3037, %v3388
    %3407 = vset.pattern.permute.xlu0 0
    %3408 = vperm.xlu0 %3407, %v3294
    %v3409 = vpop.permute.xlu0 %3408
    %3412 = vset.pattern.permute.xlu0 0
    %3413 = vperm.xlu0 %3412, %v3295
    %v3414 = vpop.permute.xlu0 %3413
    %3417 = vset.pattern.permute.xlu0 0
    %3418 = vperm.xlu0 %3417, %v3296
    %v3419 = vpop.permute.xlu0 %3418
    %3422 = vset.pattern.permute.xlu0 0
    %3423 = vperm.xlu0 %3422, %v3297
    %v3424 = vpop.permute.xlu0 %3423
    %3427 = vset.pattern.permute.xlu0 0
    %3428 = vperm.xlu0 %3427, %v3298
    %v3429 = vpop.permute.xlu0 %3428
    %3432 = vset.pattern.permute.xlu0 0
    %3433 = vperm.xlu0 %3432, %v3299
    %v3434 = vpop.permute.xlu0 %3433
    %3437 = vset.pattern.permute.xlu0 0
    %3438 = vperm.xlu0 %3437, %v3300
    %v3439 = vpop.permute.xlu0 %3438
    %3442 = vset.pattern.permute.xlu0 0
    %3443 = vperm.xlu0 %3442, %v3301
    %v3444 = vpop.permute.xlu0 %3443
    %3447 = vset.pattern.permute.xlu0 0
    %3448 = vperm.xlu0 %3447, %v3302
    %v3449 = vpop.permute.xlu0 %3448
    %3452 = vset.pattern.permute.xlu0 0
    %3453 = vperm.xlu0 %3452, %v3303
    %v3454 = vpop.permute.xlu0 %3453
    %3457 = vset.pattern.permute.xlu0 0
    %3458 = vperm.xlu0 %3457, %v3304
    %v3459 = vpop.permute.xlu0 %3458
    %3462 = vset.pattern.permute.xlu0 0
    %3463 = vperm.xlu0 %3462, %v3305
    %v3464 = vpop.permute.xlu0 %3463
    %3467 = vset.pattern.permute.xlu0 0
    %3468 = vperm.xlu0 %3467, %v3306
    %v3469 = vpop.permute.xlu0 %3468
    %3472 = vset.pattern.permute.xlu0 0
    %3473 = vperm.xlu0 %3472, %v3307
    %v3474 = vpop.permute.xlu0 %3473
    %3477 = vset.pattern.permute.xlu0 0
    %3478 = vperm.xlu0 %3477, %v3308
    %v3479 = vpop.permute.xlu0 %3478
    %3482 = vset.pattern.permute.xlu0 0
    %3483 = vperm.xlu0 %3482, %v3309
    %v3484 = vpop.permute.xlu0 %3483
    %v3486 = vadd.f32 %v3390, %v3409
    %v3487 = vadd.f32 %v3391, %v3414
    %v3488 = vadd.f32 %v3392, %v3419
    %v3489 = vadd.f32 %v3393, %v3424
    %v3490 = vadd.f32 %v3394, %v3429
    %v3491 = vadd.f32 %v3395, %v3434
    %v3492 = vadd.f32 %v3396, %v3439
    %v3493 = vadd.f32 %v3397, %v3444
    %v3494 = vadd.f32 %v3398, %v3449
    %v3495 = vadd.f32 %v3399, %v3454
    %v3496 = vadd.f32 %v3400, %v3459
    %v3497 = vadd.f32 %v3401, %v3464
    %v3498 = vadd.f32 %v3402, %v3469
    %v3499 = vadd.f32 %v3403, %v3474
    %v3500 = vadd.f32 %v3404, %v3479
    %v3501 = vadd.f32 %v3405, %v3484
    %v3502 = vxor.u32 %v3486, 2147483648
    %v3503 = vxor.u32 %v3487, 2147483648
    %v3504 = vxor.u32 %v3488, 2147483648
    %v3505 = vxor.u32 %v3489, 2147483648
    %v3506 = vxor.u32 %v3490, 2147483648
    %v3507 = vxor.u32 %v3491, 2147483648
    %v3508 = vxor.u32 %v3492, 2147483648
    %v3509 = vxor.u32 %v3493, 2147483648
    %v3510 = vxor.u32 %v3494, 2147483648
    %v3511 = vxor.u32 %v3495, 2147483648
    %v3512 = vxor.u32 %v3496, 2147483648
    %v3513 = vxor.u32 %v3497, 2147483648
    %v3514 = vxor.u32 %v3498, 2147483648
    %v3515 = vxor.u32 %v3499, 2147483648
    %v3516 = vxor.u32 %v3500, 2147483648
    %v3517 = vxor.u32 %v3501, 2147483648
    %v3518 = vmul.f32 %v3502, 1.442695
    %v3519 = vpow.pop %v3518
    %v3520 = vmul.f32 %v3503, 1.442695
    %v3521 = vpow.pop %v3520
    %v3522 = vmul.f32 %v3504, 1.442695
    %v3523 = vpow.pop %v3522
    %v3524 = vmul.f32 %v3505, 1.442695
    %v3525 = vpow.pop %v3524
    %v3526 = vmul.f32 %v3506, 1.442695
    %v3527 = vpow.pop %v3526
    %v3528 = vmul.f32 %v3507, 1.442695
    %v3529 = vpow.pop %v3528
    %v3530 = vmul.f32 %v3508, 1.442695
    %v3531 = vpow.pop %v3530
    %v3532 = vmul.f32 %v3509, 1.442695
    %v3533 = vpow.pop %v3532
    %v3534 = vmul.f32 %v3510, 1.442695
    %v3535 = vpow.pop %v3534
    %v3536 = vmul.f32 %v3511, 1.442695
    %v3537 = vpow.pop %v3536
    %v3538 = vmul.f32 %v3512, 1.442695
    %v3539 = vpow.pop %v3538
    %v3540 = vmul.f32 %v3513, 1.442695
    %v3541 = vpow.pop %v3540
    %v3542 = vmul.f32 %v3514, 1.442695
    %v3543 = vpow.pop %v3542
    %v3544 = vmul.f32 %v3515, 1.442695
    %v3545 = vpow.pop %v3544
    %v3546 = vmul.f32 %v3516, 1.442695
    %v3547 = vpow.pop %v3546
    %v3548 = vmul.f32 %v3517, 1.442695
    %v3549 = vpow.pop %v3548
    %v3550 = vadd.f32 %v3519, 1.0
    %v3551 = vadd.f32 %v3521, 1.0
    %v3552 = vadd.f32 %v3523, 1.0
    %v3553 = vadd.f32 %v3525, 1.0
    %v3554 = vadd.f32 %v3527, 1.0
    %v3555 = vadd.f32 %v3529, 1.0
    %v3556 = vadd.f32 %v3531, 1.0
    %v3557 = vadd.f32 %v3533, 1.0
    %v3558 = vadd.f32 %v3535, 1.0
    %v3559 = vadd.f32 %v3537, 1.0
    %v3560 = vadd.f32 %v3539, 1.0
    %v3561 = vadd.f32 %v3541, 1.0
    %v3562 = vadd.f32 %v3543, 1.0
    %v3563 = vadd.f32 %v3545, 1.0
    %v3564 = vadd.f32 %v3547, 1.0
    %v3565 = vadd.f32 %v3549, 1.0
    %v3566 = vrcp.pop %v3550
    %v3567 = vmul.f32 1.0, %v3566
    %v3568 = vrcp.pop %v3551
    %v3569 = vmul.f32 1.0, %v3568
    %v3570 = vrcp.pop %v3552
    %v3571 = vmul.f32 1.0, %v3570
    %v3572 = vrcp.pop %v3553
    %v3573 = vmul.f32 1.0, %v3572
    %v3574 = vrcp.pop %v3554
    %v3575 = vmul.f32 1.0, %v3574
    %v3576 = vrcp.pop %v3555
    %v3577 = vmul.f32 1.0, %v3576
    %v3578 = vrcp.pop %v3556
    %v3579 = vmul.f32 1.0, %v3578
    %v3580 = vrcp.pop %v3557
    %v3581 = vmul.f32 1.0, %v3580
    %v3582 = vrcp.pop %v3558
    %v3583 = vmul.f32 1.0, %v3582
    %v3584 = vrcp.pop %v3559
    %v3585 = vmul.f32 1.0, %v3584
    %v3586 = vrcp.pop %v3560
    %v3587 = vmul.f32 1.0, %v3586
    %v3588 = vrcp.pop %v3561
    %v3589 = vmul.f32 1.0, %v3588
    %v3590 = vrcp.pop %v3562
    %v3591 = vmul.f32 1.0, %v3590
    %v3592 = vrcp.pop %v3563
    %v3593 = vmul.f32 1.0, %v3592
    %v3594 = vrcp.pop %v3564
    %v3595 = vmul.f32 1.0, %v3594
    %v3596 = vrcp.pop %v3565
    %v3597 = vmul.f32 1.0, %v3596
    %3598 = vst.msk [vmem:[%s12] sm:$0xff] %vm2876, %v3567
    %3599 = vst.msk [vmem:[%s12 + $0x8] sm:$0xff] %vm2876, %v3569
    %3600 = vst.msk [vmem:[%s12 + $0x10] sm:$0xff] %vm2876, %v3571
    %3601 = vst.msk [vmem:[%s12 + $0x18] sm:$0xff] %vm2876, %v3573
    %3602 = vst.msk [vmem:[%s12 + $0x20] sm:$0xff] %vm2876, %v3575
    %3603 = vst.msk [vmem:[%s12 + $0x28] sm:$0xff] %vm2876, %v3577
    %3604 = vst.msk [vmem:[%s12 + $0x30] sm:$0xff] %vm2876, %v3579
    %3605 = vst.msk [vmem:[%s12 + $0x38] sm:$0xff] %vm2876, %v3581
    %3606 = vst.msk [vmem:[%s12 + $0x40] sm:$0xff] %vm2876, %v3583
    %3607 = vst.msk [vmem:[%s12 + $0x48] sm:$0xff] %vm2876, %v3585
    %3608 = vst.msk [vmem:[%s12 + $0x50] sm:$0xff] %vm2876, %v3587
    %3609 = vst.msk [vmem:[%s12 + $0x58] sm:$0xff] %vm2876, %v3589
    %3610 = vst.msk [vmem:[%s12 + $0x60] sm:$0xff] %vm2876, %v3591
    %3611 = vst.msk [vmem:[%s12 + $0x68] sm:$0xff] %vm2876, %v3593
    %3612 = vst.msk [vmem:[%s12 + $0x70] sm:$0xff] %vm2876, %v3595
    %3613 = vst.msk [vmem:[%s12 + $0x78] sm:$0xff] %vm2876, %v3597
    %v3614 = vmul.f32 %v3038, %v3313
    %v3615 = vmul.f32 %v3039, %v3318
    %v3616 = vmul.f32 %v3040, %v3323
    %v3617 = vmul.f32 %v3041, %v3328
    %v3618 = vmul.f32 %v3042, %v3333
    %v3619 = vmul.f32 %v3043, %v3338
    %v3620 = vmul.f32 %v3044, %v3343
    %v3621 = vmul.f32 %v3045, %v3348
    %v3622 = vmul.f32 %v3046, %v3353
    %v3623 = vmul.f32 %v3047, %v3358
    %v3624 = vmul.f32 %v3048, %v3363
    %v3625 = vmul.f32 %v3049, %v3368
    %v3626 = vmul.f32 %v3050, %v3373
    %v3627 = vmul.f32 %v3051, %v3378
    %v3628 = vmul.f32 %v3052, %v3383
    %v3629 = vmul.f32 %v3053, %v3388
    %v3630 = vadd.f32 %v3614, %v3409
    %v3631 = vadd.f32 %v3615, %v3414
    %v3632 = vadd.f32 %v3616, %v3419
    %v3633 = vadd.f32 %v3617, %v3424
    %v3634 = vadd.f32 %v3618, %v3429
    %v3635 = vadd.f32 %v3619, %v3434
    %v3636 = vadd.f32 %v3620, %v3439
    %v3637 = vadd.f32 %v3621, %v3444
    %v3638 = vadd.f32 %v3622, %v3449
    %v3639 = vadd.f32 %v3623, %v3454
    %v3640 = vadd.f32 %v3624, %v3459
    %v3641 = vadd.f32 %v3625, %v3464
    %v3642 = vadd.f32 %v3626, %v3469
    %v3643 = vadd.f32 %v3627, %v3474
    %v3644 = vadd.f32 %v3628, %v3479
    %v3645 = vadd.f32 %v3629, %v3484
    %v3646 = vxor.u32 %v3630, 2147483648
    %v3647 = vxor.u32 %v3631, 2147483648
    %v3648 = vxor.u32 %v3632, 2147483648
    %v3649 = vxor.u32 %v3633, 2147483648
    %v3650 = vxor.u32 %v3634, 2147483648
    %v3651 = vxor.u32 %v3635, 2147483648
    %v3652 = vxor.u32 %v3636, 2147483648
    %v3653 = vxor.u32 %v3637, 2147483648
    %v3654 = vxor.u32 %v3638, 2147483648
    %v3655 = vxor.u32 %v3639, 2147483648
    %v3656 = vxor.u32 %v3640, 2147483648
    %v3657 = vxor.u32 %v3641, 2147483648
    %v3658 = vxor.u32 %v3642, 2147483648
    %v3659 = vxor.u32 %v3643, 2147483648
    %v3660 = vxor.u32 %v3644, 2147483648
    %v3661 = vxor.u32 %v3645, 2147483648
    %v3662 = vmul.f32 %v3646, 1.442695
    %v3663 = vpow.pop %v3662
    %v3664 = vmul.f32 %v3647, 1.442695
    %v3665 = vpow.pop %v3664
    %v3666 = vmul.f32 %v3648, 1.442695
    %v3667 = vpow.pop %v3666
    %v3668 = vmul.f32 %v3649, 1.442695
    %v3669 = vpow.pop %v3668
    %v3670 = vmul.f32 %v3650, 1.442695
    %v3671 = vpow.pop %v3670
    %v3672 = vmul.f32 %v3651, 1.442695
    %v3673 = vpow.pop %v3672
    %v3674 = vmul.f32 %v3652, 1.442695
    %v3675 = vpow.pop %v3674
    %v3676 = vmul.f32 %v3653, 1.442695
    %v3677 = vpow.pop %v3676
    %v3678 = vmul.f32 %v3654, 1.442695
    %v3679 = vpow.pop %v3678
    %v3680 = vmul.f32 %v3655, 1.442695
    %v3681 = vpow.pop %v3680
    %v3682 = vmul.f32 %v3656, 1.442695
    %v3683 = vpow.pop %v3682
    %v3684 = vmul.f32 %v3657, 1.442695
    %v3685 = vpow.pop %v3684
    %v3686 = vmul.f32 %v3658, 1.442695
    %v3687 = vpow.pop %v3686
    %v3688 = vmul.f32 %v3659, 1.442695
    %v3689 = vpow.pop %v3688
    %v3690 = vmul.f32 %v3660, 1.442695
    %v3691 = vpow.pop %v3690
    %v3692 = vmul.f32 %v3661, 1.442695
    %v3693 = vpow.pop %v3692
    %v3694 = vadd.f32 %v3663, 1.0
    %v3695 = vadd.f32 %v3665, 1.0
    %v3696 = vadd.f32 %v3667, 1.0
    %v3697 = vadd.f32 %v3669, 1.0
    %v3698 = vadd.f32 %v3671, 1.0
    %v3699 = vadd.f32 %v3673, 1.0
    %v3700 = vadd.f32 %v3675, 1.0
    %v3701 = vadd.f32 %v3677, 1.0
    %v3702 = vadd.f32 %v3679, 1.0
    %v3703 = vadd.f32 %v3681, 1.0
    %v3704 = vadd.f32 %v3683, 1.0
    %v3705 = vadd.f32 %v3685, 1.0
    %v3706 = vadd.f32 %v3687, 1.0
    %v3707 = vadd.f32 %v3689, 1.0
    %v3708 = vadd.f32 %v3691, 1.0
    %v3709 = vadd.f32 %v3693, 1.0
    %v3710 = vrcp.pop %v3694
    %v3711 = vmul.f32 1.0, %v3710
    %v3712 = vrcp.pop %v3695
    %v3713 = vmul.f32 1.0, %v3712
    %v3714 = vrcp.pop %v3696
    %v3715 = vmul.f32 1.0, %v3714
    %v3716 = vrcp.pop %v3697
    %v3717 = vmul.f32 1.0, %v3716
    %v3718 = vrcp.pop %v3698
    %v3719 = vmul.f32 1.0, %v3718
    %v3720 = vrcp.pop %v3699
    %v3721 = vmul.f32 1.0, %v3720
    %v3722 = vrcp.pop %v3700
    %v3723 = vmul.f32 1.0, %v3722
    %v3724 = vrcp.pop %v3701
    %v3725 = vmul.f32 1.0, %v3724
    %v3726 = vrcp.pop %v3702
    %v3727 = vmul.f32 1.0, %v3726
    %v3728 = vrcp.pop %v3703
    %v3729 = vmul.f32 1.0, %v3728
    %v3730 = vrcp.pop %v3704
    %v3731 = vmul.f32 1.0, %v3730
    %v3732 = vrcp.pop %v3705
    %v3733 = vmul.f32 1.0, %v3732
    %v3734 = vrcp.pop %v3706
    %v3735 = vmul.f32 1.0, %v3734
    %v3736 = vrcp.pop %v3707
    %v3737 = vmul.f32 1.0, %v3736
    %v3738 = vrcp.pop %v3708
    %v3739 = vmul.f32 1.0, %v3738
    %v3740 = vrcp.pop %v3709
    %v3741 = vmul.f32 1.0, %v3740
    %s3742 = scalar_lea.vmem %s12, 128
    %3743 = vst.msk [vmem:[%s3742] sm:$0xff] %vm2876, %v3711
    %3744 = vst.msk [vmem:[%s3742 + $0x8] sm:$0xff] %vm2876, %v3713
    %3745 = vst.msk [vmem:[%s3742 + $0x10] sm:$0xff] %vm2876, %v3715
    %3746 = vst.msk [vmem:[%s3742 + $0x18] sm:$0xff] %vm2876, %v3717
    %3747 = vst.msk [vmem:[%s3742 + $0x20] sm:$0xff] %vm2876, %v3719
    %3748 = vst.msk [vmem:[%s3742 + $0x28] sm:$0xff] %vm2876, %v3721
    %3749 = vst.msk [vmem:[%s3742 + $0x30] sm:$0xff] %vm2876, %v3723
    %3750 = vst.msk [vmem:[%s3742 + $0x38] sm:$0xff] %vm2876, %v3725
    %3751 = vst.msk [vmem:[%s3742 + $0x40] sm:$0xff] %vm2876, %v3727
    %3752 = vst.msk [vmem:[%s3742 + $0x48] sm:$0xff] %vm2876, %v3729
    %3753 = vst.msk [vmem:[%s3742 + $0x50] sm:$0xff] %vm2876, %v3731
    %3754 = vst.msk [vmem:[%s3742 + $0x58] sm:$0xff] %vm2876, %v3733
    %3755 = vst.msk [vmem:[%s3742 + $0x60] sm:$0xff] %vm2876, %v3735
    %3756 = vst.msk [vmem:[%s3742 + $0x68] sm:$0xff] %vm2876, %v3737
    %3757 = vst.msk [vmem:[%s3742 + $0x70] sm:$0xff] %vm2876, %v3739
    %3758 = vst.msk [vmem:[%s3742 + $0x78] sm:$0xff] %vm2876, %v3741
    %3775 = vrot.lane.b32.xlu0 %v3567, 2
    %v3776 = vpop.permute.xlu0 %3775
    %3777 = vrot.lane.b32.xlu0 %v3569, 2
    %v3778 = vpop.permute.xlu0 %3777
    %3779 = vrot.lane.b32.xlu0 %v3571, 2
    %v3780 = vpop.permute.xlu0 %3779
    %3781 = vrot.lane.b32.xlu0 %v3573, 2
    %v3782 = vpop.permute.xlu0 %3781
    %3783 = vrot.lane.b32.xlu0 %v3575, 2
    %v3784 = vpop.permute.xlu0 %3783
    %3785 = vrot.lane.b32.xlu0 %v3577, 2
    %v3786 = vpop.permute.xlu0 %3785
    %3787 = vrot.lane.b32.xlu0 %v3579, 2
    %v3788 = vpop.permute.xlu0 %3787
    %3789 = vrot.lane.b32.xlu0 %v3581, 2
    %v3790 = vpop.permute.xlu0 %3789
    %3791 = vrot.lane.b32.xlu0 %v3583, 2
    %v3792 = vpop.permute.xlu0 %3791
    %3793 = vrot.lane.b32.xlu0 %v3585, 2
    %v3794 = vpop.permute.xlu0 %3793
    %3795 = vrot.lane.b32.xlu0 %v3587, 2
    %v3796 = vpop.permute.xlu0 %3795
    %3797 = vrot.lane.b32.xlu0 %v3589, 2
    %v3798 = vpop.permute.xlu0 %3797
    %3799 = vrot.lane.b32.xlu0 %v3591, 2
    %v3800 = vpop.permute.xlu0 %3799
    %3801 = vrot.lane.b32.xlu0 %v3593, 2
    %v3802 = vpop.permute.xlu0 %3801
    %3803 = vrot.lane.b32.xlu0 %v3595, 2
    %v3804 = vpop.permute.xlu0 %3803
    %3805 = vrot.lane.b32.xlu0 %v3597, 2
    %v3806 = vpop.permute.xlu0 %3805
    %vm3823 = vcmask 130064
    %3824 = vst.msk [vmem:[#allocation3] sm:$0xff] %vm3823, %v3776
    %3825 = vst.msk [vmem:[#allocation3 + $0x8] sm:$0xff] %vm3823, %v3778
    %3826 = vst.msk [vmem:[#allocation3 + $0x10] sm:$0xff] %vm3823, %v3780
    %3827 = vst.msk [vmem:[#allocation3 + $0x18] sm:$0xff] %vm3823, %v3782
    %3828 = vst.msk [vmem:[#allocation3 + $0x20] sm:$0xff] %vm3823, %v3784
    %3829 = vst.msk [vmem:[#allocation3 + $0x28] sm:$0xff] %vm3823, %v3786
    %3830 = vst.msk [vmem:[#allocation3 + $0x30] sm:$0xff] %vm3823, %v3788
    %3831 = vst.msk [vmem:[#allocation3 + $0x38] sm:$0xff] %vm3823, %v3790
    %3832 = vst.msk [vmem:[#allocation3 + $0x40] sm:$0xff] %vm3823, %v3792
    %3833 = vst.msk [vmem:[#allocation3 + $0x48] sm:$0xff] %vm3823, %v3794
    %3834 = vst.msk [vmem:[#allocation3 + $0x50] sm:$0xff] %vm3823, %v3796
    %3835 = vst.msk [vmem:[#allocation3 + $0x58] sm:$0xff] %vm3823, %v3798
    %3836 = vst.msk [vmem:[#allocation3 + $0x60] sm:$0xff] %vm3823, %v3800
    %3837 = vst.msk [vmem:[#allocation3 + $0x68] sm:$0xff] %vm3823, %v3802
    %3838 = vst.msk [vmem:[#allocation3 + $0x70] sm:$0xff] %vm3823, %v3804
    %3839 = vst.msk [vmem:[#allocation3 + $0x78] sm:$0xff] %vm3823, %v3806
    %3856 = vrot.lane.b32.xlu0 %v3711, 2
    %v3857 = vpop.permute.xlu0 %3856
    %3858 = vrot.lane.b32.xlu0 %v3713, 2
    %v3859 = vpop.permute.xlu0 %3858
    %3860 = vrot.lane.b32.xlu0 %v3715, 2
    %v3861 = vpop.permute.xlu0 %3860
    %3862 = vrot.lane.b32.xlu0 %v3717, 2
    %v3863 = vpop.permute.xlu0 %3862
    %3864 = vrot.lane.b32.xlu0 %v3719, 2
    %v3865 = vpop.permute.xlu0 %3864
    %3866 = vrot.lane.b32.xlu0 %v3721, 2
    %v3867 = vpop.permute.xlu0 %3866
    %3868 = vrot.lane.b32.xlu0 %v3723, 2
    %v3869 = vpop.permute.xlu0 %3868
    %3870 = vrot.lane.b32.xlu0 %v3725, 2
    %v3871 = vpop.permute.xlu0 %3870
    %3872 = vrot.lane.b32.xlu0 %v3727, 2
    %v3873 = vpop.permute.xlu0 %3872
    %3874 = vrot.lane.b32.xlu0 %v3729, 2
    %v3875 = vpop.permute.xlu0 %3874
    %3876 = vrot.lane.b32.xlu0 %v3731, 2
    %v3877 = vpop.permute.xlu0 %3876
    %3878 = vrot.lane.b32.xlu0 %v3733, 2
    %v3879 = vpop.permute.xlu0 %3878
    %3880 = vrot.lane.b32.xlu0 %v3735, 2
    %v3881 = vpop.permute.xlu0 %3880
    %3882 = vrot.lane.b32.xlu0 %v3737, 2
    %v3883 = vpop.permute.xlu0 %3882
    %3884 = vrot.lane.b32.xlu0 %v3739, 2
    %v3885 = vpop.permute.xlu0 %3884
    %3886 = vrot.lane.b32.xlu0 %v3741, 2
    %v3887 = vpop.permute.xlu0 %3886
    %s3904 = scalar_lea.vmem [#allocation3], 128
    %3905 = vst.msk [vmem:[%s3904] sm:$0xff] %vm3823, %v3857
    %3906 = vst.msk [vmem:[%s3904 + $0x8] sm:$0xff] %vm3823, %v3859
    %3907 = vst.msk [vmem:[%s3904 + $0x10] sm:$0xff] %vm3823, %v3861
    %3908 = vst.msk [vmem:[%s3904 + $0x18] sm:$0xff] %vm3823, %v3863
    %3909 = vst.msk [vmem:[%s3904 + $0x20] sm:$0xff] %vm3823, %v3865
    %3910 = vst.msk [vmem:[%s3904 + $0x28] sm:$0xff] %vm3823, %v3867
    %3911 = vst.msk [vmem:[%s3904 + $0x30] sm:$0xff] %vm3823, %v3869
    %3912 = vst.msk [vmem:[%s3904 + $0x38] sm:$0xff] %vm3823, %v3871
    %3913 = vst.msk [vmem:[%s3904 + $0x40] sm:$0xff] %vm3823, %v3873
    %3914 = vst.msk [vmem:[%s3904 + $0x48] sm:$0xff] %vm3823, %v3875
    %3915 = vst.msk [vmem:[%s3904 + $0x50] sm:$0xff] %vm3823, %v3877
    %3916 = vst.msk [vmem:[%s3904 + $0x58] sm:$0xff] %vm3823, %v3879
    %3917 = vst.msk [vmem:[%s3904 + $0x60] sm:$0xff] %vm3823, %v3881
    %3918 = vst.msk [vmem:[%s3904 + $0x68] sm:$0xff] %vm3823, %v3883
    %3919 = vst.msk [vmem:[%s3904 + $0x70] sm:$0xff] %vm3823, %v3885
    %3920 = vst.msk [vmem:[%s3904 + $0x78] sm:$0xff] %vm3823, %v3887
    %v3921 = vld [vmem:[%s4] sm:$0xff]
    %v3922 = vld [vmem:[%s4 + $0x8] sm:$0xff]
    %v3923 = vld [vmem:[%s4 + $0x10] sm:$0xff]
    %v3924 = vld [vmem:[%s4 + $0x18] sm:$0xff]
    %v3925 = vld [vmem:[%s4 + $0x20] sm:$0xff]
    %v3926 = vld [vmem:[%s4 + $0x28] sm:$0xff]
    %v3927 = vld [vmem:[%s4 + $0x30] sm:$0xff]
    %v3928 = vld [vmem:[%s4 + $0x38] sm:$0xff]
    %v3929 = vld [vmem:[%s4 + $0x40] sm:$0xff]
    %v3930 = vld [vmem:[%s4 + $0x48] sm:$0xff]
    %v3931 = vld [vmem:[%s4 + $0x50] sm:$0xff]
    %v3932 = vld [vmem:[%s4 + $0x58] sm:$0xff]
    %v3933 = vld [vmem:[%s4 + $0x60] sm:$0xff]
    %v3934 = vld [vmem:[%s4 + $0x68] sm:$0xff]
    %v3935 = vld [vmem:[%s4 + $0x70] sm:$0xff]
    %v3936 = vld [vmem:[%s4 + $0x78] sm:$0xff]
    %v3937 = vld [vmem:[%s4 + $0x80] sm:$0xff]
    %v3938 = vld [vmem:[%s4 + $0x88] sm:$0xff]
    %v3939 = vld [vmem:[%s4 + $0x90] sm:$0xff]
    %v3940 = vld [vmem:[%s4 + $0x98] sm:$0xff]
    %v3941 = vld [vmem:[%s4 + $0xa0] sm:$0xff]
    %v3942 = vld [vmem:[%s4 + $0xa8] sm:$0xff]
    %v3943 = vld [vmem:[%s4 + $0xb0] sm:$0xff]
    %v3944 = vld [vmem:[%s4 + $0xb8] sm:$0xff]
    %v3945 = vld [vmem:[%s4 + $0xc0] sm:$0xff]
    %v3946 = vld [vmem:[%s4 + $0xc8] sm:$0xff]
    %v3947 = vld [vmem:[%s4 + $0xd0] sm:$0xff]
    %v3948 = vld [vmem:[%s4 + $0xd8] sm:$0xff]
    %v3949 = vld [vmem:[%s4 + $0xe0] sm:$0xff]
    %v3950 = vld [vmem:[%s4 + $0xe8] sm:$0xff]
    %v3951 = vld [vmem:[%s4 + $0xf0] sm:$0xff]
    %v3952 = vld [vmem:[%s4 + $0xf8] sm:$0xff]
    %s3953 = scalar_lea.vmem %s4, 256
    %v3954 = vld [vmem:[%s3953] sm:$0xff]
    %v3955 = vld [vmem:[%s3953 + $0x8] sm:$0xff]
    %v3956 = vld [vmem:[%s3953 + $0x10] sm:$0xff]
    %v3957 = vld [vmem:[%s3953 + $0x18] sm:$0xff]
    %v3958 = vld [vmem:[%s3953 + $0x20] sm:$0xff]
    %v3959 = vld [vmem:[%s3953 + $0x28] sm:$0xff]
    %v3960 = vld [vmem:[%s3953 + $0x30] sm:$0xff]
    %v3961 = vld [vmem:[%s3953 + $0x38] sm:$0xff]
    %v3962 = vld [vmem:[%s3953 + $0x40] sm:$0xff]
    %v3963 = vld [vmem:[%s3953 + $0x48] sm:$0xff]
    %v3964 = vld [vmem:[%s3953 + $0x50] sm:$0xff]
    %v3965 = vld [vmem:[%s3953 + $0x58] sm:$0xff]
    %v3966 = vld [vmem:[%s3953 + $0x60] sm:$0xff]
    %v3967 = vld [vmem:[%s3953 + $0x68] sm:$0xff]
    %v3968 = vld [vmem:[%s3953 + $0x70] sm:$0xff]
    %v3969 = vld [vmem:[%s3953 + $0x78] sm:$0xff]
    %v3970 = vld [vmem:[%s3953 + $0x80] sm:$0xff]
    %v3971 = vld [vmem:[%s3953 + $0x88] sm:$0xff]
    %v3972 = vld [vmem:[%s3953 + $0x90] sm:$0xff]
    %v3973 = vld [vmem:[%s3953 + $0x98] sm:$0xff]
    %v3974 = vld [vmem:[%s3953 + $0xa0] sm:$0xff]
    %v3975 = vld [vmem:[%s3953 + $0xa8] sm:$0xff]
    %v3976 = vld [vmem:[%s3953 + $0xb0] sm:$0xff]
    %v3977 = vld [vmem:[%s3953 + $0xb8] sm:$0xff]
    %v3978 = vld [vmem:[%s3953 + $0xc0] sm:$0xff]
    %v3979 = vld [vmem:[%s3953 + $0xc8] sm:$0xff]
    %v3980 = vld [vmem:[%s3953 + $0xd0] sm:$0xff]
    %v3981 = vld [vmem:[%s3953 + $0xd8] sm:$0xff]
    %v3982 = vld [vmem:[%s3953 + $0xe0] sm:$0xff]
    %v3983 = vld [vmem:[%s3953 + $0xe8] sm:$0xff]
    %v3984 = vld [vmem:[%s3953 + $0xf0] sm:$0xff]
    %v3985 = vld [vmem:[%s3953 + $0xf8] sm:$0xff]
    %s3986 = scalar_lea.vmem %s4, 512
    %v3987 = vld [vmem:[%s3986] sm:$0xff]
    %v3988 = vld [vmem:[%s3986 + $0x8] sm:$0xff]
    %v3989 = vld [vmem:[%s3986 + $0x10] sm:$0xff]
    %v3990 = vld [vmem:[%s3986 + $0x18] sm:$0xff]
    %v3991 = vld [vmem:[%s3986 + $0x20] sm:$0xff]
    %v3992 = vld [vmem:[%s3986 + $0x28] sm:$0xff]
    %v3993 = vld [vmem:[%s3986 + $0x30] sm:$0xff]
    %v3994 = vld [vmem:[%s3986 + $0x38] sm:$0xff]
    %v3995 = vld [vmem:[%s3986 + $0x40] sm:$0xff]
    %v3996 = vld [vmem:[%s3986 + $0x48] sm:$0xff]
    %v3997 = vld [vmem:[%s3986 + $0x50] sm:$0xff]
    %v3998 = vld [vmem:[%s3986 + $0x58] sm:$0xff]
    %v3999 = vld [vmem:[%s3986 + $0x60] sm:$0xff]
    %v4000 = vld [vmem:[%s3986 + $0x68] sm:$0xff]
    %v4001 = vld [vmem:[%s3986 + $0x70] sm:$0xff]
    %v4002 = vld [vmem:[%s3986 + $0x78] sm:$0xff]
    %v4003 = vld [vmem:[%s3986 + $0x80] sm:$0xff]
    %v4004 = vld [vmem:[%s3986 + $0x88] sm:$0xff]
    %v4005 = vld [vmem:[%s3986 + $0x90] sm:$0xff]
    %v4006 = vld [vmem:[%s3986 + $0x98] sm:$0xff]
    %v4007 = vld [vmem:[%s3986 + $0xa0] sm:$0xff]
    %v4008 = vld [vmem:[%s3986 + $0xa8] sm:$0xff]
    %v4009 = vld [vmem:[%s3986 + $0xb0] sm:$0xff]
    %v4010 = vld [vmem:[%s3986 + $0xb8] sm:$0xff]
    %v4011 = vld [vmem:[%s3986 + $0xc0] sm:$0xff]
    %v4012 = vld [vmem:[%s3986 + $0xc8] sm:$0xff]
    %v4013 = vld [vmem:[%s3986 + $0xd0] sm:$0xff]
    %v4014 = vld [vmem:[%s3986 + $0xd8] sm:$0xff]
    %v4015 = vld [vmem:[%s3986 + $0xe0] sm:$0xff]
    %v4016 = vld [vmem:[%s3986 + $0xe8] sm:$0xff]
    %v4017 = vld [vmem:[%s3986 + $0xf0] sm:$0xff]
    %v4018 = vld [vmem:[%s3986 + $0xf8] sm:$0xff]
    %s4019 = scalar_lea.vmem %s4, 768
    %v4020 = vld [vmem:[%s4019] sm:$0xff]
    %v4021 = vld [vmem:[%s4019 + $0x8] sm:$0xff]
    %v4022 = vld [vmem:[%s4019 + $0x10] sm:$0xff]
    %v4023 = vld [vmem:[%s4019 + $0x18] sm:$0xff]
    %v4024 = vld [vmem:[%s4019 + $0x20] sm:$0xff]
    %v4025 = vld [vmem:[%s4019 + $0x28] sm:$0xff]
    %v4026 = vld [vmem:[%s4019 + $0x30] sm:$0xff]
    %v4027 = vld [vmem:[%s4019 + $0x38] sm:$0xff]
    %v4028 = vld [vmem:[%s4019 + $0x40] sm:$0xff]
    %v4029 = vld [vmem:[%s4019 + $0x48] sm:$0xff]
    %v4030 = vld [vmem:[%s4019 + $0x50] sm:$0xff]
    %v4031 = vld [vmem:[%s4019 + $0x58] sm:$0xff]
    %v4032 = vld [vmem:[%s4019 + $0x60] sm:$0xff]
    %v4033 = vld [vmem:[%s4019 + $0x68] sm:$0xff]
    %v4034 = vld [vmem:[%s4019 + $0x70] sm:$0xff]
    %v4035 = vld [vmem:[%s4019 + $0x78] sm:$0xff]
    %v4036 = vld [vmem:[%s4019 + $0x80] sm:$0xff]
    %v4037 = vld [vmem:[%s4019 + $0x88] sm:$0xff]
    %v4038 = vld [vmem:[%s4019 + $0x90] sm:$0xff]
    %v4039 = vld [vmem:[%s4019 + $0x98] sm:$0xff]
    %v4040 = vld [vmem:[%s4019 + $0xa0] sm:$0xff]
    %v4041 = vld [vmem:[%s4019 + $0xa8] sm:$0xff]
    %v4042 = vld [vmem:[%s4019 + $0xb0] sm:$0xff]
    %v4043 = vld [vmem:[%s4019 + $0xb8] sm:$0xff]
    %v4044 = vld [vmem:[%s4019 + $0xc0] sm:$0xff]
    %v4045 = vld [vmem:[%s4019 + $0xc8] sm:$0xff]
    %v4046 = vld [vmem:[%s4019 + $0xd0] sm:$0xff]
    %v4047 = vld [vmem:[%s4019 + $0xd8] sm:$0xff]
    %v4048 = vld [vmem:[%s4019 + $0xe0] sm:$0xff]
    %v4049 = vld [vmem:[%s4019 + $0xe8] sm:$0xff]
    %v4050 = vld [vmem:[%s4019 + $0xf0] sm:$0xff]
    %v4051 = vld [vmem:[%s4019 + $0xf8] sm:$0xff]
    %s4052 = scalar_lea.vmem %s4, 1024
    %v4053 = vld [vmem:[%s4052] sm:$0xff]
    %v4054 = vld [vmem:[%s4052 + $0x8] sm:$0xff]
    %v4055 = vld [vmem:[%s4052 + $0x10] sm:$0xff]
    %v4056 = vld [vmem:[%s4052 + $0x18] sm:$0xff]
    %v4057 = vld [vmem:[%s4052 + $0x20] sm:$0xff]
    %v4058 = vld [vmem:[%s4052 + $0x28] sm:$0xff]
    %v4059 = vld [vmem:[%s4052 + $0x30] sm:$0xff]
    %v4060 = vld [vmem:[%s4052 + $0x38] sm:$0xff]
    %v4061 = vld [vmem:[%s4052 + $0x40] sm:$0xff]
    %v4062 = vld [vmem:[%s4052 + $0x48] sm:$0xff]
    %v4063 = vld [vmem:[%s4052 + $0x50] sm:$0xff]
    %v4064 = vld [vmem:[%s4052 + $0x58] sm:$0xff]
    %v4065 = vld [vmem:[%s4052 + $0x60] sm:$0xff]
    %v4066 = vld [vmem:[%s4052 + $0x68] sm:$0xff]
    %v4067 = vld [vmem:[%s4052 + $0x70] sm:$0xff]
    %v4068 = vld [vmem:[%s4052 + $0x78] sm:$0xff]
    %v4069 = vld [vmem:[%s4052 + $0x80] sm:$0xff]
    %v4070 = vld [vmem:[%s4052 + $0x88] sm:$0xff]
    %v4071 = vld [vmem:[%s4052 + $0x90] sm:$0xff]
    %v4072 = vld [vmem:[%s4052 + $0x98] sm:$0xff]
    %v4073 = vld [vmem:[%s4052 + $0xa0] sm:$0xff]
    %v4074 = vld [vmem:[%s4052 + $0xa8] sm:$0xff]
    %v4075 = vld [vmem:[%s4052 + $0xb0] sm:$0xff]
    %v4076 = vld [vmem:[%s4052 + $0xb8] sm:$0xff]
    %v4077 = vld [vmem:[%s4052 + $0xc0] sm:$0xff]
    %v4078 = vld [vmem:[%s4052 + $0xc8] sm:$0xff]
    %v4079 = vld [vmem:[%s4052 + $0xd0] sm:$0xff]
    %v4080 = vld [vmem:[%s4052 + $0xd8] sm:$0xff]
    %v4081 = vld [vmem:[%s4052 + $0xe0] sm:$0xff]
    %v4082 = vld [vmem:[%s4052 + $0xe8] sm:$0xff]
    %v4083 = vld [vmem:[%s4052 + $0xf0] sm:$0xff]
    %v4084 = vld [vmem:[%s4052 + $0xf8] sm:$0xff]
    %v4085 = vld [vmem:[#allocation3] sm:$0xff]
    %v4086 = vld [vmem:[#allocation3 + $0x8] sm:$0xff]
    %v4087 = vld [vmem:[#allocation3 + $0x10] sm:$0xff]
    %v4088 = vld [vmem:[#allocation3 + $0x18] sm:$0xff]
    %v4089 = vld [vmem:[#allocation3 + $0x20] sm:$0xff]
    %v4090 = vld [vmem:[#allocation3 + $0x28] sm:$0xff]
    %v4091 = vld [vmem:[#allocation3 + $0x30] sm:$0xff]
    %v4092 = vld [vmem:[#allocation3 + $0x38] sm:$0xff]
    %v4093 = vld [vmem:[#allocation3 + $0x40] sm:$0xff]
    %v4094 = vld [vmem:[#allocation3 + $0x48] sm:$0xff]
    %v4095 = vld [vmem:[#allocation3 + $0x50] sm:$0xff]
    %v4096 = vld [vmem:[#allocation3 + $0x58] sm:$0xff]
    %v4097 = vld [vmem:[#allocation3 + $0x60] sm:$0xff]
    %v4098 = vld [vmem:[#allocation3 + $0x68] sm:$0xff]
    %v4099 = vld [vmem:[#allocation3 + $0x70] sm:$0xff]
    %v4100 = vld [vmem:[#allocation3 + $0x78] sm:$0xff]
    %4117 = vrot.lane.b32.xlu0 %v4085, 127
    %v4118 = vpop.permute.xlu0 %4117
    %4119 = vrot.lane.b32.xlu0 %v4086, 127
    %v4120 = vpop.permute.xlu0 %4119
    %4121 = vrot.lane.b32.xlu0 %v4087, 127
    %v4122 = vpop.permute.xlu0 %4121
    %4123 = vrot.lane.b32.xlu0 %v4088, 127
    %v4124 = vpop.permute.xlu0 %4123
    %4125 = vrot.lane.b32.xlu0 %v4089, 127
    %v4126 = vpop.permute.xlu0 %4125
    %4127 = vrot.lane.b32.xlu0 %v4090, 127
    %v4128 = vpop.permute.xlu0 %4127
    %4129 = vrot.lane.b32.xlu0 %v4091, 127
    %v4130 = vpop.permute.xlu0 %4129
    %4131 = vrot.lane.b32.xlu0 %v4092, 127
    %v4132 = vpop.permute.xlu0 %4131
    %4133 = vrot.lane.b32.xlu0 %v4093, 127
    %v4134 = vpop.permute.xlu0 %4133
    %4135 = vrot.lane.b32.xlu0 %v4094, 127
    %v4136 = vpop.permute.xlu0 %4135
    %4137 = vrot.lane.b32.xlu0 %v4095, 127
    %v4138 = vpop.permute.xlu0 %4137
    %4139 = vrot.lane.b32.xlu0 %v4096, 127
    %v4140 = vpop.permute.xlu0 %4139
    %4141 = vrot.lane.b32.xlu0 %v4097, 127
    %v4142 = vpop.permute.xlu0 %4141
    %4143 = vrot.lane.b32.xlu0 %v4098, 127
    %v4144 = vpop.permute.xlu0 %4143
    %4145 = vrot.lane.b32.xlu0 %v4099, 127
    %v4146 = vpop.permute.xlu0 %4145
    %4147 = vrot.lane.b32.xlu0 %v4100, 127
    %v4148 = vpop.permute.xlu0 %4147
    %4165 = vmatprep.subr.mxu0 0.0
    %4166 = vmatpush1.msra.mxu0 %v4118
    %4167 = vmatprep.subr.mxu0 0.0
    %4168 = vmatpush1.msra.mxu0 %v4120
    %4169 = vmatprep.subr.mxu0 0.0
    %4170 = vmatpush1.msra.mxu0 %v4122
    %4171 = vmatprep.subr.mxu0 0.0
    %4172 = vmatpush1.msra.mxu0 %v4124
    %4173 = vmatprep.subr.mxu0 0.0
    %4174 = vmatpush1.msra.mxu0 %v4126
    %4175 = vmatprep.subr.mxu0 0.0
    %4176 = vmatpush1.msra.mxu0 %v4128
    %4177 = vmatprep.subr.mxu0 0.0
    %4178 = vmatpush1.msra.mxu0 %v4130
    %4179 = vmatprep.subr.mxu0 0.0
    %4180 = vmatpush1.msra.mxu0 %v4132
    %4181 = vmatprep.subr.mxu0 0.0
    %4182 = vmatpush1.msra.mxu0 %v4134
    %4183 = vmatprep.subr.mxu0 0.0
    %4184 = vmatpush1.msra.mxu0 %v4136
    %4185 = vmatprep.subr.mxu0 0.0
    %4186 = vmatpush1.msra.mxu0 %v4138
    %4187 = vmatprep.subr.mxu0 0.0
    %4188 = vmatpush1.msra.mxu0 %v4140
    %4189 = vmatprep.subr.mxu0 0.0
    %4190 = vmatpush1.msra.mxu0 %v4142
    %4191 = vmatprep.subr.mxu0 0.0
    %4192 = vmatpush1.msra.mxu0 %v4144
    %4193 = vmatprep.subr.mxu0 0.0
    %4194 = vmatpush1.msra.mxu0 %v4146
    %4195 = vmatprep.subr.mxu0 0.0
    %4196 = vmatpush1.msra.mxu0 %v4148
    %4197 = vmatprep.subr.mxu0 0.0
    %4198 = vmatpush1.msra.mxu0 0.0
    %4199 = vmatprep.subr.mxu0 0.0
    %4200 = vmatpush1.msra.mxu0 0.0
    %4201 = vmatprep.subr.mxu0 0.0
    %4202 = vmatpush1.msra.mxu0 0.0
    %4203 = vmatprep.subr.mxu0 0.0
    %4204 = vmatpush1.msra.mxu0 0.0
    %4205 = vmatprep.subr.mxu0 0.0
    %4206 = vmatpush1.msra.mxu0 0.0
    %4207 = vmatprep.subr.mxu0 0.0
    %4208 = vmatpush1.msra.mxu0 0.0
    %4209 = vmatprep.subr.mxu0 0.0
    %4210 = vmatpush1.msra.mxu0 0.0
    %4211 = vmatprep.subr.mxu0 0.0
    %4212 = vmatpush1.msra.mxu0 0.0
    %4213 = vmatprep.subr.mxu0 0.0
    %4214 = vmatpush1.msra.mxu0 0.0
    %4215 = vmatprep.subr.mxu0 0.0
    %4216 = vmatpush1.msra.mxu0 0.0
    %4217 = vmatprep.subr.mxu0 0.0
    %4218 = vmatpush1.msra.mxu0 0.0
    %4219 = vmatprep.subr.mxu0 0.0
    %4220 = vmatpush1.msra.mxu0 0.0
    %4221 = vmatprep.subr.mxu0 0.0
    %4222 = vmatpush1.msra.mxu0 0.0
    %4223 = vmatprep.subr.mxu0 0.0
    %4224 = vmatpush1.msra.mxu0 0.0
    %4225 = vmatprep.subr.mxu0 0.0
    %4226 = vmatpush1.msra.mxu0 0.0
    %4227 = vmatprep.subr.mxu0 0.0
    %4228 = vmatpush1.msra.mxu0 0.0
    %4229 = vmatprep.mubr.f32.mxu0 0.0
    %4230 = vmatmul.mubr.f32.gmra.mrb[0].mxu0 %v3954
    %v4231 = vpop.f32.mrb[0].mxu0
    %v4232 = vadd.f32 0.0, %v4231
    %v4233 = vpop.f32.mrb[0].mxu0
    %4234 = vmatprep.mubr.f32.mxu0 0.0
    %4235 = vmatmul.mubr.f32.gmra.mrb[0].mxu0 %v3955
    %v4236 = vpop.f32.mrb[0].mxu0
    %v4237 = vadd.f32 0.0, %v4236
    %v4238 = vpop.f32.mrb[0].mxu0
    %4239 = vmatprep.mubr.f32.mxu0 0.0
    %4240 = vmatmul.mubr.f32.gmra.mrb[0].mxu0 %v3956
    %v4241 = vpop.f32.mrb[0].mxu0
    %v4242 = vadd.f32 0.0, %v4241
    %v4243 = vpop.f32.mrb[0].mxu0
    %4244 = vmatprep.mubr.f32.mxu0 0.0
    %4245 = vmatmul.mubr.f32.gmra.mrb[0].mxu0 %v3957
    %v4246 = vpop.f32.mrb[0].mxu0
    %v4247 = vadd.f32 0.0, %v4246
    %v4248 = vpop.f32.mrb[0].mxu0
    %4249 = vmatprep.mubr.f32.mxu0 0.0
    %4250 = vmatmul.mubr.f32.gmra.mrb[0].mxu0 %v3958
    %v4251 = vpop.f32.mrb[0].mxu0
    %v4252 = vadd.f32 0.0, %v4251
    %v4253 = vpop.f32.mrb[0].mxu0
    %4254 = vmatprep.mubr.f32.mxu0 0.0
    %4255 = vmatmul.mubr.f32.gmra.mrb[0].mxu0 %v3959
    %v4256 = vpop.f32.mrb[0].mxu0
    %v4257 = vadd.f32 0.0, %v4256
    %v4258 = vpop.f32.mrb[0].mxu0
    %4259 = vmatprep.mubr.f32.mxu0 0.0
    %4260 = vmatmul.mubr.f32.gmra.mrb[0].mxu0 %v3960
    %v4261 = vpop.f32.mrb[0].mxu0
    %v4262 = vadd.f32 0.0, %v4261
    %v4263 = vpop.f32.mrb[0].mxu0
    %4264 = vmatprep.mubr.f32.mxu0 0.0
    %4265 = vmatmul.mubr.f32.gmra.mrb[0].mxu0 %v3961
    %v4266 = vpop.f32.mrb[0].mxu0
    %v4267 = vadd.f32 0.0, %v4266
    %v4268 = vpop.f32.mrb[0].mxu0
    %4269 = vmatprep.mubr.f32.mxu0 0.0
    %4270 = vmatmul.mubr.f32.gmra.mrb[0].mxu0 %v3962
    %v4271 = vpop.f32.mrb[0].mxu0
    %v4272 = vadd.f32 0.0, %v4271
    %v4273 = vpop.f32.mrb[0].mxu0
    %4274 = vmatprep.mubr.f32.mxu0 0.0
    %4275 = vmatmul.mubr.f32.gmra.mrb[0].mxu0 %v3963
    %v4276 = vpop.f32.mrb[0].mxu0
    %v4277 = vadd.f32 0.0, %v4276
    %v4278 = vpop.f32.mrb[0].mxu0
    %4279 = vmatprep.mubr.f32.mxu0 0.0
    %4280 = vmatmul.mubr.f32.gmra.mrb[0].mxu0 %v3964
    %v4281 = vpop.f32.mrb[0].mxu0
    %v4282 = vadd.f32 0.0, %v4281
    %v4283 = vpop.f32.mrb[0].mxu0
    %4284 = vmatprep.mubr.f32.mxu0 0.0
    %4285 = vmatmul.mubr.f32.gmra.mrb[0].mxu0 %v3965
    %v4286 = vpop.f32.mrb[0].mxu0
    %v4287 = vadd.f32 0.0, %v4286
    %v4288 = vpop.f32.mrb[0].mxu0
    %4289 = vmatprep.mubr.f32.mxu0 0.0
    %4290 = vmatmul.mubr.f32.gmra.mrb[0].mxu0 %v3966
    %v4291 = vpop.f32.mrb[0].mxu0
    %v4292 = vadd.f32 0.0, %v4291
    %v4293 = vpop.f32.mrb[0].mxu0
    %4294 = vmatprep.mubr.f32.mxu0 0.0
    %4295 = vmatmul.mubr.f32.gmra.mrb[0].mxu0 %v3967
    %v4296 = vpop.f32.mrb[0].mxu0
    %v4297 = vadd.f32 0.0, %v4296
    %v4298 = vpop.f32.mrb[0].mxu0
    %4299 = vmatprep.mubr.f32.mxu0 0.0
    %4300 = vmatmul.mubr.f32.gmra.mrb[0].mxu0 %v3968
    %v4301 = vpop.f32.mrb[0].mxu0
    %v4302 = vadd.f32 0.0, %v4301
    %v4303 = vpop.f32.mrb[0].mxu0
    %4304 = vmatprep.mubr.f32.mxu0 0.0
    %4305 = vmatmul.mubr.f32.gmra.mrb[0].mxu0 %v3969
    %v4306 = vpop.f32.mrb[0].mxu0
    %v4307 = vadd.f32 0.0, %v4306
    %v4308 = vpop.f32.mrb[0].mxu0
    %4309 = vmatprep.mubr.f32.mxu0 0.0
    %4310 = vmatmul.mubr.f32.gmra.mrb[0].mxu0 %v3970
    %v4311 = vpop.f32.mrb[0].mxu0
    %v4312 = vadd.f32 0.0, %v4311
    %v4313 = vpop.f32.mrb[0].mxu0
    %4314 = vmatprep.mubr.f32.mxu0 0.0
    %4315 = vmatmul.mubr.f32.gmra.mrb[0].mxu0 %v3971
    %v4316 = vpop.f32.mrb[0].mxu0
    %v4317 = vadd.f32 0.0, %v4316
    %v4318 = vpop.f32.mrb[0].mxu0
    %4319 = vmatprep.mubr.f32.mxu0 0.0
    %4320 = vmatmul.mubr.f32.gmra.mrb[0].mxu0 %v3972
    %v4321 = vpop.f32.mrb[0].mxu0
    %v4322 = vadd.f32 0.0, %v4321
    %v4323 = vpop.f32.mrb[0].mxu0
    %4324 = vmatprep.mubr.f32.mxu0 0.0
    %4325 = vmatmul.mubr.f32.gmra.mrb[0].mxu0 %v3973
    %v4326 = vpop.f32.mrb[0].mxu0
    %v4327 = vadd.f32 0.0, %v4326
    %v4328 = vpop.f32.mrb[0].mxu0
    %4329 = vmatprep.mubr.f32.mxu0 0.0
    %4330 = vmatmul.mubr.f32.gmra.mrb[0].mxu0 %v3974
    %v4331 = vpop.f32.mrb[0].mxu0
    %v4332 = vadd.f32 0.0, %v4331
    %v4333 = vpop.f32.mrb[0].mxu0
    %4334 = vmatprep.mubr.f32.mxu0 0.0
    %4335 = vmatmul.mubr.f32.gmra.mrb[0].mxu0 %v3975
    %v4336 = vpop.f32.mrb[0].mxu0
    %v4337 = vadd.f32 0.0, %v4336
    %v4338 = vpop.f32.mrb[0].mxu0
    %4339 = vmatprep.mubr.f32.mxu0 0.0
    %4340 = vmatmul.mubr.f32.gmra.mrb[0].mxu0 %v3976
    %v4341 = vpop.f32.mrb[0].mxu0
    %v4342 = vadd.f32 0.0, %v4341
    %v4343 = vpop.f32.mrb[0].mxu0
    %4344 = vmatprep.mubr.f32.mxu0 0.0
    %4345 = vmatmul.mubr.f32.gmra.mrb[0].mxu0 %v3977
    %v4346 = vpop.f32.mrb[0].mxu0
    %v4347 = vadd.f32 0.0, %v4346
    %v4348 = vpop.f32.mrb[0].mxu0
    %4349 = vmatprep.mubr.f32.mxu0 0.0
    %4350 = vmatmul.mubr.f32.gmra.mrb[0].mxu0 %v3978
    %v4351 = vpop.f32.mrb[0].mxu0
    %v4352 = vadd.f32 0.0, %v4351
    %v4353 = vpop.f32.mrb[0].mxu0
    %4354 = vmatprep.mubr.f32.mxu0 0.0
    %4355 = vmatmul.mubr.f32.gmra.mrb[0].mxu0 %v3979
    %v4356 = vpop.f32.mrb[0].mxu0
    %v4357 = vadd.f32 0.0, %v4356
    %v4358 = vpop.f32.mrb[0].mxu0
    %4359 = vmatprep.mubr.f32.mxu0 0.0
    %4360 = vmatmul.mubr.f32.gmra.mrb[0].mxu0 %v3980
    %v4361 = vpop.f32.mrb[0].mxu0
    %v4362 = vadd.f32 0.0, %v4361
    %v4363 = vpop.f32.mrb[0].mxu0
    %4364 = vmatprep.mubr.f32.mxu0 0.0
    %4365 = vmatmul.mubr.f32.gmra.mrb[0].mxu0 %v3981
    %v4366 = vpop.f32.mrb[0].mxu0
    %v4367 = vadd.f32 0.0, %v4366
    %v4368 = vpop.f32.mrb[0].mxu0
    %4369 = vmatprep.mubr.f32.mxu0 0.0
    %4370 = vmatmul.mubr.f32.gmra.mrb[0].mxu0 %v3982
    %v4371 = vpop.f32.mrb[0].mxu0
    %v4372 = vadd.f32 0.0, %v4371
    %v4373 = vpop.f32.mrb[0].mxu0
    %4374 = vmatprep.mubr.f32.mxu0 0.0
    %4375 = vmatmul.mubr.f32.gmra.mrb[0].mxu0 %v3983
    %v4376 = vpop.f32.mrb[0].mxu0
    %v4377 = vadd.f32 0.0, %v4376
    %v4378 = vpop.f32.mrb[0].mxu0
    %4379 = vmatprep.mubr.f32.mxu0 0.0
    %4380 = vmatmul.mubr.f32.gmra.mrb[0].mxu0 %v3984
    %v4381 = vpop.f32.mrb[0].mxu0
    %v4382 = vadd.f32 0.0, %v4381
    %v4383 = vpop.f32.mrb[0].mxu0
    %4384 = vmatprep.mubr.f32.mxu0 0.0
    %4385 = vmatmul.mubr.f32.gmra.mrb[0].mxu0 %v3985
    %v4386 = vpop.f32.mrb[0].mxu0
    %v4387 = vadd.f32 0.0, %v4386
    %v4388 = vpop.f32.mrb[0].mxu0
    %4389 = vdwg.mxu0
    %4390 = vmatprep.subr.mxu0 0.0
    %4391 = vmatpush1.msra.mxu0 %v4085
    %4392 = vmatprep.subr.mxu0 0.0
    %4393 = vmatpush1.msra.mxu0 %v4086
    %4394 = vmatprep.subr.mxu0 0.0
    %4395 = vmatpush1.msra.mxu0 %v4087
    %4396 = vmatprep.subr.mxu0 0.0
    %4397 = vmatpush1.msra.mxu0 %v4088
    %4398 = vmatprep.subr.mxu0 0.0
    %4399 = vmatpush1.msra.mxu0 %v4089
    %4400 = vmatprep.subr.mxu0 0.0
    %4401 = vmatpush1.msra.mxu0 %v4090
    %4402 = vmatprep.subr.mxu0 0.0
    %4403 = vmatpush1.msra.mxu0 %v4091
    %4404 = vmatprep.subr.mxu0 0.0
    %4405 = vmatpush1.msra.mxu0 %v4092
    %4406 = vmatprep.subr.mxu0 0.0
    %4407 = vmatpush1.msra.mxu0 %v4093
    %4408 = vmatprep.subr.mxu0 0.0
    %4409 = vmatpush1.msra.mxu0 %v4094
    %4410 = vmatprep.subr.mxu0 0.0
    %4411 = vmatpush1.msra.mxu0 %v4095
    %4412 = vmatprep.subr.mxu0 0.0
    %4413 = vmatpush1.msra.mxu0 %v4096
    %4414 = vmatprep.subr.mxu0 0.0
    %4415 = vmatpush1.msra.mxu0 %v4097
    %4416 = vmatprep.subr.mxu0 0.0
    %4417 = vmatpush1.msra.mxu0 %v4098
    %4418 = vmatprep.subr.mxu0 0.0
    %4419 = vmatpush1.msra.mxu0 %v4099
    %4420 = vmatprep.subr.mxu0 0.0
    %4421 = vmatpush1.msra.mxu0 %v4100
    %4422 = vmatprep.subr.mxu0 0.0
    %4423 = vmatpush1.msra.mxu0 0.0
    %4424 = vmatprep.subr.mxu0 0.0
    %4425 = vmatpush1.msra.mxu0 0.0
    %4426 = vmatprep.subr.mxu0 0.0
    %4427 = vmatpush1.msra.mxu0 0.0
    %4428 = vmatprep.subr.mxu0 0.0
    %4429 = vmatpush1.msra.mxu0 0.0
    %4430 = vmatprep.subr.mxu0 0.0
    %4431 = vmatpush1.msra.mxu0 0.0
    %4432 = vmatprep.subr.mxu0 0.0
    %4433 = vmatpush1.msra.mxu0 0.0
    %4434 = vmatprep.subr.mxu0 0.0
    %4435 = vmatpush1.msra.mxu0 0.0
    %4436 = vmatprep.subr.mxu0 0.0
    %4437 = vmatpush1.msra.mxu0 0.0
    %4438 = vmatprep.subr.mxu0 0.0
    %4439 = vmatpush1.msra.mxu0 0.0
    %4440 = vmatprep.subr.mxu0 0.0
    %4441 = vmatpush1.msra.mxu0 0.0
    %4442 = vmatprep.subr.mxu0 0.0
    %4443 = vmatpush1.msra.mxu0 0.0
    %4444 = vmatprep.subr.mxu0 0.0
    %4445 = vmatpush1.msra.mxu0 0.0
    %4446 = vmatprep.subr.mxu0 0.0
    %4447 = vmatpush1.msra.mxu0 0.0
    %4448 = vmatprep.subr.mxu0 0.0
    %4449 = vmatpush1.msra.mxu0 0.0
    %4450 = vmatprep.subr.mxu0 0.0
    %4451 = vmatpush1.msra.mxu0 0.0
    %4452 = vmatprep.subr.mxu0 0.0
    %4453 = vmatpush1.msra.mxu0 0.0
    %4454 = vmatprep.mubr.f32.mxu0 0.0
    %4455 = vmatmul.mubr.f32.gmra.mrb[0].mxu0 %v3921
    %v4456 = vpop.f32.mrb[0].mxu0
    %v4457 = vadd.f32 %v4232, %v4456
    %v4458 = vpop.f32.mrb[0].mxu0
    %4459 = vmatprep.mubr.f32.mxu0 0.0
    %4460 = vmatmul.mubr.f32.gmra.mrb[0].mxu0 %v3922
    %v4461 = vpop.f32.mrb[0].mxu0
    %v4462 = vadd.f32 %v4237, %v4461
    %v4463 = vpop.f32.mrb[0].mxu0
    %4464 = vmatprep.mubr.f32.mxu0 0.0
    %4465 = vmatmul.mubr.f32.gmra.mrb[0].mxu0 %v3923
    %v4466 = vpop.f32.mrb[0].mxu0
    %v4467 = vadd.f32 %v4242, %v4466
    %v4468 = vpop.f32.mrb[0].mxu0
    %4469 = vmatprep.mubr.f32.mxu0 0.0
    %4470 = vmatmul.mubr.f32.gmra.mrb[0].mxu0 %v3924
    %v4471 = vpop.f32.mrb[0].mxu0
    %v4472 = vadd.f32 %v4247, %v4471
    %v4473 = vpop.f32.mrb[0].mxu0
    %4474 = vmatprep.mubr.f32.mxu0 0.0
    %4475 = vmatmul.mubr.f32.gmra.mrb[0].mxu0 %v3925
    %v4476 = vpop.f32.mrb[0].mxu0
    %v4477 = vadd.f32 %v4252, %v4476
    %v4478 = vpop.f32.mrb[0].mxu0
    %4479 = vmatprep.mubr.f32.mxu0 0.0
    %4480 = vmatmul.mubr.f32.gmra.mrb[0].mxu0 %v3926
    %v4481 = vpop.f32.mrb[0].mxu0
    %v4482 = vadd.f32 %v4257, %v4481
    %v4483 = vpop.f32.mrb[0].mxu0
    %4484 = vmatprep.mubr.f32.mxu0 0.0
    %4485 = vmatmul.mubr.f32.gmra.mrb[0].mxu0 %v3927
    %v4486 = vpop.f32.mrb[0].mxu0
    %v4487 = vadd.f32 %v4262, %v4486
    %v4488 = vpop.f32.mrb[0].mxu0
    %4489 = vmatprep.mubr.f32.mxu0 0.0
    %4490 = vmatmul.mubr.f32.gmra.mrb[0].mxu0 %v3928
    %v4491 = vpop.f32.mrb[0].mxu0
    %v4492 = vadd.f32 %v4267, %v4491
    %v4493 = vpop.f32.mrb[0].mxu0
    %4494 = vmatprep.mubr.f32.mxu0 0.0
    %4495 = vmatmul.mubr.f32.gmra.mrb[0].mxu0 %v3929
    %v4496 = vpop.f32.mrb[0].mxu0
    %v4497 = vadd.f32 %v4272, %v4496
    %v4498 = vpop.f32.mrb[0].mxu0
    %4499 = vmatprep.mubr.f32.mxu0 0.0
    %4500 = vmatmul.mubr.f32.gmra.mrb[0].mxu0 %v3930
    %v4501 = vpop.f32.mrb[0].mxu0
    %v4502 = vadd.f32 %v4277, %v4501
    %v4503 = vpop.f32.mrb[0].mxu0
    %4504 = vmatprep.mubr.f32.mxu0 0.0
    %4505 = vmatmul.mubr.f32.gmra.mrb[0].mxu0 %v3931
    %v4506 = vpop.f32.mrb[0].mxu0
    %v4507 = vadd.f32 %v4282, %v4506
    %v4508 = vpop.f32.mrb[0].mxu0
    %4509 = vmatprep.mubr.f32.mxu0 0.0
    %4510 = vmatmul.mubr.f32.gmra.mrb[0].mxu0 %v3932
    %v4511 = vpop.f32.mrb[0].mxu0
    %v4512 = vadd.f32 %v4287, %v4511
    %v4513 = vpop.f32.mrb[0].mxu0
    %4514 = vmatprep.mubr.f32.mxu0 0.0
    %4515 = vmatmul.mubr.f32.gmra.mrb[0].mxu0 %v3933
    %v4516 = vpop.f32.mrb[0].mxu0
    %v4517 = vadd.f32 %v4292, %v4516
    %v4518 = vpop.f32.mrb[0].mxu0
    %4519 = vmatprep.mubr.f32.mxu0 0.0
    %4520 = vmatmul.mubr.f32.gmra.mrb[0].mxu0 %v3934
    %v4521 = vpop.f32.mrb[0].mxu0
    %v4522 = vadd.f32 %v4297, %v4521
    %v4523 = vpop.f32.mrb[0].mxu0
    %4524 = vmatprep.mubr.f32.mxu0 0.0
    %4525 = vmatmul.mubr.f32.gmra.mrb[0].mxu0 %v3935
    %v4526 = vpop.f32.mrb[0].mxu0
    %v4527 = vadd.f32 %v4302, %v4526
    %v4528 = vpop.f32.mrb[0].mxu0
    %4529 = vmatprep.mubr.f32.mxu0 0.0
    %4530 = vmatmul.mubr.f32.gmra.mrb[0].mxu0 %v3936
    %v4531 = vpop.f32.mrb[0].mxu0
    %v4532 = vadd.f32 %v4307, %v4531
    %v4533 = vpop.f32.mrb[0].mxu0
    %4534 = vmatprep.mubr.f32.mxu0 0.0
    %4535 = vmatmul.mubr.f32.gmra.mrb[0].mxu0 %v3937
    %v4536 = vpop.f32.mrb[0].mxu0
    %v4537 = vadd.f32 %v4312, %v4536
    %v4538 = vpop.f32.mrb[0].mxu0
    %4539 = vmatprep.mubr.f32.mxu0 0.0
    %4540 = vmatmul.mubr.f32.gmra.mrb[0].mxu0 %v3938
    %v4541 = vpop.f32.mrb[0].mxu0
    %v4542 = vadd.f32 %v4317, %v4541
    %v4543 = vpop.f32.mrb[0].mxu0
    %4544 = vmatprep.mubr.f32.mxu0 0.0
    %4545 = vmatmul.mubr.f32.gmra.mrb[0].mxu0 %v3939
    %v4546 = vpop.f32.mrb[0].mxu0
    %v4547 = vadd.f32 %v4322, %v4546
    %v4548 = vpop.f32.mrb[0].mxu0
    %4549 = vmatprep.mubr.f32.mxu0 0.0
    %4550 = vmatmul.mubr.f32.gmra.mrb[0].mxu0 %v3940
    %v4551 = vpop.f32.mrb[0].mxu0
    %v4552 = vadd.f32 %v4327, %v4551
    %v4553 = vpop.f32.mrb[0].mxu0
    %4554 = vmatprep.mubr.f32.mxu0 0.0
    %4555 = vmatmul.mubr.f32.gmra.mrb[0].mxu0 %v3941
    %v4556 = vpop.f32.mrb[0].mxu0
    %v4557 = vadd.f32 %v4332, %v4556
    %v4558 = vpop.f32.mrb[0].mxu0
    %4559 = vmatprep.mubr.f32.mxu0 0.0
    %4560 = vmatmul.mubr.f32.gmra.mrb[0].mxu0 %v3942
    %v4561 = vpop.f32.mrb[0].mxu0
    %v4562 = vadd.f32 %v4337, %v4561
    %v4563 = vpop.f32.mrb[0].mxu0
    %4564 = vmatprep.mubr.f32.mxu0 0.0
    %4565 = vmatmul.mubr.f32.gmra.mrb[0].mxu0 %v3943
    %v4566 = vpop.f32.mrb[0].mxu0
    %v4567 = vadd.f32 %v4342, %v4566
    %v4568 = vpop.f32.mrb[0].mxu0
    %4569 = vmatprep.mubr.f32.mxu0 0.0
    %4570 = vmatmul.mubr.f32.gmra.mrb[0].mxu0 %v3944
    %v4571 = vpop.f32.mrb[0].mxu0
    %v4572 = vadd.f32 %v4347, %v4571
    %v4573 = vpop.f32.mrb[0].mxu0
    %4574 = vmatprep.mubr.f32.mxu0 0.0
    %4575 = vmatmul.mubr.f32.gmra.mrb[0].mxu0 %v3945
    %v4576 = vpop.f32.mrb[0].mxu0
    %v4577 = vadd.f32 %v4352, %v4576
    %v4578 = vpop.f32.mrb[0].mxu0
    %4579 = vmatprep.mubr.f32.mxu0 0.0
    %4580 = vmatmul.mubr.f32.gmra.mrb[0].mxu0 %v3946
    %v4581 = vpop.f32.mrb[0].mxu0
    %v4582 = vadd.f32 %v4357, %v4581
    %v4583 = vpop.f32.mrb[0].mxu0
    %4584 = vmatprep.mubr.f32.mxu0 0.0
    %4585 = vmatmul.mubr.f32.gmra.mrb[0].mxu0 %v3947
    %v4586 = vpop.f32.mrb[0].mxu0
    %v4587 = vadd.f32 %v4362, %v4586
    %v4588 = vpop.f32.mrb[0].mxu0
    %4589 = vmatprep.mubr.f32.mxu0 0.0
    %4590 = vmatmul.mubr.f32.gmra.mrb[0].mxu0 %v3948
    %v4591 = vpop.f32.mrb[0].mxu0
    %v4592 = vadd.f32 %v4367, %v4591
    %v4593 = vpop.f32.mrb[0].mxu0
    %4594 = vmatprep.mubr.f32.mxu0 0.0
    %4595 = vmatmul.mubr.f32.gmra.mrb[0].mxu0 %v3949
    %v4596 = vpop.f32.mrb[0].mxu0
    %v4597 = vadd.f32 %v4372, %v4596
    %v4598 = vpop.f32.mrb[0].mxu0
    %4599 = vmatprep.mubr.f32.mxu0 0.0
    %4600 = vmatmul.mubr.f32.gmra.mrb[0].mxu0 %v3950
    %v4601 = vpop.f32.mrb[0].mxu0
    %v4602 = vadd.f32 %v4377, %v4601
    %v4603 = vpop.f32.mrb[0].mxu0
    %4604 = vmatprep.mubr.f32.mxu0 0.0
    %4605 = vmatmul.mubr.f32.gmra.mrb[0].mxu0 %v3951
    %v4606 = vpop.f32.mrb[0].mxu0
    %v4607 = vadd.f32 %v4382, %v4606
    %v4608 = vpop.f32.mrb[0].mxu0
    %4609 = vmatprep.mubr.f32.mxu0 0.0
    %4610 = vmatmul.mubr.f32.gmra.mrb[0].mxu0 %v3952
    %v4611 = vpop.f32.mrb[0].mxu0
    %v4612 = vadd.f32 %v4387, %v4611
    %v4613 = vpop.f32.mrb[0].mxu0
    %4614 = vdwg.mxu0
    %4615 = vrot.lane.b32.xlu0 %v4085, 126
    %v4616 = vpop.permute.xlu0 %4615
    %4617 = vrot.lane.b32.xlu0 %v4086, 126
    %v4618 = vpop.permute.xlu0 %4617
    %4619 = vrot.lane.b32.xlu0 %v4087, 126
    %v4620 = vpop.permute.xlu0 %4619
    %4621 = vrot.lane.b32.xlu0 %v4088, 126
    %v4622 = vpop.permute.xlu0 %4621
    %4623 = vrot.lane.b32.xlu0 %v4089, 126
    %v4624 = vpop.permute.xlu0 %4623
    %4625 = vrot.lane.b32.xlu0 %v4090, 126
    %v4626 = vpop.permute.xlu0 %4625
    %4627 = vrot.lane.b32.xlu0 %v4091, 126
    %v4628 = vpop.permute.xlu0 %4627
    %4629 = vrot.lane.b32.xlu0 %v4092, 126
    %v4630 = vpop.permute.xlu0 %4629
    %4631 = vrot.lane.b32.xlu0 %v4093, 126
    %v4632 = vpop.permute.xlu0 %4631
    %4633 = vrot.lane.b32.xlu0 %v4094, 126
    %v4634 = vpop.permute.xlu0 %4633
    %4635 = vrot.lane.b32.xlu0 %v4095, 126
    %v4636 = vpop.permute.xlu0 %4635
    %4637 = vrot.lane.b32.xlu0 %v4096, 126
    %v4638 = vpop.permute.xlu0 %4637
    %4639 = vrot.lane.b32.xlu0 %v4097, 126
    %v4640 = vpop.permute.xlu0 %4639
    %4641 = vrot.lane.b32.xlu0 %v4098, 126
    %v4642 = vpop.permute.xlu0 %4641
    %4643 = vrot.lane.b32.xlu0 %v4099, 126
    %v4644 = vpop.permute.xlu0 %4643
    %4645 = vrot.lane.b32.xlu0 %v4100, 126
    %v4646 = vpop.permute.xlu0 %4645
    %4663 = vmatprep.subr.mxu0 0.0
    %4664 = vmatpush1.msra.mxu0 %v4616
    %4665 = vmatprep.subr.mxu0 0.0
    %4666 = vmatpush1.msra.mxu0 %v4618
    %4667 = vmatprep.subr.mxu0 0.0
    %4668 = vmatpush1.msra.mxu0 %v4620
    %4669 = vmatprep.subr.mxu0 0.0
    %4670 = vmatpush1.msra.mxu0 %v4622
    %4671 = vmatprep.subr.mxu0 0.0
    %4672 = vmatpush1.msra.mxu0 %v4624
    %4673 = vmatprep.subr.mxu0 0.0
    %4674 = vmatpush1.msra.mxu0 %v4626
    %4675 = vmatprep.subr.mxu0 0.0
    %4676 = vmatpush1.msra.mxu0 %v4628
    %4677 = vmatprep.subr.mxu0 0.0
    %4678 = vmatpush1.msra.mxu0 %v4630
    %4679 = vmatprep.subr.mxu0 0.0
    %4680 = vmatpush1.msra.mxu0 %v4632
    %4681 = vmatprep.subr.mxu0 0.0
    %4682 = vmatpush1.msra.mxu0 %v4634
    %4683 = vmatprep.subr.mxu0 0.0
    %4684 = vmatpush1.msra.mxu0 %v4636
    %4685 = vmatprep.subr.mxu0 0.0
    %4686 = vmatpush1.msra.mxu0 %v4638
    %4687 = vmatprep.subr.mxu0 0.0
    %4688 = vmatpush1.msra.mxu0 %v4640
    %4689 = vmatprep.subr.mxu0 0.0
    %4690 = vmatpush1.msra.mxu0 %v4642
    %4691 = vmatprep.subr.mxu0 0.0
    %4692 = vmatpush1.msra.mxu0 %v4644
    %4693 = vmatprep.subr.mxu0 0.0
    %4694 = vmatpush1.msra.mxu0 %v4646
    %4695 = vmatprep.subr.mxu0 0.0
    %4696 = vmatpush1.msra.mxu0 0.0
    %4697 = vmatprep.subr.mxu0 0.0
    %4698 = vmatpush1.msra.mxu0 0.0
    %4699 = vmatprep.subr.mxu0 0.0
    %4700 = vmatpush1.msra.mxu0 0.0
    %4701 = vmatprep.subr.mxu0 0.0
    %4702 = vmatpush1.msra.mxu0 0.0
    %4703 = vmatprep.subr.mxu0 0.0
    %4704 = vmatpush1.msra.mxu0 0.0
    %4705 = vmatprep.subr.mxu0 0.0
    %4706 = vmatpush1.msra.mxu0 0.0
    %4707 = vmatprep.subr.mxu0 0.0
    %4708 = vmatpush1.msra.mxu0 0.0
    %4709 = vmatprep.subr.mxu0 0.0
    %4710 = vmatpush1.msra.mxu0 0.0
    %4711 = vmatprep.subr.mxu0 0.0
    %4712 = vmatpush1.msra.mxu0 0.0
    %4713 = vmatprep.subr.mxu0 0.0
    %4714 = vmatpush1.msra.mxu0 0.0
    %4715 = vmatprep.subr.mxu0 0.0
    %4716 = vmatpush1.msra.mxu0 0.0
    %4717 = vmatprep.subr.mxu0 0.0
    %4718 = vmatpush1.msra.mxu0 0.0
    %4719 = vmatprep.subr.mxu0 0.0
    %4720 = vmatpush1.msra.mxu0 0.0
    %4721 = vmatprep.subr.mxu0 0.0
    %4722 = vmatpush1.msra.mxu0 0.0
    %4723 = vmatprep.subr.mxu0 0.0
    %4724 = vmatpush1.msra.mxu0 0.0
    %4725 = vmatprep.subr.mxu0 0.0
    %4726 = vmatpush1.msra.mxu0 0.0
    %4727 = vmatprep.mubr.f32.mxu0 0.0
    %4728 = vmatmul.mubr.f32.gmra.mrb[0].mxu0 %v3987
    %v4729 = vpop.f32.mrb[0].mxu0
    %v4730 = vadd.f32 0.0, %v4729
    %v4731 = vpop.f32.mrb[0].mxu0
    %4732 = vmatprep.mubr.f32.mxu0 0.0
    %4733 = vmatmul.mubr.f32.gmra.mrb[0].mxu0 %v3988
    %v4734 = vpop.f32.mrb[0].mxu0
    %v4735 = vadd.f32 0.0, %v4734
    %v4736 = vpop.f32.mrb[0].mxu0
    %4737 = vmatprep.mubr.f32.mxu0 0.0
    %4738 = vmatmul.mubr.f32.gmra.mrb[0].mxu0 %v3989
    %v4739 = vpop.f32.mrb[0].mxu0
    %v4740 = vadd.f32 0.0, %v4739
    %v4741 = vpop.f32.mrb[0].mxu0
    %4742 = vmatprep.mubr.f32.mxu0 0.0
    %4743 = vmatmul.mubr.f32.gmra.mrb[0].mxu0 %v3990
    %v4744 = vpop.f32.mrb[0].mxu0
    %v4745 = vadd.f32 0.0, %v4744
    %v4746 = vpop.f32.mrb[0].mxu0
    %4747 = vmatprep.mubr.f32.mxu0 0.0
    %4748 = vmatmul.mubr.f32.gmra.mrb[0].mxu0 %v3991
    %v4749 = vpop.f32.mrb[0].mxu0
    %v4750 = vadd.f32 0.0, %v4749
    %v4751 = vpop.f32.mrb[0].mxu0
    %4752 = vmatprep.mubr.f32.mxu0 0.0
    %4753 = vmatmul.mubr.f32.gmra.mrb[0].mxu0 %v3992
    %v4754 = vpop.f32.mrb[0].mxu0
    %v4755 = vadd.f32 0.0, %v4754
    %v4756 = vpop.f32.mrb[0].mxu0
    %4757 = vmatprep.mubr.f32.mxu0 0.0
    %4758 = vmatmul.mubr.f32.gmra.mrb[0].mxu0 %v3993
    %v4759 = vpop.f32.mrb[0].mxu0
    %v4760 = vadd.f32 0.0, %v4759
    %v4761 = vpop.f32.mrb[0].mxu0
    %4762 = vmatprep.mubr.f32.mxu0 0.0
    %4763 = vmatmul.mubr.f32.gmra.mrb[0].mxu0 %v3994
    %v4764 = vpop.f32.mrb[0].mxu0
    %v4765 = vadd.f32 0.0, %v4764
    %v4766 = vpop.f32.mrb[0].mxu0
    %4767 = vmatprep.mubr.f32.mxu0 0.0
    %4768 = vmatmul.mubr.f32.gmra.mrb[0].mxu0 %v3995
    %v4769 = vpop.f32.mrb[0].mxu0
    %v4770 = vadd.f32 0.0, %v4769
    %v4771 = vpop.f32.mrb[0].mxu0
    %4772 = vmatprep.mubr.f32.mxu0 0.0
    %4773 = vmatmul.mubr.f32.gmra.mrb[0].mxu0 %v3996
    %v4774 = vpop.f32.mrb[0].mxu0
    %v4775 = vadd.f32 0.0, %v4774
    %v4776 = vpop.f32.mrb[0].mxu0
    %4777 = vmatprep.mubr.f32.mxu0 0.0
    %4778 = vmatmul.mubr.f32.gmra.mrb[0].mxu0 %v3997
    %v4779 = vpop.f32.mrb[0].mxu0
    %v4780 = vadd.f32 0.0, %v4779
    %v4781 = vpop.f32.mrb[0].mxu0
    %4782 = vmatprep.mubr.f32.mxu0 0.0
    %4783 = vmatmul.mubr.f32.gmra.mrb[0].mxu0 %v3998
    %v4784 = vpop.f32.mrb[0].mxu0
    %v4785 = vadd.f32 0.0, %v4784
    %v4786 = vpop.f32.mrb[0].mxu0
    %4787 = vmatprep.mubr.f32.mxu0 0.0
    %4788 = vmatmul.mubr.f32.gmra.mrb[0].mxu0 %v3999
    %v4789 = vpop.f32.mrb[0].mxu0
    %v4790 = vadd.f32 0.0, %v4789
    %v4791 = vpop.f32.mrb[0].mxu0
    %4792 = vmatprep.mubr.f32.mxu0 0.0
    %4793 = vmatmul.mubr.f32.gmra.mrb[0].mxu0 %v4000
    %v4794 = vpop.f32.mrb[0].mxu0
    %v4795 = vadd.f32 0.0, %v4794
    %v4796 = vpop.f32.mrb[0].mxu0
    %4797 = vmatprep.mubr.f32.mxu0 0.0
    %4798 = vmatmul.mubr.f32.gmra.mrb[0].mxu0 %v4001
    %v4799 = vpop.f32.mrb[0].mxu0
    %v4800 = vadd.f32 0.0, %v4799
    %v4801 = vpop.f32.mrb[0].mxu0
    %4802 = vmatprep.mubr.f32.mxu0 0.0
    %4803 = vmatmul.mubr.f32.gmra.mrb[0].mxu0 %v4002
    %v4804 = vpop.f32.mrb[0].mxu0
    %v4805 = vadd.f32 0.0, %v4804
    %v4806 = vpop.f32.mrb[0].mxu0
    %4807 = vmatprep.mubr.f32.mxu0 0.0
    %4808 = vmatmul.mubr.f32.gmra.mrb[0].mxu0 %v4003
    %v4809 = vpop.f32.mrb[0].mxu0
    %v4810 = vadd.f32 0.0, %v4809
    %v4811 = vpop.f32.mrb[0].mxu0
    %4812 = vmatprep.mubr.f32.mxu0 0.0
    %4813 = vmatmul.mubr.f32.gmra.mrb[0].mxu0 %v4004
    %v4814 = vpop.f32.mrb[0].mxu0
    %v4815 = vadd.f32 0.0, %v4814
    %v4816 = vpop.f32.mrb[0].mxu0
    %4817 = vmatprep.mubr.f32.mxu0 0.0
    %4818 = vmatmul.mubr.f32.gmra.mrb[0].mxu0 %v4005
    %v4819 = vpop.f32.mrb[0].mxu0
    %v4820 = vadd.f32 0.0, %v4819
    %v4821 = vpop.f32.mrb[0].mxu0
    %4822 = vmatprep.mubr.f32.mxu0 0.0
    %4823 = vmatmul.mubr.f32.gmra.mrb[0].mxu0 %v4006
    %v4824 = vpop.f32.mrb[0].mxu0
    %v4825 = vadd.f32 0.0, %v4824
    %v4826 = vpop.f32.mrb[0].mxu0
    %4827 = vmatprep.mubr.f32.mxu0 0.0
    %4828 = vmatmul.mubr.f32.gmra.mrb[0].mxu0 %v4007
    %v4829 = vpop.f32.mrb[0].mxu0
    %v4830 = vadd.f32 0.0, %v4829
    %v4831 = vpop.f32.mrb[0].mxu0
    %4832 = vmatprep.mubr.f32.mxu0 0.0
    %4833 = vmatmul.mubr.f32.gmra.mrb[0].mxu0 %v4008
    %v4834 = vpop.f32.mrb[0].mxu0
    %v4835 = vadd.f32 0.0, %v4834
    %v4836 = vpop.f32.mrb[0].mxu0
    %4837 = vmatprep.mubr.f32.mxu0 0.0
    %4838 = vmatmul.mubr.f32.gmra.mrb[0].mxu0 %v4009
    %v4839 = vpop.f32.mrb[0].mxu0
    %v4840 = vadd.f32 0.0, %v4839
    %v4841 = vpop.f32.mrb[0].mxu0
    %4842 = vmatprep.mubr.f32.mxu0 0.0
    %4843 = vmatmul.mubr.f32.gmra.mrb[0].mxu0 %v4010
    %v4844 = vpop.f32.mrb[0].mxu0
    %v4845 = vadd.f32 0.0, %v4844
    %v4846 = vpop.f32.mrb[0].mxu0
    %4847 = vmatprep.mubr.f32.mxu0 0.0
    %4848 = vmatmul.mubr.f32.gmra.mrb[0].mxu0 %v4011
    %v4849 = vpop.f32.mrb[0].mxu0
    %v4850 = vadd.f32 0.0, %v4849
    %v4851 = vpop.f32.mrb[0].mxu0
    %4852 = vmatprep.mubr.f32.mxu0 0.0
    %4853 = vmatmul.mubr.f32.gmra.mrb[0].mxu0 %v4012
    %v4854 = vpop.f32.mrb[0].mxu0
    %v4855 = vadd.f32 0.0, %v4854
    %v4856 = vpop.f32.mrb[0].mxu0
    %4857 = vmatprep.mubr.f32.mxu0 0.0
    %4858 = vmatmul.mubr.f32.gmra.mrb[0].mxu0 %v4013
    %v4859 = vpop.f32.mrb[0].mxu0
    %v4860 = vadd.f32 0.0, %v4859
    %v4861 = vpop.f32.mrb[0].mxu0
    %4862 = vmatprep.mubr.f32.mxu0 0.0
    %4863 = vmatmul.mubr.f32.gmra.mrb[0].mxu0 %v4014
    %v4864 = vpop.f32.mrb[0].mxu0
    %v4865 = vadd.f32 0.0, %v4864
    %v4866 = vpop.f32.mrb[0].mxu0
    %4867 = vmatprep.mubr.f32.mxu0 0.0
    %4868 = vmatmul.mubr.f32.gmra.mrb[0].mxu0 %v4015
    %v4869 = vpop.f32.mrb[0].mxu0
    %v4870 = vadd.f32 0.0, %v4869
    %v4871 = vpop.f32.mrb[0].mxu0
    %4872 = vmatprep.mubr.f32.mxu0 0.0
    %4873 = vmatmul.mubr.f32.gmra.mrb[0].mxu0 %v4016
    %v4874 = vpop.f32.mrb[0].mxu0
    %v4875 = vadd.f32 0.0, %v4874
    %v4876 = vpop.f32.mrb[0].mxu0
    %4877 = vmatprep.mubr.f32.mxu0 0.0
    %4878 = vmatmul.mubr.f32.gmra.mrb[0].mxu0 %v4017
    %v4879 = vpop.f32.mrb[0].mxu0
    %v4880 = vadd.f32 0.0, %v4879
    %v4881 = vpop.f32.mrb[0].mxu0
    %4882 = vmatprep.mubr.f32.mxu0 0.0
    %4883 = vmatmul.mubr.f32.gmra.mrb[0].mxu0 %v4018
    %v4884 = vpop.f32.mrb[0].mxu0
    %v4885 = vadd.f32 0.0, %v4884
    %v4886 = vpop.f32.mrb[0].mxu0
    %4887 = vdwg.mxu0
    %v4888 = vadd.f32 %v4457, %v4730
    %v4889 = vadd.f32 %v4462, %v4735
    %v4890 = vadd.f32 %v4467, %v4740
    %v4891 = vadd.f32 %v4472, %v4745
    %v4892 = vadd.f32 %v4477, %v4750
    %v4893 = vadd.f32 %v4482, %v4755
    %v4894 = vadd.f32 %v4487, %v4760
    %v4895 = vadd.f32 %v4492, %v4765
    %v4896 = vadd.f32 %v4497, %v4770
    %v4897 = vadd.f32 %v4502, %v4775
    %v4898 = vadd.f32 %v4507, %v4780
    %v4899 = vadd.f32 %v4512, %v4785
    %v4900 = vadd.f32 %v4517, %v4790
    %v4901 = vadd.f32 %v4522, %v4795
    %v4902 = vadd.f32 %v4527, %v4800
    %v4903 = vadd.f32 %v4532, %v4805
    %v4904 = vadd.f32 %v4537, %v4810
    %v4905 = vadd.f32 %v4542, %v4815
    %v4906 = vadd.f32 %v4547, %v4820
    %v4907 = vadd.f32 %v4552, %v4825
    %v4908 = vadd.f32 %v4557, %v4830
    %v4909 = vadd.f32 %v4562, %v4835
    %v4910 = vadd.f32 %v4567, %v4840
    %v4911 = vadd.f32 %v4572, %v4845
    %v4912 = vadd.f32 %v4577, %v4850
    %v4913 = vadd.f32 %v4582, %v4855
    %v4914 = vadd.f32 %v4587, %v4860
    %v4915 = vadd.f32 %v4592, %v4865
    %v4916 = vadd.f32 %v4597, %v4870
    %v4917 = vadd.f32 %v4602, %v4875
    %v4918 = vadd.f32 %v4607, %v4880
    %v4919 = vadd.f32 %v4612, %v4885
    %4920 = vrot.lane.b32.xlu0 %v4085, 125
    %v4921 = vpop.permute.xlu0 %4920
    %4922 = vrot.lane.b32.xlu0 %v4086, 125
    %v4923 = vpop.permute.xlu0 %4922
    %4924 = vrot.lane.b32.xlu0 %v4087, 125
    %v4925 = vpop.permute.xlu0 %4924
    %4926 = vrot.lane.b32.xlu0 %v4088, 125
    %v4927 = vpop.permute.xlu0 %4926
    %4928 = vrot.lane.b32.xlu0 %v4089, 125
    %v4929 = vpop.permute.xlu0 %4928
    %4930 = vrot.lane.b32.xlu0 %v4090, 125
    %v4931 = vpop.permute.xlu0 %4930
    %4932 = vrot.lane.b32.xlu0 %v4091, 125
    %v4933 = vpop.permute.xlu0 %4932
    %4934 = vrot.lane.b32.xlu0 %v4092, 125
    %v4935 = vpop.permute.xlu0 %4934
    %4936 = vrot.lane.b32.xlu0 %v4093, 125
    %v4937 = vpop.permute.xlu0 %4936
    %4938 = vrot.lane.b32.xlu0 %v4094, 125
    %v4939 = vpop.permute.xlu0 %4938
    %4940 = vrot.lane.b32.xlu0 %v4095, 125
    %v4941 = vpop.permute.xlu0 %4940
    %4942 = vrot.lane.b32.xlu0 %v4096, 125
    %v4943 = vpop.permute.xlu0 %4942
    %4944 = vrot.lane.b32.xlu0 %v4097, 125
    %v4945 = vpop.permute.xlu0 %4944
    %4946 = vrot.lane.b32.xlu0 %v4098, 125
    %v4947 = vpop.permute.xlu0 %4946
    %4948 = vrot.lane.b32.xlu0 %v4099, 125
    %v4949 = vpop.permute.xlu0 %4948
    %4950 = vrot.lane.b32.xlu0 %v4100, 125
    %v4951 = vpop.permute.xlu0 %4950
    %4968 = vmatprep.subr.mxu0 0.0
    %4969 = vmatpush1.msra.mxu0 %v4921
    %4970 = vmatprep.subr.mxu0 0.0
    %4971 = vmatpush1.msra.mxu0 %v4923
    %4972 = vmatprep.subr.mxu0 0.0
    %4973 = vmatpush1.msra.mxu0 %v4925
    %4974 = vmatprep.subr.mxu0 0.0
    %4975 = vmatpush1.msra.mxu0 %v4927
    %4976 = vmatprep.subr.mxu0 0.0
    %4977 = vmatpush1.msra.mxu0 %v4929
    %4978 = vmatprep.subr.mxu0 0.0
    %4979 = vmatpush1.msra.mxu0 %v4931
    %4980 = vmatprep.subr.mxu0 0.0
    %4981 = vmatpush1.msra.mxu0 %v4933
    %4982 = vmatprep.subr.mxu0 0.0
    %4983 = vmatpush1.msra.mxu0 %v4935
    %4984 = vmatprep.subr.mxu0 0.0
    %4985 = vmatpush1.msra.mxu0 %v4937
    %4986 = vmatprep.subr.mxu0 0.0
    %4987 = vmatpush1.msra.mxu0 %v4939
    %4988 = vmatprep.subr.mxu0 0.0
    %4989 = vmatpush1.msra.mxu0 %v4941
    %4990 = vmatprep.subr.mxu0 0.0
    %4991 = vmatpush1.msra.mxu0 %v4943
    %4992 = vmatprep.subr.mxu0 0.0
    %4993 = vmatpush1.msra.mxu0 %v4945
    %4994 = vmatprep.subr.mxu0 0.0
    %4995 = vmatpush1.msra.mxu0 %v4947
    %4996 = vmatprep.subr.mxu0 0.0
    %4997 = vmatpush1.msra.mxu0 %v4949
    %4998 = vmatprep.subr.mxu0 0.0
    %4999 = vmatpush1.msra.mxu0 %v4951
    %5000 = vmatprep.subr.mxu0 0.0
    %5001 = vmatpush1.msra.mxu0 0.0
    %5002 = vmatprep.subr.mxu0 0.0
    %5003 = vmatpush1.msra.mxu0 0.0
    %5004 = vmatprep.subr.mxu0 0.0
    %5005 = vmatpush1.msra.mxu0 0.0
    %5006 = vmatprep.subr.mxu0 0.0
    %5007 = vmatpush1.msra.mxu0 0.0
    %5008 = vmatprep.subr.mxu0 0.0
    %5009 = vmatpush1.msra.mxu0 0.0
    %5010 = vmatprep.subr.mxu0 0.0
    %5011 = vmatpush1.msra.mxu0 0.0
    %5012 = vmatprep.subr.mxu0 0.0
    %5013 = vmatpush1.msra.mxu0 0.0
    %5014 = vmatprep.subr.mxu0 0.0
    %5015 = vmatpush1.msra.mxu0 0.0
    %5016 = vmatprep.subr.mxu0 0.0
    %5017 = vmatpush1.msra.mxu0 0.0
    %5018 = vmatprep.subr.mxu0 0.0
    %5019 = vmatpush1.msra.mxu0 0.0
    %5020 = vmatprep.subr.mxu0 0.0
    %5021 = vmatpush1.msra.mxu0 0.0
    %5022 = vmatprep.subr.mxu0 0.0
    %5023 = vmatpush1.msra.mxu0 0.0
    %5024 = vmatprep.subr.mxu0 0.0
    %5025 = vmatpush1.msra.mxu0 0.0
    %5026 = vmatprep.subr.mxu0 0.0
    %5027 = vmatpush1.msra.mxu0 0.0
    %5028 = vmatprep.subr.mxu0 0.0
    %5029 = vmatpush1.msra.mxu0 0.0
    %5030 = vmatprep.subr.mxu0 0.0
    %5031 = vmatpush1.msra.mxu0 0.0
    %5032 = vmatprep.mubr.f32.mxu0 0.0
    %5033 = vmatmul.mubr.f32.gmra.mrb[0].mxu0 %v4020
    %v5034 = vpop.f32.mrb[0].mxu0
    %v5035 = vadd.f32 0.0, %v5034
    %v5036 = vpop.f32.mrb[0].mxu0
    %5037 = vmatprep.mubr.f32.mxu0 0.0
    %5038 = vmatmul.mubr.f32.gmra.mrb[0].mxu0 %v4021
    %v5039 = vpop.f32.mrb[0].mxu0
    %v5040 = vadd.f32 0.0, %v5039
    %v5041 = vpop.f32.mrb[0].mxu0
    %5042 = vmatprep.mubr.f32.mxu0 0.0
    %5043 = vmatmul.mubr.f32.gmra.mrb[0].mxu0 %v4022
    %v5044 = vpop.f32.mrb[0].mxu0
    %v5045 = vadd.f32 0.0, %v5044
    %v5046 = vpop.f32.mrb[0].mxu0
    %5047 = vmatprep.mubr.f32.mxu0 0.0
    %5048 = vmatmul.mubr.f32.gmra.mrb[0].mxu0 %v4023
    %v5049 = vpop.f32.mrb[0].mxu0
    %v5050 = vadd.f32 0.0, %v5049
    %v5051 = vpop.f32.mrb[0].mxu0
    %5052 = vmatprep.mubr.f32.mxu0 0.0
    %5053 = vmatmul.mubr.f32.gmra.mrb[0].mxu0 %v4024
    %v5054 = vpop.f32.mrb[0].mxu0
    %v5055 = vadd.f32 0.0, %v5054
    %v5056 = vpop.f32.mrb[0].mxu0
    %5057 = vmatprep.mubr.f32.mxu0 0.0
    %5058 = vmatmul.mubr.f32.gmra.mrb[0].mxu0 %v4025
    %v5059 = vpop.f32.mrb[0].mxu0
    %v5060 = vadd.f32 0.0, %v5059
    %v5061 = vpop.f32.mrb[0].mxu0
    %5062 = vmatprep.mubr.f32.mxu0 0.0
    %5063 = vmatmul.mubr.f32.gmra.mrb[0].mxu0 %v4026
    %v5064 = vpop.f32.mrb[0].mxu0
    %v5065 = vadd.f32 0.0, %v5064
    %v5066 = vpop.f32.mrb[0].mxu0
    %5067 = vmatprep.mubr.f32.mxu0 0.0
    %5068 = vmatmul.mubr.f32.gmra.mrb[0].mxu0 %v4027
    %v5069 = vpop.f32.mrb[0].mxu0
    %v5070 = vadd.f32 0.0, %v5069
    %v5071 = vpop.f32.mrb[0].mxu0
    %5072 = vmatprep.mubr.f32.mxu0 0.0
    %5073 = vmatmul.mubr.f32.gmra.mrb[0].mxu0 %v4028
    %v5074 = vpop.f32.mrb[0].mxu0
    %v5075 = vadd.f32 0.0, %v5074
    %v5076 = vpop.f32.mrb[0].mxu0
    %5077 = vmatprep.mubr.f32.mxu0 0.0
    %5078 = vmatmul.mubr.f32.gmra.mrb[0].mxu0 %v4029
    %v5079 = vpop.f32.mrb[0].mxu0
    %v5080 = vadd.f32 0.0, %v5079
    %v5081 = vpop.f32.mrb[0].mxu0
    %5082 = vmatprep.mubr.f32.mxu0 0.0
    %5083 = vmatmul.mubr.f32.gmra.mrb[0].mxu0 %v4030
    %v5084 = vpop.f32.mrb[0].mxu0
    %v5085 = vadd.f32 0.0, %v5084
    %v5086 = vpop.f32.mrb[0].mxu0
    %5087 = vmatprep.mubr.f32.mxu0 0.0
    %5088 = vmatmul.mubr.f32.gmra.mrb[0].mxu0 %v4031
    %v5089 = vpop.f32.mrb[0].mxu0
    %v5090 = vadd.f32 0.0, %v5089
    %v5091 = vpop.f32.mrb[0].mxu0
    %5092 = vmatprep.mubr.f32.mxu0 0.0
    %5093 = vmatmul.mubr.f32.gmra.mrb[0].mxu0 %v4032
    %v5094 = vpop.f32.mrb[0].mxu0
    %v5095 = vadd.f32 0.0, %v5094
    %v5096 = vpop.f32.mrb[0].mxu0
    %5097 = vmatprep.mubr.f32.mxu0 0.0
    %5098 = vmatmul.mubr.f32.gmra.mrb[0].mxu0 %v4033
    %v5099 = vpop.f32.mrb[0].mxu0
    %v5100 = vadd.f32 0.0, %v5099
    %v5101 = vpop.f32.mrb[0].mxu0
    %5102 = vmatprep.mubr.f32.mxu0 0.0
    %5103 = vmatmul.mubr.f32.gmra.mrb[0].mxu0 %v4034
    %v5104 = vpop.f32.mrb[0].mxu0
    %v5105 = vadd.f32 0.0, %v5104
    %v5106 = vpop.f32.mrb[0].mxu0
    %5107 = vmatprep.mubr.f32.mxu0 0.0
    %5108 = vmatmul.mubr.f32.gmra.mrb[0].mxu0 %v4035
    %v5109 = vpop.f32.mrb[0].mxu0
    %v5110 = vadd.f32 0.0, %v5109
    %v5111 = vpop.f32.mrb[0].mxu0
    %5112 = vmatprep.mubr.f32.mxu0 0.0
    %5113 = vmatmul.mubr.f32.gmra.mrb[0].mxu0 %v4036
    %v5114 = vpop.f32.mrb[0].mxu0
    %v5115 = vadd.f32 0.0, %v5114
    %v5116 = vpop.f32.mrb[0].mxu0
    %5117 = vmatprep.mubr.f32.mxu0 0.0
    %5118 = vmatmul.mubr.f32.gmra.mrb[0].mxu0 %v4037
    %v5119 = vpop.f32.mrb[0].mxu0
    %v5120 = vadd.f32 0.0, %v5119
    %v5121 = vpop.f32.mrb[0].mxu0
    %5122 = vmatprep.mubr.f32.mxu0 0.0
    %5123 = vmatmul.mubr.f32.gmra.mrb[0].mxu0 %v4038
    %v5124 = vpop.f32.mrb[0].mxu0
    %v5125 = vadd.f32 0.0, %v5124
    %v5126 = vpop.f32.mrb[0].mxu0
    %5127 = vmatprep.mubr.f32.mxu0 0.0
    %5128 = vmatmul.mubr.f32.gmra.mrb[0].mxu0 %v4039
    %v5129 = vpop.f32.mrb[0].mxu0
    %v5130 = vadd.f32 0.0, %v5129
    %v5131 = vpop.f32.mrb[0].mxu0
    %5132 = vmatprep.mubr.f32.mxu0 0.0
    %5133 = vmatmul.mubr.f32.gmra.mrb[0].mxu0 %v4040
    %v5134 = vpop.f32.mrb[0].mxu0
    %v5135 = vadd.f32 0.0, %v5134
    %v5136 = vpop.f32.mrb[0].mxu0
    %5137 = vmatprep.mubr.f32.mxu0 0.0
    %5138 = vmatmul.mubr.f32.gmra.mrb[0].mxu0 %v4041
    %v5139 = vpop.f32.mrb[0].mxu0
    %v5140 = vadd.f32 0.0, %v5139
    %v5141 = vpop.f32.mrb[0].mxu0
    %5142 = vmatprep.mubr.f32.mxu0 0.0
    %5143 = vmatmul.mubr.f32.gmra.mrb[0].mxu0 %v4042
    %v5144 = vpop.f32.mrb[0].mxu0
    %v5145 = vadd.f32 0.0, %v5144
    %v5146 = vpop.f32.mrb[0].mxu0
    %5147 = vmatprep.mubr.f32.mxu0 0.0
    %5148 = vmatmul.mubr.f32.gmra.mrb[0].mxu0 %v4043
    %v5149 = vpop.f32.mrb[0].mxu0
    %v5150 = vadd.f32 0.0, %v5149
    %v5151 = vpop.f32.mrb[0].mxu0
    %5152 = vmatprep.mubr.f32.mxu0 0.0
    %5153 = vmatmul.mubr.f32.gmra.mrb[0].mxu0 %v4044
    %v5154 = vpop.f32.mrb[0].mxu0
    %v5155 = vadd.f32 0.0, %v5154
    %v5156 = vpop.f32.mrb[0].mxu0
    %5157 = vmatprep.mubr.f32.mxu0 0.0
    %5158 = vmatmul.mubr.f32.gmra.mrb[0].mxu0 %v4045
    %v5159 = vpop.f32.mrb[0].mxu0
    %v5160 = vadd.f32 0.0, %v5159
    %v5161 = vpop.f32.mrb[0].mxu0
    %5162 = vmatprep.mubr.f32.mxu0 0.0
    %5163 = vmatmul.mubr.f32.gmra.mrb[0].mxu0 %v4046
    %v5164 = vpop.f32.mrb[0].mxu0
    %v5165 = vadd.f32 0.0, %v5164
    %v5166 = vpop.f32.mrb[0].mxu0
    %5167 = vmatprep.mubr.f32.mxu0 0.0
    %5168 = vmatmul.mubr.f32.gmra.mrb[0].mxu0 %v4047
    %v5169 = vpop.f32.mrb[0].mxu0
    %v5170 = vadd.f32 0.0, %v5169
    %v5171 = vpop.f32.mrb[0].mxu0
    %5172 = vmatprep.mubr.f32.mxu0 0.0
    %5173 = vmatmul.mubr.f32.gmra.mrb[0].mxu0 %v4048
    %v5174 = vpop.f32.mrb[0].mxu0
    %v5175 = vadd.f32 0.0, %v5174
    %v5176 = vpop.f32.mrb[0].mxu0
    %5177 = vmatprep.mubr.f32.mxu0 0.0
    %5178 = vmatmul.mubr.f32.gmra.mrb[0].mxu0 %v4049
    %v5179 = vpop.f32.mrb[0].mxu0
    %v5180 = vadd.f32 0.0, %v5179
    %v5181 = vpop.f32.mrb[0].mxu0
    %5182 = vmatprep.mubr.f32.mxu0 0.0
    %5183 = vmatmul.mubr.f32.gmra.mrb[0].mxu0 %v4050
    %v5184 = vpop.f32.mrb[0].mxu0
    %v5185 = vadd.f32 0.0, %v5184
    %v5186 = vpop.f32.mrb[0].mxu0
    %5187 = vmatprep.mubr.f32.mxu0 0.0
    %5188 = vmatmul.mubr.f32.gmra.mrb[0].mxu0 %v4051
    %v5189 = vpop.f32.mrb[0].mxu0
    %v5190 = vadd.f32 0.0, %v5189
    %v5191 = vpop.f32.mrb[0].mxu0
    %5192 = vdwg.mxu0
    %v5193 = vadd.f32 %v4888, %v5035
    %v5194 = vadd.f32 %v4889, %v5040
    %v5195 = vadd.f32 %v4890, %v5045
    %v5196 = vadd.f32 %v4891, %v5050
    %v5197 = vadd.f32 %v4892, %v5055
    %v5198 = vadd.f32 %v4893, %v5060
    %v5199 = vadd.f32 %v4894, %v5065
    %v5200 = vadd.f32 %v4895, %v5070
    %v5201 = vadd.f32 %v4896, %v5075
    %v5202 = vadd.f32 %v4897, %v5080
    %v5203 = vadd.f32 %v4898, %v5085
    %v5204 = vadd.f32 %v4899, %v5090
    %v5205 = vadd.f32 %v4900, %v5095
    %v5206 = vadd.f32 %v4901, %v5100
    %v5207 = vadd.f32 %v4902, %v5105
    %v5208 = vadd.f32 %v4903, %v5110
    %v5209 = vadd.f32 %v4904, %v5115
    %v5210 = vadd.f32 %v4905, %v5120
    %v5211 = vadd.f32 %v4906, %v5125
    %v5212 = vadd.f32 %v4907, %v5130
    %v5213 = vadd.f32 %v4908, %v5135
    %v5214 = vadd.f32 %v4909, %v5140
    %v5215 = vadd.f32 %v4910, %v5145
    %v5216 = vadd.f32 %v4911, %v5150
    %v5217 = vadd.f32 %v4912, %v5155
    %v5218 = vadd.f32 %v4913, %v5160
    %v5219 = vadd.f32 %v4914, %v5165
    %v5220 = vadd.f32 %v4915, %v5170
    %v5221 = vadd.f32 %v4916, %v5175
    %v5222 = vadd.f32 %v4917, %v5180
    %v5223 = vadd.f32 %v4918, %v5185
    %v5224 = vadd.f32 %v4919, %v5190
    %5225 = vrot.lane.b32.xlu0 %v4085, 124
    %v5226 = vpop.permute.xlu0 %5225
    %5227 = vrot.lane.b32.xlu0 %v4086, 124
    %v5228 = vpop.permute.xlu0 %5227
    %5229 = vrot.lane.b32.xlu0 %v4087, 124
    %v5230 = vpop.permute.xlu0 %5229
    %5231 = vrot.lane.b32.xlu0 %v4088, 124
    %v5232 = vpop.permute.xlu0 %5231
    %5233 = vrot.lane.b32.xlu0 %v4089, 124
    %v5234 = vpop.permute.xlu0 %5233
    %5235 = vrot.lane.b32.xlu0 %v4090, 124
    %v5236 = vpop.permute.xlu0 %5235
    %5237 = vrot.lane.b32.xlu0 %v4091, 124
    %v5238 = vpop.permute.xlu0 %5237
    %5239 = vrot.lane.b32.xlu0 %v4092, 124
    %v5240 = vpop.permute.xlu0 %5239
    %5241 = vrot.lane.b32.xlu0 %v4093, 124
    %v5242 = vpop.permute.xlu0 %5241
    %5243 = vrot.lane.b32.xlu0 %v4094, 124
    %v5244 = vpop.permute.xlu0 %5243
    %5245 = vrot.lane.b32.xlu0 %v4095, 124
    %v5246 = vpop.permute.xlu0 %5245
    %5247 = vrot.lane.b32.xlu0 %v4096, 124
    %v5248 = vpop.permute.xlu0 %5247
    %5249 = vrot.lane.b32.xlu0 %v4097, 124
    %v5250 = vpop.permute.xlu0 %5249
    %5251 = vrot.lane.b32.xlu0 %v4098, 124
    %v5252 = vpop.permute.xlu0 %5251
    %5253 = vrot.lane.b32.xlu0 %v4099, 124
    %v5254 = vpop.permute.xlu0 %5253
    %5255 = vrot.lane.b32.xlu0 %v4100, 124
    %v5256 = vpop.permute.xlu0 %5255
    %5273 = vmatprep.subr.mxu0 0.0
    %5274 = vmatpush1.msra.mxu0 %v5226
    %5275 = vmatprep.subr.mxu0 0.0
    %5276 = vmatpush1.msra.mxu0 %v5228
    %5277 = vmatprep.subr.mxu0 0.0
    %5278 = vmatpush1.msra.mxu0 %v5230
    %5279 = vmatprep.subr.mxu0 0.0
    %5280 = vmatpush1.msra.mxu0 %v5232
    %5281 = vmatprep.subr.mxu0 0.0
    %5282 = vmatpush1.msra.mxu0 %v5234
    %5283 = vmatprep.subr.mxu0 0.0
    %5284 = vmatpush1.msra.mxu0 %v5236
    %5285 = vmatprep.subr.mxu0 0.0
    %5286 = vmatpush1.msra.mxu0 %v5238
    %5287 = vmatprep.subr.mxu0 0.0
    %5288 = vmatpush1.msra.mxu0 %v5240
    %5289 = vmatprep.subr.mxu0 0.0
    %5290 = vmatpush1.msra.mxu0 %v5242
    %5291 = vmatprep.subr.mxu0 0.0
    %5292 = vmatpush1.msra.mxu0 %v5244
    %5293 = vmatprep.subr.mxu0 0.0
    %5294 = vmatpush1.msra.mxu0 %v5246
    %5295 = vmatprep.subr.mxu0 0.0
    %5296 = vmatpush1.msra.mxu0 %v5248
    %5297 = vmatprep.subr.mxu0 0.0
    %5298 = vmatpush1.msra.mxu0 %v5250
    %5299 = vmatprep.subr.mxu0 0.0
    %5300 = vmatpush1.msra.mxu0 %v5252
    %5301 = vmatprep.subr.mxu0 0.0
    %5302 = vmatpush1.msra.mxu0 %v5254
    %5303 = vmatprep.subr.mxu0 0.0
    %5304 = vmatpush1.msra.mxu0 %v5256
    %5305 = vmatprep.subr.mxu0 0.0
    %5306 = vmatpush1.msra.mxu0 0.0
    %5307 = vmatprep.subr.mxu0 0.0
    %5308 = vmatpush1.msra.mxu0 0.0
    %5309 = vmatprep.subr.mxu0 0.0
    %5310 = vmatpush1.msra.mxu0 0.0
    %5311 = vmatprep.subr.mxu0 0.0
    %5312 = vmatpush1.msra.mxu0 0.0
    %5313 = vmatprep.subr.mxu0 0.0
    %5314 = vmatpush1.msra.mxu0 0.0
    %5315 = vmatprep.subr.mxu0 0.0
    %5316 = vmatpush1.msra.mxu0 0.0
    %5317 = vmatprep.subr.mxu0 0.0
    %5318 = vmatpush1.msra.mxu0 0.0
    %5319 = vmatprep.subr.mxu0 0.0
    %5320 = vmatpush1.msra.mxu0 0.0
    %5321 = vmatprep.subr.mxu0 0.0
    %5322 = vmatpush1.msra.mxu0 0.0
    %5323 = vmatprep.subr.mxu0 0.0
    %5324 = vmatpush1.msra.mxu0 0.0
    %5325 = vmatprep.subr.mxu0 0.0
    %5326 = vmatpush1.msra.mxu0 0.0
    %5327 = vmatprep.subr.mxu0 0.0
    %5328 = vmatpush1.msra.mxu0 0.0
    %5329 = vmatprep.subr.mxu0 0.0
    %5330 = vmatpush1.msra.mxu0 0.0
    %5331 = vmatprep.subr.mxu0 0.0
    %5332 = vmatpush1.msra.mxu0 0.0
    %5333 = vmatprep.subr.mxu0 0.0
    %5334 = vmatpush1.msra.mxu0 0.0
    %5335 = vmatprep.subr.mxu0 0.0
    %5336 = vmatpush1.msra.mxu0 0.0
    %5337 = vmatprep.mubr.f32.mxu0 0.0
    %5338 = vmatmul.mubr.f32.gmra.mrb[0].mxu0 %v4053
    %v5339 = vpop.f32.mrb[0].mxu0
    %v5340 = vadd.f32 0.0, %v5339
    %v5341 = vpop.f32.mrb[0].mxu0
    %5342 = vmatprep.mubr.f32.mxu0 0.0
    %5343 = vmatmul.mubr.f32.gmra.mrb[0].mxu0 %v4054
    %v5344 = vpop.f32.mrb[0].mxu0
    %v5345 = vadd.f32 0.0, %v5344
    %v5346 = vpop.f32.mrb[0].mxu0
    %5347 = vmatprep.mubr.f32.mxu0 0.0
    %5348 = vmatmul.mubr.f32.gmra.mrb[0].mxu0 %v4055
    %v5349 = vpop.f32.mrb[0].mxu0
    %v5350 = vadd.f32 0.0, %v5349
    %v5351 = vpop.f32.mrb[0].mxu0
    %5352 = vmatprep.mubr.f32.mxu0 0.0
    %5353 = vmatmul.mubr.f32.gmra.mrb[0].mxu0 %v4056
    %v5354 = vpop.f32.mrb[0].mxu0
    %v5355 = vadd.f32 0.0, %v5354
    %v5356 = vpop.f32.mrb[0].mxu0
    %5357 = vmatprep.mubr.f32.mxu0 0.0
    %5358 = vmatmul.mubr.f32.gmra.mrb[0].mxu0 %v4057
    %v5359 = vpop.f32.mrb[0].mxu0
    %v5360 = vadd.f32 0.0, %v5359
    %v5361 = vpop.f32.mrb[0].mxu0
    %5362 = vmatprep.mubr.f32.mxu0 0.0
    %5363 = vmatmul.mubr.f32.gmra.mrb[0].mxu0 %v4058
    %v5364 = vpop.f32.mrb[0].mxu0
    %v5365 = vadd.f32 0.0, %v5364
    %v5366 = vpop.f32.mrb[0].mxu0
    %5367 = vmatprep.mubr.f32.mxu0 0.0
    %5368 = vmatmul.mubr.f32.gmra.mrb[0].mxu0 %v4059
    %v5369 = vpop.f32.mrb[0].mxu0
    %v5370 = vadd.f32 0.0, %v5369
    %v5371 = vpop.f32.mrb[0].mxu0
    %5372 = vmatprep.mubr.f32.mxu0 0.0
    %5373 = vmatmul.mubr.f32.gmra.mrb[0].mxu0 %v4060
    %v5374 = vpop.f32.mrb[0].mxu0
    %v5375 = vadd.f32 0.0, %v5374
    %v5376 = vpop.f32.mrb[0].mxu0
    %5377 = vmatprep.mubr.f32.mxu0 0.0
    %5378 = vmatmul.mubr.f32.gmra.mrb[0].mxu0 %v4061
    %v5379 = vpop.f32.mrb[0].mxu0
    %v5380 = vadd.f32 0.0, %v5379
    %v5381 = vpop.f32.mrb[0].mxu0
    %5382 = vmatprep.mubr.f32.mxu0 0.0
    %5383 = vmatmul.mubr.f32.gmra.mrb[0].mxu0 %v4062
    %v5384 = vpop.f32.mrb[0].mxu0
    %v5385 = vadd.f32 0.0, %v5384
    %v5386 = vpop.f32.mrb[0].mxu0
    %5387 = vmatprep.mubr.f32.mxu0 0.0
    %5388 = vmatmul.mubr.f32.gmra.mrb[0].mxu0 %v4063
    %v5389 = vpop.f32.mrb[0].mxu0
    %v5390 = vadd.f32 0.0, %v5389
    %v5391 = vpop.f32.mrb[0].mxu0
    %5392 = vmatprep.mubr.f32.mxu0 0.0
    %5393 = vmatmul.mubr.f32.gmra.mrb[0].mxu0 %v4064
    %v5394 = vpop.f32.mrb[0].mxu0
    %v5395 = vadd.f32 0.0, %v5394
    %v5396 = vpop.f32.mrb[0].mxu0
    %5397 = vmatprep.mubr.f32.mxu0 0.0
    %5398 = vmatmul.mubr.f32.gmra.mrb[0].mxu0 %v4065
    %v5399 = vpop.f32.mrb[0].mxu0
    %v5400 = vadd.f32 0.0, %v5399
    %v5401 = vpop.f32.mrb[0].mxu0
    %5402 = vmatprep.mubr.f32.mxu0 0.0
    %5403 = vmatmul.mubr.f32.gmra.mrb[0].mxu0 %v4066
    %v5404 = vpop.f32.mrb[0].mxu0
    %v5405 = vadd.f32 0.0, %v5404
    %v5406 = vpop.f32.mrb[0].mxu0
    %5407 = vmatprep.mubr.f32.mxu0 0.0
    %5408 = vmatmul.mubr.f32.gmra.mrb[0].mxu0 %v4067
    %v5409 = vpop.f32.mrb[0].mxu0
    %v5410 = vadd.f32 0.0, %v5409
    %v5411 = vpop.f32.mrb[0].mxu0
    %5412 = vmatprep.mubr.f32.mxu0 0.0
    %5413 = vmatmul.mubr.f32.gmra.mrb[0].mxu0 %v4068
    %v5414 = vpop.f32.mrb[0].mxu0
    %v5415 = vadd.f32 0.0, %v5414
    %v5416 = vpop.f32.mrb[0].mxu0
    %5417 = vmatprep.mubr.f32.mxu0 0.0
    %5418 = vmatmul.mubr.f32.gmra.mrb[0].mxu0 %v4069
    %v5419 = vpop.f32.mrb[0].mxu0
    %v5420 = vadd.f32 0.0, %v5419
    %v5421 = vpop.f32.mrb[0].mxu0
    %5422 = vmatprep.mubr.f32.mxu0 0.0
    %5423 = vmatmul.mubr.f32.gmra.mrb[0].mxu0 %v4070
    %v5424 = vpop.f32.mrb[0].mxu0
    %v5425 = vadd.f32 0.0, %v5424
    %v5426 = vpop.f32.mrb[0].mxu0
    %5427 = vmatprep.mubr.f32.mxu0 0.0
    %5428 = vmatmul.mubr.f32.gmra.mrb[0].mxu0 %v4071
    %v5429 = vpop.f32.mrb[0].mxu0
    %v5430 = vadd.f32 0.0, %v5429
    %v5431 = vpop.f32.mrb[0].mxu0
    %5432 = vmatprep.mubr.f32.mxu0 0.0
    %5433 = vmatmul.mubr.f32.gmra.mrb[0].mxu0 %v4072
    %v5434 = vpop.f32.mrb[0].mxu0
    %v5435 = vadd.f32 0.0, %v5434
    %v5436 = vpop.f32.mrb[0].mxu0
    %5437 = vmatprep.mubr.f32.mxu0 0.0
    %5438 = vmatmul.mubr.f32.gmra.mrb[0].mxu0 %v4073
    %v5439 = vpop.f32.mrb[0].mxu0
    %v5440 = vadd.f32 0.0, %v5439
    %v5441 = vpop.f32.mrb[0].mxu0
    %5442 = vmatprep.mubr.f32.mxu0 0.0
    %5443 = vmatmul.mubr.f32.gmra.mrb[0].mxu0 %v4074
    %v5444 = vpop.f32.mrb[0].mxu0
    %v5445 = vadd.f32 0.0, %v5444
    %v5446 = vpop.f32.mrb[0].mxu0
    %5447 = vmatprep.mubr.f32.mxu0 0.0
    %5448 = vmatmul.mubr.f32.gmra.mrb[0].mxu0 %v4075
    %v5449 = vpop.f32.mrb[0].mxu0
    %v5450 = vadd.f32 0.0, %v5449
    %v5451 = vpop.f32.mrb[0].mxu0
    %5452 = vmatprep.mubr.f32.mxu0 0.0
    %5453 = vmatmul.mubr.f32.gmra.mrb[0].mxu0 %v4076
    %v5454 = vpop.f32.mrb[0].mxu0
    %v5455 = vadd.f32 0.0, %v5454
    %v5456 = vpop.f32.mrb[0].mxu0
    %5457 = vmatprep.mubr.f32.mxu0 0.0
    %5458 = vmatmul.mubr.f32.gmra.mrb[0].mxu0 %v4077
    %v5459 = vpop.f32.mrb[0].mxu0
    %v5460 = vadd.f32 0.0, %v5459
    %v5461 = vpop.f32.mrb[0].mxu0
    %5462 = vmatprep.mubr.f32.mxu0 0.0
    %5463 = vmatmul.mubr.f32.gmra.mrb[0].mxu0 %v4078
    %v5464 = vpop.f32.mrb[0].mxu0
    %v5465 = vadd.f32 0.0, %v5464
    %v5466 = vpop.f32.mrb[0].mxu0
    %5467 = vmatprep.mubr.f32.mxu0 0.0
    %5468 = vmatmul.mubr.f32.gmra.mrb[0].mxu0 %v4079
    %v5469 = vpop.f32.mrb[0].mxu0
    %v5470 = vadd.f32 0.0, %v5469
    %v5471 = vpop.f32.mrb[0].mxu0
    %5472 = vmatprep.mubr.f32.mxu0 0.0
    %5473 = vmatmul.mubr.f32.gmra.mrb[0].mxu0 %v4080
    %v5474 = vpop.f32.mrb[0].mxu0
    %v5475 = vadd.f32 0.0, %v5474
    %v5476 = vpop.f32.mrb[0].mxu0
    %5477 = vmatprep.mubr.f32.mxu0 0.0
    %5478 = vmatmul.mubr.f32.gmra.mrb[0].mxu0 %v4081
    %v5479 = vpop.f32.mrb[0].mxu0
    %v5480 = vadd.f32 0.0, %v5479
    %v5481 = vpop.f32.mrb[0].mxu0
    %5482 = vmatprep.mubr.f32.mxu0 0.0
    %5483 = vmatmul.mubr.f32.gmra.mrb[0].mxu0 %v4082
    %v5484 = vpop.f32.mrb[0].mxu0
    %v5485 = vadd.f32 0.0, %v5484
    %v5486 = vpop.f32.mrb[0].mxu0
    %5487 = vmatprep.mubr.f32.mxu0 0.0
    %5488 = vmatmul.mubr.f32.gmra.mrb[0].mxu0 %v4083
    %v5489 = vpop.f32.mrb[0].mxu0
    %v5490 = vadd.f32 0.0, %v5489
    %v5491 = vpop.f32.mrb[0].mxu0
    %5492 = vmatprep.mubr.f32.mxu0 0.0
    %5493 = vmatmul.mubr.f32.gmra.mrb[0].mxu0 %v4084
    %v5494 = vpop.f32.mrb[0].mxu0
    %v5495 = vadd.f32 0.0, %v5494
    %v5496 = vpop.f32.mrb[0].mxu0
    %5497 = vdwg.mxu0
    %v5498 = vadd.f32 %v5193, %v5340
    %v5499 = vadd.f32 %v5194, %v5345
    %v5500 = vadd.f32 %v5195, %v5350
    %v5501 = vadd.f32 %v5196, %v5355
    %v5502 = vadd.f32 %v5197, %v5360
    %v5503 = vadd.f32 %v5198, %v5365
    %v5504 = vadd.f32 %v5199, %v5370
    %v5505 = vadd.f32 %v5200, %v5375
    %v5506 = vadd.f32 %v5201, %v5380
    %v5507 = vadd.f32 %v5202, %v5385
    %v5508 = vadd.f32 %v5203, %v5390
    %v5509 = vadd.f32 %v5204, %v5395
    %v5510 = vadd.f32 %v5205, %v5400
    %v5511 = vadd.f32 %v5206, %v5405
    %v5512 = vadd.f32 %v5207, %v5410
    %v5513 = vadd.f32 %v5208, %v5415
    %v5514 = vadd.f32 %v5209, %v5420
    %v5515 = vadd.f32 %v5210, %v5425
    %v5516 = vadd.f32 %v5211, %v5430
    %v5517 = vadd.f32 %v5212, %v5435
    %v5518 = vadd.f32 %v5213, %v5440
    %v5519 = vadd.f32 %v5214, %v5445
    %v5520 = vadd.f32 %v5215, %v5450
    %v5521 = vadd.f32 %v5216, %v5455
    %v5522 = vadd.f32 %v5217, %v5460
    %v5523 = vadd.f32 %v5218, %v5465
    %v5524 = vadd.f32 %v5219, %v5470
    %v5525 = vadd.f32 %v5220, %v5475
    %v5526 = vadd.f32 %v5221, %v5480
    %v5527 = vadd.f32 %v5222, %v5485
    %v5528 = vadd.f32 %v5223, %v5490
    %v5529 = vadd.f32 %v5224, %v5495
    %v5530 = vld [vmem:[%s3904] sm:$0xff]
    %v5531 = vld [vmem:[%s3904 + $0x8] sm:$0xff]
    %v5532 = vld [vmem:[%s3904 + $0x10] sm:$0xff]
    %v5533 = vld [vmem:[%s3904 + $0x18] sm:$0xff]
    %v5534 = vld [vmem:[%s3904 + $0x20] sm:$0xff]
    %v5535 = vld [vmem:[%s3904 + $0x28] sm:$0xff]
    %v5536 = vld [vmem:[%s3904 + $0x30] sm:$0xff]
    %v5537 = vld [vmem:[%s3904 + $0x38] sm:$0xff]
    %v5538 = vld [vmem:[%s3904 + $0x40] sm:$0xff]
    %v5539 = vld [vmem:[%s3904 + $0x48] sm:$0xff]
    %v5540 = vld [vmem:[%s3904 + $0x50] sm:$0xff]
    %v5541 = vld [vmem:[%s3904 + $0x58] sm:$0xff]
    %v5542 = vld [vmem:[%s3904 + $0x60] sm:$0xff]
    %v5543 = vld [vmem:[%s3904 + $0x68] sm:$0xff]
    %v5544 = vld [vmem:[%s3904 + $0x70] sm:$0xff]
    %v5545 = vld [vmem:[%s3904 + $0x78] sm:$0xff]
    %5562 = vrot.lane.b32.xlu0 %v5530, 127
    %v5563 = vpop.permute.xlu0 %5562
    %5564 = vrot.lane.b32.xlu0 %v5531, 127
    %v5565 = vpop.permute.xlu0 %5564
    %5566 = vrot.lane.b32.xlu0 %v5532, 127
    %v5567 = vpop.permute.xlu0 %5566
    %5568 = vrot.lane.b32.xlu0 %v5533, 127
    %v5569 = vpop.permute.xlu0 %5568
    %5570 = vrot.lane.b32.xlu0 %v5534, 127
    %v5571 = vpop.permute.xlu0 %5570
    %5572 = vrot.lane.b32.xlu0 %v5535, 127
    %v5573 = vpop.permute.xlu0 %5572
    %5574 = vrot.lane.b32.xlu0 %v5536, 127
    %v5575 = vpop.permute.xlu0 %5574
    %5576 = vrot.lane.b32.xlu0 %v5537, 127
    %v5577 = vpop.permute.xlu0 %5576
    %5578 = vrot.lane.b32.xlu0 %v5538, 127
    %v5579 = vpop.permute.xlu0 %5578
    %5580 = vrot.lane.b32.xlu0 %v5539, 127
    %v5581 = vpop.permute.xlu0 %5580
    %5582 = vrot.lane.b32.xlu0 %v5540, 127
    %v5583 = vpop.permute.xlu0 %5582
    %5584 = vrot.lane.b32.xlu0 %v5541, 127
    %v5585 = vpop.permute.xlu0 %5584
    %5586 = vrot.lane.b32.xlu0 %v5542, 127
    %v5587 = vpop.permute.xlu0 %5586
    %5588 = vrot.lane.b32.xlu0 %v5543, 127
    %v5589 = vpop.permute.xlu0 %5588
    %5590 = vrot.lane.b32.xlu0 %v5544, 127
    %v5591 = vpop.permute.xlu0 %5590
    %5592 = vrot.lane.b32.xlu0 %v5545, 127
    %v5593 = vpop.permute.xlu0 %5592
    %5610 = vmatprep.subr.mxu0 0.0
    %5611 = vmatpush1.msra.mxu0 %v5563
    %5612 = vmatprep.subr.mxu0 0.0
    %5613 = vmatpush1.msra.mxu0 %v5565
    %5614 = vmatprep.subr.mxu0 0.0
    %5615 = vmatpush1.msra.mxu0 %v5567
    %5616 = vmatprep.subr.mxu0 0.0
    %5617 = vmatpush1.msra.mxu0 %v5569
    %5618 = vmatprep.subr.mxu0 0.0
    %5619 = vmatpush1.msra.mxu0 %v5571
    %5620 = vmatprep.subr.mxu0 0.0
    %5621 = vmatpush1.msra.mxu0 %v5573
    %5622 = vmatprep.subr.mxu0 0.0
    %5623 = vmatpush1.msra.mxu0 %v5575
    %5624 = vmatprep.subr.mxu0 0.0
    %5625 = vmatpush1.msra.mxu0 %v5577
    %5626 = vmatprep.subr.mxu0 0.0
    %5627 = vmatpush1.msra.mxu0 %v5579
    %5628 = vmatprep.subr.mxu0 0.0
    %5629 = vmatpush1.msra.mxu0 %v5581
    %5630 = vmatprep.subr.mxu0 0.0
    %5631 = vmatpush1.msra.mxu0 %v5583
    %5632 = vmatprep.subr.mxu0 0.0
    %5633 = vmatpush1.msra.mxu0 %v5585
    %5634 = vmatprep.subr.mxu0 0.0
    %5635 = vmatpush1.msra.mxu0 %v5587
    %5636 = vmatprep.subr.mxu0 0.0
    %5637 = vmatpush1.msra.mxu0 %v5589
    %5638 = vmatprep.subr.mxu0 0.0
    %5639 = vmatpush1.msra.mxu0 %v5591
    %5640 = vmatprep.subr.mxu0 0.0
    %5641 = vmatpush1.msra.mxu0 %v5593
    %5642 = vmatprep.subr.mxu0 0.0
    %5643 = vmatpush1.msra.mxu0 0.0
    %5644 = vmatprep.subr.mxu0 0.0
    %5645 = vmatpush1.msra.mxu0 0.0
    %5646 = vmatprep.subr.mxu0 0.0
    %5647 = vmatpush1.msra.mxu0 0.0
    %5648 = vmatprep.subr.mxu0 0.0
    %5649 = vmatpush1.msra.mxu0 0.0
    %5650 = vmatprep.subr.mxu0 0.0
    %5651 = vmatpush1.msra.mxu0 0.0
    %5652 = vmatprep.subr.mxu0 0.0
    %5653 = vmatpush1.msra.mxu0 0.0
    %5654 = vmatprep.subr.mxu0 0.0
    %5655 = vmatpush1.msra.mxu0 0.0
    %5656 = vmatprep.subr.mxu0 0.0
    %5657 = vmatpush1.msra.mxu0 0.0
    %5658 = vmatprep.subr.mxu0 0.0
    %5659 = vmatpush1.msra.mxu0 0.0
    %5660 = vmatprep.subr.mxu0 0.0
    %5661 = vmatpush1.msra.mxu0 0.0
    %5662 = vmatprep.subr.mxu0 0.0
    %5663 = vmatpush1.msra.mxu0 0.0
    %5664 = vmatprep.subr.mxu0 0.0
    %5665 = vmatpush1.msra.mxu0 0.0
    %5666 = vmatprep.subr.mxu0 0.0
    %5667 = vmatpush1.msra.mxu0 0.0
    %5668 = vmatprep.subr.mxu0 0.0
    %5669 = vmatpush1.msra.mxu0 0.0
    %5670 = vmatprep.subr.mxu0 0.0
    %5671 = vmatpush1.msra.mxu0 0.0
    %5672 = vmatprep.subr.mxu0 0.0
    %5673 = vmatpush1.msra.mxu0 0.0
    %5674 = vmatprep.mubr.f32.mxu0 0.0
    %5675 = vmatmul.mubr.f32.gmra.mrb[0].mxu0 %v3954
    %v5676 = vpop.f32.mrb[0].mxu0
    %v5677 = vadd.f32 0.0, %v5676
    %v5678 = vpop.f32.mrb[0].mxu0
    %5679 = vmatprep.mubr.f32.mxu0 0.0
    %5680 = vmatmul.mubr.f32.gmra.mrb[0].mxu0 %v3955
    %v5681 = vpop.f32.mrb[0].mxu0
    %v5682 = vadd.f32 0.0, %v5681
    %v5683 = vpop.f32.mrb[0].mxu0
    %5684 = vmatprep.mubr.f32.mxu0 0.0
    %5685 = vmatmul.mubr.f32.gmra.mrb[0].mxu0 %v3956
    %v5686 = vpop.f32.mrb[0].mxu0
    %v5687 = vadd.f32 0.0, %v5686
    %v5688 = vpop.f32.mrb[0].mxu0
    %5689 = vmatprep.mubr.f32.mxu0 0.0
    %5690 = vmatmul.mubr.f32.gmra.mrb[0].mxu0 %v3957
    %v5691 = vpop.f32.mrb[0].mxu0
    %v5692 = vadd.f32 0.0, %v5691
    %v5693 = vpop.f32.mrb[0].mxu0
    %5694 = vmatprep.mubr.f32.mxu0 0.0
    %5695 = vmatmul.mubr.f32.gmra.mrb[0].mxu0 %v3958
    %v5696 = vpop.f32.mrb[0].mxu0
    %v5697 = vadd.f32 0.0, %v5696
    %v5698 = vpop.f32.mrb[0].mxu0
    %5699 = vmatprep.mubr.f32.mxu0 0.0
    %5700 = vmatmul.mubr.f32.gmra.mrb[0].mxu0 %v3959
    %v5701 = vpop.f32.mrb[0].mxu0
    %v5702 = vadd.f32 0.0, %v5701
    %v5703 = vpop.f32.mrb[0].mxu0
    %5704 = vmatprep.mubr.f32.mxu0 0.0
    %5705 = vmatmul.mubr.f32.gmra.mrb[0].mxu0 %v3960
    %v5706 = vpop.f32.mrb[0].mxu0
    %v5707 = vadd.f32 0.0, %v5706
    %v5708 = vpop.f32.mrb[0].mxu0
    %5709 = vmatprep.mubr.f32.mxu0 0.0
    %5710 = vmatmul.mubr.f32.gmra.mrb[0].mxu0 %v3961
    %v5711 = vpop.f32.mrb[0].mxu0
    %v5712 = vadd.f32 0.0, %v5711
    %v5713 = vpop.f32.mrb[0].mxu0
    %5714 = vmatprep.mubr.f32.mxu0 0.0
    %5715 = vmatmul.mubr.f32.gmra.mrb[0].mxu0 %v3962
    %v5716 = vpop.f32.mrb[0].mxu0
    %v5717 = vadd.f32 0.0, %v5716
    %v5718 = vpop.f32.mrb[0].mxu0
    %5719 = vmatprep.mubr.f32.mxu0 0.0
    %5720 = vmatmul.mubr.f32.gmra.mrb[0].mxu0 %v3963
    %v5721 = vpop.f32.mrb[0].mxu0
    %v5722 = vadd.f32 0.0, %v5721
    %v5723 = vpop.f32.mrb[0].mxu0
    %5724 = vmatprep.mubr.f32.mxu0 0.0
    %5725 = vmatmul.mubr.f32.gmra.mrb[0].mxu0 %v3964
    %v5726 = vpop.f32.mrb[0].mxu0
    %v5727 = vadd.f32 0.0, %v5726
    %v5728 = vpop.f32.mrb[0].mxu0
    %5729 = vmatprep.mubr.f32.mxu0 0.0
    %5730 = vmatmul.mubr.f32.gmra.mrb[0].mxu0 %v3965
    %v5731 = vpop.f32.mrb[0].mxu0
    %v5732 = vadd.f32 0.0, %v5731
    %v5733 = vpop.f32.mrb[0].mxu0
    %5734 = vmatprep.mubr.f32.mxu0 0.0
    %5735 = vmatmul.mubr.f32.gmra.mrb[0].mxu0 %v3966
    %v5736 = vpop.f32.mrb[0].mxu0
    %v5737 = vadd.f32 0.0, %v5736
    %v5738 = vpop.f32.mrb[0].mxu0
    %5739 = vmatprep.mubr.f32.mxu0 0.0
    %5740 = vmatmul.mubr.f32.gmra.mrb[0].mxu0 %v3967
    %v5741 = vpop.f32.mrb[0].mxu0
    %v5742 = vadd.f32 0.0, %v5741
    %v5743 = vpop.f32.mrb[0].mxu0
    %5744 = vmatprep.mubr.f32.mxu0 0.0
    %5745 = vmatmul.mubr.f32.gmra.mrb[0].mxu0 %v3968
    %v5746 = vpop.f32.mrb[0].mxu0
    %v5747 = vadd.f32 0.0, %v5746
    %v5748 = vpop.f32.mrb[0].mxu0
    %5749 = vmatprep.mubr.f32.mxu0 0.0
    %5750 = vmatmul.mubr.f32.gmra.mrb[0].mxu0 %v3969
    %v5751 = vpop.f32.mrb[0].mxu0
    %v5752 = vadd.f32 0.0, %v5751
    %v5753 = vpop.f32.mrb[0].mxu0
    %5754 = vmatprep.mubr.f32.mxu0 0.0
    %5755 = vmatmul.mubr.f32.gmra.mrb[0].mxu0 %v3970
    %v5756 = vpop.f32.mrb[0].mxu0
    %v5757 = vadd.f32 0.0, %v5756
    %v5758 = vpop.f32.mrb[0].mxu0
    %5759 = vmatprep.mubr.f32.mxu0 0.0
    %5760 = vmatmul.mubr.f32.gmra.mrb[0].mxu0 %v3971
    %v5761 = vpop.f32.mrb[0].mxu0
    %v5762 = vadd.f32 0.0, %v5761
    %v5763 = vpop.f32.mrb[0].mxu0
    %5764 = vmatprep.mubr.f32.mxu0 0.0
    %5765 = vmatmul.mubr.f32.gmra.mrb[0].mxu0 %v3972
    %v5766 = vpop.f32.mrb[0].mxu0
    %v5767 = vadd.f32 0.0, %v5766
    %v5768 = vpop.f32.mrb[0].mxu0
    %5769 = vmatprep.mubr.f32.mxu0 0.0
    %5770 = vmatmul.mubr.f32.gmra.mrb[0].mxu0 %v3973
    %v5771 = vpop.f32.mrb[0].mxu0
    %v5772 = vadd.f32 0.0, %v5771
    %v5773 = vpop.f32.mrb[0].mxu0
    %5774 = vmatprep.mubr.f32.mxu0 0.0
    %5775 = vmatmul.mubr.f32.gmra.mrb[0].mxu0 %v3974
    %v5776 = vpop.f32.mrb[0].mxu0
    %v5777 = vadd.f32 0.0, %v5776
    %v5778 = vpop.f32.mrb[0].mxu0
    %5779 = vmatprep.mubr.f32.mxu0 0.0
    %5780 = vmatmul.mubr.f32.gmra.mrb[0].mxu0 %v3975
    %v5781 = vpop.f32.mrb[0].mxu0
    %v5782 = vadd.f32 0.0, %v5781
    %v5783 = vpop.f32.mrb[0].mxu0
    %5784 = vmatprep.mubr.f32.mxu0 0.0
    %5785 = vmatmul.mubr.f32.gmra.mrb[0].mxu0 %v3976
    %v5786 = vpop.f32.mrb[0].mxu0
    %v5787 = vadd.f32 0.0, %v5786
    %v5788 = vpop.f32.mrb[0].mxu0
    %5789 = vmatprep.mubr.f32.mxu0 0.0
    %5790 = vmatmul.mubr.f32.gmra.mrb[0].mxu0 %v3977
    %v5791 = vpop.f32.mrb[0].mxu0
    %v5792 = vadd.f32 0.0, %v5791
    %v5793 = vpop.f32.mrb[0].mxu0
    %5794 = vmatprep.mubr.f32.mxu0 0.0
    %5795 = vmatmul.mubr.f32.gmra.mrb[0].mxu0 %v3978
    %v5796 = vpop.f32.mrb[0].mxu0
    %v5797 = vadd.f32 0.0, %v5796
    %v5798 = vpop.f32.mrb[0].mxu0
    %5799 = vmatprep.mubr.f32.mxu0 0.0
    %5800 = vmatmul.mubr.f32.gmra.mrb[0].mxu0 %v3979
    %v5801 = vpop.f32.mrb[0].mxu0
    %v5802 = vadd.f32 0.0, %v5801
    %v5803 = vpop.f32.mrb[0].mxu0
    %5804 = vmatprep.mubr.f32.mxu0 0.0
    %5805 = vmatmul.mubr.f32.gmra.mrb[0].mxu0 %v3980
    %v5806 = vpop.f32.mrb[0].mxu0
    %v5807 = vadd.f32 0.0, %v5806
    %v5808 = vpop.f32.mrb[0].mxu0
    %5809 = vmatprep.mubr.f32.mxu0 0.0
    %5810 = vmatmul.mubr.f32.gmra.mrb[0].mxu0 %v3981
    %v5811 = vpop.f32.mrb[0].mxu0
    %v5812 = vadd.f32 0.0, %v5811
    %v5813 = vpop.f32.mrb[0].mxu0
    %5814 = vmatprep.mubr.f32.mxu0 0.0
    %5815 = vmatmul.mubr.f32.gmra.mrb[0].mxu0 %v3982
    %v5816 = vpop.f32.mrb[0].mxu0
    %v5817 = vadd.f32 0.0, %v5816
    %v5818 = vpop.f32.mrb[0].mxu0
    %5819 = vmatprep.mubr.f32.mxu0 0.0
    %5820 = vmatmul.mubr.f32.gmra.mrb[0].mxu0 %v3983
    %v5821 = vpop.f32.mrb[0].mxu0
    %v5822 = vadd.f32 0.0, %v5821
    %v5823 = vpop.f32.mrb[0].mxu0
    %5824 = vmatprep.mubr.f32.mxu0 0.0
    %5825 = vmatmul.mubr.f32.gmra.mrb[0].mxu0 %v3984
    %v5826 = vpop.f32.mrb[0].mxu0
    %v5827 = vadd.f32 0.0, %v5826
    %v5828 = vpop.f32.mrb[0].mxu0
    %5829 = vmatprep.mubr.f32.mxu0 0.0
    %5830 = vmatmul.mubr.f32.gmra.mrb[0].mxu0 %v3985
    %v5831 = vpop.f32.mrb[0].mxu0
    %v5832 = vadd.f32 0.0, %v5831
    %v5833 = vpop.f32.mrb[0].mxu0
    %5834 = vdwg.mxu0
    %5835 = vmatprep.subr.mxu0 0.0
    %5836 = vmatpush1.msra.mxu0 %v5530
    %5837 = vmatprep.subr.mxu0 0.0
    %5838 = vmatpush1.msra.mxu0 %v5531
    %5839 = vmatprep.subr.mxu0 0.0
    %5840 = vmatpush1.msra.mxu0 %v5532
    %5841 = vmatprep.subr.mxu0 0.0
    %5842 = vmatpush1.msra.mxu0 %v5533
    %5843 = vmatprep.subr.mxu0 0.0
    %5844 = vmatpush1.msra.mxu0 %v5534
    %5845 = vmatprep.subr.mxu0 0.0
    %5846 = vmatpush1.msra.mxu0 %v5535
    %5847 = vmatprep.subr.mxu0 0.0
    %5848 = vmatpush1.msra.mxu0 %v5536
    %5849 = vmatprep.subr.mxu0 0.0
    %5850 = vmatpush1.msra.mxu0 %v5537
    %5851 = vmatprep.subr.mxu0 0.0
    %5852 = vmatpush1.msra.mxu0 %v5538
    %5853 = vmatprep.subr.mxu0 0.0
    %5854 = vmatpush1.msra.mxu0 %v5539
    %5855 = vmatprep.subr.mxu0 0.0
    %5856 = vmatpush1.msra.mxu0 %v5540
    %5857 = vmatprep.subr.mxu0 0.0
    %5858 = vmatpush1.msra.mxu0 %v5541
    %5859 = vmatprep.subr.mxu0 0.0
    %5860 = vmatpush1.msra.mxu0 %v5542
    %5861 = vmatprep.subr.mxu0 0.0
    %5862 = vmatpush1.msra.mxu0 %v5543
    %5863 = vmatprep.subr.mxu0 0.0
    %5864 = vmatpush1.msra.mxu0 %v5544
    %5865 = vmatprep.subr.mxu0 0.0
    %5866 = vmatpush1.msra.mxu0 %v5545
    %5867 = vmatprep.subr.mxu0 0.0
    %5868 = vmatpush1.msra.mxu0 0.0
    %5869 = vmatprep.subr.mxu0 0.0
    %5870 = vmatpush1.msra.mxu0 0.0
    %5871 = vmatprep.subr.mxu0 0.0
    %5872 = vmatpush1.msra.mxu0 0.0
    %5873 = vmatprep.subr.mxu0 0.0
    %5874 = vmatpush1.msra.mxu0 0.0
    %5875 = vmatprep.subr.mxu0 0.0
    %5876 = vmatpush1.msra.mxu0 0.0
    %5877 = vmatprep.subr.mxu0 0.0
    %5878 = vmatpush1.msra.mxu0 0.0
    %5879 = vmatprep.subr.mxu0 0.0
    %5880 = vmatpush1.msra.mxu0 0.0
    %5881 = vmatprep.subr.mxu0 0.0
    %5882 = vmatpush1.msra.mxu0 0.0
    %5883 = vmatprep.subr.mxu0 0.0
    %5884 = vmatpush1.msra.mxu0 0.0
    %5885 = vmatprep.subr.mxu0 0.0
    %5886 = vmatpush1.msra.mxu0 0.0
    %5887 = vmatprep.subr.mxu0 0.0
    %5888 = vmatpush1.msra.mxu0 0.0
    %5889 = vmatprep.subr.mxu0 0.0
    %5890 = vmatpush1.msra.mxu0 0.0
    %5891 = vmatprep.subr.mxu0 0.0
    %5892 = vmatpush1.msra.mxu0 0.0
    %5893 = vmatprep.subr.mxu0 0.0
    %5894 = vmatpush1.msra.mxu0 0.0
    %5895 = vmatprep.subr.mxu0 0.0
    %5896 = vmatpush1.msra.mxu0 0.0
    %5897 = vmatprep.subr.mxu0 0.0
    %5898 = vmatpush1.msra.mxu0 0.0
    %5899 = vmatprep.mubr.f32.mxu0 0.0
    %5900 = vmatmul.mubr.f32.gmra.mrb[0].mxu0 %v3921
    %v5901 = vpop.f32.mrb[0].mxu0
    %v5902 = vadd.f32 %v5677, %v5901
    %v5903 = vpop.f32.mrb[0].mxu0
    %5904 = vmatprep.mubr.f32.mxu0 0.0
    %5905 = vmatmul.mubr.f32.gmra.mrb[0].mxu0 %v3922
    %v5906 = vpop.f32.mrb[0].mxu0
    %v5907 = vadd.f32 %v5682, %v5906
    %v5908 = vpop.f32.mrb[0].mxu0
    %5909 = vmatprep.mubr.f32.mxu0 0.0
    %5910 = vmatmul.mubr.f32.gmra.mrb[0].mxu0 %v3923
    %v5911 = vpop.f32.mrb[0].mxu0
    %v5912 = vadd.f32 %v5687, %v5911
    %v5913 = vpop.f32.mrb[0].mxu0
    %5914 = vmatprep.mubr.f32.mxu0 0.0
    %5915 = vmatmul.mubr.f32.gmra.mrb[0].mxu0 %v3924
    %v5916 = vpop.f32.mrb[0].mxu0
    %v5917 = vadd.f32 %v5692, %v5916
    %v5918 = vpop.f32.mrb[0].mxu0
    %5919 = vmatprep.mubr.f32.mxu0 0.0
    %5920 = vmatmul.mubr.f32.gmra.mrb[0].mxu0 %v3925
    %v5921 = vpop.f32.mrb[0].mxu0
    %v5922 = vadd.f32 %v5697, %v5921
    %v5923 = vpop.f32.mrb[0].mxu0
    %5924 = vmatprep.mubr.f32.mxu0 0.0
    %5925 = vmatmul.mubr.f32.gmra.mrb[0].mxu0 %v3926
    %v5926 = vpop.f32.mrb[0].mxu0
    %v5927 = vadd.f32 %v5702, %v5926
    %v5928 = vpop.f32.mrb[0].mxu0
    %5929 = vmatprep.mubr.f32.mxu0 0.0
    %5930 = vmatmul.mubr.f32.gmra.mrb[0].mxu0 %v3927
    %v5931 = vpop.f32.mrb[0].mxu0
    %v5932 = vadd.f32 %v5707, %v5931
    %v5933 = vpop.f32.mrb[0].mxu0
    %5934 = vmatprep.mubr.f32.mxu0 0.0
    %5935 = vmatmul.mubr.f32.gmra.mrb[0].mxu0 %v3928
    %v5936 = vpop.f32.mrb[0].mxu0
    %v5937 = vadd.f32 %v5712, %v5936
    %v5938 = vpop.f32.mrb[0].mxu0
    %5939 = vmatprep.mubr.f32.mxu0 0.0
    %5940 = vmatmul.mubr.f32.gmra.mrb[0].mxu0 %v3929
    %v5941 = vpop.f32.mrb[0].mxu0
    %v5942 = vadd.f32 %v5717, %v5941
    %v5943 = vpop.f32.mrb[0].mxu0
    %5944 = vmatprep.mubr.f32.mxu0 0.0
    %5945 = vmatmul.mubr.f32.gmra.mrb[0].mxu0 %v3930
    %v5946 = vpop.f32.mrb[0].mxu0
    %v5947 = vadd.f32 %v5722, %v5946
    %v5948 = vpop.f32.mrb[0].mxu0
    %5949 = vmatprep.mubr.f32.mxu0 0.0
    %5950 = vmatmul.mubr.f32.gmra.mrb[0].mxu0 %v3931
    %v5951 = vpop.f32.mrb[0].mxu0
    %v5952 = vadd.f32 %v5727, %v5951
    %v5953 = vpop.f32.mrb[0].mxu0
    %5954 = vmatprep.mubr.f32.mxu0 0.0
    %5955 = vmatmul.mubr.f32.gmra.mrb[0].mxu0 %v3932
    %v5956 = vpop.f32.mrb[0].mxu0
    %v5957 = vadd.f32 %v5732, %v5956
    %v5958 = vpop.f32.mrb[0].mxu0
    %5959 = vmatprep.mubr.f32.mxu0 0.0
    %5960 = vmatmul.mubr.f32.gmra.mrb[0].mxu0 %v3933
    %v5961 = vpop.f32.mrb[0].mxu0
    %v5962 = vadd.f32 %v5737, %v5961
    %v5963 = vpop.f32.mrb[0].mxu0
    %5964 = vmatprep.mubr.f32.mxu0 0.0
    %5965 = vmatmul.mubr.f32.gmra.mrb[0].mxu0 %v3934
    %v5966 = vpop.f32.mrb[0].mxu0
    %v5967 = vadd.f32 %v5742, %v5966
    %v5968 = vpop.f32.mrb[0].mxu0
    %5969 = vmatprep.mubr.f32.mxu0 0.0
    %5970 = vmatmul.mubr.f32.gmra.mrb[0].mxu0 %v3935
    %v5971 = vpop.f32.mrb[0].mxu0
    %v5972 = vadd.f32 %v5747, %v5971
    %v5973 = vpop.f32.mrb[0].mxu0
    %5974 = vmatprep.mubr.f32.mxu0 0.0
    %5975 = vmatmul.mubr.f32.gmra.mrb[0].mxu0 %v3936
    %v5976 = vpop.f32.mrb[0].mxu0
    %v5977 = vadd.f32 %v5752, %v5976
    %v5978 = vpop.f32.mrb[0].mxu0
    %5979 = vmatprep.mubr.f32.mxu0 0.0
    %5980 = vmatmul.mubr.f32.gmra.mrb[0].mxu0 %v3937
    %v5981 = vpop.f32.mrb[0].mxu0
    %v5982 = vadd.f32 %v5757, %v5981
    %v5983 = vpop.f32.mrb[0].mxu0
    %5984 = vmatprep.mubr.f32.mxu0 0.0
    %5985 = vmatmul.mubr.f32.gmra.mrb[0].mxu0 %v3938
    %v5986 = vpop.f32.mrb[0].mxu0
    %v5987 = vadd.f32 %v5762, %v5986
    %v5988 = vpop.f32.mrb[0].mxu0
    %5989 = vmatprep.mubr.f32.mxu0 0.0
    %5990 = vmatmul.mubr.f32.gmra.mrb[0].mxu0 %v3939
    %v5991 = vpop.f32.mrb[0].mxu0
    %v5992 = vadd.f32 %v5767, %v5991
    %v5993 = vpop.f32.mrb[0].mxu0
    %5994 = vmatprep.mubr.f32.mxu0 0.0
    %5995 = vmatmul.mubr.f32.gmra.mrb[0].mxu0 %v3940
    %v5996 = vpop.f32.mrb[0].mxu0
    %v5997 = vadd.f32 %v5772, %v5996
    %v5998 = vpop.f32.mrb[0].mxu0
    %5999 = vmatprep.mubr.f32.mxu0 0.0
    %6000 = vmatmul.mubr.f32.gmra.mrb[0].mxu0 %v3941
    %v6001 = vpop.f32.mrb[0].mxu0
    %v6002 = vadd.f32 %v5777, %v6001
    %v6003 = vpop.f32.mrb[0].mxu0
    %6004 = vmatprep.mubr.f32.mxu0 0.0
    %6005 = vmatmul.mubr.f32.gmra.mrb[0].mxu0 %v3942
    %v6006 = vpop.f32.mrb[0].mxu0
    %v6007 = vadd.f32 %v5782, %v6006
    %v6008 = vpop.f32.mrb[0].mxu0
    %6009 = vmatprep.mubr.f32.mxu0 0.0
    %6010 = vmatmul.mubr.f32.gmra.mrb[0].mxu0 %v3943
    %v6011 = vpop.f32.mrb[0].mxu0
    %v6012 = vadd.f32 %v5787, %v6011
    %v6013 = vpop.f32.mrb[0].mxu0
    %6014 = vmatprep.mubr.f32.mxu0 0.0
    %6015 = vmatmul.mubr.f32.gmra.mrb[0].mxu0 %v3944
    %v6016 = vpop.f32.mrb[0].mxu0
    %v6017 = vadd.f32 %v5792, %v6016
    %v6018 = vpop.f32.mrb[0].mxu0
    %6019 = vmatprep.mubr.f32.mxu0 0.0
    %6020 = vmatmul.mubr.f32.gmra.mrb[0].mxu0 %v3945
    %v6021 = vpop.f32.mrb[0].mxu0
    %v6022 = vadd.f32 %v5797, %v6021
    %v6023 = vpop.f32.mrb[0].mxu0
    %6024 = vmatprep.mubr.f32.mxu0 0.0
    %6025 = vmatmul.mubr.f32.gmra.mrb[0].mxu0 %v3946
    %v6026 = vpop.f32.mrb[0].mxu0
    %v6027 = vadd.f32 %v5802, %v6026
    %v6028 = vpop.f32.mrb[0].mxu0
    %6029 = vmatprep.mubr.f32.mxu0 0.0
    %6030 = vmatmul.mubr.f32.gmra.mrb[0].mxu0 %v3947
    %v6031 = vpop.f32.mrb[0].mxu0
    %v6032 = vadd.f32 %v5807, %v6031
    %v6033 = vpop.f32.mrb[0].mxu0
    %6034 = vmatprep.mubr.f32.mxu0 0.0
    %6035 = vmatmul.mubr.f32.gmra.mrb[0].mxu0 %v3948
    %v6036 = vpop.f32.mrb[0].mxu0
    %v6037 = vadd.f32 %v5812, %v6036
    %v6038 = vpop.f32.mrb[0].mxu0
    %6039 = vmatprep.mubr.f32.mxu0 0.0
    %6040 = vmatmul.mubr.f32.gmra.mrb[0].mxu0 %v3949
    %v6041 = vpop.f32.mrb[0].mxu0
    %v6042 = vadd.f32 %v5817, %v6041
    %v6043 = vpop.f32.mrb[0].mxu0
    %6044 = vmatprep.mubr.f32.mxu0 0.0
    %6045 = vmatmul.mubr.f32.gmra.mrb[0].mxu0 %v3950
    %v6046 = vpop.f32.mrb[0].mxu0
    %v6047 = vadd.f32 %v5822, %v6046
    %v6048 = vpop.f32.mrb[0].mxu0
    %6049 = vmatprep.mubr.f32.mxu0 0.0
    %6050 = vmatmul.mubr.f32.gmra.mrb[0].mxu0 %v3951
    %v6051 = vpop.f32.mrb[0].mxu0
    %v6052 = vadd.f32 %v5827, %v6051
    %v6053 = vpop.f32.mrb[0].mxu0
    %6054 = vmatprep.mubr.f32.mxu0 0.0
    %6055 = vmatmul.mubr.f32.gmra.mrb[0].mxu0 %v3952
    %v6056 = vpop.f32.mrb[0].mxu0
    %v6057 = vadd.f32 %v5832, %v6056
    %v6058 = vpop.f32.mrb[0].mxu0
    %6059 = vdwg.mxu0
    %6060 = vrot.lane.b32.xlu0 %v5530, 126
    %v6061 = vpop.permute.xlu0 %6060
    %6062 = vrot.lane.b32.xlu0 %v5531, 126
    %v6063 = vpop.permute.xlu0 %6062
    %6064 = vrot.lane.b32.xlu0 %v5532, 126
    %v6065 = vpop.permute.xlu0 %6064
    %6066 = vrot.lane.b32.xlu0 %v5533, 126
    %v6067 = vpop.permute.xlu0 %6066
    %6068 = vrot.lane.b32.xlu0 %v5534, 126
    %v6069 = vpop.permute.xlu0 %6068
    %6070 = vrot.lane.b32.xlu0 %v5535, 126
    %v6071 = vpop.permute.xlu0 %6070
    %6072 = vrot.lane.b32.xlu0 %v5536, 126
    %v6073 = vpop.permute.xlu0 %6072
    %6074 = vrot.lane.b32.xlu0 %v5537, 126
    %v6075 = vpop.permute.xlu0 %6074
    %6076 = vrot.lane.b32.xlu0 %v5538, 126
    %v6077 = vpop.permute.xlu0 %6076
    %6078 = vrot.lane.b32.xlu0 %v5539, 126
    %v6079 = vpop.permute.xlu0 %6078
    %6080 = vrot.lane.b32.xlu0 %v5540, 126
    %v6081 = vpop.permute.xlu0 %6080
    %6082 = vrot.lane.b32.xlu0 %v5541, 126
    %v6083 = vpop.permute.xlu0 %6082
    %6084 = vrot.lane.b32.xlu0 %v5542, 126
    %v6085 = vpop.permute.xlu0 %6084
    %6086 = vrot.lane.b32.xlu0 %v5543, 126
    %v6087 = vpop.permute.xlu0 %6086
    %6088 = vrot.lane.b32.xlu0 %v5544, 126
    %v6089 = vpop.permute.xlu0 %6088
    %6090 = vrot.lane.b32.xlu0 %v5545, 126
    %v6091 = vpop.permute.xlu0 %6090
    %6108 = vmatprep.subr.mxu0 0.0
    %6109 = vmatpush1.msra.mxu0 %v6061
    %6110 = vmatprep.subr.mxu0 0.0
    %6111 = vmatpush1.msra.mxu0 %v6063
    %6112 = vmatprep.subr.mxu0 0.0
    %6113 = vmatpush1.msra.mxu0 %v6065
    %6114 = vmatprep.subr.mxu0 0.0
    %6115 = vmatpush1.msra.mxu0 %v6067
    %6116 = vmatprep.subr.mxu0 0.0
    %6117 = vmatpush1.msra.mxu0 %v6069
    %6118 = vmatprep.subr.mxu0 0.0
    %6119 = vmatpush1.msra.mxu0 %v6071
    %6120 = vmatprep.subr.mxu0 0.0
    %6121 = vmatpush1.msra.mxu0 %v6073
    %6122 = vmatprep.subr.mxu0 0.0
    %6123 = vmatpush1.msra.mxu0 %v6075
    %6124 = vmatprep.subr.mxu0 0.0
    %6125 = vmatpush1.msra.mxu0 %v6077
    %6126 = vmatprep.subr.mxu0 0.0
    %6127 = vmatpush1.msra.mxu0 %v6079
    %6128 = vmatprep.subr.mxu0 0.0
    %6129 = vmatpush1.msra.mxu0 %v6081
    %6130 = vmatprep.subr.mxu0 0.0
    %6131 = vmatpush1.msra.mxu0 %v6083
    %6132 = vmatprep.subr.mxu0 0.0
    %6133 = vmatpush1.msra.mxu0 %v6085
    %6134 = vmatprep.subr.mxu0 0.0
    %6135 = vmatpush1.msra.mxu0 %v6087
    %6136 = vmatprep.subr.mxu0 0.0
    %6137 = vmatpush1.msra.mxu0 %v6089
    %6138 = vmatprep.subr.mxu0 0.0
    %6139 = vmatpush1.msra.mxu0 %v6091
    %6140 = vmatprep.subr.mxu0 0.0
    %6141 = vmatpush1.msra.mxu0 0.0
    %6142 = vmatprep.subr.mxu0 0.0
    %6143 = vmatpush1.msra.mxu0 0.0
    %6144 = vmatprep.subr.mxu0 0.0
    %6145 = vmatpush1.msra.mxu0 0.0
    %6146 = vmatprep.subr.mxu0 0.0
    %6147 = vmatpush1.msra.mxu0 0.0
    %6148 = vmatprep.subr.mxu0 0.0
    %6149 = vmatpush1.msra.mxu0 0.0
    %6150 = vmatprep.subr.mxu0 0.0
    %6151 = vmatpush1.msra.mxu0 0.0
    %6152 = vmatprep.subr.mxu0 0.0
    %6153 = vmatpush1.msra.mxu0 0.0
    %6154 = vmatprep.subr.mxu0 0.0
    %6155 = vmatpush1.msra.mxu0 0.0
    %6156 = vmatprep.subr.mxu0 0.0
    %6157 = vmatpush1.msra.mxu0 0.0
    %6158 = vmatprep.subr.mxu0 0.0
    %6159 = vmatpush1.msra.mxu0 0.0
    %6160 = vmatprep.subr.mxu0 0.0
    %6161 = vmatpush1.msra.mxu0 0.0
    %6162 = vmatprep.subr.mxu0 0.0
    %6163 = vmatpush1.msra.mxu0 0.0
    %6164 = vmatprep.subr.mxu0 0.0
    %6165 = vmatpush1.msra.mxu0 0.0
    %6166 = vmatprep.subr.mxu0 0.0
    %6167 = vmatpush1.msra.mxu0 0.0
    %6168 = vmatprep.subr.mxu0 0.0
    %6169 = vmatpush1.msra.mxu0 0.0
    %6170 = vmatprep.subr.mxu0 0.0
    %6171 = vmatpush1.msra.mxu0 0.0
    %6172 = vmatprep.mubr.f32.mxu0 0.0
    %6173 = vmatmul.mubr.f32.gmra.mrb[0].mxu0 %v3987
    %v6174 = vpop.f32.mrb[0].mxu0
    %v6175 = vadd.f32 0.0, %v6174
    %v6176 = vpop.f32.mrb[0].mxu0
    %6177 = vmatprep.mubr.f32.mxu0 0.0
    %6178 = vmatmul.mubr.f32.gmra.mrb[0].mxu0 %v3988
    %v6179 = vpop.f32.mrb[0].mxu0
    %v6180 = vadd.f32 0.0, %v6179
    %v6181 = vpop.f32.mrb[0].mxu0
    %6182 = vmatprep.mubr.f32.mxu0 0.0
    %6183 = vmatmul.mubr.f32.gmra.mrb[0].mxu0 %v3989
    %v6184 = vpop.f32.mrb[0].mxu0
    %v6185 = vadd.f32 0.0, %v6184
    %v6186 = vpop.f32.mrb[0].mxu0
    %6187 = vmatprep.mubr.f32.mxu0 0.0
    %6188 = vmatmul.mubr.f32.gmra.mrb[0].mxu0 %v3990
    %v6189 = vpop.f32.mrb[0].mxu0
    %v6190 = vadd.f32 0.0, %v6189
    %v6191 = vpop.f32.mrb[0].mxu0
    %6192 = vmatprep.mubr.f32.mxu0 0.0
    %6193 = vmatmul.mubr.f32.gmra.mrb[0].mxu0 %v3991
    %v6194 = vpop.f32.mrb[0].mxu0
    %v6195 = vadd.f32 0.0, %v6194
    %v6196 = vpop.f32.mrb[0].mxu0
    %6197 = vmatprep.mubr.f32.mxu0 0.0
    %6198 = vmatmul.mubr.f32.gmra.mrb[0].mxu0 %v3992
    %v6199 = vpop.f32.mrb[0].mxu0
    %v6200 = vadd.f32 0.0, %v6199
    %v6201 = vpop.f32.mrb[0].mxu0
    %6202 = vmatprep.mubr.f32.mxu0 0.0
    %6203 = vmatmul.mubr.f32.gmra.mrb[0].mxu0 %v3993
    %v6204 = vpop.f32.mrb[0].mxu0
    %v6205 = vadd.f32 0.0, %v6204
    %v6206 = vpop.f32.mrb[0].mxu0
    %6207 = vmatprep.mubr.f32.mxu0 0.0
    %6208 = vmatmul.mubr.f32.gmra.mrb[0].mxu0 %v3994
    %v6209 = vpop.f32.mrb[0].mxu0
    %v6210 = vadd.f32 0.0, %v6209
    %v6211 = vpop.f32.mrb[0].mxu0
    %6212 = vmatprep.mubr.f32.mxu0 0.0
    %6213 = vmatmul.mubr.f32.gmra.mrb[0].mxu0 %v3995
    %v6214 = vpop.f32.mrb[0].mxu0
    %v6215 = vadd.f32 0.0, %v6214
    %v6216 = vpop.f32.mrb[0].mxu0
    %6217 = vmatprep.mubr.f32.mxu0 0.0
    %6218 = vmatmul.mubr.f32.gmra.mrb[0].mxu0 %v3996
    %v6219 = vpop.f32.mrb[0].mxu0
    %v6220 = vadd.f32 0.0, %v6219
    %v6221 = vpop.f32.mrb[0].mxu0
    %6222 = vmatprep.mubr.f32.mxu0 0.0
    %6223 = vmatmul.mubr.f32.gmra.mrb[0].mxu0 %v3997
    %v6224 = vpop.f32.mrb[0].mxu0
    %v6225 = vadd.f32 0.0, %v6224
    %v6226 = vpop.f32.mrb[0].mxu0
    %6227 = vmatprep.mubr.f32.mxu0 0.0
    %6228 = vmatmul.mubr.f32.gmra.mrb[0].mxu0 %v3998
    %v6229 = vpop.f32.mrb[0].mxu0
    %v6230 = vadd.f32 0.0, %v6229
    %v6231 = vpop.f32.mrb[0].mxu0
    %6232 = vmatprep.mubr.f32.mxu0 0.0
    %6233 = vmatmul.mubr.f32.gmra.mrb[0].mxu0 %v3999
    %v6234 = vpop.f32.mrb[0].mxu0
    %v6235 = vadd.f32 0.0, %v6234
    %v6236 = vpop.f32.mrb[0].mxu0
    %6237 = vmatprep.mubr.f32.mxu0 0.0
    %6238 = vmatmul.mubr.f32.gmra.mrb[0].mxu0 %v4000
    %v6239 = vpop.f32.mrb[0].mxu0
    %v6240 = vadd.f32 0.0, %v6239
    %v6241 = vpop.f32.mrb[0].mxu0
    %6242 = vmatprep.mubr.f32.mxu0 0.0
    %6243 = vmatmul.mubr.f32.gmra.mrb[0].mxu0 %v4001
    %v6244 = vpop.f32.mrb[0].mxu0
    %v6245 = vadd.f32 0.0, %v6244
    %v6246 = vpop.f32.mrb[0].mxu0
    %6247 = vmatprep.mubr.f32.mxu0 0.0
    %6248 = vmatmul.mubr.f32.gmra.mrb[0].mxu0 %v4002
    %v6249 = vpop.f32.mrb[0].mxu0
    %v6250 = vadd.f32 0.0, %v6249
    %v6251 = vpop.f32.mrb[0].mxu0
    %6252 = vmatprep.mubr.f32.mxu0 0.0
    %6253 = vmatmul.mubr.f32.gmra.mrb[0].mxu0 %v4003
    %v6254 = vpop.f32.mrb[0].mxu0
    %v6255 = vadd.f32 0.0, %v6254
    %v6256 = vpop.f32.mrb[0].mxu0
    %6257 = vmatprep.mubr.f32.mxu0 0.0
    %6258 = vmatmul.mubr.f32.gmra.mrb[0].mxu0 %v4004
    %v6259 = vpop.f32.mrb[0].mxu0
    %v6260 = vadd.f32 0.0, %v6259
    %v6261 = vpop.f32.mrb[0].mxu0
    %6262 = vmatprep.mubr.f32.mxu0 0.0
    %6263 = vmatmul.mubr.f32.gmra.mrb[0].mxu0 %v4005
    %v6264 = vpop.f32.mrb[0].mxu0
    %v6265 = vadd.f32 0.0, %v6264
    %v6266 = vpop.f32.mrb[0].mxu0
    %6267 = vmatprep.mubr.f32.mxu0 0.0
    %6268 = vmatmul.mubr.f32.gmra.mrb[0].mxu0 %v4006
    %v6269 = vpop.f32.mrb[0].mxu0
    %v6270 = vadd.f32 0.0, %v6269
    %v6271 = vpop.f32.mrb[0].mxu0
    %6272 = vmatprep.mubr.f32.mxu0 0.0
    %6273 = vmatmul.mubr.f32.gmra.mrb[0].mxu0 %v4007
    %v6274 = vpop.f32.mrb[0].mxu0
    %v6275 = vadd.f32 0.0, %v6274
    %v6276 = vpop.f32.mrb[0].mxu0
    %6277 = vmatprep.mubr.f32.mxu0 0.0
    %6278 = vmatmul.mubr.f32.gmra.mrb[0].mxu0 %v4008
    %v6279 = vpop.f32.mrb[0].mxu0
    %v6280 = vadd.f32 0.0, %v6279
    %v6281 = vpop.f32.mrb[0].mxu0
    %6282 = vmatprep.mubr.f32.mxu0 0.0
    %6283 = vmatmul.mubr.f32.gmra.mrb[0].mxu0 %v4009
    %v6284 = vpop.f32.mrb[0].mxu0
    %v6285 = vadd.f32 0.0, %v6284
    %v6286 = vpop.f32.mrb[0].mxu0
    %6287 = vmatprep.mubr.f32.mxu0 0.0
    %6288 = vmatmul.mubr.f32.gmra.mrb[0].mxu0 %v4010
    %v6289 = vpop.f32.mrb[0].mxu0
    %v6290 = vadd.f32 0.0, %v6289
    %v6291 = vpop.f32.mrb[0].mxu0
    %6292 = vmatprep.mubr.f32.mxu0 0.0
    %6293 = vmatmul.mubr.f32.gmra.mrb[0].mxu0 %v4011
    %v6294 = vpop.f32.mrb[0].mxu0
    %v6295 = vadd.f32 0.0, %v6294
    %v6296 = vpop.f32.mrb[0].mxu0
    %6297 = vmatprep.mubr.f32.mxu0 0.0
    %6298 = vmatmul.mubr.f32.gmra.mrb[0].mxu0 %v4012
    %v6299 = vpop.f32.mrb[0].mxu0
    %v6300 = vadd.f32 0.0, %v6299
    %v6301 = vpop.f32.mrb[0].mxu0
    %6302 = vmatprep.mubr.f32.mxu0 0.0
    %6303 = vmatmul.mubr.f32.gmra.mrb[0].mxu0 %v4013
    %v6304 = vpop.f32.mrb[0].mxu0
    %v6305 = vadd.f32 0.0, %v6304
    %v6306 = vpop.f32.mrb[0].mxu0
    %6307 = vmatprep.mubr.f32.mxu0 0.0
    %6308 = vmatmul.mubr.f32.gmra.mrb[0].mxu0 %v4014
    %v6309 = vpop.f32.mrb[0].mxu0
    %v6310 = vadd.f32 0.0, %v6309
    %v6311 = vpop.f32.mrb[0].mxu0
    %6312 = vmatprep.mubr.f32.mxu0 0.0
    %6313 = vmatmul.mubr.f32.gmra.mrb[0].mxu0 %v4015
    %v6314 = vpop.f32.mrb[0].mxu0
    %v6315 = vadd.f32 0.0, %v6314
    %v6316 = vpop.f32.mrb[0].mxu0
    %6317 = vmatprep.mubr.f32.mxu0 0.0
    %6318 = vmatmul.mubr.f32.gmra.mrb[0].mxu0 %v4016
    %v6319 = vpop.f32.mrb[0].mxu0
    %v6320 = vadd.f32 0.0, %v6319
    %v6321 = vpop.f32.mrb[0].mxu0
    %6322 = vmatprep.mubr.f32.mxu0 0.0
    %6323 = vmatmul.mubr.f32.gmra.mrb[0].mxu0 %v4017
    %v6324 = vpop.f32.mrb[0].mxu0
    %v6325 = vadd.f32 0.0, %v6324
    %v6326 = vpop.f32.mrb[0].mxu0
    %6327 = vmatprep.mubr.f32.mxu0 0.0
    %6328 = vmatmul.mubr.f32.gmra.mrb[0].mxu0 %v4018
    %v6329 = vpop.f32.mrb[0].mxu0
    %v6330 = vadd.f32 0.0, %v6329
    %v6331 = vpop.f32.mrb[0].mxu0
    %6332 = vdwg.mxu0
    %v6333 = vadd.f32 %v5902, %v6175
    %v6334 = vadd.f32 %v5907, %v6180
    %v6335 = vadd.f32 %v5912, %v6185
    %v6336 = vadd.f32 %v5917, %v6190
    %v6337 = vadd.f32 %v5922, %v6195
    %v6338 = vadd.f32 %v5927, %v6200
    %v6339 = vadd.f32 %v5932, %v6205
    %v6340 = vadd.f32 %v5937, %v6210
    %v6341 = vadd.f32 %v5942, %v6215
    %v6342 = vadd.f32 %v5947, %v6220
    %v6343 = vadd.f32 %v5952, %v6225
    %v6344 = vadd.f32 %v5957, %v6230
    %v6345 = vadd.f32 %v5962, %v6235
    %v6346 = vadd.f32 %v5967, %v6240
    %v6347 = vadd.f32 %v5972, %v6245
    %v6348 = vadd.f32 %v5977, %v6250
    %v6349 = vadd.f32 %v5982, %v6255
    %v6350 = vadd.f32 %v5987, %v6260
    %v6351 = vadd.f32 %v5992, %v6265
    %v6352 = vadd.f32 %v5997, %v6270
    %v6353 = vadd.f32 %v6002, %v6275
    %v6354 = vadd.f32 %v6007, %v6280
    %v6355 = vadd.f32 %v6012, %v6285
    %v6356 = vadd.f32 %v6017, %v6290
    %v6357 = vadd.f32 %v6022, %v6295
    %v6358 = vadd.f32 %v6027, %v6300
    %v6359 = vadd.f32 %v6032, %v6305
    %v6360 = vadd.f32 %v6037, %v6310
    %v6361 = vadd.f32 %v6042, %v6315
    %v6362 = vadd.f32 %v6047, %v6320
    %v6363 = vadd.f32 %v6052, %v6325
    %v6364 = vadd.f32 %v6057, %v6330
    %6365 = vrot.lane.b32.xlu0 %v5530, 125
    %v6366 = vpop.permute.xlu0 %6365
    %6367 = vrot.lane.b32.xlu0 %v5531, 125
    %v6368 = vpop.permute.xlu0 %6367
    %6369 = vrot.lane.b32.xlu0 %v5532, 125
    %v6370 = vpop.permute.xlu0 %6369
    %6371 = vrot.lane.b32.xlu0 %v5533, 125
    %v6372 = vpop.permute.xlu0 %6371
    %6373 = vrot.lane.b32.xlu0 %v5534, 125
    %v6374 = vpop.permute.xlu0 %6373
    %6375 = vrot.lane.b32.xlu0 %v5535, 125
    %v6376 = vpop.permute.xlu0 %6375
    %6377 = vrot.lane.b32.xlu0 %v5536, 125
    %v6378 = vpop.permute.xlu0 %6377
    %6379 = vrot.lane.b32.xlu0 %v5537, 125
    %v6380 = vpop.permute.xlu0 %6379
    %6381 = vrot.lane.b32.xlu0 %v5538, 125
    %v6382 = vpop.permute.xlu0 %6381
    %6383 = vrot.lane.b32.xlu0 %v5539, 125
    %v6384 = vpop.permute.xlu0 %6383
    %6385 = vrot.lane.b32.xlu0 %v5540, 125
    %v6386 = vpop.permute.xlu0 %6385
    %6387 = vrot.lane.b32.xlu0 %v5541, 125
    %v6388 = vpop.permute.xlu0 %6387
    %6389 = vrot.lane.b32.xlu0 %v5542, 125
    %v6390 = vpop.permute.xlu0 %6389
    %6391 = vrot.lane.b32.xlu0 %v5543, 125
    %v6392 = vpop.permute.xlu0 %6391
    %6393 = vrot.lane.b32.xlu0 %v5544, 125
    %v6394 = vpop.permute.xlu0 %6393
    %6395 = vrot.lane.b32.xlu0 %v5545, 125
    %v6396 = vpop.permute.xlu0 %6395
    %6413 = vmatprep.subr.mxu0 0.0
    %6414 = vmatpush1.msra.mxu0 %v6366
    %6415 = vmatprep.subr.mxu0 0.0
    %6416 = vmatpush1.msra.mxu0 %v6368
    %6417 = vmatprep.subr.mxu0 0.0
    %6418 = vmatpush1.msra.mxu0 %v6370
    %6419 = vmatprep.subr.mxu0 0.0
    %6420 = vmatpush1.msra.mxu0 %v6372
    %6421 = vmatprep.subr.mxu0 0.0
    %6422 = vmatpush1.msra.mxu0 %v6374
    %6423 = vmatprep.subr.mxu0 0.0
    %6424 = vmatpush1.msra.mxu0 %v6376
    %6425 = vmatprep.subr.mxu0 0.0
    %6426 = vmatpush1.msra.mxu0 %v6378
    %6427 = vmatprep.subr.mxu0 0.0
    %6428 = vmatpush1.msra.mxu0 %v6380
    %6429 = vmatprep.subr.mxu0 0.0
    %6430 = vmatpush1.msra.mxu0 %v6382
    %6431 = vmatprep.subr.mxu0 0.0
    %6432 = vmatpush1.msra.mxu0 %v6384
    %6433 = vmatprep.subr.mxu0 0.0
    %6434 = vmatpush1.msra.mxu0 %v6386
    %6435 = vmatprep.subr.mxu0 0.0
    %6436 = vmatpush1.msra.mxu0 %v6388
    %6437 = vmatprep.subr.mxu0 0.0
    %6438 = vmatpush1.msra.mxu0 %v6390
    %6439 = vmatprep.subr.mxu0 0.0
    %6440 = vmatpush1.msra.mxu0 %v6392
    %6441 = vmatprep.subr.mxu0 0.0
    %6442 = vmatpush1.msra.mxu0 %v6394
    %6443 = vmatprep.subr.mxu0 0.0
    %6444 = vmatpush1.msra.mxu0 %v6396
    %6445 = vmatprep.subr.mxu0 0.0
    %6446 = vmatpush1.msra.mxu0 0.0
    %6447 = vmatprep.subr.mxu0 0.0
    %6448 = vmatpush1.msra.mxu0 0.0
    %6449 = vmatprep.subr.mxu0 0.0
    %6450 = vmatpush1.msra.mxu0 0.0
    %6451 = vmatprep.subr.mxu0 0.0
    %6452 = vmatpush1.msra.mxu0 0.0
    %6453 = vmatprep.subr.mxu0 0.0
    %6454 = vmatpush1.msra.mxu0 0.0
    %6455 = vmatprep.subr.mxu0 0.0
    %6456 = vmatpush1.msra.mxu0 0.0
    %6457 = vmatprep.subr.mxu0 0.0
    %6458 = vmatpush1.msra.mxu0 0.0
    %6459 = vmatprep.subr.mxu0 0.0
    %6460 = vmatpush1.msra.mxu0 0.0
    %6461 = vmatprep.subr.mxu0 0.0
    %6462 = vmatpush1.msra.mxu0 0.0
    %6463 = vmatprep.subr.mxu0 0.0
    %6464 = vmatpush1.msra.mxu0 0.0
    %6465 = vmatprep.subr.mxu0 0.0
    %6466 = vmatpush1.msra.mxu0 0.0
    %6467 = vmatprep.subr.mxu0 0.0
    %6468 = vmatpush1.msra.mxu0 0.0
    %6469 = vmatprep.subr.mxu0 0.0
    %6470 = vmatpush1.msra.mxu0 0.0
    %6471 = vmatprep.subr.mxu0 0.0
    %6472 = vmatpush1.msra.mxu0 0.0
    %6473 = vmatprep.subr.mxu0 0.0
    %6474 = vmatpush1.msra.mxu0 0.0
    %6475 = vmatprep.subr.mxu0 0.0
    %6476 = vmatpush1.msra.mxu0 0.0
    %6477 = vmatprep.mubr.f32.mxu0 0.0
    %6478 = vmatmul.mubr.f32.gmra.mrb[0].mxu0 %v4020
    %v6479 = vpop.f32.mrb[0].mxu0
    %v6480 = vadd.f32 0.0, %v6479
    %v6481 = vpop.f32.mrb[0].mxu0
    %6482 = vmatprep.mubr.f32.mxu0 0.0
    %6483 = vmatmul.mubr.f32.gmra.mrb[0].mxu0 %v4021
    %v6484 = vpop.f32.mrb[0].mxu0
    %v6485 = vadd.f32 0.0, %v6484
    %v6486 = vpop.f32.mrb[0].mxu0
    %6487 = vmatprep.mubr.f32.mxu0 0.0
    %6488 = vmatmul.mubr.f32.gmra.mrb[0].mxu0 %v4022
    %v6489 = vpop.f32.mrb[0].mxu0
    %v6490 = vadd.f32 0.0, %v6489
    %v6491 = vpop.f32.mrb[0].mxu0
    %6492 = vmatprep.mubr.f32.mxu0 0.0
    %6493 = vmatmul.mubr.f32.gmra.mrb[0].mxu0 %v4023
    %v6494 = vpop.f32.mrb[0].mxu0
    %v6495 = vadd.f32 0.0, %v6494
    %v6496 = vpop.f32.mrb[0].mxu0
    %6497 = vmatprep.mubr.f32.mxu0 0.0
    %6498 = vmatmul.mubr.f32.gmra.mrb[0].mxu0 %v4024
    %v6499 = vpop.f32.mrb[0].mxu0
    %v6500 = vadd.f32 0.0, %v6499
    %v6501 = vpop.f32.mrb[0].mxu0
    %6502 = vmatprep.mubr.f32.mxu0 0.0
    %6503 = vmatmul.mubr.f32.gmra.mrb[0].mxu0 %v4025
    %v6504 = vpop.f32.mrb[0].mxu0
    %v6505 = vadd.f32 0.0, %v6504
    %v6506 = vpop.f32.mrb[0].mxu0
    %6507 = vmatprep.mubr.f32.mxu0 0.0
    %6508 = vmatmul.mubr.f32.gmra.mrb[0].mxu0 %v4026
    %v6509 = vpop.f32.mrb[0].mxu0
    %v6510 = vadd.f32 0.0, %v6509
    %v6511 = vpop.f32.mrb[0].mxu0
    %6512 = vmatprep.mubr.f32.mxu0 0.0
    %6513 = vmatmul.mubr.f32.gmra.mrb[0].mxu0 %v4027
    %v6514 = vpop.f32.mrb[0].mxu0
    %v6515 = vadd.f32 0.0, %v6514
    %v6516 = vpop.f32.mrb[0].mxu0
    %6517 = vmatprep.mubr.f32.mxu0 0.0
    %6518 = vmatmul.mubr.f32.gmra.mrb[0].mxu0 %v4028
    %v6519 = vpop.f32.mrb[0].mxu0
    %v6520 = vadd.f32 0.0, %v6519
    %v6521 = vpop.f32.mrb[0].mxu0
    %6522 = vmatprep.mubr.f32.mxu0 0.0
    %6523 = vmatmul.mubr.f32.gmra.mrb[0].mxu0 %v4029
    %v6524 = vpop.f32.mrb[0].mxu0
    %v6525 = vadd.f32 0.0, %v6524
    %v6526 = vpop.f32.mrb[0].mxu0
    %6527 = vmatprep.mubr.f32.mxu0 0.0
    %6528 = vmatmul.mubr.f32.gmra.mrb[0].mxu0 %v4030
    %v6529 = vpop.f32.mrb[0].mxu0
    %v6530 = vadd.f32 0.0, %v6529
    %v6531 = vpop.f32.mrb[0].mxu0
    %6532 = vmatprep.mubr.f32.mxu0 0.0
    %6533 = vmatmul.mubr.f32.gmra.mrb[0].mxu0 %v4031
    %v6534 = vpop.f32.mrb[0].mxu0
    %v6535 = vadd.f32 0.0, %v6534
    %v6536 = vpop.f32.mrb[0].mxu0
    %6537 = vmatprep.mubr.f32.mxu0 0.0
    %6538 = vmatmul.mubr.f32.gmra.mrb[0].mxu0 %v4032
    %v6539 = vpop.f32.mrb[0].mxu0
    %v6540 = vadd.f32 0.0, %v6539
    %v6541 = vpop.f32.mrb[0].mxu0
    %6542 = vmatprep.mubr.f32.mxu0 0.0
    %6543 = vmatmul.mubr.f32.gmra.mrb[0].mxu0 %v4033
    %v6544 = vpop.f32.mrb[0].mxu0
    %v6545 = vadd.f32 0.0, %v6544
    %v6546 = vpop.f32.mrb[0].mxu0
    %6547 = vmatprep.mubr.f32.mxu0 0.0
    %6548 = vmatmul.mubr.f32.gmra.mrb[0].mxu0 %v4034
    %v6549 = vpop.f32.mrb[0].mxu0
    %v6550 = vadd.f32 0.0, %v6549
    %v6551 = vpop.f32.mrb[0].mxu0
    %6552 = vmatprep.mubr.f32.mxu0 0.0
    %6553 = vmatmul.mubr.f32.gmra.mrb[0].mxu0 %v4035
    %v6554 = vpop.f32.mrb[0].mxu0
    %v6555 = vadd.f32 0.0, %v6554
    %v6556 = vpop.f32.mrb[0].mxu0
    %6557 = vmatprep.mubr.f32.mxu0 0.0
    %6558 = vmatmul.mubr.f32.gmra.mrb[0].mxu0 %v4036
    %v6559 = vpop.f32.mrb[0].mxu0
    %v6560 = vadd.f32 0.0, %v6559
    %v6561 = vpop.f32.mrb[0].mxu0
    %6562 = vmatprep.mubr.f32.mxu0 0.0
    %6563 = vmatmul.mubr.f32.gmra.mrb[0].mxu0 %v4037
    %v6564 = vpop.f32.mrb[0].mxu0
    %v6565 = vadd.f32 0.0, %v6564
    %v6566 = vpop.f32.mrb[0].mxu0
    %6567 = vmatprep.mubr.f32.mxu0 0.0
    %6568 = vmatmul.mubr.f32.gmra.mrb[0].mxu0 %v4038
    %v6569 = vpop.f32.mrb[0].mxu0
    %v6570 = vadd.f32 0.0, %v6569
    %v6571 = vpop.f32.mrb[0].mxu0
    %6572 = vmatprep.mubr.f32.mxu0 0.0
    %6573 = vmatmul.mubr.f32.gmra.mrb[0].mxu0 %v4039
    %v6574 = vpop.f32.mrb[0].mxu0
    %v6575 = vadd.f32 0.0, %v6574
    %v6576 = vpop.f32.mrb[0].mxu0
    %6577 = vmatprep.mubr.f32.mxu0 0.0
    %6578 = vmatmul.mubr.f32.gmra.mrb[0].mxu0 %v4040
    %v6579 = vpop.f32.mrb[0].mxu0
    %v6580 = vadd.f32 0.0, %v6579
    %v6581 = vpop.f32.mrb[0].mxu0
    %6582 = vmatprep.mubr.f32.mxu0 0.0
    %6583 = vmatmul.mubr.f32.gmra.mrb[0].mxu0 %v4041
    %v6584 = vpop.f32.mrb[0].mxu0
    %v6585 = vadd.f32 0.0, %v6584
    %v6586 = vpop.f32.mrb[0].mxu0
    %6587 = vmatprep.mubr.f32.mxu0 0.0
    %6588 = vmatmul.mubr.f32.gmra.mrb[0].mxu0 %v4042
    %v6589 = vpop.f32.mrb[0].mxu0
    %v6590 = vadd.f32 0.0, %v6589
    %v6591 = vpop.f32.mrb[0].mxu0
    %6592 = vmatprep.mubr.f32.mxu0 0.0
    %6593 = vmatmul.mubr.f32.gmra.mrb[0].mxu0 %v4043
    %v6594 = vpop.f32.mrb[0].mxu0
    %v6595 = vadd.f32 0.0, %v6594
    %v6596 = vpop.f32.mrb[0].mxu0
    %6597 = vmatprep.mubr.f32.mxu0 0.0
    %6598 = vmatmul.mubr.f32.gmra.mrb[0].mxu0 %v4044
    %v6599 = vpop.f32.mrb[0].mxu0
    %v6600 = vadd.f32 0.0, %v6599
    %v6601 = vpop.f32.mrb[0].mxu0
    %6602 = vmatprep.mubr.f32.mxu0 0.0
    %6603 = vmatmul.mubr.f32.gmra.mrb[0].mxu0 %v4045
    %v6604 = vpop.f32.mrb[0].mxu0
    %v6605 = vadd.f32 0.0, %v6604
    %v6606 = vpop.f32.mrb[0].mxu0
    %6607 = vmatprep.mubr.f32.mxu0 0.0
    %6608 = vmatmul.mubr.f32.gmra.mrb[0].mxu0 %v4046
    %v6609 = vpop.f32.mrb[0].mxu0
    %v6610 = vadd.f32 0.0, %v6609
    %v6611 = vpop.f32.mrb[0].mxu0
    %6612 = vmatprep.mubr.f32.mxu0 0.0
    %6613 = vmatmul.mubr.f32.gmra.mrb[0].mxu0 %v4047
    %v6614 = vpop.f32.mrb[0].mxu0
    %v6615 = vadd.f32 0.0, %v6614
    %v6616 = vpop.f32.mrb[0].mxu0
    %6617 = vmatprep.mubr.f32.mxu0 0.0
    %6618 = vmatmul.mubr.f32.gmra.mrb[0].mxu0 %v4048
    %v6619 = vpop.f32.mrb[0].mxu0
    %v6620 = vadd.f32 0.0, %v6619
    %v6621 = vpop.f32.mrb[0].mxu0
    %6622 = vmatprep.mubr.f32.mxu0 0.0
    %6623 = vmatmul.mubr.f32.gmra.mrb[0].mxu0 %v4049
    %v6624 = vpop.f32.mrb[0].mxu0
    %v6625 = vadd.f32 0.0, %v6624
    %v6626 = vpop.f32.mrb[0].mxu0
    %6627 = vmatprep.mubr.f32.mxu0 0.0
    %6628 = vmatmul.mubr.f32.gmra.mrb[0].mxu0 %v4050
    %v6629 = vpop.f32.mrb[0].mxu0
    %v6630 = vadd.f32 0.0, %v6629
    %v6631 = vpop.f32.mrb[0].mxu0
    %6632 = vmatprep.mubr.f32.mxu0 0.0
    %6633 = vmatmul.mubr.f32.gmra.mrb[0].mxu0 %v4051
    %v6634 = vpop.f32.mrb[0].mxu0
    %v6635 = vadd.f32 0.0, %v6634
    %v6636 = vpop.f32.mrb[0].mxu0
    %6637 = vdwg.mxu0
    %v6638 = vadd.f32 %v6333, %v6480
    %v6639 = vadd.f32 %v6334, %v6485
    %v6640 = vadd.f32 %v6335, %v6490
    %v6641 = vadd.f32 %v6336, %v6495
    %v6642 = vadd.f32 %v6337, %v6500
    %v6643 = vadd.f32 %v6338, %v6505
    %v6644 = vadd.f32 %v6339, %v6510
    %v6645 = vadd.f32 %v6340, %v6515
    %v6646 = vadd.f32 %v6341, %v6520
    %v6647 = vadd.f32 %v6342, %v6525
    %v6648 = vadd.f32 %v6343, %v6530
    %v6649 = vadd.f32 %v6344, %v6535
    %v6650 = vadd.f32 %v6345, %v6540
    %v6651 = vadd.f32 %v6346, %v6545
    %v6652 = vadd.f32 %v6347, %v6550
    %v6653 = vadd.f32 %v6348, %v6555
    %v6654 = vadd.f32 %v6349, %v6560
    %v6655 = vadd.f32 %v6350, %v6565
    %v6656 = vadd.f32 %v6351, %v6570
    %v6657 = vadd.f32 %v6352, %v6575
    %v6658 = vadd.f32 %v6353, %v6580
    %v6659 = vadd.f32 %v6354, %v6585
    %v6660 = vadd.f32 %v6355, %v6590
    %v6661 = vadd.f32 %v6356, %v6595
    %v6662 = vadd.f32 %v6357, %v6600
    %v6663 = vadd.f32 %v6358, %v6605
    %v6664 = vadd.f32 %v6359, %v6610
    %v6665 = vadd.f32 %v6360, %v6615
    %v6666 = vadd.f32 %v6361, %v6620
    %v6667 = vadd.f32 %v6362, %v6625
    %v6668 = vadd.f32 %v6363, %v6630
    %v6669 = vadd.f32 %v6364, %v6635
    %6670 = vrot.lane.b32.xlu0 %v5530, 124
    %v6671 = vpop.permute.xlu0 %6670
    %6672 = vrot.lane.b32.xlu0 %v5531, 124
    %v6673 = vpop.permute.xlu0 %6672
    %6674 = vrot.lane.b32.xlu0 %v5532, 124
    %v6675 = vpop.permute.xlu0 %6674
    %6676 = vrot.lane.b32.xlu0 %v5533, 124
    %v6677 = vpop.permute.xlu0 %6676
    %6678 = vrot.lane.b32.xlu0 %v5534, 124
    %v6679 = vpop.permute.xlu0 %6678
    %6680 = vrot.lane.b32.xlu0 %v5535, 124
    %v6681 = vpop.permute.xlu0 %6680
    %6682 = vrot.lane.b32.xlu0 %v5536, 124
    %v6683 = vpop.permute.xlu0 %6682
    %6684 = vrot.lane.b32.xlu0 %v5537, 124
    %v6685 = vpop.permute.xlu0 %6684
    %6686 = vrot.lane.b32.xlu0 %v5538, 124
    %v6687 = vpop.permute.xlu0 %6686
    %6688 = vrot.lane.b32.xlu0 %v5539, 124
    %v6689 = vpop.permute.xlu0 %6688
    %6690 = vrot.lane.b32.xlu0 %v5540, 124
    %v6691 = vpop.permute.xlu0 %6690
    %6692 = vrot.lane.b32.xlu0 %v5541, 124
    %v6693 = vpop.permute.xlu0 %6692
    %6694 = vrot.lane.b32.xlu0 %v5542, 124
    %v6695 = vpop.permute.xlu0 %6694
    %6696 = vrot.lane.b32.xlu0 %v5543, 124
    %v6697 = vpop.permute.xlu0 %6696
    %6698 = vrot.lane.b32.xlu0 %v5544, 124
    %v6699 = vpop.permute.xlu0 %6698
    %6700 = vrot.lane.b32.xlu0 %v5545, 124
    %v6701 = vpop.permute.xlu0 %6700
    %6718 = vmatprep.subr.mxu0 0.0
    %6719 = vmatpush1.msra.mxu0 %v6671
    %6720 = vmatprep.subr.mxu0 0.0
    %6721 = vmatpush1.msra.mxu0 %v6673
    %6722 = vmatprep.subr.mxu0 0.0
    %6723 = vmatpush1.msra.mxu0 %v6675
    %6724 = vmatprep.subr.mxu0 0.0
    %6725 = vmatpush1.msra.mxu0 %v6677
    %6726 = vmatprep.subr.mxu0 0.0
    %6727 = vmatpush1.msra.mxu0 %v6679
    %6728 = vmatprep.subr.mxu0 0.0
    %6729 = vmatpush1.msra.mxu0 %v6681
    %6730 = vmatprep.subr.mxu0 0.0
    %6731 = vmatpush1.msra.mxu0 %v6683
    %6732 = vmatprep.subr.mxu0 0.0
    %6733 = vmatpush1.msra.mxu0 %v6685
    %6734 = vmatprep.subr.mxu0 0.0
    %6735 = vmatpush1.msra.mxu0 %v6687
    %6736 = vmatprep.subr.mxu0 0.0
    %6737 = vmatpush1.msra.mxu0 %v6689
    %6738 = vmatprep.subr.mxu0 0.0
    %6739 = vmatpush1.msra.mxu0 %v6691
    %6740 = vmatprep.subr.mxu0 0.0
    %6741 = vmatpush1.msra.mxu0 %v6693
    %6742 = vmatprep.subr.mxu0 0.0
    %6743 = vmatpush1.msra.mxu0 %v6695
    %6744 = vmatprep.subr.mxu0 0.0
    %6745 = vmatpush1.msra.mxu0 %v6697
    %6746 = vmatprep.subr.mxu0 0.0
    %6747 = vmatpush1.msra.mxu0 %v6699
    %6748 = vmatprep.subr.mxu0 0.0
    %6749 = vmatpush1.msra.mxu0 %v6701
    %6750 = vmatprep.subr.mxu0 0.0
    %6751 = vmatpush1.msra.mxu0 0.0
    %6752 = vmatprep.subr.mxu0 0.0
    %6753 = vmatpush1.msra.mxu0 0.0
    %6754 = vmatprep.subr.mxu0 0.0
    %6755 = vmatpush1.msra.mxu0 0.0
    %6756 = vmatprep.subr.mxu0 0.0
    %6757 = vmatpush1.msra.mxu0 0.0
    %6758 = vmatprep.subr.mxu0 0.0
    %6759 = vmatpush1.msra.mxu0 0.0
    %6760 = vmatprep.subr.mxu0 0.0
    %6761 = vmatpush1.msra.mxu0 0.0
    %6762 = vmatprep.subr.mxu0 0.0
    %6763 = vmatpush1.msra.mxu0 0.0
    %6764 = vmatprep.subr.mxu0 0.0
    %6765 = vmatpush1.msra.mxu0 0.0
    %6766 = vmatprep.subr.mxu0 0.0
    %6767 = vmatpush1.msra.mxu0 0.0
    %6768 = vmatprep.subr.mxu0 0.0
    %6769 = vmatpush1.msra.mxu0 0.0
    %6770 = vmatprep.subr.mxu0 0.0
    %6771 = vmatpush1.msra.mxu0 0.0
    %6772 = vmatprep.subr.mxu0 0.0
    %6773 = vmatpush1.msra.mxu0 0.0
    %6774 = vmatprep.subr.mxu0 0.0
    %6775 = vmatpush1.msra.mxu0 0.0
    %6776 = vmatprep.subr.mxu0 0.0
    %6777 = vmatpush1.msra.mxu0 0.0
    %6778 = vmatprep.subr.mxu0 0.0
    %6779 = vmatpush1.msra.mxu0 0.0
    %6780 = vmatprep.subr.mxu0 0.0
    %6781 = vmatpush1.msra.mxu0 0.0
    %6782 = vmatprep.mubr.f32.mxu0 0.0
    %6783 = vmatmul.mubr.f32.gmra.mrb[0].mxu0 %v4053
    %v6784 = vpop.f32.mrb[0].mxu0
    %v6785 = vadd.f32 0.0, %v6784
    %v6786 = vpop.f32.mrb[0].mxu0
    %6787 = vmatprep.mubr.f32.mxu0 0.0
    %6788 = vmatmul.mubr.f32.gmra.mrb[0].mxu0 %v4054
    %v6789 = vpop.f32.mrb[0].mxu0
    %v6790 = vadd.f32 0.0, %v6789
    %v6791 = vpop.f32.mrb[0].mxu0
    %6792 = vmatprep.mubr.f32.mxu0 0.0
    %6793 = vmatmul.mubr.f32.gmra.mrb[0].mxu0 %v4055
    %v6794 = vpop.f32.mrb[0].mxu0
    %v6795 = vadd.f32 0.0, %v6794
    %v6796 = vpop.f32.mrb[0].mxu0
    %6797 = vmatprep.mubr.f32.mxu0 0.0
    %6798 = vmatmul.mubr.f32.gmra.mrb[0].mxu0 %v4056
    %v6799 = vpop.f32.mrb[0].mxu0
    %v6800 = vadd.f32 0.0, %v6799
    %v6801 = vpop.f32.mrb[0].mxu0
    %6802 = vmatprep.mubr.f32.mxu0 0.0
    %6803 = vmatmul.mubr.f32.gmra.mrb[0].mxu0 %v4057
    %v6804 = vpop.f32.mrb[0].mxu0
    %v6805 = vadd.f32 0.0, %v6804
    %v6806 = vpop.f32.mrb[0].mxu0
    %6807 = vmatprep.mubr.f32.mxu0 0.0
    %6808 = vmatmul.mubr.f32.gmra.mrb[0].mxu0 %v4058
    %v6809 = vpop.f32.mrb[0].mxu0
    %v6810 = vadd.f32 0.0, %v6809
    %v6811 = vpop.f32.mrb[0].mxu0
    %6812 = vmatprep.mubr.f32.mxu0 0.0
    %6813 = vmatmul.mubr.f32.gmra.mrb[0].mxu0 %v4059
    %v6814 = vpop.f32.mrb[0].mxu0
    %v6815 = vadd.f32 0.0, %v6814
    %v6816 = vpop.f32.mrb[0].mxu0
    %6817 = vmatprep.mubr.f32.mxu0 0.0
    %6818 = vmatmul.mubr.f32.gmra.mrb[0].mxu0 %v4060
    %v6819 = vpop.f32.mrb[0].mxu0
    %v6820 = vadd.f32 0.0, %v6819
    %v6821 = vpop.f32.mrb[0].mxu0
    %6822 = vmatprep.mubr.f32.mxu0 0.0
    %6823 = vmatmul.mubr.f32.gmra.mrb[0].mxu0 %v4061
    %v6824 = vpop.f32.mrb[0].mxu0
    %v6825 = vadd.f32 0.0, %v6824
    %v6826 = vpop.f32.mrb[0].mxu0
    %6827 = vmatprep.mubr.f32.mxu0 0.0
    %6828 = vmatmul.mubr.f32.gmra.mrb[0].mxu0 %v4062
    %v6829 = vpop.f32.mrb[0].mxu0
    %v6830 = vadd.f32 0.0, %v6829
    %v6831 = vpop.f32.mrb[0].mxu0
    %6832 = vmatprep.mubr.f32.mxu0 0.0
    %6833 = vmatmul.mubr.f32.gmra.mrb[0].mxu0 %v4063
    %v6834 = vpop.f32.mrb[0].mxu0
    %v6835 = vadd.f32 0.0, %v6834
    %v6836 = vpop.f32.mrb[0].mxu0
    %6837 = vmatprep.mubr.f32.mxu0 0.0
    %6838 = vmatmul.mubr.f32.gmra.mrb[0].mxu0 %v4064
    %v6839 = vpop.f32.mrb[0].mxu0
    %v6840 = vadd.f32 0.0, %v6839
    %v6841 = vpop.f32.mrb[0].mxu0
    %6842 = vmatprep.mubr.f32.mxu0 0.0
    %6843 = vmatmul.mubr.f32.gmra.mrb[0].mxu0 %v4065
    %v6844 = vpop.f32.mrb[0].mxu0
    %v6845 = vadd.f32 0.0, %v6844
    %v6846 = vpop.f32.mrb[0].mxu0
    %6847 = vmatprep.mubr.f32.mxu0 0.0
    %6848 = vmatmul.mubr.f32.gmra.mrb[0].mxu0 %v4066
    %v6849 = vpop.f32.mrb[0].mxu0
    %v6850 = vadd.f32 0.0, %v6849
    %v6851 = vpop.f32.mrb[0].mxu0
    %6852 = vmatprep.mubr.f32.mxu0 0.0
    %6853 = vmatmul.mubr.f32.gmra.mrb[0].mxu0 %v4067
    %v6854 = vpop.f32.mrb[0].mxu0
    %v6855 = vadd.f32 0.0, %v6854
    %v6856 = vpop.f32.mrb[0].mxu0
    %6857 = vmatprep.mubr.f32.mxu0 0.0
    %6858 = vmatmul.mubr.f32.gmra.mrb[0].mxu0 %v4068
    %v6859 = vpop.f32.mrb[0].mxu0
    %v6860 = vadd.f32 0.0, %v6859
    %v6861 = vpop.f32.mrb[0].mxu0
    %6862 = vmatprep.mubr.f32.mxu0 0.0
    %6863 = vmatmul.mubr.f32.gmra.mrb[0].mxu0 %v4069
    %v6864 = vpop.f32.mrb[0].mxu0
    %v6865 = vadd.f32 0.0, %v6864
    %v6866 = vpop.f32.mrb[0].mxu0
    %6867 = vmatprep.mubr.f32.mxu0 0.0
    %6868 = vmatmul.mubr.f32.gmra.mrb[0].mxu0 %v4070
    %v6869 = vpop.f32.mrb[0].mxu0
    %v6870 = vadd.f32 0.0, %v6869
    %v6871 = vpop.f32.mrb[0].mxu0
    %6872 = vmatprep.mubr.f32.mxu0 0.0
    %6873 = vmatmul.mubr.f32.gmra.mrb[0].mxu0 %v4071
    %v6874 = vpop.f32.mrb[0].mxu0
    %v6875 = vadd.f32 0.0, %v6874
    %v6876 = vpop.f32.mrb[0].mxu0
    %6877 = vmatprep.mubr.f32.mxu0 0.0
    %6878 = vmatmul.mubr.f32.gmra.mrb[0].mxu0 %v4072
    %v6879 = vpop.f32.mrb[0].mxu0
    %v6880 = vadd.f32 0.0, %v6879
    %v6881 = vpop.f32.mrb[0].mxu0
    %6882 = vmatprep.mubr.f32.mxu0 0.0
    %6883 = vmatmul.mubr.f32.gmra.mrb[0].mxu0 %v4073
    %v6884 = vpop.f32.mrb[0].mxu0
    %v6885 = vadd.f32 0.0, %v6884
    %v6886 = vpop.f32.mrb[0].mxu0
    %6887 = vmatprep.mubr.f32.mxu0 0.0
    %6888 = vmatmul.mubr.f32.gmra.mrb[0].mxu0 %v4074
    %v6889 = vpop.f32.mrb[0].mxu0
    %v6890 = vadd.f32 0.0, %v6889
    %v6891 = vpop.f32.mrb[0].mxu0
    %6892 = vmatprep.mubr.f32.mxu0 0.0
    %6893 = vmatmul.mubr.f32.gmra.mrb[0].mxu0 %v4075
    %v6894 = vpop.f32.mrb[0].mxu0
    %v6895 = vadd.f32 0.0, %v6894
    %v6896 = vpop.f32.mrb[0].mxu0
    %6897 = vmatprep.mubr.f32.mxu0 0.0
    %6898 = vmatmul.mubr.f32.gmra.mrb[0].mxu0 %v4076
    %v6899 = vpop.f32.mrb[0].mxu0
    %v6900 = vadd.f32 0.0, %v6899
    %v6901 = vpop.f32.mrb[0].mxu0
    %6902 = vmatprep.mubr.f32.mxu0 0.0
    %6903 = vmatmul.mubr.f32.gmra.mrb[0].mxu0 %v4077
    %v6904 = vpop.f32.mrb[0].mxu0
    %v6905 = vadd.f32 0.0, %v6904
    %v6906 = vpop.f32.mrb[0].mxu0
    %6907 = vmatprep.mubr.f32.mxu0 0.0
    %6908 = vmatmul.mubr.f32.gmra.mrb[0].mxu0 %v4078
    %v6909 = vpop.f32.mrb[0].mxu0
    %v6910 = vadd.f32 0.0, %v6909
    %v6911 = vpop.f32.mrb[0].mxu0
    %6912 = vmatprep.mubr.f32.mxu0 0.0
    %6913 = vmatmul.mubr.f32.gmra.mrb[0].mxu0 %v4079
    %v6914 = vpop.f32.mrb[0].mxu0
    %v6915 = vadd.f32 0.0, %v6914
    %v6916 = vpop.f32.mrb[0].mxu0
    %6917 = vmatprep.mubr.f32.mxu0 0.0
    %6918 = vmatmul.mubr.f32.gmra.mrb[0].mxu0 %v4080
    %v6919 = vpop.f32.mrb[0].mxu0
    %v6920 = vadd.f32 0.0, %v6919
    %v6921 = vpop.f32.mrb[0].mxu0
    %6922 = vmatprep.mubr.f32.mxu0 0.0
    %6923 = vmatmul.mubr.f32.gmra.mrb[0].mxu0 %v4081
    %v6924 = vpop.f32.mrb[0].mxu0
    %v6925 = vadd.f32 0.0, %v6924
    %v6926 = vpop.f32.mrb[0].mxu0
    %6927 = vmatprep.mubr.f32.mxu0 0.0
    %6928 = vmatmul.mubr.f32.gmra.mrb[0].mxu0 %v4082
    %v6929 = vpop.f32.mrb[0].mxu0
    %v6930 = vadd.f32 0.0, %v6929
    %v6931 = vpop.f32.mrb[0].mxu0
    %6932 = vmatprep.mubr.f32.mxu0 0.0
    %6933 = vmatmul.mubr.f32.gmra.mrb[0].mxu0 %v4083
    %v6934 = vpop.f32.mrb[0].mxu0
    %v6935 = vadd.f32 0.0, %v6934
    %v6936 = vpop.f32.mrb[0].mxu0
    %6937 = vmatprep.mubr.f32.mxu0 0.0
    %6938 = vmatmul.mubr.f32.gmra.mrb[0].mxu0 %v4084
    %v6939 = vpop.f32.mrb[0].mxu0
    %v6940 = vadd.f32 0.0, %v6939
    %v6941 = vpop.f32.mrb[0].mxu0
    %6942 = vdwg.mxu0
    %v6943 = vadd.f32 %v6638, %v6785
    %v6944 = vadd.f32 %v6639, %v6790
    %v6945 = vadd.f32 %v6640, %v6795
    %v6946 = vadd.f32 %v6641, %v6800
    %v6947 = vadd.f32 %v6642, %v6805
    %v6948 = vadd.f32 %v6643, %v6810
    %v6949 = vadd.f32 %v6644, %v6815
    %v6950 = vadd.f32 %v6645, %v6820
    %v6951 = vadd.f32 %v6646, %v6825
    %v6952 = vadd.f32 %v6647, %v6830
    %v6953 = vadd.f32 %v6648, %v6835
    %v6954 = vadd.f32 %v6649, %v6840
    %v6955 = vadd.f32 %v6650, %v6845
    %v6956 = vadd.f32 %v6651, %v6850
    %v6957 = vadd.f32 %v6652, %v6855
    %v6958 = vadd.f32 %v6653, %v6860
    %v6959 = vadd.f32 %v6654, %v6865
    %v6960 = vadd.f32 %v6655, %v6870
    %v6961 = vadd.f32 %v6656, %v6875
    %v6962 = vadd.f32 %v6657, %v6880
    %v6963 = vadd.f32 %v6658, %v6885
    %v6964 = vadd.f32 %v6659, %v6890
    %v6965 = vadd.f32 %v6660, %v6895
    %v6966 = vadd.f32 %v6661, %v6900
    %v6967 = vadd.f32 %v6662, %v6905
    %v6968 = vadd.f32 %v6663, %v6910
    %v6969 = vadd.f32 %v6664, %v6915
    %v6970 = vadd.f32 %v6665, %v6920
    %v6971 = vadd.f32 %v6666, %v6925
    %v6972 = vadd.f32 %v6667, %v6930
    %v6973 = vadd.f32 %v6668, %v6935
    %v6974 = vadd.f32 %v6669, %v6940
    %v6975 = vsel %vm2876, %v5498, 0.0
    %6976 = vadd.xlane.f32.xlu0 %v6975
    %v6977 = vpop.xlane.xlu0 %6976
    %v6978 = vsel %vm2876, %v5499, 0.0
    %6979 = vadd.xlane.f32.xlu0 %v6978
    %v6980 = vpop.xlane.xlu0 %6979
    %v6981 = vsel %vm2876, %v5500, 0.0
    %6982 = vadd.xlane.f32.xlu0 %v6981
    %v6983 = vpop.xlane.xlu0 %6982
    %v6984 = vsel %vm2876, %v5501, 0.0
    %6985 = vadd.xlane.f32.xlu0 %v6984
    %v6986 = vpop.xlane.xlu0 %6985
    %v6987 = vsel %vm2876, %v5502, 0.0
    %6988 = vadd.xlane.f32.xlu0 %v6987
    %v6989 = vpop.xlane.xlu0 %6988
    %v6990 = vsel %vm2876, %v5503, 0.0
    %6991 = vadd.xlane.f32.xlu0 %v6990
    %v6992 = vpop.xlane.xlu0 %6991
    %v6993 = vsel %vm2876, %v5504, 0.0
    %6994 = vadd.xlane.f32.xlu0 %v6993
    %v6995 = vpop.xlane.xlu0 %6994
    %v6996 = vsel %vm2876, %v5505, 0.0
    %6997 = vadd.xlane.f32.xlu0 %v6996
    %v6998 = vpop.xlane.xlu0 %6997
    %v6999 = vsel %vm2876, %v5506, 0.0
    %7000 = vadd.xlane.f32.xlu0 %v6999
    %v7001 = vpop.xlane.xlu0 %7000
    %v7002 = vsel %vm2876, %v5507, 0.0
    %7003 = vadd.xlane.f32.xlu0 %v7002
    %v7004 = vpop.xlane.xlu0 %7003
    %v7005 = vsel %vm2876, %v5508, 0.0
    %7006 = vadd.xlane.f32.xlu0 %v7005
    %v7007 = vpop.xlane.xlu0 %7006
    %v7008 = vsel %vm2876, %v5509, 0.0
    %7009 = vadd.xlane.f32.xlu0 %v7008
    %v7010 = vpop.xlane.xlu0 %7009
    %v7011 = vsel %vm2876, %v5510, 0.0
    %7012 = vadd.xlane.f32.xlu0 %v7011
    %v7013 = vpop.xlane.xlu0 %7012
    %v7014 = vsel %vm2876, %v5511, 0.0
    %7015 = vadd.xlane.f32.xlu0 %v7014
    %v7016 = vpop.xlane.xlu0 %7015
    %v7017 = vsel %vm2876, %v5512, 0.0
    %7018 = vadd.xlane.f32.xlu0 %v7017
    %v7019 = vpop.xlane.xlu0 %7018
    %v7020 = vsel %vm2876, %v5513, 0.0
    %7021 = vadd.xlane.f32.xlu0 %v7020
    %v7022 = vpop.xlane.xlu0 %7021
    %v7023 = vsel %vm2876, %v5514, 0.0
    %7024 = vadd.xlane.f32.xlu0 %v7023
    %v7025 = vpop.xlane.xlu0 %7024
    %v7026 = vsel %vm2876, %v5515, 0.0
    %7027 = vadd.xlane.f32.xlu0 %v7026
    %v7028 = vpop.xlane.xlu0 %7027
    %v7029 = vsel %vm2876, %v5516, 0.0
    %7030 = vadd.xlane.f32.xlu0 %v7029
    %v7031 = vpop.xlane.xlu0 %7030
    %v7032 = vsel %vm2876, %v5517, 0.0
    %7033 = vadd.xlane.f32.xlu0 %v7032
    %v7034 = vpop.xlane.xlu0 %7033
    %v7035 = vsel %vm2876, %v5518, 0.0
    %7036 = vadd.xlane.f32.xlu0 %v7035
    %v7037 = vpop.xlane.xlu0 %7036
    %v7038 = vsel %vm2876, %v5519, 0.0
    %7039 = vadd.xlane.f32.xlu0 %v7038
    %v7040 = vpop.xlane.xlu0 %7039
    %v7041 = vsel %vm2876, %v5520, 0.0
    %7042 = vadd.xlane.f32.xlu0 %v7041
    %v7043 = vpop.xlane.xlu0 %7042
    %v7044 = vsel %vm2876, %v5521, 0.0
    %7045 = vadd.xlane.f32.xlu0 %v7044
    %v7046 = vpop.xlane.xlu0 %7045
    %v7047 = vsel %vm2876, %v5522, 0.0
    %7048 = vadd.xlane.f32.xlu0 %v7047
    %v7049 = vpop.xlane.xlu0 %7048
    %v7050 = vsel %vm2876, %v5523, 0.0
    %7051 = vadd.xlane.f32.xlu0 %v7050
    %v7052 = vpop.xlane.xlu0 %7051
    %v7053 = vsel %vm2876, %v5524, 0.0
    %7054 = vadd.xlane.f32.xlu0 %v7053
    %v7055 = vpop.xlane.xlu0 %7054
    %v7056 = vsel %vm2876, %v5525, 0.0
    %7057 = vadd.xlane.f32.xlu0 %v7056
    %v7058 = vpop.xlane.xlu0 %7057
    %v7059 = vsel %vm2876, %v5526, 0.0
    %7060 = vadd.xlane.f32.xlu0 %v7059
    %v7061 = vpop.xlane.xlu0 %7060
    %v7062 = vsel %vm2876, %v5527, 0.0
    %7063 = vadd.xlane.f32.xlu0 %v7062
    %v7064 = vpop.xlane.xlu0 %7063
    %v7065 = vsel %vm2876, %v5528, 0.0
    %7066 = vadd.xlane.f32.xlu0 %v7065
    %v7067 = vpop.xlane.xlu0 %7066
    %v7068 = vsel %vm2876, %v5529, 0.0
    %7069 = vadd.xlane.f32.xlu0 %v7068
    %v7070 = vpop.xlane.xlu0 %7069
    %v7071 = vadd.f32 %v6977, 0.0
    %v7072 = vadd.f32 %v6980, 0.0
    %v7073 = vadd.f32 %v6983, 0.0
    %v7074 = vadd.f32 %v6986, 0.0
    %v7075 = vadd.f32 %v6989, 0.0
    %v7076 = vadd.f32 %v6992, 0.0
    %v7077 = vadd.f32 %v6995, 0.0
    %v7078 = vadd.f32 %v6998, 0.0
    %v7079 = vadd.f32 %v7001, 0.0
    %v7080 = vadd.f32 %v7004, 0.0
    %v7081 = vadd.f32 %v7007, 0.0
    %v7082 = vadd.f32 %v7010, 0.0
    %v7083 = vadd.f32 %v7013, 0.0
    %v7084 = vadd.f32 %v7016, 0.0
    %v7085 = vadd.f32 %v7019, 0.0
    %v7086 = vadd.f32 %v7022, 0.0
    %v7087 = vadd.f32 %v7025, 0.0
    %v7088 = vadd.f32 %v7028, 0.0
    %v7089 = vadd.f32 %v7031, 0.0
    %v7090 = vadd.f32 %v7034, 0.0
    %v7091 = vadd.f32 %v7037, 0.0
    %v7092 = vadd.f32 %v7040, 0.0
    %v7093 = vadd.f32 %v7043, 0.0
    %v7094 = vadd.f32 %v7046, 0.0
    %v7095 = vadd.f32 %v7049, 0.0
    %v7096 = vadd.f32 %v7052, 0.0
    %v7097 = vadd.f32 %v7055, 0.0
    %v7098 = vadd.f32 %v7058, 0.0
    %v7099 = vadd.f32 %v7061, 0.0
    %v7100 = vadd.f32 %v7064, 0.0
    %v7101 = vadd.f32 %v7067, 0.0
    %v7102 = vadd.f32 %v7070, 0.0
    %v7103 = vsel %vm2876, %v6943, 0.0
    %7104 = vadd.xlane.f32.xlu0 %v7103
    %v7105 = vpop.xlane.xlu0 %7104
    %v7106 = vsel %vm2876, %v6944, 0.0
    %7107 = vadd.xlane.f32.xlu0 %v7106
    %v7108 = vpop.xlane.xlu0 %7107
    %v7109 = vsel %vm2876, %v6945, 0.0
    %7110 = vadd.xlane.f32.xlu0 %v7109
    %v7111 = vpop.xlane.xlu0 %7110
    %v7112 = vsel %vm2876, %v6946, 0.0
    %7113 = vadd.xlane.f32.xlu0 %v7112
    %v7114 = vpop.xlane.xlu0 %7113
    %v7115 = vsel %vm2876, %v6947, 0.0
    %7116 = vadd.xlane.f32.xlu0 %v7115
    %v7117 = vpop.xlane.xlu0 %7116
    %v7118 = vsel %vm2876, %v6948, 0.0
    %7119 = vadd.xlane.f32.xlu0 %v7118
    %v7120 = vpop.xlane.xlu0 %7119
    %v7121 = vsel %vm2876, %v6949, 0.0
    %7122 = vadd.xlane.f32.xlu0 %v7121
    %v7123 = vpop.xlane.xlu0 %7122
    %v7124 = vsel %vm2876, %v6950, 0.0
    %7125 = vadd.xlane.f32.xlu0 %v7124
    %v7126 = vpop.xlane.xlu0 %7125
    %v7127 = vsel %vm2876, %v6951, 0.0
    %7128 = vadd.xlane.f32.xlu0 %v7127
    %v7129 = vpop.xlane.xlu0 %7128
    %v7130 = vsel %vm2876, %v6952, 0.0
    %7131 = vadd.xlane.f32.xlu0 %v7130
    %v7132 = vpop.xlane.xlu0 %7131
    %v7133 = vsel %vm2876, %v6953, 0.0
    %7134 = vadd.xlane.f32.xlu0 %v7133
    %v7135 = vpop.xlane.xlu0 %7134
    %v7136 = vsel %vm2876, %v6954, 0.0
    %7137 = vadd.xlane.f32.xlu0 %v7136
    %v7138 = vpop.xlane.xlu0 %7137
    %v7139 = vsel %vm2876, %v6955, 0.0
    %7140 = vadd.xlane.f32.xlu0 %v7139
    %v7141 = vpop.xlane.xlu0 %7140
    %v7142 = vsel %vm2876, %v6956, 0.0
    %7143 = vadd.xlane.f32.xlu0 %v7142
    %v7144 = vpop.xlane.xlu0 %7143
    %v7145 = vsel %vm2876, %v6957, 0.0
    %7146 = vadd.xlane.f32.xlu0 %v7145
    %v7147 = vpop.xlane.xlu0 %7146
    %v7148 = vsel %vm2876, %v6958, 0.0
    %7149 = vadd.xlane.f32.xlu0 %v7148
    %v7150 = vpop.xlane.xlu0 %7149
    %v7151 = vsel %vm2876, %v6959, 0.0
    %7152 = vadd.xlane.f32.xlu0 %v7151
    %v7153 = vpop.xlane.xlu0 %7152
    %v7154 = vsel %vm2876, %v6960, 0.0
    %7155 = vadd.xlane.f32.xlu0 %v7154
    %v7156 = vpop.xlane.xlu0 %7155
    %v7157 = vsel %vm2876, %v6961, 0.0
    %7158 = vadd.xlane.f32.xlu0 %v7157
    %v7159 = vpop.xlane.xlu0 %7158
    %v7160 = vsel %vm2876, %v6962, 0.0
    %7161 = vadd.xlane.f32.xlu0 %v7160
    %v7162 = vpop.xlane.xlu0 %7161
    %v7163 = vsel %vm2876, %v6963, 0.0
    %7164 = vadd.xlane.f32.xlu0 %v7163
    %v7165 = vpop.xlane.xlu0 %7164
    %v7166 = vsel %vm2876, %v6964, 0.0
    %7167 = vadd.xlane.f32.xlu0 %v7166
    %v7168 = vpop.xlane.xlu0 %7167
    %v7169 = vsel %vm2876, %v6965, 0.0
    %7170 = vadd.xlane.f32.xlu0 %v7169
    %v7171 = vpop.xlane.xlu0 %7170
    %v7172 = vsel %vm2876, %v6966, 0.0
    %7173 = vadd.xlane.f32.xlu0 %v7172
    %v7174 = vpop.xlane.xlu0 %7173
    %v7175 = vsel %vm2876, %v6967, 0.0
    %7176 = vadd.xlane.f32.xlu0 %v7175
    %v7177 = vpop.xlane.xlu0 %7176
    %v7178 = vsel %vm2876, %v6968, 0.0
    %7179 = vadd.xlane.f32.xlu0 %v7178
    %v7180 = vpop.xlane.xlu0 %7179
    %v7181 = vsel %vm2876, %v6969, 0.0
    %7182 = vadd.xlane.f32.xlu0 %v7181
    %v7183 = vpop.xlane.xlu0 %7182
    %v7184 = vsel %vm2876, %v6970, 0.0
    %7185 = vadd.xlane.f32.xlu0 %v7184
    %v7186 = vpop.xlane.xlu0 %7185
    %v7187 = vsel %vm2876, %v6971, 0.0
    %7188 = vadd.xlane.f32.xlu0 %v7187
    %v7189 = vpop.xlane.xlu0 %7188
    %v7190 = vsel %vm2876, %v6972, 0.0
    %7191 = vadd.xlane.f32.xlu0 %v7190
    %v7192 = vpop.xlane.xlu0 %7191
    %v7193 = vsel %vm2876, %v6973, 0.0
    %7194 = vadd.xlane.f32.xlu0 %v7193
    %v7195 = vpop.xlane.xlu0 %7194
    %v7196 = vsel %vm2876, %v6974, 0.0
    %7197 = vadd.xlane.f32.xlu0 %v7196
    %v7198 = vpop.xlane.xlu0 %7197
    %v7199 = vadd.f32 %v7071, %v7105
    %v7200 = vadd.f32 %v7072, %v7108
    %v7201 = vadd.f32 %v7073, %v7111
    %v7202 = vadd.f32 %v7074, %v7114
    %v7203 = vadd.f32 %v7075, %v7117
    %v7204 = vadd.f32 %v7076, %v7120
    %v7205 = vadd.f32 %v7077, %v7123
    %v7206 = vadd.f32 %v7078, %v7126
    %v7207 = vadd.f32 %v7079, %v7129
    %v7208 = vadd.f32 %v7080, %v7132
    %v7209 = vadd.f32 %v7081, %v7135
    %v7210 = vadd.f32 %v7082, %v7138
    %v7211 = vadd.f32 %v7083, %v7141
    %v7212 = vadd.f32 %v7084, %v7144
    %v7213 = vadd.f32 %v7085, %v7147
    %v7214 = vadd.f32 %v7086, %v7150
    %v7215 = vadd.f32 %v7087, %v7153
    %v7216 = vadd.f32 %v7088, %v7156
    %v7217 = vadd.f32 %v7089, %v7159
    %v7218 = vadd.f32 %v7090, %v7162
    %v7219 = vadd.f32 %v7091, %v7165
    %v7220 = vadd.f32 %v7092, %v7168
    %v7221 = vadd.f32 %v7093, %v7171
    %v7222 = vadd.f32 %v7094, %v7174
    %v7223 = vadd.f32 %v7095, %v7177
    %v7224 = vadd.f32 %v7096, %v7180
    %v7225 = vadd.f32 %v7097, %v7183
    %v7226 = vadd.f32 %v7098, %v7186
    %v7227 = vadd.f32 %v7099, %v7189
    %v7228 = vadd.f32 %v7100, %v7192
    %v7229 = vadd.f32 %v7101, %v7195
    %v7230 = vadd.f32 %v7102, %v7198
    %v7231 = vmul.f32 %v7199, %v3005
    %v7232 = vmul.f32 %v7200, %v3005
    %v7233 = vmul.f32 %v7201, %v3005
    %v7234 = vmul.f32 %v7202, %v3005
    %v7235 = vmul.f32 %v7203, %v3005
    %v7236 = vmul.f32 %v7204, %v3005
    %v7237 = vmul.f32 %v7205, %v3005
    %v7238 = vmul.f32 %v7206, %v3005
    %v7239 = vmul.f32 %v7207, %v3005
    %v7240 = vmul.f32 %v7208, %v3005
    %v7241 = vmul.f32 %v7209, %v3005
    %v7242 = vmul.f32 %v7210, %v3005
    %v7243 = vmul.f32 %v7211, %v3005
    %v7244 = vmul.f32 %v7212, %v3005
    %v7245 = vmul.f32 %v7213, %v3005
    %v7246 = vmul.f32 %v7214, %v3005
    %v7247 = vmul.f32 %v7215, %v3005
    %v7248 = vmul.f32 %v7216, %v3005
    %v7249 = vmul.f32 %v7217, %v3005
    %v7250 = vmul.f32 %v7218, %v3005
    %v7251 = vmul.f32 %v7219, %v3005
    %v7252 = vmul.f32 %v7220, %v3005
    %v7253 = vmul.f32 %v7221, %v3005
    %v7254 = vmul.f32 %v7222, %v3005
    %v7255 = vmul.f32 %v7223, %v3005
    %v7256 = vmul.f32 %v7224, %v3005
    %v7257 = vmul.f32 %v7225, %v3005
    %v7258 = vmul.f32 %v7226, %v3005
    %v7259 = vmul.f32 %v7227, %v3005
    %v7260 = vmul.f32 %v7228, %v3005
    %v7261 = vmul.f32 %v7229, %v3005
    %v7262 = vmul.f32 %v7230, %v3005
    %v7263 = vsub.f32 %v5498, %v7231
    %v7264 = vsub.f32 %v5499, %v7232
    %v7265 = vsub.f32 %v5500, %v7233
    %v7266 = vsub.f32 %v5501, %v7234
    %v7267 = vsub.f32 %v5502, %v7235
    %v7268 = vsub.f32 %v5503, %v7236
    %v7269 = vsub.f32 %v5504, %v7237
    %v7270 = vsub.f32 %v5505, %v7238
    %v7271 = vsub.f32 %v5506, %v7239
    %v7272 = vsub.f32 %v5507, %v7240
    %v7273 = vsub.f32 %v5508, %v7241
    %v7274 = vsub.f32 %v5509, %v7242
    %v7275 = vsub.f32 %v5510, %v7243
    %v7276 = vsub.f32 %v5511, %v7244
    %v7277 = vsub.f32 %v5512, %v7245
    %v7278 = vsub.f32 %v5513, %v7246
    %v7279 = vsub.f32 %v5514, %v7247
    %v7280 = vsub.f32 %v5515, %v7248
    %v7281 = vsub.f32 %v5516, %v7249
    %v7282 = vsub.f32 %v5517, %v7250
    %v7283 = vsub.f32 %v5518, %v7251
    %v7284 = vsub.f32 %v5519, %v7252
    %v7285 = vsub.f32 %v5520, %v7253
    %v7286 = vsub.f32 %v5521, %v7254
    %v7287 = vsub.f32 %v5522, %v7255
    %v7288 = vsub.f32 %v5523, %v7256
    %v7289 = vsub.f32 %v5524, %v7257
    %v7290 = vsub.f32 %v5525, %v7258
    %v7291 = vsub.f32 %v5526, %v7259
    %v7292 = vsub.f32 %v5527, %v7260
    %v7293 = vsub.f32 %v5528, %v7261
    %v7294 = vsub.f32 %v5529, %v7262
    %v7295 = vsub.f32 %v6943, %v7231
    %v7296 = vsub.f32 %v6944, %v7232
    %v7297 = vsub.f32 %v6945, %v7233
    %v7298 = vsub.f32 %v6946, %v7234
    %v7299 = vsub.f32 %v6947, %v7235
    %v7300 = vsub.f32 %v6948, %v7236
    %v7301 = vsub.f32 %v6949, %v7237
    %v7302 = vsub.f32 %v6950, %v7238
    %v7303 = vsub.f32 %v6951, %v7239
    %v7304 = vsub.f32 %v6952, %v7240
    %v7305 = vsub.f32 %v6953, %v7241
    %v7306 = vsub.f32 %v6954, %v7242
    %v7307 = vsub.f32 %v6955, %v7243
    %v7308 = vsub.f32 %v6956, %v7244
    %v7309 = vsub.f32 %v6957, %v7245
    %v7310 = vsub.f32 %v6958, %v7246
    %v7311 = vsub.f32 %v6959, %v7247
    %v7312 = vsub.f32 %v6960, %v7248
    %v7313 = vsub.f32 %v6961, %v7249
    %v7314 = vsub.f32 %v6962, %v7250
    %v7315 = vsub.f32 %v6963, %v7251
    %v7316 = vsub.f32 %v6964, %v7252
    %v7317 = vsub.f32 %v6965, %v7253
    %v7318 = vsub.f32 %v6966, %v7254
    %v7319 = vsub.f32 %v6967, %v7255
    %v7320 = vsub.f32 %v6968, %v7256
    %v7321 = vsub.f32 %v6969, %v7257
    %v7322 = vsub.f32 %v6970, %v7258
    %v7323 = vsub.f32 %v6971, %v7259
    %v7324 = vsub.f32 %v6972, %v7260
    %v7325 = vsub.f32 %v6973, %v7261
    %v7326 = vsub.f32 %v6974, %v7262
    %v7327 = vmul.f32 %v7263, %v7263
    %v7328 = vmul.f32 %v7264, %v7264
    %v7329 = vmul.f32 %v7265, %v7265
    %v7330 = vmul.f32 %v7266, %v7266
    %v7331 = vmul.f32 %v7267, %v7267
    %v7332 = vmul.f32 %v7268, %v7268
    %v7333 = vmul.f32 %v7269, %v7269
    %v7334 = vmul.f32 %v7270, %v7270
    %v7335 = vmul.f32 %v7271, %v7271
    %v7336 = vmul.f32 %v7272, %v7272
    %v7337 = vmul.f32 %v7273, %v7273
    %v7338 = vmul.f32 %v7274, %v7274
    %v7339 = vmul.f32 %v7275, %v7275
    %v7340 = vmul.f32 %v7276, %v7276
    %v7341 = vmul.f32 %v7277, %v7277
    %v7342 = vmul.f32 %v7278, %v7278
    %v7343 = vmul.f32 %v7279, %v7279
    %v7344 = vmul.f32 %v7280, %v7280
    %v7345 = vmul.f32 %v7281, %v7281
    %v7346 = vmul.f32 %v7282, %v7282
    %v7347 = vmul.f32 %v7283, %v7283
    %v7348 = vmul.f32 %v7284, %v7284
    %v7349 = vmul.f32 %v7285, %v7285
    %v7350 = vmul.f32 %v7286, %v7286
    %v7351 = vmul.f32 %v7287, %v7287
    %v7352 = vmul.f32 %v7288, %v7288
    %v7353 = vmul.f32 %v7289, %v7289
    %v7354 = vmul.f32 %v7290, %v7290
    %v7355 = vmul.f32 %v7291, %v7291
    %v7356 = vmul.f32 %v7292, %v7292
    %v7357 = vmul.f32 %v7293, %v7293
    %v7358 = vmul.f32 %v7294, %v7294
    %v7359 = vsel %vm2876, %v7327, 0.0
    %7360 = vadd.xlane.f32.xlu0 %v7359
    %v7361 = vpop.xlane.xlu0 %7360
    %v7362 = vsel %vm2876, %v7328, 0.0
    %7363 = vadd.xlane.f32.xlu0 %v7362
    %v7364 = vpop.xlane.xlu0 %7363
    %v7365 = vsel %vm2876, %v7329, 0.0
    %7366 = vadd.xlane.f32.xlu0 %v7365
    %v7367 = vpop.xlane.xlu0 %7366
    %v7368 = vsel %vm2876, %v7330, 0.0
    %7369 = vadd.xlane.f32.xlu0 %v7368
    %v7370 = vpop.xlane.xlu0 %7369
    %v7371 = vsel %vm2876, %v7331, 0.0
    %7372 = vadd.xlane.f32.xlu0 %v7371
    %v7373 = vpop.xlane.xlu0 %7372
    %v7374 = vsel %vm2876, %v7332, 0.0
    %7375 = vadd.xlane.f32.xlu0 %v7374
    %v7376 = vpop.xlane.xlu0 %7375
    %v7377 = vsel %vm2876, %v7333, 0.0
    %7378 = vadd.xlane.f32.xlu0 %v7377
    %v7379 = vpop.xlane.xlu0 %7378
    %v7380 = vsel %vm2876, %v7334, 0.0
    %7381 = vadd.xlane.f32.xlu0 %v7380
    %v7382 = vpop.xlane.xlu0 %7381
    %v7383 = vsel %vm2876, %v7335, 0.0
    %7384 = vadd.xlane.f32.xlu0 %v7383
    %v7385 = vpop.xlane.xlu0 %7384
    %v7386 = vsel %vm2876, %v7336, 0.0
    %7387 = vadd.xlane.f32.xlu0 %v7386
    %v7388 = vpop.xlane.xlu0 %7387
    %v7389 = vsel %vm2876, %v7337, 0.0
    %7390 = vadd.xlane.f32.xlu0 %v7389
    %v7391 = vpop.xlane.xlu0 %7390
    %v7392 = vsel %vm2876, %v7338, 0.0
    %7393 = vadd.xlane.f32.xlu0 %v7392
    %v7394 = vpop.xlane.xlu0 %7393
    %v7395 = vsel %vm2876, %v7339, 0.0
    %7396 = vadd.xlane.f32.xlu0 %v7395
    %v7397 = vpop.xlane.xlu0 %7396
    %v7398 = vsel %vm2876, %v7340, 0.0
    %7399 = vadd.xlane.f32.xlu0 %v7398
    %v7400 = vpop.xlane.xlu0 %7399
    %v7401 = vsel %vm2876, %v7341, 0.0
    %7402 = vadd.xlane.f32.xlu0 %v7401
    %v7403 = vpop.xlane.xlu0 %7402
    %v7404 = vsel %vm2876, %v7342, 0.0
    %7405 = vadd.xlane.f32.xlu0 %v7404
    %v7406 = vpop.xlane.xlu0 %7405
    %v7407 = vsel %vm2876, %v7343, 0.0
    %7408 = vadd.xlane.f32.xlu0 %v7407
    %v7409 = vpop.xlane.xlu0 %7408
    %v7410 = vsel %vm2876, %v7344, 0.0
    %7411 = vadd.xlane.f32.xlu0 %v7410
    %v7412 = vpop.xlane.xlu0 %7411
    %v7413 = vsel %vm2876, %v7345, 0.0
    %7414 = vadd.xlane.f32.xlu0 %v7413
    %v7415 = vpop.xlane.xlu0 %7414
    %v7416 = vsel %vm2876, %v7346, 0.0
    %7417 = vadd.xlane.f32.xlu0 %v7416
    %v7418 = vpop.xlane.xlu0 %7417
    %v7419 = vsel %vm2876, %v7347, 0.0
    %7420 = vadd.xlane.f32.xlu0 %v7419
    %v7421 = vpop.xlane.xlu0 %7420
    %v7422 = vsel %vm2876, %v7348, 0.0
    %7423 = vadd.xlane.f32.xlu0 %v7422
    %v7424 = vpop.xlane.xlu0 %7423
    %v7425 = vsel %vm2876, %v7349, 0.0
    %7426 = vadd.xlane.f32.xlu0 %v7425
    %v7427 = vpop.xlane.xlu0 %7426
    %v7428 = vsel %vm2876, %v7350, 0.0
    %7429 = vadd.xlane.f32.xlu0 %v7428
    %v7430 = vpop.xlane.xlu0 %7429
    %v7431 = vsel %vm2876, %v7351, 0.0
    %7432 = vadd.xlane.f32.xlu0 %v7431
    %v7433 = vpop.xlane.xlu0 %7432
    %v7434 = vsel %vm2876, %v7352, 0.0
    %7435 = vadd.xlane.f32.xlu0 %v7434
    %v7436 = vpop.xlane.xlu0 %7435
    %v7437 = vsel %vm2876, %v7353, 0.0
    %7438 = vadd.xlane.f32.xlu0 %v7437
    %v7439 = vpop.xlane.xlu0 %7438
    %v7440 = vsel %vm2876, %v7354, 0.0
    %7441 = vadd.xlane.f32.xlu0 %v7440
    %v7442 = vpop.xlane.xlu0 %7441
    %v7443 = vsel %vm2876, %v7355, 0.0
    %7444 = vadd.xlane.f32.xlu0 %v7443
    %v7445 = vpop.xlane.xlu0 %7444
    %v7446 = vsel %vm2876, %v7356, 0.0
    %7447 = vadd.xlane.f32.xlu0 %v7446
    %v7448 = vpop.xlane.xlu0 %7447
    %v7449 = vsel %vm2876, %v7357, 0.0
    %7450 = vadd.xlane.f32.xlu0 %v7449
    %v7451 = vpop.xlane.xlu0 %7450
    %v7452 = vsel %vm2876, %v7358, 0.0
    %7453 = vadd.xlane.f32.xlu0 %v7452
    %v7454 = vpop.xlane.xlu0 %7453
    %v7455 = vadd.f32 %v7361, 0.0
    %v7456 = vadd.f32 %v7364, 0.0
    %v7457 = vadd.f32 %v7367, 0.0
    %v7458 = vadd.f32 %v7370, 0.0
    %v7459 = vadd.f32 %v7373, 0.0
    %v7460 = vadd.f32 %v7376, 0.0
    %v7461 = vadd.f32 %v7379, 0.0
    %v7462 = vadd.f32 %v7382, 0.0
    %v7463 = vadd.f32 %v7385, 0.0
    %v7464 = vadd.f32 %v7388, 0.0
    %v7465 = vadd.f32 %v7391, 0.0
    %v7466 = vadd.f32 %v7394, 0.0
    %v7467 = vadd.f32 %v7397, 0.0
    %v7468 = vadd.f32 %v7400, 0.0
    %v7469 = vadd.f32 %v7403, 0.0
    %v7470 = vadd.f32 %v7406, 0.0
    %v7471 = vadd.f32 %v7409, 0.0
    %v7472 = vadd.f32 %v7412, 0.0
    %v7473 = vadd.f32 %v7415, 0.0
    %v7474 = vadd.f32 %v7418, 0.0
    %v7475 = vadd.f32 %v7421, 0.0
    %v7476 = vadd.f32 %v7424, 0.0
    %v7477 = vadd.f32 %v7427, 0.0
    %v7478 = vadd.f32 %v7430, 0.0
    %v7479 = vadd.f32 %v7433, 0.0
    %v7480 = vadd.f32 %v7436, 0.0
    %v7481 = vadd.f32 %v7439, 0.0
    %v7482 = vadd.f32 %v7442, 0.0
    %v7483 = vadd.f32 %v7445, 0.0
    %v7484 = vadd.f32 %v7448, 0.0
    %v7485 = vadd.f32 %v7451, 0.0
    %v7486 = vadd.f32 %v7454, 0.0
    %v7487 = vmul.f32 %v7295, %v7295
    %v7488 = vmul.f32 %v7296, %v7296
    %v7489 = vmul.f32 %v7297, %v7297
    %v7490 = vmul.f32 %v7298, %v7298
    %v7491 = vmul.f32 %v7299, %v7299
    %v7492 = vmul.f32 %v7300, %v7300
    %v7493 = vmul.f32 %v7301, %v7301
    %v7494 = vmul.f32 %v7302, %v7302
    %v7495 = vmul.f32 %v7303, %v7303
    %v7496 = vmul.f32 %v7304, %v7304
    %v7497 = vmul.f32 %v7305, %v7305
    %v7498 = vmul.f32 %v7306, %v7306
    %v7499 = vmul.f32 %v7307, %v7307
    %v7500 = vmul.f32 %v7308, %v7308
    %v7501 = vmul.f32 %v7309, %v7309
    %v7502 = vmul.f32 %v7310, %v7310
    %v7503 = vmul.f32 %v7311, %v7311
    %v7504 = vmul.f32 %v7312, %v7312
    %v7505 = vmul.f32 %v7313, %v7313
    %v7506 = vmul.f32 %v7314, %v7314
    %v7507 = vmul.f32 %v7315, %v7315
    %v7508 = vmul.f32 %v7316, %v7316
    %v7509 = vmul.f32 %v7317, %v7317
    %v7510 = vmul.f32 %v7318, %v7318
    %v7511 = vmul.f32 %v7319, %v7319
    %v7512 = vmul.f32 %v7320, %v7320
    %v7513 = vmul.f32 %v7321, %v7321
    %v7514 = vmul.f32 %v7322, %v7322
    %v7515 = vmul.f32 %v7323, %v7323
    %v7516 = vmul.f32 %v7324, %v7324
    %v7517 = vmul.f32 %v7325, %v7325
    %v7518 = vmul.f32 %v7326, %v7326
    %v7519 = vsel %vm2876, %v7487, 0.0
    %7520 = vadd.xlane.f32.xlu0 %v7519
    %v7521 = vpop.xlane.xlu0 %7520
    %v7522 = vsel %vm2876, %v7488, 0.0
    %7523 = vadd.xlane.f32.xlu0 %v7522
    %v7524 = vpop.xlane.xlu0 %7523
    %v7525 = vsel %vm2876, %v7489, 0.0
    %7526 = vadd.xlane.f32.xlu0 %v7525
    %v7527 = vpop.xlane.xlu0 %7526
    %v7528 = vsel %vm2876, %v7490, 0.0
    %7529 = vadd.xlane.f32.xlu0 %v7528
    %v7530 = vpop.xlane.xlu0 %7529
    %v7531 = vsel %vm2876, %v7491, 0.0
    %7532 = vadd.xlane.f32.xlu0 %v7531
    %v7533 = vpop.xlane.xlu0 %7532
    %v7534 = vsel %vm2876, %v7492, 0.0
    %7535 = vadd.xlane.f32.xlu0 %v7534
    %v7536 = vpop.xlane.xlu0 %7535
    %v7537 = vsel %vm2876, %v7493, 0.0
    %7538 = vadd.xlane.f32.xlu0 %v7537
    %v7539 = vpop.xlane.xlu0 %7538
    %v7540 = vsel %vm2876, %v7494, 0.0
    %7541 = vadd.xlane.f32.xlu0 %v7540
    %v7542 = vpop.xlane.xlu0 %7541
    %v7543 = vsel %vm2876, %v7495, 0.0
    %7544 = vadd.xlane.f32.xlu0 %v7543
    %v7545 = vpop.xlane.xlu0 %7544
    %v7546 = vsel %vm2876, %v7496, 0.0
    %7547 = vadd.xlane.f32.xlu0 %v7546
    %v7548 = vpop.xlane.xlu0 %7547
    %v7549 = vsel %vm2876, %v7497, 0.0
    %7550 = vadd.xlane.f32.xlu0 %v7549
    %v7551 = vpop.xlane.xlu0 %7550
    %v7552 = vsel %vm2876, %v7498, 0.0
    %7553 = vadd.xlane.f32.xlu0 %v7552
    %v7554 = vpop.xlane.xlu0 %7553
    %v7555 = vsel %vm2876, %v7499, 0.0
    %7556 = vadd.xlane.f32.xlu0 %v7555
    %v7557 = vpop.xlane.xlu0 %7556
    %v7558 = vsel %vm2876, %v7500, 0.0
    %7559 = vadd.xlane.f32.xlu0 %v7558
    %v7560 = vpop.xlane.xlu0 %7559
    %v7561 = vsel %vm2876, %v7501, 0.0
    %7562 = vadd.xlane.f32.xlu0 %v7561
    %v7563 = vpop.xlane.xlu0 %7562
    %v7564 = vsel %vm2876, %v7502, 0.0
    %7565 = vadd.xlane.f32.xlu0 %v7564
    %v7566 = vpop.xlane.xlu0 %7565
    %v7567 = vsel %vm2876, %v7503, 0.0
    %7568 = vadd.xlane.f32.xlu0 %v7567
    %v7569 = vpop.xlane.xlu0 %7568
    %v7570 = vsel %vm2876, %v7504, 0.0
    %7571 = vadd.xlane.f32.xlu0 %v7570
    %v7572 = vpop.xlane.xlu0 %7571
    %v7573 = vsel %vm2876, %v7505, 0.0
    %7574 = vadd.xlane.f32.xlu0 %v7573
    %v7575 = vpop.xlane.xlu0 %7574
    %v7576 = vsel %vm2876, %v7506, 0.0
    %7577 = vadd.xlane.f32.xlu0 %v7576
    %v7578 = vpop.xlane.xlu0 %7577
    %v7579 = vsel %vm2876, %v7507, 0.0
    %7580 = vadd.xlane.f32.xlu0 %v7579
    %v7581 = vpop.xlane.xlu0 %7580
    %v7582 = vsel %vm2876, %v7508, 0.0
    %7583 = vadd.xlane.f32.xlu0 %v7582
    %v7584 = vpop.xlane.xlu0 %7583
    %v7585 = vsel %vm2876, %v7509, 0.0
    %7586 = vadd.xlane.f32.xlu0 %v7585
    %v7587 = vpop.xlane.xlu0 %7586
    %v7588 = vsel %vm2876, %v7510, 0.0
    %7589 = vadd.xlane.f32.xlu0 %v7588
    %v7590 = vpop.xlane.xlu0 %7589
    %v7591 = vsel %vm2876, %v7511, 0.0
    %7592 = vadd.xlane.f32.xlu0 %v7591
    %v7593 = vpop.xlane.xlu0 %7592
    %v7594 = vsel %vm2876, %v7512, 0.0
    %7595 = vadd.xlane.f32.xlu0 %v7594
    %v7596 = vpop.xlane.xlu0 %7595
    %v7597 = vsel %vm2876, %v7513, 0.0
    %7598 = vadd.xlane.f32.xlu0 %v7597
    %v7599 = vpop.xlane.xlu0 %7598
    %v7600 = vsel %vm2876, %v7514, 0.0
    %7601 = vadd.xlane.f32.xlu0 %v7600
    %v7602 = vpop.xlane.xlu0 %7601
    %v7603 = vsel %vm2876, %v7515, 0.0
    %7604 = vadd.xlane.f32.xlu0 %v7603
    %v7605 = vpop.xlane.xlu0 %7604
    %v7606 = vsel %vm2876, %v7516, 0.0
    %7607 = vadd.xlane.f32.xlu0 %v7606
    %v7608 = vpop.xlane.xlu0 %7607
    %v7609 = vsel %vm2876, %v7517, 0.0
    %7610 = vadd.xlane.f32.xlu0 %v7609
    %v7611 = vpop.xlane.xlu0 %7610
    %v7612 = vsel %vm2876, %v7518, 0.0
    %7613 = vadd.xlane.f32.xlu0 %v7612
    %v7614 = vpop.xlane.xlu0 %7613
    %v7615 = vadd.f32 %v7455, %v7521
    %v7616 = vadd.f32 %v7456, %v7524
    %v7617 = vadd.f32 %v7457, %v7527
    %v7618 = vadd.f32 %v7458, %v7530
    %v7619 = vadd.f32 %v7459, %v7533
    %v7620 = vadd.f32 %v7460, %v7536
    %v7621 = vadd.f32 %v7461, %v7539
    %v7622 = vadd.f32 %v7462, %v7542
    %v7623 = vadd.f32 %v7463, %v7545
    %v7624 = vadd.f32 %v7464, %v7548
    %v7625 = vadd.f32 %v7465, %v7551
    %v7626 = vadd.f32 %v7466, %v7554
    %v7627 = vadd.f32 %v7467, %v7557
    %v7628 = vadd.f32 %v7468, %v7560
    %v7629 = vadd.f32 %v7469, %v7563
    %v7630 = vadd.f32 %v7470, %v7566
    %v7631 = vadd.f32 %v7471, %v7569
    %v7632 = vadd.f32 %v7472, %v7572
    %v7633 = vadd.f32 %v7473, %v7575
    %v7634 = vadd.f32 %v7474, %v7578
    %v7635 = vadd.f32 %v7475, %v7581
    %v7636 = vadd.f32 %v7476, %v7584
    %v7637 = vadd.f32 %v7477, %v7587
    %v7638 = vadd.f32 %v7478, %v7590
    %v7639 = vadd.f32 %v7479, %v7593
    %v7640 = vadd.f32 %v7480, %v7596
    %v7641 = vadd.f32 %v7481, %v7599
    %v7642 = vadd.f32 %v7482, %v7602
    %v7643 = vadd.f32 %v7483, %v7605
    %v7644 = vadd.f32 %v7484, %v7608
    %v7645 = vadd.f32 %v7485, %v7611
    %v7646 = vadd.f32 %v7486, %v7614
    %v7647 = vmul.f32 %v7615, %v3005
    %v7648 = vmul.f32 %v7616, %v3005
    %v7649 = vmul.f32 %v7617, %v3005
    %v7650 = vmul.f32 %v7618, %v3005
    %v7651 = vmul.f32 %v7619, %v3005
    %v7652 = vmul.f32 %v7620, %v3005
    %v7653 = vmul.f32 %v7621, %v3005
    %v7654 = vmul.f32 %v7622, %v3005
    %v7655 = vmul.f32 %v7623, %v3005
    %v7656 = vmul.f32 %v7624, %v3005
    %v7657 = vmul.f32 %v7625, %v3005
    %v7658 = vmul.f32 %v7626, %v3005
    %v7659 = vmul.f32 %v7627, %v3005
    %v7660 = vmul.f32 %v7628, %v3005
    %v7661 = vmul.f32 %v7629, %v3005
    %v7662 = vmul.f32 %v7630, %v3005
    %v7663 = vmul.f32 %v7631, %v3005
    %v7664 = vmul.f32 %v7632, %v3005
    %v7665 = vmul.f32 %v7633, %v3005
    %v7666 = vmul.f32 %v7634, %v3005
    %v7667 = vmul.f32 %v7635, %v3005
    %v7668 = vmul.f32 %v7636, %v3005
    %v7669 = vmul.f32 %v7637, %v3005
    %v7670 = vmul.f32 %v7638, %v3005
    %v7671 = vmul.f32 %v7639, %v3005
    %v7672 = vmul.f32 %v7640, %v3005
    %v7673 = vmul.f32 %v7641, %v3005
    %v7674 = vmul.f32 %v7642, %v3005
    %v7675 = vmul.f32 %v7643, %v3005
    %v7676 = vmul.f32 %v7644, %v3005
    %v7677 = vmul.f32 %v7645, %v3005
    %v7678 = vmul.f32 %v7646, %v3005
    %v7679 = vadd.f32 %v7647, 1e-05
    %v7680 = vadd.f32 %v7648, 1e-05
    %v7681 = vadd.f32 %v7649, 1e-05
    %v7682 = vadd.f32 %v7650, 1e-05
    %v7683 = vadd.f32 %v7651, 1e-05
    %v7684 = vadd.f32 %v7652, 1e-05
    %v7685 = vadd.f32 %v7653, 1e-05
    %v7686 = vadd.f32 %v7654, 1e-05
    %v7687 = vadd.f32 %v7655, 1e-05
    %v7688 = vadd.f32 %v7656, 1e-05
    %v7689 = vadd.f32 %v7657, 1e-05
    %v7690 = vadd.f32 %v7658, 1e-05
    %v7691 = vadd.f32 %v7659, 1e-05
    %v7692 = vadd.f32 %v7660, 1e-05
    %v7693 = vadd.f32 %v7661, 1e-05
    %v7694 = vadd.f32 %v7662, 1e-05
    %v7695 = vadd.f32 %v7663, 1e-05
    %v7696 = vadd.f32 %v7664, 1e-05
    %v7697 = vadd.f32 %v7665, 1e-05
    %v7698 = vadd.f32 %v7666, 1e-05
    %v7699 = vadd.f32 %v7667, 1e-05
    %v7700 = vadd.f32 %v7668, 1e-05
    %v7701 = vadd.f32 %v7669, 1e-05
    %v7702 = vadd.f32 %v7670, 1e-05
    %v7703 = vadd.f32 %v7671, 1e-05
    %v7704 = vadd.f32 %v7672, 1e-05
    %v7705 = vadd.f32 %v7673, 1e-05
    %v7706 = vadd.f32 %v7674, 1e-05
    %v7707 = vadd.f32 %v7675, 1e-05
    %v7708 = vadd.f32 %v7676, 1e-05
    %v7709 = vadd.f32 %v7677, 1e-05
    %v7710 = vadd.f32 %v7678, 1e-05
    %v7711 = vrsqrt.pop %v7679
    %v7712 = vrsqrt.pop %v7680
    %v7713 = vrsqrt.pop %v7681
    %v7714 = vrsqrt.pop %v7682
    %v7715 = vrsqrt.pop %v7683
    %v7716 = vrsqrt.pop %v7684
    %v7717 = vrsqrt.pop %v7685
    %v7718 = vrsqrt.pop %v7686
    %v7719 = vrsqrt.pop %v7687
    %v7720 = vrsqrt.pop %v7688
    %v7721 = vrsqrt.pop %v7689
    %v7722 = vrsqrt.pop %v7690
    %v7723 = vrsqrt.pop %v7691
    %v7724 = vrsqrt.pop %v7692
    %v7725 = vrsqrt.pop %v7693
    %v7726 = vrsqrt.pop %v7694
    %v7727 = vrsqrt.pop %v7695
    %v7728 = vrsqrt.pop %v7696
    %v7729 = vrsqrt.pop %v7697
    %v7730 = vrsqrt.pop %v7698
    %v7731 = vrsqrt.pop %v7699
    %v7732 = vrsqrt.pop %v7700
    %v7733 = vrsqrt.pop %v7701
    %v7734 = vrsqrt.pop %v7702
    %v7735 = vrsqrt.pop %v7703
    %v7736 = vrsqrt.pop %v7704
    %v7737 = vrsqrt.pop %v7705
    %v7738 = vrsqrt.pop %v7706
    %v7739 = vrsqrt.pop %v7707
    %v7740 = vrsqrt.pop %v7708
    %v7741 = vrsqrt.pop %v7709
    %v7742 = vrsqrt.pop %v7710
    %v7743 = vld [vmem:[%s5] sm:$0xff]
    %v7744 = vld [vmem:[%s5 + $0x8] sm:$0xff]
    %v7745 = vld [vmem:[%s5 + $0x10] sm:$0xff]
    %v7746 = vld [vmem:[%s5 + $0x18] sm:$0xff]
    %v7747 = vld [vmem:[%s5 + $0x20] sm:$0xff]
    %v7748 = vld [vmem:[%s5 + $0x28] sm:$0xff]
    %v7749 = vld [vmem:[%s5 + $0x30] sm:$0xff]
    %v7750 = vld [vmem:[%s5 + $0x38] sm:$0xff]
    %v7751 = vld [vmem:[%s5 + $0x40] sm:$0xff]
    %v7752 = vld [vmem:[%s5 + $0x48] sm:$0xff]
    %v7753 = vld [vmem:[%s5 + $0x50] sm:$0xff]
    %v7754 = vld [vmem:[%s5 + $0x58] sm:$0xff]
    %v7755 = vld [vmem:[%s5 + $0x60] sm:$0xff]
    %v7756 = vld [vmem:[%s5 + $0x68] sm:$0xff]
    %v7757 = vld [vmem:[%s5 + $0x70] sm:$0xff]
    %v7758 = vld [vmem:[%s5 + $0x78] sm:$0xff]
    %v7759 = vld [vmem:[%s5 + $0x80] sm:$0xff]
    %v7760 = vld [vmem:[%s5 + $0x88] sm:$0xff]
    %v7761 = vld [vmem:[%s5 + $0x90] sm:$0xff]
    %v7762 = vld [vmem:[%s5 + $0x98] sm:$0xff]
    %v7763 = vld [vmem:[%s5 + $0xa0] sm:$0xff]
    %v7764 = vld [vmem:[%s5 + $0xa8] sm:$0xff]
    %v7765 = vld [vmem:[%s5 + $0xb0] sm:$0xff]
    %v7766 = vld [vmem:[%s5 + $0xb8] sm:$0xff]
    %v7767 = vld [vmem:[%s5 + $0xc0] sm:$0xff]
    %v7768 = vld [vmem:[%s5 + $0xc8] sm:$0xff]
    %v7769 = vld [vmem:[%s5 + $0xd0] sm:$0xff]
    %v7770 = vld [vmem:[%s5 + $0xd8] sm:$0xff]
    %v7771 = vld [vmem:[%s5 + $0xe0] sm:$0xff]
    %v7772 = vld [vmem:[%s5 + $0xe8] sm:$0xff]
    %v7773 = vld [vmem:[%s5 + $0xf0] sm:$0xff]
    %v7774 = vld [vmem:[%s5 + $0xf8] sm:$0xff]
    %v7775 = vmul.f32 %v7711, %v7743
    %v7776 = vmul.f32 %v7712, %v7744
    %v7777 = vmul.f32 %v7713, %v7745
    %v7778 = vmul.f32 %v7714, %v7746
    %v7779 = vmul.f32 %v7715, %v7747
    %v7780 = vmul.f32 %v7716, %v7748
    %v7781 = vmul.f32 %v7717, %v7749
    %v7782 = vmul.f32 %v7718, %v7750
    %v7783 = vmul.f32 %v7719, %v7751
    %v7784 = vmul.f32 %v7720, %v7752
    %v7785 = vmul.f32 %v7721, %v7753
    %v7786 = vmul.f32 %v7722, %v7754
    %v7787 = vmul.f32 %v7723, %v7755
    %v7788 = vmul.f32 %v7724, %v7756
    %v7789 = vmul.f32 %v7725, %v7757
    %v7790 = vmul.f32 %v7726, %v7758
    %v7791 = vmul.f32 %v7727, %v7759
    %v7792 = vmul.f32 %v7728, %v7760
    %v7793 = vmul.f32 %v7729, %v7761
    %v7794 = vmul.f32 %v7730, %v7762
    %v7795 = vmul.f32 %v7731, %v7763
    %v7796 = vmul.f32 %v7732, %v7764
    %v7797 = vmul.f32 %v7733, %v7765
    %v7798 = vmul.f32 %v7734, %v7766
    %v7799 = vmul.f32 %v7735, %v7767
    %v7800 = vmul.f32 %v7736, %v7768
    %v7801 = vmul.f32 %v7737, %v7769
    %v7802 = vmul.f32 %v7738, %v7770
    %v7803 = vmul.f32 %v7739, %v7771
    %v7804 = vmul.f32 %v7740, %v7772
    %v7805 = vmul.f32 %v7741, %v7773
    %v7806 = vmul.f32 %v7742, %v7774
    %v7807 = vld [vmem:[%s6] sm:$0xff]
    %v7808 = vld [vmem:[%s6 + $0x8] sm:$0xff]
    %v7809 = vld [vmem:[%s6 + $0x10] sm:$0xff]
    %v7810 = vld [vmem:[%s6 + $0x18] sm:$0xff]
    %v7811 = vld [vmem:[%s6 + $0x20] sm:$0xff]
    %v7812 = vld [vmem:[%s6 + $0x28] sm:$0xff]
    %v7813 = vld [vmem:[%s6 + $0x30] sm:$0xff]
    %v7814 = vld [vmem:[%s6 + $0x38] sm:$0xff]
    %v7815 = vld [vmem:[%s6 + $0x40] sm:$0xff]
    %v7816 = vld [vmem:[%s6 + $0x48] sm:$0xff]
    %v7817 = vld [vmem:[%s6 + $0x50] sm:$0xff]
    %v7818 = vld [vmem:[%s6 + $0x58] sm:$0xff]
    %v7819 = vld [vmem:[%s6 + $0x60] sm:$0xff]
    %v7820 = vld [vmem:[%s6 + $0x68] sm:$0xff]
    %v7821 = vld [vmem:[%s6 + $0x70] sm:$0xff]
    %v7822 = vld [vmem:[%s6 + $0x78] sm:$0xff]
    %v7823 = vld [vmem:[%s6 + $0x80] sm:$0xff]
    %v7824 = vld [vmem:[%s6 + $0x88] sm:$0xff]
    %v7825 = vld [vmem:[%s6 + $0x90] sm:$0xff]
    %v7826 = vld [vmem:[%s6 + $0x98] sm:$0xff]
    %v7827 = vld [vmem:[%s6 + $0xa0] sm:$0xff]
    %v7828 = vld [vmem:[%s6 + $0xa8] sm:$0xff]
    %v7829 = vld [vmem:[%s6 + $0xb0] sm:$0xff]
    %v7830 = vld [vmem:[%s6 + $0xb8] sm:$0xff]
    %v7831 = vld [vmem:[%s6 + $0xc0] sm:$0xff]
    %v7832 = vld [vmem:[%s6 + $0xc8] sm:$0xff]
    %v7833 = vld [vmem:[%s6 + $0xd0] sm:$0xff]
    %v7834 = vld [vmem:[%s6 + $0xd8] sm:$0xff]
    %v7835 = vld [vmem:[%s6 + $0xe0] sm:$0xff]
    %v7836 = vld [vmem:[%s6 + $0xe8] sm:$0xff]
    %v7837 = vld [vmem:[%s6 + $0xf0] sm:$0xff]
    %v7838 = vld [vmem:[%s6 + $0xf8] sm:$0xff]
    %7840 = vset.pattern.permute.xlu0 0
    %7841 = vperm.xlu0 %7840, %v7775
    %v7842 = vpop.permute.xlu0 %7841
    %7845 = vset.pattern.permute.xlu0 0
    %7846 = vperm.xlu0 %7845, %v7776
    %v7847 = vpop.permute.xlu0 %7846
    %7850 = vset.pattern.permute.xlu0 0
    %7851 = vperm.xlu0 %7850, %v7777
    %v7852 = vpop.permute.xlu0 %7851
    %7855 = vset.pattern.permute.xlu0 0
    %7856 = vperm.xlu0 %7855, %v7778
    %v7857 = vpop.permute.xlu0 %7856
    %7860 = vset.pattern.permute.xlu0 0
    %7861 = vperm.xlu0 %7860, %v7779
    %v7862 = vpop.permute.xlu0 %7861
    %7865 = vset.pattern.permute.xlu0 0
    %7866 = vperm.xlu0 %7865, %v7780
    %v7867 = vpop.permute.xlu0 %7866
    %7870 = vset.pattern.permute.xlu0 0
    %7871 = vperm.xlu0 %7870, %v7781
    %v7872 = vpop.permute.xlu0 %7871
    %7875 = vset.pattern.permute.xlu0 0
    %7876 = vperm.xlu0 %7875, %v7782
    %v7877 = vpop.permute.xlu0 %7876
    %7880 = vset.pattern.permute.xlu0 0
    %7881 = vperm.xlu0 %7880, %v7783
    %v7882 = vpop.permute.xlu0 %7881
    %7885 = vset.pattern.permute.xlu0 0
    %7886 = vperm.xlu0 %7885, %v7784
    %v7887 = vpop.permute.xlu0 %7886
    %7890 = vset.pattern.permute.xlu0 0
    %7891 = vperm.xlu0 %7890, %v7785
    %v7892 = vpop.permute.xlu0 %7891
    %7895 = vset.pattern.permute.xlu0 0
    %7896 = vperm.xlu0 %7895, %v7786
    %v7897 = vpop.permute.xlu0 %7896
    %7900 = vset.pattern.permute.xlu0 0
    %7901 = vperm.xlu0 %7900, %v7787
    %v7902 = vpop.permute.xlu0 %7901
    %7905 = vset.pattern.permute.xlu0 0
    %7906 = vperm.xlu0 %7905, %v7788
    %v7907 = vpop.permute.xlu0 %7906
    %7910 = vset.pattern.permute.xlu0 0
    %7911 = vperm.xlu0 %7910, %v7789
    %v7912 = vpop.permute.xlu0 %7911
    %7915 = vset.pattern.permute.xlu0 0
    %7916 = vperm.xlu0 %7915, %v7790
    %v7917 = vpop.permute.xlu0 %7916
    %7920 = vset.pattern.permute.xlu0 0
    %7921 = vperm.xlu0 %7920, %v7791
    %v7922 = vpop.permute.xlu0 %7921
    %7925 = vset.pattern.permute.xlu0 0
    %7926 = vperm.xlu0 %7925, %v7792
    %v7927 = vpop.permute.xlu0 %7926
    %7930 = vset.pattern.permute.xlu0 0
    %7931 = vperm.xlu0 %7930, %v7793
    %v7932 = vpop.permute.xlu0 %7931
    %7935 = vset.pattern.permute.xlu0 0
    %7936 = vperm.xlu0 %7935, %v7794
    %v7937 = vpop.permute.xlu0 %7936
    %7940 = vset.pattern.permute.xlu0 0
    %7941 = vperm.xlu0 %7940, %v7795
    %v7942 = vpop.permute.xlu0 %7941
    %7945 = vset.pattern.permute.xlu0 0
    %7946 = vperm.xlu0 %7945, %v7796
    %v7947 = vpop.permute.xlu0 %7946
    %7950 = vset.pattern.permute.xlu0 0
    %7951 = vperm.xlu0 %7950, %v7797
    %v7952 = vpop.permute.xlu0 %7951
    %7955 = vset.pattern.permute.xlu0 0
    %7956 = vperm.xlu0 %7955, %v7798
    %v7957 = vpop.permute.xlu0 %7956
    %7960 = vset.pattern.permute.xlu0 0
    %7961 = vperm.xlu0 %7960, %v7799
    %v7962 = vpop.permute.xlu0 %7961
    %7965 = vset.pattern.permute.xlu0 0
    %7966 = vperm.xlu0 %7965, %v7800
    %v7967 = vpop.permute.xlu0 %7966
    %7970 = vset.pattern.permute.xlu0 0
    %7971 = vperm.xlu0 %7970, %v7801
    %v7972 = vpop.permute.xlu0 %7971
    %7975 = vset.pattern.permute.xlu0 0
    %7976 = vperm.xlu0 %7975, %v7802
    %v7977 = vpop.permute.xlu0 %7976
    %7980 = vset.pattern.permute.xlu0 0
    %7981 = vperm.xlu0 %7980, %v7803
    %v7982 = vpop.permute.xlu0 %7981
    %7985 = vset.pattern.permute.xlu0 0
    %7986 = vperm.xlu0 %7985, %v7804
    %v7987 = vpop.permute.xlu0 %7986
    %7990 = vset.pattern.permute.xlu0 0
    %7991 = vperm.xlu0 %7990, %v7805
    %v7992 = vpop.permute.xlu0 %7991
    %7995 = vset.pattern.permute.xlu0 0
    %7996 = vperm.xlu0 %7995, %v7806
    %v7997 = vpop.permute.xlu0 %7996
    %v7999 = vmul.f32 %v7263, %v7842
    %v8000 = vmul.f32 %v7264, %v7847
    %v8001 = vmul.f32 %v7265, %v7852
    %v8002 = vmul.f32 %v7266, %v7857
    %v8003 = vmul.f32 %v7267, %v7862
    %v8004 = vmul.f32 %v7268, %v7867
    %v8005 = vmul.f32 %v7269, %v7872
    %v8006 = vmul.f32 %v7270, %v7877
    %v8007 = vmul.f32 %v7271, %v7882
    %v8008 = vmul.f32 %v7272, %v7887
    %v8009 = vmul.f32 %v7273, %v7892
    %v8010 = vmul.f32 %v7274, %v7897
    %v8011 = vmul.f32 %v7275, %v7902
    %v8012 = vmul.f32 %v7276, %v7907
    %v8013 = vmul.f32 %v7277, %v7912
    %v8014 = vmul.f32 %v7278, %v7917
    %v8015 = vmul.f32 %v7279, %v7922
    %v8016 = vmul.f32 %v7280, %v7927
    %v8017 = vmul.f32 %v7281, %v7932
    %v8018 = vmul.f32 %v7282, %v7937
    %v8019 = vmul.f32 %v7283, %v7942
    %v8020 = vmul.f32 %v7284, %v7947
    %v8021 = vmul.f32 %v7285, %v7952
    %v8022 = vmul.f32 %v7286, %v7957
    %v8023 = vmul.f32 %v7287, %v7962
    %v8024 = vmul.f32 %v7288, %v7967
    %v8025 = vmul.f32 %v7289, %v7972
    %v8026 = vmul.f32 %v7290, %v7977
    %v8027 = vmul.f32 %v7291, %v7982
    %v8028 = vmul.f32 %v7292, %v7987
    %v8029 = vmul.f32 %v7293, %v7992
    %v8030 = vmul.f32 %v7294, %v7997
    %8032 = vset.pattern.permute.xlu0 0
    %8033 = vperm.xlu0 %8032, %v7807
    %v8034 = vpop.permute.xlu0 %8033
    %8037 = vset.pattern.permute.xlu0 0
    %8038 = vperm.xlu0 %8037, %v7808
    %v8039 = vpop.permute.xlu0 %8038
    %8042 = vset.pattern.permute.xlu0 0
    %8043 = vperm.xlu0 %8042, %v7809
    %v8044 = vpop.permute.xlu0 %8043
    %8047 = vset.pattern.permute.xlu0 0
    %8048 = vperm.xlu0 %8047, %v7810
    %v8049 = vpop.permute.xlu0 %8048
    %8052 = vset.pattern.permute.xlu0 0
    %8053 = vperm.xlu0 %8052, %v7811
    %v8054 = vpop.permute.xlu0 %8053
    %8057 = vset.pattern.permute.xlu0 0
    %8058 = vperm.xlu0 %8057, %v7812
    %v8059 = vpop.permute.xlu0 %8058
    %8062 = vset.pattern.permute.xlu0 0
    %8063 = vperm.xlu0 %8062, %v7813
    %v8064 = vpop.permute.xlu0 %8063
    %8067 = vset.pattern.permute.xlu0 0
    %8068 = vperm.xlu0 %8067, %v7814
    %v8069 = vpop.permute.xlu0 %8068
    %8072 = vset.pattern.permute.xlu0 0
    %8073 = vperm.xlu0 %8072, %v7815
    %v8074 = vpop.permute.xlu0 %8073
    %8077 = vset.pattern.permute.xlu0 0
    %8078 = vperm.xlu0 %8077, %v7816
    %v8079 = vpop.permute.xlu0 %8078
    %8082 = vset.pattern.permute.xlu0 0
    %8083 = vperm.xlu0 %8082, %v7817
    %v8084 = vpop.permute.xlu0 %8083
    %8087 = vset.pattern.permute.xlu0 0
    %8088 = vperm.xlu0 %8087, %v7818
    %v8089 = vpop.permute.xlu0 %8088
    %8092 = vset.pattern.permute.xlu0 0
    %8093 = vperm.xlu0 %8092, %v7819
    %v8094 = vpop.permute.xlu0 %8093
    %8097 = vset.pattern.permute.xlu0 0
    %8098 = vperm.xlu0 %8097, %v7820
    %v8099 = vpop.permute.xlu0 %8098
    %8102 = vset.pattern.permute.xlu0 0
    %8103 = vperm.xlu0 %8102, %v7821
    %v8104 = vpop.permute.xlu0 %8103
    %8107 = vset.pattern.permute.xlu0 0
    %8108 = vperm.xlu0 %8107, %v7822
    %v8109 = vpop.permute.xlu0 %8108
    %8112 = vset.pattern.permute.xlu0 0
    %8113 = vperm.xlu0 %8112, %v7823
    %v8114 = vpop.permute.xlu0 %8113
    %8117 = vset.pattern.permute.xlu0 0
    %8118 = vperm.xlu0 %8117, %v7824
    %v8119 = vpop.permute.xlu0 %8118
    %8122 = vset.pattern.permute.xlu0 0
    %8123 = vperm.xlu0 %8122, %v7825
    %v8124 = vpop.permute.xlu0 %8123
    %8127 = vset.pattern.permute.xlu0 0
    %8128 = vperm.xlu0 %8127, %v7826
    %v8129 = vpop.permute.xlu0 %8128
    %8132 = vset.pattern.permute.xlu0 0
    %8133 = vperm.xlu0 %8132, %v7827
    %v8134 = vpop.permute.xlu0 %8133
    %8137 = vset.pattern.permute.xlu0 0
    %8138 = vperm.xlu0 %8137, %v7828
    %v8139 = vpop.permute.xlu0 %8138
    %8142 = vset.pattern.permute.xlu0 0
    %8143 = vperm.xlu0 %8142, %v7829
    %v8144 = vpop.permute.xlu0 %8143
    %8147 = vset.pattern.permute.xlu0 0
    %8148 = vperm.xlu0 %8147, %v7830
    %v8149 = vpop.permute.xlu0 %8148
    %8152 = vset.pattern.permute.xlu0 0
    %8153 = vperm.xlu0 %8152, %v7831
    %v8154 = vpop.permute.xlu0 %8153
    %8157 = vset.pattern.permute.xlu0 0
    %8158 = vperm.xlu0 %8157, %v7832
    %v8159 = vpop.permute.xlu0 %8158
    %8162 = vset.pattern.permute.xlu0 0
    %8163 = vperm.xlu0 %8162, %v7833
    %v8164 = vpop.permute.xlu0 %8163
    %8167 = vset.pattern.permute.xlu0 0
    %8168 = vperm.xlu0 %8167, %v7834
    %v8169 = vpop.permute.xlu0 %8168
    %8172 = vset.pattern.permute.xlu0 0
    %8173 = vperm.xlu0 %8172, %v7835
    %v8174 = vpop.permute.xlu0 %8173
    %8177 = vset.pattern.permute.xlu0 0
    %8178 = vperm.xlu0 %8177, %v7836
    %v8179 = vpop.permute.xlu0 %8178
    %8182 = vset.pattern.permute.xlu0 0
    %8183 = vperm.xlu0 %8182, %v7837
    %v8184 = vpop.permute.xlu0 %8183
    %8187 = vset.pattern.permute.xlu0 0
    %8188 = vperm.xlu0 %8187, %v7838
    %v8189 = vpop.permute.xlu0 %8188
    %v8191 = vadd.f32 %v7999, %v8034
    %v8192 = vadd.f32 %v8000, %v8039
    %v8193 = vadd.f32 %v8001, %v8044
    %v8194 = vadd.f32 %v8002, %v8049
    %v8195 = vadd.f32 %v8003, %v8054
    %v8196 = vadd.f32 %v8004, %v8059
    %v8197 = vadd.f32 %v8005, %v8064
    %v8198 = vadd.f32 %v8006, %v8069
    %v8199 = vadd.f32 %v8007, %v8074
    %v8200 = vadd.f32 %v8008, %v8079
    %v8201 = vadd.f32 %v8009, %v8084
    %v8202 = vadd.f32 %v8010, %v8089
    %v8203 = vadd.f32 %v8011, %v8094
    %v8204 = vadd.f32 %v8012, %v8099
    %v8205 = vadd.f32 %v8013, %v8104
    %v8206 = vadd.f32 %v8014, %v8109
    %v8207 = vadd.f32 %v8015, %v8114
    %v8208 = vadd.f32 %v8016, %v8119
    %v8209 = vadd.f32 %v8017, %v8124
    %v8210 = vadd.f32 %v8018, %v8129
    %v8211 = vadd.f32 %v8019, %v8134
    %v8212 = vadd.f32 %v8020, %v8139
    %v8213 = vadd.f32 %v8021, %v8144
    %v8214 = vadd.f32 %v8022, %v8149
    %v8215 = vadd.f32 %v8023, %v8154
    %v8216 = vadd.f32 %v8024, %v8159
    %v8217 = vadd.f32 %v8025, %v8164
    %v8218 = vadd.f32 %v8026, %v8169
    %v8219 = vadd.f32 %v8027, %v8174
    %v8220 = vadd.f32 %v8028, %v8179
    %v8221 = vadd.f32 %v8029, %v8184
    %v8222 = vadd.f32 %v8030, %v8189
    %v8223 = vxor.u32 %v8191, 2147483648
    %v8224 = vxor.u32 %v8192, 2147483648
    %v8225 = vxor.u32 %v8193, 2147483648
    %v8226 = vxor.u32 %v8194, 2147483648
    %v8227 = vxor.u32 %v8195, 2147483648
    %v8228 = vxor.u32 %v8196, 2147483648
    %v8229 = vxor.u32 %v8197, 2147483648
    %v8230 = vxor.u32 %v8198, 2147483648
    %v8231 = vxor.u32 %v8199, 2147483648
    %v8232 = vxor.u32 %v8200, 2147483648
    %v8233 = vxor.u32 %v8201, 2147483648
    %v8234 = vxor.u32 %v8202, 2147483648
    %v8235 = vxor.u32 %v8203, 2147483648
    %v8236 = vxor.u32 %v8204, 2147483648
    %v8237 = vxor.u32 %v8205, 2147483648
    %v8238 = vxor.u32 %v8206, 2147483648
    %v8239 = vxor.u32 %v8207, 2147483648
    %v8240 = vxor.u32 %v8208, 2147483648
    %v8241 = vxor.u32 %v8209, 2147483648
    %v8242 = vxor.u32 %v8210, 2147483648
    %v8243 = vxor.u32 %v8211, 2147483648
    %v8244 = vxor.u32 %v8212, 2147483648
    %v8245 = vxor.u32 %v8213, 2147483648
    %v8246 = vxor.u32 %v8214, 2147483648
    %v8247 = vxor.u32 %v8215, 2147483648
    %v8248 = vxor.u32 %v8216, 2147483648
    %v8249 = vxor.u32 %v8217, 2147483648
    %v8250 = vxor.u32 %v8218, 2147483648
    %v8251 = vxor.u32 %v8219, 2147483648
    %v8252 = vxor.u32 %v8220, 2147483648
    %v8253 = vxor.u32 %v8221, 2147483648
    %v8254 = vxor.u32 %v8222, 2147483648
    %v8255 = vmul.f32 %v8223, 1.442695
    %v8256 = vpow.pop %v8255
    %v8257 = vmul.f32 %v8224, 1.442695
    %v8258 = vpow.pop %v8257
    %v8259 = vmul.f32 %v8225, 1.442695
    %v8260 = vpow.pop %v8259
    %v8261 = vmul.f32 %v8226, 1.442695
    %v8262 = vpow.pop %v8261
    %v8263 = vmul.f32 %v8227, 1.442695
    %v8264 = vpow.pop %v8263
    %v8265 = vmul.f32 %v8228, 1.442695
    %v8266 = vpow.pop %v8265
    %v8267 = vmul.f32 %v8229, 1.442695
    %v8268 = vpow.pop %v8267
    %v8269 = vmul.f32 %v8230, 1.442695
    %v8270 = vpow.pop %v8269
    %v8271 = vmul.f32 %v8231, 1.442695
    %v8272 = vpow.pop %v8271
    %v8273 = vmul.f32 %v8232, 1.442695
    %v8274 = vpow.pop %v8273
    %v8275 = vmul.f32 %v8233, 1.442695
    %v8276 = vpow.pop %v8275
    %v8277 = vmul.f32 %v8234, 1.442695
    %v8278 = vpow.pop %v8277
    %v8279 = vmul.f32 %v8235, 1.442695
    %v8280 = vpow.pop %v8279
    %v8281 = vmul.f32 %v8236, 1.442695
    %v8282 = vpow.pop %v8281
    %v8283 = vmul.f32 %v8237, 1.442695
    %v8284 = vpow.pop %v8283
    %v8285 = vmul.f32 %v8238, 1.442695
    %v8286 = vpow.pop %v8285
    %v8287 = vmul.f32 %v8239, 1.442695
    %v8288 = vpow.pop %v8287
    %v8289 = vmul.f32 %v8240, 1.442695
    %v8290 = vpow.pop %v8289
    %v8291 = vmul.f32 %v8241, 1.442695
    %v8292 = vpow.pop %v8291
    %v8293 = vmul.f32 %v8242, 1.442695
    %v8294 = vpow.pop %v8293
    %v8295 = vmul.f32 %v8243, 1.442695
    %v8296 = vpow.pop %v8295
    %v8297 = vmul.f32 %v8244, 1.442695
    %v8298 = vpow.pop %v8297
    %v8299 = vmul.f32 %v8245, 1.442695
    %v8300 = vpow.pop %v8299
    %v8301 = vmul.f32 %v8246, 1.442695
    %v8302 = vpow.pop %v8301
    %v8303 = vmul.f32 %v8247, 1.442695
    %v8304 = vpow.pop %v8303
    %v8305 = vmul.f32 %v8248, 1.442695
    %v8306 = vpow.pop %v8305
    %v8307 = vmul.f32 %v8249, 1.442695
    %v8308 = vpow.pop %v8307
    %v8309 = vmul.f32 %v8250, 1.442695
    %v8310 = vpow.pop %v8309
    %v8311 = vmul.f32 %v8251, 1.442695
    %v8312 = vpow.pop %v8311
    %v8313 = vmul.f32 %v8252, 1.442695
    %v8314 = vpow.pop %v8313
    %v8315 = vmul.f32 %v8253, 1.442695
    %v8316 = vpow.pop %v8315
    %v8317 = vmul.f32 %v8254, 1.442695
    %v8318 = vpow.pop %v8317
    %v8319 = vadd.f32 %v8256, 1.0
    %v8320 = vadd.f32 %v8258, 1.0
    %v8321 = vadd.f32 %v8260, 1.0
    %v8322 = vadd.f32 %v8262, 1.0
    %v8323 = vadd.f32 %v8264, 1.0
    %v8324 = vadd.f32 %v8266, 1.0
    %v8325 = vadd.f32 %v8268, 1.0
    %v8326 = vadd.f32 %v8270, 1.0
    %v8327 = vadd.f32 %v8272, 1.0
    %v8328 = vadd.f32 %v8274, 1.0
    %v8329 = vadd.f32 %v8276, 1.0
    %v8330 = vadd.f32 %v8278, 1.0
    %v8331 = vadd.f32 %v8280, 1.0
    %v8332 = vadd.f32 %v8282, 1.0
    %v8333 = vadd.f32 %v8284, 1.0
    %v8334 = vadd.f32 %v8286, 1.0
    %v8335 = vadd.f32 %v8288, 1.0
    %v8336 = vadd.f32 %v8290, 1.0
    %v8337 = vadd.f32 %v8292, 1.0
    %v8338 = vadd.f32 %v8294, 1.0
    %v8339 = vadd.f32 %v8296, 1.0
    %v8340 = vadd.f32 %v8298, 1.0
    %v8341 = vadd.f32 %v8300, 1.0
    %v8342 = vadd.f32 %v8302, 1.0
    %v8343 = vadd.f32 %v8304, 1.0
    %v8344 = vadd.f32 %v8306, 1.0
    %v8345 = vadd.f32 %v8308, 1.0
    %v8346 = vadd.f32 %v8310, 1.0
    %v8347 = vadd.f32 %v8312, 1.0
    %v8348 = vadd.f32 %v8314, 1.0
    %v8349 = vadd.f32 %v8316, 1.0
    %v8350 = vadd.f32 %v8318, 1.0
    %v8351 = vrcp.pop %v8319
    %v8352 = vmul.f32 1.0, %v8351
    %v8353 = vrcp.pop %v8320
    %v8354 = vmul.f32 1.0, %v8353
    %v8355 = vrcp.pop %v8321
    %v8356 = vmul.f32 1.0, %v8355
    %v8357 = vrcp.pop %v8322
    %v8358 = vmul.f32 1.0, %v8357
    %v8359 = vrcp.pop %v8323
    %v8360 = vmul.f32 1.0, %v8359
    %v8361 = vrcp.pop %v8324
    %v8362 = vmul.f32 1.0, %v8361
    %v8363 = vrcp.pop %v8325
    %v8364 = vmul.f32 1.0, %v8363
    %v8365 = vrcp.pop %v8326
    %v8366 = vmul.f32 1.0, %v8365
    %v8367 = vrcp.pop %v8327
    %v8368 = vmul.f32 1.0, %v8367
    %v8369 = vrcp.pop %v8328
    %v8370 = vmul.f32 1.0, %v8369
    %v8371 = vrcp.pop %v8329
    %v8372 = vmul.f32 1.0, %v8371
    %v8373 = vrcp.pop %v8330
    %v8374 = vmul.f32 1.0, %v8373
    %v8375 = vrcp.pop %v8331
    %v8376 = vmul.f32 1.0, %v8375
    %v8377 = vrcp.pop %v8332
    %v8378 = vmul.f32 1.0, %v8377
    %v8379 = vrcp.pop %v8333
    %v8380 = vmul.f32 1.0, %v8379
    %v8381 = vrcp.pop %v8334
    %v8382 = vmul.f32 1.0, %v8381
    %v8383 = vrcp.pop %v8335
    %v8384 = vmul.f32 1.0, %v8383
    %v8385 = vrcp.pop %v8336
    %v8386 = vmul.f32 1.0, %v8385
    %v8387 = vrcp.pop %v8337
    %v8388 = vmul.f32 1.0, %v8387
    %v8389 = vrcp.pop %v8338
    %v8390 = vmul.f32 1.0, %v8389
    %v8391 = vrcp.pop %v8339
    %v8392 = vmul.f32 1.0, %v8391
    %v8393 = vrcp.pop %v8340
    %v8394 = vmul.f32 1.0, %v8393
    %v8395 = vrcp.pop %v8341
    %v8396 = vmul.f32 1.0, %v8395
    %v8397 = vrcp.pop %v8342
    %v8398 = vmul.f32 1.0, %v8397
    %v8399 = vrcp.pop %v8343
    %v8400 = vmul.f32 1.0, %v8399
    %v8401 = vrcp.pop %v8344
    %v8402 = vmul.f32 1.0, %v8401
    %v8403 = vrcp.pop %v8345
    %v8404 = vmul.f32 1.0, %v8403
    %v8405 = vrcp.pop %v8346
    %v8406 = vmul.f32 1.0, %v8405
    %v8407 = vrcp.pop %v8347
    %v8408 = vmul.f32 1.0, %v8407
    %v8409 = vrcp.pop %v8348
    %v8410 = vmul.f32 1.0, %v8409
    %v8411 = vrcp.pop %v8349
    %v8412 = vmul.f32 1.0, %v8411
    %v8413 = vrcp.pop %v8350
    %v8414 = vmul.f32 1.0, %v8413
    %8415 = vst.msk [vmem:[%s13] sm:$0xff] %vm2876, %v8352
    %8416 = vst.msk [vmem:[%s13 + $0x8] sm:$0xff] %vm2876, %v8354
    %8417 = vst.msk [vmem:[%s13 + $0x10] sm:$0xff] %vm2876, %v8356
    %8418 = vst.msk [vmem:[%s13 + $0x18] sm:$0xff] %vm2876, %v8358
    %8419 = vst.msk [vmem:[%s13 + $0x20] sm:$0xff] %vm2876, %v8360
    %8420 = vst.msk [vmem:[%s13 + $0x28] sm:$0xff] %vm2876, %v8362
    %8421 = vst.msk [vmem:[%s13 + $0x30] sm:$0xff] %vm2876, %v8364
    %8422 = vst.msk [vmem:[%s13 + $0x38] sm:$0xff] %vm2876, %v8366
    %8423 = vst.msk [vmem:[%s13 + $0x40] sm:$0xff] %vm2876, %v8368
    %8424 = vst.msk [vmem:[%s13 + $0x48] sm:$0xff] %vm2876, %v8370
    %8425 = vst.msk [vmem:[%s13 + $0x50] sm:$0xff] %vm2876, %v8372
    %8426 = vst.msk [vmem:[%s13 + $0x58] sm:$0xff] %vm2876, %v8374
    %8427 = vst.msk [vmem:[%s13 + $0x60] sm:$0xff] %vm2876, %v8376
    %8428 = vst.msk [vmem:[%s13 + $0x68] sm:$0xff] %vm2876, %v8378
    %8429 = vst.msk [vmem:[%s13 + $0x70] sm:$0xff] %vm2876, %v8380
    %8430 = vst.msk [vmem:[%s13 + $0x78] sm:$0xff] %vm2876, %v8382
    %8431 = vst.msk [vmem:[%s13 + $0x80] sm:$0xff] %vm2876, %v8384
    %8432 = vst.msk [vmem:[%s13 + $0x88] sm:$0xff] %vm2876, %v8386
    %8433 = vst.msk [vmem:[%s13 + $0x90] sm:$0xff] %vm2876, %v8388
    %8434 = vst.msk [vmem:[%s13 + $0x98] sm:$0xff] %vm2876, %v8390
    %8435 = vst.msk [vmem:[%s13 + $0xa0] sm:$0xff] %vm2876, %v8392
    %8436 = vst.msk [vmem:[%s13 + $0xa8] sm:$0xff] %vm2876, %v8394
    %8437 = vst.msk [vmem:[%s13 + $0xb0] sm:$0xff] %vm2876, %v8396
    %8438 = vst.msk [vmem:[%s13 + $0xb8] sm:$0xff] %vm2876, %v8398
    %8439 = vst.msk [vmem:[%s13 + $0xc0] sm:$0xff] %vm2876, %v8400
    %8440 = vst.msk [vmem:[%s13 + $0xc8] sm:$0xff] %vm2876, %v8402
    %8441 = vst.msk [vmem:[%s13 + $0xd0] sm:$0xff] %vm2876, %v8404
    %8442 = vst.msk [vmem:[%s13 + $0xd8] sm:$0xff] %vm2876, %v8406
    %8443 = vst.msk [vmem:[%s13 + $0xe0] sm:$0xff] %vm2876, %v8408
    %8444 = vst.msk [vmem:[%s13 + $0xe8] sm:$0xff] %vm2876, %v8410
    %8445 = vst.msk [vmem:[%s13 + $0xf0] sm:$0xff] %vm2876, %v8412
    %8446 = vst.msk [vmem:[%s13 + $0xf8] sm:$0xff] %vm2876, %v8414
    %v8447 = vmul.f32 %v7295, %v7842
    %v8448 = vmul.f32 %v7296, %v7847
    %v8449 = vmul.f32 %v7297, %v7852
    %v8450 = vmul.f32 %v7298, %v7857
    %v8451 = vmul.f32 %v7299, %v7862
    %v8452 = vmul.f32 %v7300, %v7867
    %v8453 = vmul.f32 %v7301, %v7872
    %v8454 = vmul.f32 %v7302, %v7877
    %v8455 = vmul.f32 %v7303, %v7882
    %v8456 = vmul.f32 %v7304, %v7887
    %v8457 = vmul.f32 %v7305, %v7892
    %v8458 = vmul.f32 %v7306, %v7897
    %v8459 = vmul.f32 %v7307, %v7902
    %v8460 = vmul.f32 %v7308, %v7907
    %v8461 = vmul.f32 %v7309, %v7912
    %v8462 = vmul.f32 %v7310, %v7917
    %v8463 = vmul.f32 %v7311, %v7922
    %v8464 = vmul.f32 %v7312, %v7927
    %v8465 = vmul.f32 %v7313, %v7932
    %v8466 = vmul.f32 %v7314, %v7937
    %v8467 = vmul.f32 %v7315, %v7942
    %v8468 = vmul.f32 %v7316, %v7947
    %v8469 = vmul.f32 %v7317, %v7952
    %v8470 = vmul.f32 %v7318, %v7957
    %v8471 = vmul.f32 %v7319, %v7962
    %v8472 = vmul.f32 %v7320, %v7967
    %v8473 = vmul.f32 %v7321, %v7972
    %v8474 = vmul.f32 %v7322, %v7977
    %v8475 = vmul.f32 %v7323, %v7982
    %v8476 = vmul.f32 %v7324, %v7987
    %v8477 = vmul.f32 %v7325, %v7992
    %v8478 = vmul.f32 %v7326, %v7997
    %v8479 = vadd.f32 %v8447, %v8034
    %v8480 = vadd.f32 %v8448, %v8039
    %v8481 = vadd.f32 %v8449, %v8044
    %v8482 = vadd.f32 %v8450, %v8049
    %v8483 = vadd.f32 %v8451, %v8054
    %v8484 = vadd.f32 %v8452, %v8059
    %v8485 = vadd.f32 %v8453, %v8064
    %v8486 = vadd.f32 %v8454, %v8069
    %v8487 = vadd.f32 %v8455, %v8074
    %v8488 = vadd.f32 %v8456, %v8079
    %v8489 = vadd.f32 %v8457, %v8084
    %v8490 = vadd.f32 %v8458, %v8089
    %v8491 = vadd.f32 %v8459, %v8094
    %v8492 = vadd.f32 %v8460, %v8099
    %v8493 = vadd.f32 %v8461, %v8104
    %v8494 = vadd.f32 %v8462, %v8109
    %v8495 = vadd.f32 %v8463, %v8114
    %v8496 = vadd.f32 %v8464, %v8119
    %v8497 = vadd.f32 %v8465, %v8124
    %v8498 = vadd.f32 %v8466, %v8129
    %v8499 = vadd.f32 %v8467, %v8134
    %v8500 = vadd.f32 %v8468, %v8139
    %v8501 = vadd.f32 %v8469, %v8144
    %v8502 = vadd.f32 %v8470, %v8149
    %v8503 = vadd.f32 %v8471, %v8154
    %v8504 = vadd.f32 %v8472, %v8159
    %v8505 = vadd.f32 %v8473, %v8164
    %v8506 = vadd.f32 %v8474, %v8169
    %v8507 = vadd.f32 %v8475, %v8174
    %v8508 = vadd.f32 %v8476, %v8179
    %v8509 = vadd.f32 %v8477, %v8184
    %v8510 = vadd.f32 %v8478, %v8189
    %v8511 = vxor.u32 %v8479, 2147483648
    %v8512 = vxor.u32 %v8480, 2147483648
    %v8513 = vxor.u32 %v8481, 2147483648
    %v8514 = vxor.u32 %v8482, 2147483648
    %v8515 = vxor.u32 %v8483, 2147483648
    %v8516 = vxor.u32 %v8484, 2147483648
    %v8517 = vxor.u32 %v8485, 2147483648
    %v8518 = vxor.u32 %v8486, 2147483648
    %v8519 = vxor.u32 %v8487, 2147483648
    %v8520 = vxor.u32 %v8488, 2147483648
    %v8521 = vxor.u32 %v8489, 2147483648
    %v8522 = vxor.u32 %v8490, 2147483648
    %v8523 = vxor.u32 %v8491, 2147483648
    %v8524 = vxor.u32 %v8492, 2147483648
    %v8525 = vxor.u32 %v8493, 2147483648
    %v8526 = vxor.u32 %v8494, 2147483648
    %v8527 = vxor.u32 %v8495, 2147483648
    %v8528 = vxor.u32 %v8496, 2147483648
    %v8529 = vxor.u32 %v8497, 2147483648
    %v8530 = vxor.u32 %v8498, 2147483648
    %v8531 = vxor.u32 %v8499, 2147483648
    %v8532 = vxor.u32 %v8500, 2147483648
    %v8533 = vxor.u32 %v8501, 2147483648
    %v8534 = vxor.u32 %v8502, 2147483648
    %v8535 = vxor.u32 %v8503, 2147483648
    %v8536 = vxor.u32 %v8504, 2147483648
    %v8537 = vxor.u32 %v8505, 2147483648
    %v8538 = vxor.u32 %v8506, 2147483648
    %v8539 = vxor.u32 %v8507, 2147483648
    %v8540 = vxor.u32 %v8508, 2147483648
    %v8541 = vxor.u32 %v8509, 2147483648
    %v8542 = vxor.u32 %v8510, 2147483648
    %v8543 = vmul.f32 %v8511, 1.442695
    %v8544 = vpow.pop %v8543
    %v8545 = vmul.f32 %v8512, 1.442695
    %v8546 = vpow.pop %v8545
    %v8547 = vmul.f32 %v8513, 1.442695
    %v8548 = vpow.pop %v8547
    %v8549 = vmul.f32 %v8514, 1.442695
    %v8550 = vpow.pop %v8549
    %v8551 = vmul.f32 %v8515, 1.442695
    %v8552 = vpow.pop %v8551
    %v8553 = vmul.f32 %v8516, 1.442695
    %v8554 = vpow.pop %v8553
    %v8555 = vmul.f32 %v8517, 1.442695
    %v8556 = vpow.pop %v8555
    %v8557 = vmul.f32 %v8518, 1.442695
    %v8558 = vpow.pop %v8557
    %v8559 = vmul.f32 %v8519, 1.442695
    %v8560 = vpow.pop %v8559
    %v8561 = vmul.f32 %v8520, 1.442695
    %v8562 = vpow.pop %v8561
    %v8563 = vmul.f32 %v8521, 1.442695
    %v8564 = vpow.pop %v8563
    %v8565 = vmul.f32 %v8522, 1.442695
    %v8566 = vpow.pop %v8565
    %v8567 = vmul.f32 %v8523, 1.442695
    %v8568 = vpow.pop %v8567
    %v8569 = vmul.f32 %v8524, 1.442695
    %v8570 = vpow.pop %v8569
    %v8571 = vmul.f32 %v8525, 1.442695
    %v8572 = vpow.pop %v8571
    %v8573 = vmul.f32 %v8526, 1.442695
    %v8574 = vpow.pop %v8573
    %v8575 = vmul.f32 %v8527, 1.442695
    %v8576 = vpow.pop %v8575
    %v8577 = vmul.f32 %v8528, 1.442695
    %v8578 = vpow.pop %v8577
    %v8579 = vmul.f32 %v8529, 1.442695
    %v8580 = vpow.pop %v8579
    %v8581 = vmul.f32 %v8530, 1.442695
    %v8582 = vpow.pop %v8581
    %v8583 = vmul.f32 %v8531, 1.442695
    %v8584 = vpow.pop %v8583
    %v8585 = vmul.f32 %v8532, 1.442695
    %v8586 = vpow.pop %v8585
    %v8587 = vmul.f32 %v8533, 1.442695
    %v8588 = vpow.pop %v8587
    %v8589 = vmul.f32 %v8534, 1.442695
    %v8590 = vpow.pop %v8589
    %v8591 = vmul.f32 %v8535, 1.442695
    %v8592 = vpow.pop %v8591
    %v8593 = vmul.f32 %v8536, 1.442695
    %v8594 = vpow.pop %v8593
    %v8595 = vmul.f32 %v8537, 1.442695
    %v8596 = vpow.pop %v8595
    %v8597 = vmul.f32 %v8538, 1.442695
    %v8598 = vpow.pop %v8597
    %v8599 = vmul.f32 %v8539, 1.442695
    %v8600 = vpow.pop %v8599
    %v8601 = vmul.f32 %v8540, 1.442695
    %v8602 = vpow.pop %v8601
    %v8603 = vmul.f32 %v8541, 1.442695
    %v8604 = vpow.pop %v8603
    %v8605 = vmul.f32 %v8542, 1.442695
    %v8606 = vpow.pop %v8605
    %v8607 = vadd.f32 %v8544, 1.0
    %v8608 = vadd.f32 %v8546, 1.0
    %v8609 = vadd.f32 %v8548, 1.0
    %v8610 = vadd.f32 %v8550, 1.0
    %v8611 = vadd.f32 %v8552, 1.0
    %v8612 = vadd.f32 %v8554, 1.0
    %v8613 = vadd.f32 %v8556, 1.0
    %v8614 = vadd.f32 %v8558, 1.0
    %v8615 = vadd.f32 %v8560, 1.0
    %v8616 = vadd.f32 %v8562, 1.0
    %v8617 = vadd.f32 %v8564, 1.0
    %v8618 = vadd.f32 %v8566, 1.0
    %v8619 = vadd.f32 %v8568, 1.0
    %v8620 = vadd.f32 %v8570, 1.0
    %v8621 = vadd.f32 %v8572, 1.0
    %v8622 = vadd.f32 %v8574, 1.0
    %v8623 = vadd.f32 %v8576, 1.0
    %v8624 = vadd.f32 %v8578, 1.0
    %v8625 = vadd.f32 %v8580, 1.0
    %v8626 = vadd.f32 %v8582, 1.0
    %v8627 = vadd.f32 %v8584, 1.0
    %v8628 = vadd.f32 %v8586, 1.0
    %v8629 = vadd.f32 %v8588, 1.0
    %v8630 = vadd.f32 %v8590, 1.0
    %v8631 = vadd.f32 %v8592, 1.0
    %v8632 = vadd.f32 %v8594, 1.0
    %v8633 = vadd.f32 %v8596, 1.0
    %v8634 = vadd.f32 %v8598, 1.0
    %v8635 = vadd.f32 %v8600, 1.0
    %v8636 = vadd.f32 %v8602, 1.0
    %v8637 = vadd.f32 %v8604, 1.0
    %v8638 = vadd.f32 %v8606, 1.0
    %v8639 = vrcp.pop %v8607
    %v8640 = vmul.f32 1.0, %v8639
    %v8641 = vrcp.pop %v8608
    %v8642 = vmul.f32 1.0, %v8641
    %v8643 = vrcp.pop %v8609
    %v8644 = vmul.f32 1.0, %v8643
    %v8645 = vrcp.pop %v8610
    %v8646 = vmul.f32 1.0, %v8645
    %v8647 = vrcp.pop %v8611
    %v8648 = vmul.f32 1.0, %v8647
    %v8649 = vrcp.pop %v8612
    %v8650 = vmul.f32 1.0, %v8649
    %v8651 = vrcp.pop %v8613
    %v8652 = vmul.f32 1.0, %v8651
    %v8653 = vrcp.pop %v8614
    %v8654 = vmul.f32 1.0, %v8653
    %v8655 = vrcp.pop %v8615
    %v8656 = vmul.f32 1.0, %v8655
    %v8657 = vrcp.pop %v8616
    %v8658 = vmul.f32 1.0, %v8657
    %v8659 = vrcp.pop %v8617
    %v8660 = vmul.f32 1.0, %v8659
    %v8661 = vrcp.pop %v8618
    %v8662 = vmul.f32 1.0, %v8661
    %v8663 = vrcp.pop %v8619
    %v8664 = vmul.f32 1.0, %v8663
    %v8665 = vrcp.pop %v8620
    %v8666 = vmul.f32 1.0, %v8665
    %v8667 = vrcp.pop %v8621
    %v8668 = vmul.f32 1.0, %v8667
    %v8669 = vrcp.pop %v8622
    %v8670 = vmul.f32 1.0, %v8669
    %v8671 = vrcp.pop %v8623
    %v8672 = vmul.f32 1.0, %v8671
    %v8673 = vrcp.pop %v8624
    %v8674 = vmul.f32 1.0, %v8673
    %v8675 = vrcp.pop %v8625
    %v8676 = vmul.f32 1.0, %v8675
    %v8677 = vrcp.pop %v8626
    %v8678 = vmul.f32 1.0, %v8677
    %v8679 = vrcp.pop %v8627
    %v8680 = vmul.f32 1.0, %v8679
    %v8681 = vrcp.pop %v8628
    %v8682 = vmul.f32 1.0, %v8681
    %v8683 = vrcp.pop %v8629
    %v8684 = vmul.f32 1.0, %v8683
    %v8685 = vrcp.pop %v8630
    %v8686 = vmul.f32 1.0, %v8685
    %v8687 = vrcp.pop %v8631
    %v8688 = vmul.f32 1.0, %v8687
    %v8689 = vrcp.pop %v8632
    %v8690 = vmul.f32 1.0, %v8689
    %v8691 = vrcp.pop %v8633
    %v8692 = vmul.f32 1.0, %v8691
    %v8693 = vrcp.pop %v8634
    %v8694 = vmul.f32 1.0, %v8693
    %v8695 = vrcp.pop %v8635
    %v8696 = vmul.f32 1.0, %v8695
    %v8697 = vrcp.pop %v8636
    %v8698 = vmul.f32 1.0, %v8697
    %v8699 = vrcp.pop %v8637
    %v8700 = vmul.f32 1.0, %v8699
    %v8701 = vrcp.pop %v8638
    %v8702 = vmul.f32 1.0, %v8701
    %s8703 = scalar_lea.vmem %s13, 256
    %8704 = vst.msk [vmem:[%s8703] sm:$0xff] %vm2876, %v8640
    %8705 = vst.msk [vmem:[%s8703 + $0x8] sm:$0xff] %vm2876, %v8642
    %8706 = vst.msk [vmem:[%s8703 + $0x10] sm:$0xff] %vm2876, %v8644
    %8707 = vst.msk [vmem:[%s8703 + $0x18] sm:$0xff] %vm2876, %v8646
    %8708 = vst.msk [vmem:[%s8703 + $0x20] sm:$0xff] %vm2876, %v8648
    %8709 = vst.msk [vmem:[%s8703 + $0x28] sm:$0xff] %vm2876, %v8650
    %8710 = vst.msk [vmem:[%s8703 + $0x30] sm:$0xff] %vm2876, %v8652
    %8711 = vst.msk [vmem:[%s8703 + $0x38] sm:$0xff] %vm2876, %v8654
    %8712 = vst.msk [vmem:[%s8703 + $0x40] sm:$0xff] %vm2876, %v8656
    %8713 = vst.msk [vmem:[%s8703 + $0x48] sm:$0xff] %vm2876, %v8658
    %8714 = vst.msk [vmem:[%s8703 + $0x50] sm:$0xff] %vm2876, %v8660
    %8715 = vst.msk [vmem:[%s8703 + $0x58] sm:$0xff] %vm2876, %v8662
    %8716 = vst.msk [vmem:[%s8703 + $0x60] sm:$0xff] %vm2876, %v8664
    %8717 = vst.msk [vmem:[%s8703 + $0x68] sm:$0xff] %vm2876, %v8666
    %8718 = vst.msk [vmem:[%s8703 + $0x70] sm:$0xff] %vm2876, %v8668
    %8719 = vst.msk [vmem:[%s8703 + $0x78] sm:$0xff] %vm2876, %v8670
    %8720 = vst.msk [vmem:[%s8703 + $0x80] sm:$0xff] %vm2876, %v8672
    %8721 = vst.msk [vmem:[%s8703 + $0x88] sm:$0xff] %vm2876, %v8674
    %8722 = vst.msk [vmem:[%s8703 + $0x90] sm:$0xff] %vm2876, %v8676
    %8723 = vst.msk [vmem:[%s8703 + $0x98] sm:$0xff] %vm2876, %v8678
    %8724 = vst.msk [vmem:[%s8703 + $0xa0] sm:$0xff] %vm2876, %v8680
    %8725 = vst.msk [vmem:[%s8703 + $0xa8] sm:$0xff] %vm2876, %v8682
    %8726 = vst.msk [vmem:[%s8703 + $0xb0] sm:$0xff] %vm2876, %v8684
    %8727 = vst.msk [vmem:[%s8703 + $0xb8] sm:$0xff] %vm2876, %v8686
    %8728 = vst.msk [vmem:[%s8703 + $0xc0] sm:$0xff] %vm2876, %v8688
    %8729 = vst.msk [vmem:[%s8703 + $0xc8] sm:$0xff] %vm2876, %v8690
    %8730 = vst.msk [vmem:[%s8703 + $0xd0] sm:$0xff] %vm2876, %v8692
    %8731 = vst.msk [vmem:[%s8703 + $0xd8] sm:$0xff] %vm2876, %v8694
    %8732 = vst.msk [vmem:[%s8703 + $0xe0] sm:$0xff] %vm2876, %v8696
    %8733 = vst.msk [vmem:[%s8703 + $0xe8] sm:$0xff] %vm2876, %v8698
    %8734 = vst.msk [vmem:[%s8703 + $0xf0] sm:$0xff] %vm2876, %v8700
    %8735 = vst.msk [vmem:[%s8703 + $0xf8] sm:$0xff] %vm2876, %v8702
    %8768 = vrot.lane.b32.xlu0 %v8352, 2
    %v8769 = vpop.permute.xlu0 %8768
    %8770 = vrot.lane.b32.xlu0 %v8354, 2
    %v8771 = vpop.permute.xlu0 %8770
    %8772 = vrot.lane.b32.xlu0 %v8356, 2
    %v8773 = vpop.permute.xlu0 %8772
    %8774 = vrot.lane.b32.xlu0 %v8358, 2
    %v8775 = vpop.permute.xlu0 %8774
    %8776 = vrot.lane.b32.xlu0 %v8360, 2
    %v8777 = vpop.permute.xlu0 %8776
    %8778 = vrot.lane.b32.xlu0 %v8362, 2
    %v8779 = vpop.permute.xlu0 %8778
    %8780 = vrot.lane.b32.xlu0 %v8364, 2
    %v8781 = vpop.permute.xlu0 %8780
    %8782 = vrot.lane.b32.xlu0 %v8366, 2
    %v8783 = vpop.permute.xlu0 %8782
    %8784 = vrot.lane.b32.xlu0 %v8368, 2
    %v8785 = vpop.permute.xlu0 %8784
    %8786 = vrot.lane.b32.xlu0 %v8370, 2
    %v8787 = vpop.permute.xlu0 %8786
    %8788 = vrot.lane.b32.xlu0 %v8372, 2
    %v8789 = vpop.permute.xlu0 %8788
    %8790 = vrot.lane.b32.xlu0 %v8374, 2
    %v8791 = vpop.permute.xlu0 %8790
    %8792 = vrot.lane.b32.xlu0 %v8376, 2
    %v8793 = vpop.permute.xlu0 %8792
    %8794 = vrot.lane.b32.xlu0 %v8378, 2
    %v8795 = vpop.permute.xlu0 %8794
    %8796 = vrot.lane.b32.xlu0 %v8380, 2
    %v8797 = vpop.permute.xlu0 %8796
    %8798 = vrot.lane.b32.xlu0 %v8382, 2
    %v8799 = vpop.permute.xlu0 %8798
    %8800 = vrot.lane.b32.xlu0 %v8384, 2
    %v8801 = vpop.permute.xlu0 %8800
    %8802 = vrot.lane.b32.xlu0 %v8386, 2
    %v8803 = vpop.permute.xlu0 %8802
    %8804 = vrot.lane.b32.xlu0 %v8388, 2
    %v8805 = vpop.permute.xlu0 %8804
    %8806 = vrot.lane.b32.xlu0 %v8390, 2
    %v8807 = vpop.permute.xlu0 %8806
    %8808 = vrot.lane.b32.xlu0 %v8392, 2
    %v8809 = vpop.permute.xlu0 %8808
    %8810 = vrot.lane.b32.xlu0 %v8394, 2
    %v8811 = vpop.permute.xlu0 %8810
    %8812 = vrot.lane.b32.xlu0 %v8396, 2
    %v8813 = vpop.permute.xlu0 %8812
    %8814 = vrot.lane.b32.xlu0 %v8398, 2
    %v8815 = vpop.permute.xlu0 %8814
    %8816 = vrot.lane.b32.xlu0 %v8400, 2
    %v8817 = vpop.permute.xlu0 %8816
    %8818 = vrot.lane.b32.xlu0 %v8402, 2
    %v8819 = vpop.permute.xlu0 %8818
    %8820 = vrot.lane.b32.xlu0 %v8404, 2
    %v8821 = vpop.permute.xlu0 %8820
    %8822 = vrot.lane.b32.xlu0 %v8406, 2
    %v8823 = vpop.permute.xlu0 %8822
    %8824 = vrot.lane.b32.xlu0 %v8408, 2
    %v8825 = vpop.permute.xlu0 %8824
    %8826 = vrot.lane.b32.xlu0 %v8410, 2
    %v8827 = vpop.permute.xlu0 %8826
    %8828 = vrot.lane.b32.xlu0 %v8412, 2
    %v8829 = vpop.permute.xlu0 %8828
    %8830 = vrot.lane.b32.xlu0 %v8414, 2
    %v8831 = vpop.permute.xlu0 %8830
    %8864 = vst.msk [vmem:[#allocation4] sm:$0xff] %vm3823, %v8769
    %8865 = vst.msk [vmem:[#allocation4 + $0x8] sm:$0xff] %vm3823, %v8771
    %8866 = vst.msk [vmem:[#allocation4 + $0x10] sm:$0xff] %vm3823, %v8773
    %8867 = vst.msk [vmem:[#allocation4 + $0x18] sm:$0xff] %vm3823, %v8775
    %8868 = vst.msk [vmem:[#allocation4 + $0x20] sm:$0xff] %vm3823, %v8777
    %8869 = vst.msk [vmem:[#allocation4 + $0x28] sm:$0xff] %vm3823, %v8779
    %8870 = vst.msk [vmem:[#allocation4 + $0x30] sm:$0xff] %vm3823, %v8781
    %8871 = vst.msk [vmem:[#allocation4 + $0x38] sm:$0xff] %vm3823, %v8783
    %8872 = vst.msk [vmem:[#allocation4 + $0x40] sm:$0xff] %vm3823, %v8785
    %8873 = vst.msk [vmem:[#allocation4 + $0x48] sm:$0xff] %vm3823, %v8787
    %8874 = vst.msk [vmem:[#allocation4 + $0x50] sm:$0xff] %vm3823, %v8789
    %8875 = vst.msk [vmem:[#allocation4 + $0x58] sm:$0xff] %vm3823, %v8791
    %8876 = vst.msk [vmem:[#allocation4 + $0x60] sm:$0xff] %vm3823, %v8793
    %8877 = vst.msk [vmem:[#allocation4 + $0x68] sm:$0xff] %vm3823, %v8795
    %8878 = vst.msk [vmem:[#allocation4 + $0x70] sm:$0xff] %vm3823, %v8797
    %8879 = vst.msk [vmem:[#allocation4 + $0x78] sm:$0xff] %vm3823, %v8799
    %8880 = vst.msk [vmem:[#allocation4 + $0x80] sm:$0xff] %vm3823, %v8801
    %8881 = vst.msk [vmem:[#allocation4 + $0x88] sm:$0xff] %vm3823, %v8803
    %8882 = vst.msk [vmem:[#allocation4 + $0x90] sm:$0xff] %vm3823, %v8805
    %8883 = vst.msk [vmem:[#allocation4 + $0x98] sm:$0xff] %vm3823, %v8807
    %8884 = vst.msk [vmem:[#allocation4 + $0xa0] sm:$0xff] %vm3823, %v8809
    %8885 = vst.msk [vmem:[#allocation4 + $0xa8] sm:$0xff] %vm3823, %v8811
    %8886 = vst.msk [vmem:[#allocation4 + $0xb0] sm:$0xff] %vm3823, %v8813
    %8887 = vst.msk [vmem:[#allocation4 + $0xb8] sm:$0xff] %vm3823, %v8815
    %8888 = vst.msk [vmem:[#allocation4 + $0xc0] sm:$0xff] %vm3823, %v8817
    %8889 = vst.msk [vmem:[#allocation4 + $0xc8] sm:$0xff] %vm3823, %v8819
    %8890 = vst.msk [vmem:[#allocation4 + $0xd0] sm:$0xff] %vm3823, %v8821
    %8891 = vst.msk [vmem:[#allocation4 + $0xd8] sm:$0xff] %vm3823, %v8823
    %8892 = vst.msk [vmem:[#allocation4 + $0xe0] sm:$0xff] %vm3823, %v8825
    %8893 = vst.msk [vmem:[#allocation4 + $0xe8] sm:$0xff] %vm3823, %v8827
    %8894 = vst.msk [vmem:[#allocation4 + $0xf0] sm:$0xff] %vm3823, %v8829
    %8895 = vst.msk [vmem:[#allocation4 + $0xf8] sm:$0xff] %vm3823, %v8831
    %8928 = vrot.lane.b32.xlu0 %v8640, 2
    %v8929 = vpop.permute.xlu0 %8928
    %8930 = vrot.lane.b32.xlu0 %v8642, 2
    %v8931 = vpop.permute.xlu0 %8930
    %8932 = vrot.lane.b32.xlu0 %v8644, 2
    %v8933 = vpop.permute.xlu0 %8932
    %8934 = vrot.lane.b32.xlu0 %v8646, 2
    %v8935 = vpop.permute.xlu0 %8934
    %8936 = vrot.lane.b32.xlu0 %v8648, 2
    %v8937 = vpop.permute.xlu0 %8936
    %8938 = vrot.lane.b32.xlu0 %v8650, 2
    %v8939 = vpop.permute.xlu0 %8938
    %8940 = vrot.lane.b32.xlu0 %v8652, 2
    %v8941 = vpop.permute.xlu0 %8940
    %8942 = vrot.lane.b32.xlu0 %v8654, 2
    %v8943 = vpop.permute.xlu0 %8942
    %8944 = vrot.lane.b32.xlu0 %v8656, 2
    %v8945 = vpop.permute.xlu0 %8944
    %8946 = vrot.lane.b32.xlu0 %v8658, 2
    %v8947 = vpop.permute.xlu0 %8946
    %8948 = vrot.lane.b32.xlu0 %v8660, 2
    %v8949 = vpop.permute.xlu0 %8948
    %8950 = vrot.lane.b32.xlu0 %v8662, 2
    %v8951 = vpop.permute.xlu0 %8950
    %8952 = vrot.lane.b32.xlu0 %v8664, 2
    %v8953 = vpop.permute.xlu0 %8952
    %8954 = vrot.lane.b32.xlu0 %v8666, 2
    %v8955 = vpop.permute.xlu0 %8954
    %8956 = vrot.lane.b32.xlu0 %v8668, 2
    %v8957 = vpop.permute.xlu0 %8956
    %8958 = vrot.lane.b32.xlu0 %v8670, 2
    %v8959 = vpop.permute.xlu0 %8958
    %8960 = vrot.lane.b32.xlu0 %v8672, 2
    %v8961 = vpop.permute.xlu0 %8960
    %8962 = vrot.lane.b32.xlu0 %v8674, 2
    %v8963 = vpop.permute.xlu0 %8962
    %8964 = vrot.lane.b32.xlu0 %v8676, 2
    %v8965 = vpop.permute.xlu0 %8964
    %8966 = vrot.lane.b32.xlu0 %v8678, 2
    %v8967 = vpop.permute.xlu0 %8966
    %8968 = vrot.lane.b32.xlu0 %v8680, 2
    %v8969 = vpop.permute.xlu0 %8968
    %8970 = vrot.lane.b32.xlu0 %v8682, 2
    %v8971 = vpop.permute.xlu0 %8970
    %8972 = vrot.lane.b32.xlu0 %v8684, 2
    %v8973 = vpop.permute.xlu0 %8972
    %8974 = vrot.lane.b32.xlu0 %v8686, 2
    %v8975 = vpop.permute.xlu0 %8974
    %8976 = vrot.lane.b32.xlu0 %v8688, 2
    %v8977 = vpop.permute.xlu0 %8976
    %8978 = vrot.lane.b32.xlu0 %v8690, 2
    %v8979 = vpop.permute.xlu0 %8978
    %8980 = vrot.lane.b32.xlu0 %v8692, 2
    %v8981 = vpop.permute.xlu0 %8980
    %8982 = vrot.lane.b32.xlu0 %v8694, 2
    %v8983 = vpop.permute.xlu0 %8982
    %8984 = vrot.lane.b32.xlu0 %v8696, 2
    %v8985 = vpop.permute.xlu0 %8984
    %8986 = vrot.lane.b32.xlu0 %v8698, 2
    %v8987 = vpop.permute.xlu0 %8986
    %8988 = vrot.lane.b32.xlu0 %v8700, 2
    %v8989 = vpop.permute.xlu0 %8988
    %8990 = vrot.lane.b32.xlu0 %v8702, 2
    %v8991 = vpop.permute.xlu0 %8990
    %s9024 = scalar_lea.vmem [#allocation4], 256
    %9025 = vst.msk [vmem:[%s9024] sm:$0xff] %vm3823, %v8929
    %9026 = vst.msk [vmem:[%s9024 + $0x8] sm:$0xff] %vm3823, %v8931
    %9027 = vst.msk [vmem:[%s9024 + $0x10] sm:$0xff] %vm3823, %v8933
    %9028 = vst.msk [vmem:[%s9024 + $0x18] sm:$0xff] %vm3823, %v8935
    %9029 = vst.msk [vmem:[%s9024 + $0x20] sm:$0xff] %vm3823, %v8937
    %9030 = vst.msk [vmem:[%s9024 + $0x28] sm:$0xff] %vm3823, %v8939
    %9031 = vst.msk [vmem:[%s9024 + $0x30] sm:$0xff] %vm3823, %v8941
    %9032 = vst.msk [vmem:[%s9024 + $0x38] sm:$0xff] %vm3823, %v8943
    %9033 = vst.msk [vmem:[%s9024 + $0x40] sm:$0xff] %vm3823, %v8945
    %9034 = vst.msk [vmem:[%s9024 + $0x48] sm:$0xff] %vm3823, %v8947
    %9035 = vst.msk [vmem:[%s9024 + $0x50] sm:$0xff] %vm3823, %v8949
    %9036 = vst.msk [vmem:[%s9024 + $0x58] sm:$0xff] %vm3823, %v8951
    %9037 = vst.msk [vmem:[%s9024 + $0x60] sm:$0xff] %vm3823, %v8953
    %9038 = vst.msk [vmem:[%s9024 + $0x68] sm:$0xff] %vm3823, %v8955
    %9039 = vst.msk [vmem:[%s9024 + $0x70] sm:$0xff] %vm3823, %v8957
    %9040 = vst.msk [vmem:[%s9024 + $0x78] sm:$0xff] %vm3823, %v8959
    %9041 = vst.msk [vmem:[%s9024 + $0x80] sm:$0xff] %vm3823, %v8961
    %9042 = vst.msk [vmem:[%s9024 + $0x88] sm:$0xff] %vm3823, %v8963
    %9043 = vst.msk [vmem:[%s9024 + $0x90] sm:$0xff] %vm3823, %v8965
    %9044 = vst.msk [vmem:[%s9024 + $0x98] sm:$0xff] %vm3823, %v8967
    %9045 = vst.msk [vmem:[%s9024 + $0xa0] sm:$0xff] %vm3823, %v8969
    %9046 = vst.msk [vmem:[%s9024 + $0xa8] sm:$0xff] %vm3823, %v8971
    %9047 = vst.msk [vmem:[%s9024 + $0xb0] sm:$0xff] %vm3823, %v8973
    %9048 = vst.msk [vmem:[%s9024 + $0xb8] sm:$0xff] %vm3823, %v8975
    %9049 = vst.msk [vmem:[%s9024 + $0xc0] sm:$0xff] %vm3823, %v8977
    %9050 = vst.msk [vmem:[%s9024 + $0xc8] sm:$0xff] %vm3823, %v8979
    %9051 = vst.msk [vmem:[%s9024 + $0xd0] sm:$0xff] %vm3823, %v8981
    %9052 = vst.msk [vmem:[%s9024 + $0xd8] sm:$0xff] %vm3823, %v8983
    %9053 = vst.msk [vmem:[%s9024 + $0xe0] sm:$0xff] %vm3823, %v8985
    %9054 = vst.msk [vmem:[%s9024 + $0xe8] sm:$0xff] %vm3823, %v8987
    %9055 = vst.msk [vmem:[%s9024 + $0xf0] sm:$0xff] %vm3823, %v8989
    %9056 = vst.msk [vmem:[%s9024 + $0xf8] sm:$0xff] %vm3823, %v8991
    %v9057 = vld [vmem:[#allocation5] sm:$0xff]
    %v9058 = vld [vmem:[#allocation5 + $0x8] sm:$0xff]
    %v9059 = vld [vmem:[#allocation5 + $0x10] sm:$0xff]
    %v9060 = vld [vmem:[#allocation5 + $0x18] sm:$0xff]
    %v9061 = vld [vmem:[#allocation5 + $0x20] sm:$0xff]
    %v9062 = vld [vmem:[#allocation5 + $0x28] sm:$0xff]
    %v9063 = vld [vmem:[#allocation5 + $0x30] sm:$0xff]
    %v9064 = vld [vmem:[#allocation5 + $0x38] sm:$0xff]
    %v9065 = vld [vmem:[#allocation5 + $0x40] sm:$0xff]
    %v9066 = vld [vmem:[#allocation5 + $0x48] sm:$0xff]
    %v9067 = vld [vmem:[#allocation5 + $0x50] sm:$0xff]
    %v9068 = vld [vmem:[#allocation5 + $0x58] sm:$0xff]
    %v9069 = vld [vmem:[#allocation5 + $0x60] sm:$0xff]
    %v9070 = vld [vmem:[#allocation5 + $0x68] sm:$0xff]
    %v9071 = vld [vmem:[#allocation5 + $0x70] sm:$0xff]
    %v9072 = vld [vmem:[#allocation5 + $0x78] sm:$0xff]
    %v9073 = vld [vmem:[#allocation5 + $0x80] sm:$0xff]
    %v9074 = vld [vmem:[#allocation5 + $0x88] sm:$0xff]
    %v9075 = vld [vmem:[#allocation5 + $0x90] sm:$0xff]
    %v9076 = vld [vmem:[#allocation5 + $0x98] sm:$0xff]
    %v9077 = vld [vmem:[#allocation5 + $0xa0] sm:$0xff]
    %v9078 = vld [vmem:[#allocation5 + $0xa8] sm:$0xff]
    %v9079 = vld [vmem:[#allocation5 + $0xb0] sm:$0xff]
    %v9080 = vld [vmem:[#allocation5 + $0xb8] sm:$0xff]
    %v9081 = vld [vmem:[#allocation5 + $0xc0] sm:$0xff]
    %v9082 = vld [vmem:[#allocation5 + $0xc8] sm:$0xff]
    %v9083 = vld [vmem:[#allocation5 + $0xd0] sm:$0xff]
    %v9084 = vld [vmem:[#allocation5 + $0xd8] sm:$0xff]
    %v9085 = vld [vmem:[#allocation5 + $0xe0] sm:$0xff]
    %v9086 = vld [vmem:[#allocation5 + $0xe8] sm:$0xff]
    %v9087 = vld [vmem:[#allocation5 + $0xf0] sm:$0xff]
    %v9088 = vld [vmem:[#allocation5 + $0xf8] sm:$0xff]
    %s9089 = scalar_lea.vmem [#allocation5], 256
    %v9090 = vld [vmem:[%s9089] sm:$0xff]
    %v9091 = vld [vmem:[%s9089 + $0x8] sm:$0xff]
    %v9092 = vld [vmem:[%s9089 + $0x10] sm:$0xff]
    %v9093 = vld [vmem:[%s9089 + $0x18] sm:$0xff]
    %v9094 = vld [vmem:[%s9089 + $0x20] sm:$0xff]
    %v9095 = vld [vmem:[%s9089 + $0x28] sm:$0xff]
    %v9096 = vld [vmem:[%s9089 + $0x30] sm:$0xff]
    %v9097 = vld [vmem:[%s9089 + $0x38] sm:$0xff]
    %v9098 = vld [vmem:[%s9089 + $0x40] sm:$0xff]
    %v9099 = vld [vmem:[%s9089 + $0x48] sm:$0xff]
    %v9100 = vld [vmem:[%s9089 + $0x50] sm:$0xff]
    %v9101 = vld [vmem:[%s9089 + $0x58] sm:$0xff]
    %v9102 = vld [vmem:[%s9089 + $0x60] sm:$0xff]
    %v9103 = vld [vmem:[%s9089 + $0x68] sm:$0xff]
    %v9104 = vld [vmem:[%s9089 + $0x70] sm:$0xff]
    %v9105 = vld [vmem:[%s9089 + $0x78] sm:$0xff]
    %v9106 = vld [vmem:[%s9089 + $0x80] sm:$0xff]
    %v9107 = vld [vmem:[%s9089 + $0x88] sm:$0xff]
    %v9108 = vld [vmem:[%s9089 + $0x90] sm:$0xff]
    %v9109 = vld [vmem:[%s9089 + $0x98] sm:$0xff]
    %v9110 = vld [vmem:[%s9089 + $0xa0] sm:$0xff]
    %v9111 = vld [vmem:[%s9089 + $0xa8] sm:$0xff]
    %v9112 = vld [vmem:[%s9089 + $0xb0] sm:$0xff]
    %v9113 = vld [vmem:[%s9089 + $0xb8] sm:$0xff]
    %v9114 = vld [vmem:[%s9089 + $0xc0] sm:$0xff]
    %v9115 = vld [vmem:[%s9089 + $0xc8] sm:$0xff]
    %v9116 = vld [vmem:[%s9089 + $0xd0] sm:$0xff]
    %v9117 = vld [vmem:[%s9089 + $0xd8] sm:$0xff]
    %v9118 = vld [vmem:[%s9089 + $0xe0] sm:$0xff]
    %v9119 = vld [vmem:[%s9089 + $0xe8] sm:$0xff]
    %v9120 = vld [vmem:[%s9089 + $0xf0] sm:$0xff]
    %v9121 = vld [vmem:[%s9089 + $0xf8] sm:$0xff]
    %s9122 = scalar_lea.vmem [#allocation5], 512
    %v9123 = vld [vmem:[%s9122] sm:$0xff]
    %v9124 = vld [vmem:[%s9122 + $0x8] sm:$0xff]
    %v9125 = vld [vmem:[%s9122 + $0x10] sm:$0xff]
    %v9126 = vld [vmem:[%s9122 + $0x18] sm:$0xff]
    %v9127 = vld [vmem:[%s9122 + $0x20] sm:$0xff]
    %v9128 = vld [vmem:[%s9122 + $0x28] sm:$0xff]
    %v9129 = vld [vmem:[%s9122 + $0x30] sm:$0xff]
    %v9130 = vld [vmem:[%s9122 + $0x38] sm:$0xff]
    %v9131 = vld [vmem:[%s9122 + $0x40] sm:$0xff]
    %v9132 = vld [vmem:[%s9122 + $0x48] sm:$0xff]
    %v9133 = vld [vmem:[%s9122 + $0x50] sm:$0xff]
    %v9134 = vld [vmem:[%s9122 + $0x58] sm:$0xff]
    %v9135 = vld [vmem:[%s9122 + $0x60] sm:$0xff]
    %v9136 = vld [vmem:[%s9122 + $0x68] sm:$0xff]
    %v9137 = vld [vmem:[%s9122 + $0x70] sm:$0xff]
    %v9138 = vld [vmem:[%s9122 + $0x78] sm:$0xff]
    %v9139 = vld [vmem:[%s9122 + $0x80] sm:$0xff]
    %v9140 = vld [vmem:[%s9122 + $0x88] sm:$0xff]
    %v9141 = vld [vmem:[%s9122 + $0x90] sm:$0xff]
    %v9142 = vld [vmem:[%s9122 + $0x98] sm:$0xff]
    %v9143 = vld [vmem:[%s9122 + $0xa0] sm:$0xff]
    %v9144 = vld [vmem:[%s9122 + $0xa8] sm:$0xff]
    %v9145 = vld [vmem:[%s9122 + $0xb0] sm:$0xff]
    %v9146 = vld [vmem:[%s9122 + $0xb8] sm:$0xff]
    %v9147 = vld [vmem:[%s9122 + $0xc0] sm:$0xff]
    %v9148 = vld [vmem:[%s9122 + $0xc8] sm:$0xff]
    %v9149 = vld [vmem:[%s9122 + $0xd0] sm:$0xff]
    %v9150 = vld [vmem:[%s9122 + $0xd8] sm:$0xff]
    %v9151 = vld [vmem:[%s9122 + $0xe0] sm:$0xff]
    %v9152 = vld [vmem:[%s9122 + $0xe8] sm:$0xff]
    %v9153 = vld [vmem:[%s9122 + $0xf0] sm:$0xff]
    %v9154 = vld [vmem:[%s9122 + $0xf8] sm:$0xff]
    %v9155 = vld [vmem:[#allocation4] sm:$0xff]
    %v9156 = vld [vmem:[#allocation4 + $0x8] sm:$0xff]
    %v9157 = vld [vmem:[#allocation4 + $0x10] sm:$0xff]
    %v9158 = vld [vmem:[#allocation4 + $0x18] sm:$0xff]
    %v9159 = vld [vmem:[#allocation4 + $0x20] sm:$0xff]
    %v9160 = vld [vmem:[#allocation4 + $0x28] sm:$0xff]
    %v9161 = vld [vmem:[#allocation4 + $0x30] sm:$0xff]
    %v9162 = vld [vmem:[#allocation4 + $0x38] sm:$0xff]
    %v9163 = vld [vmem:[#allocation4 + $0x40] sm:$0xff]
    %v9164 = vld [vmem:[#allocation4 + $0x48] sm:$0xff]
    %v9165 = vld [vmem:[#allocation4 + $0x50] sm:$0xff]
    %v9166 = vld [vmem:[#allocation4 + $0x58] sm:$0xff]
    %v9167 = vld [vmem:[#allocation4 + $0x60] sm:$0xff]
    %v9168 = vld [vmem:[#allocation4 + $0x68] sm:$0xff]
    %v9169 = vld [vmem:[#allocation4 + $0x70] sm:$0xff]
    %v9170 = vld [vmem:[#allocation4 + $0x78] sm:$0xff]
    %v9171 = vld [vmem:[#allocation4 + $0x80] sm:$0xff]
    %v9172 = vld [vmem:[#allocation4 + $0x88] sm:$0xff]
    %v9173 = vld [vmem:[#allocation4 + $0x90] sm:$0xff]
    %v9174 = vld [vmem:[#allocation4 + $0x98] sm:$0xff]
    %v9175 = vld [vmem:[#allocation4 + $0xa0] sm:$0xff]
    %v9176 = vld [vmem:[#allocation4 + $0xa8] sm:$0xff]
    %v9177 = vld [vmem:[#allocation4 + $0xb0] sm:$0xff]
    %v9178 = vld [vmem:[#allocation4 + $0xb8] sm:$0xff]
    %v9179 = vld [vmem:[#allocation4 + $0xc0] sm:$0xff]
    %v9180 = vld [vmem:[#allocation4 + $0xc8] sm:$0xff]
    %v9181 = vld [vmem:[#allocation4 + $0xd0] sm:$0xff]
    %v9182 = vld [vmem:[#allocation4 + $0xd8] sm:$0xff]
    %v9183 = vld [vmem:[#allocation4 + $0xe0] sm:$0xff]
    %v9184 = vld [vmem:[#allocation4 + $0xe8] sm:$0xff]
    %v9185 = vld [vmem:[#allocation4 + $0xf0] sm:$0xff]
    %v9186 = vld [vmem:[#allocation4 + $0xf8] sm:$0xff]
    %9219 = vrot.lane.b32.xlu0 %v9155, 127
    %v9220 = vpop.permute.xlu0 %9219
    %9221 = vrot.lane.b32.xlu0 %v9156, 127
    %v9222 = vpop.permute.xlu0 %9221
    %9223 = vrot.lane.b32.xlu0 %v9157, 127
    %v9224 = vpop.permute.xlu0 %9223
    %9225 = vrot.lane.b32.xlu0 %v9158, 127
    %v9226 = vpop.permute.xlu0 %9225
    %9227 = vrot.lane.b32.xlu0 %v9159, 127
    %v9228 = vpop.permute.xlu0 %9227
    %9229 = vrot.lane.b32.xlu0 %v9160, 127
    %v9230 = vpop.permute.xlu0 %9229
    %9231 = vrot.lane.b32.xlu0 %v9161, 127
    %v9232 = vpop.permute.xlu0 %9231
    %9233 = vrot.lane.b32.xlu0 %v9162, 127
    %v9234 = vpop.permute.xlu0 %9233
    %9235 = vrot.lane.b32.xlu0 %v9163, 127
    %v9236 = vpop.permute.xlu0 %9235
    %9237 = vrot.lane.b32.xlu0 %v9164, 127
    %v9238 = vpop.permute.xlu0 %9237
    %9239 = vrot.lane.b32.xlu0 %v9165, 127
    %v9240 = vpop.permute.xlu0 %9239
    %9241 = vrot.lane.b32.xlu0 %v9166, 127
    %v9242 = vpop.permute.xlu0 %9241
    %9243 = vrot.lane.b32.xlu0 %v9167, 127
    %v9244 = vpop.permute.xlu0 %9243
    %9245 = vrot.lane.b32.xlu0 %v9168, 127
    %v9246 = vpop.permute.xlu0 %9245
    %9247 = vrot.lane.b32.xlu0 %v9169, 127
    %v9248 = vpop.permute.xlu0 %9247
    %9249 = vrot.lane.b32.xlu0 %v9170, 127
    %v9250 = vpop.permute.xlu0 %9249
    %9251 = vrot.lane.b32.xlu0 %v9171, 127
    %v9252 = vpop.permute.xlu0 %9251
    %9253 = vrot.lane.b32.xlu0 %v9172, 127
    %v9254 = vpop.permute.xlu0 %9253
    %9255 = vrot.lane.b32.xlu0 %v9173, 127
    %v9256 = vpop.permute.xlu0 %9255
    %9257 = vrot.lane.b32.xlu0 %v9174, 127
    %v9258 = vpop.permute.xlu0 %9257
    %9259 = vrot.lane.b32.xlu0 %v9175, 127
    %v9260 = vpop.permute.xlu0 %9259
    %9261 = vrot.lane.b32.xlu0 %v9176, 127
    %v9262 = vpop.permute.xlu0 %9261
    %9263 = vrot.lane.b32.xlu0 %v9177, 127
    %v9264 = vpop.permute.xlu0 %9263
    %9265 = vrot.lane.b32.xlu0 %v9178, 127
    %v9266 = vpop.permute.xlu0 %9265
    %9267 = vrot.lane.b32.xlu0 %v9179, 127
    %v9268 = vpop.permute.xlu0 %9267
    %9269 = vrot.lane.b32.xlu0 %v9180, 127
    %v9270 = vpop.permute.xlu0 %9269
    %9271 = vrot.lane.b32.xlu0 %v9181, 127
    %v9272 = vpop.permute.xlu0 %9271
    %9273 = vrot.lane.b32.xlu0 %v9182, 127
    %v9274 = vpop.permute.xlu0 %9273
    %9275 = vrot.lane.b32.xlu0 %v9183, 127
    %v9276 = vpop.permute.xlu0 %9275
    %9277 = vrot.lane.b32.xlu0 %v9184, 127
    %v9278 = vpop.permute.xlu0 %9277
    %9279 = vrot.lane.b32.xlu0 %v9185, 127
    %v9280 = vpop.permute.xlu0 %9279
    %9281 = vrot.lane.b32.xlu0 %v9186, 127
    %v9282 = vpop.permute.xlu0 %9281
    %9315 = vmatprep.subr.mxu0 0.0
    %9316 = vmatpush1.msra.mxu0 %v9220
    %9317 = vmatprep.subr.mxu0 0.0
    %9318 = vmatpush1.msra.mxu0 %v9222
    %9319 = vmatprep.subr.mxu0 0.0
    %9320 = vmatpush1.msra.mxu0 %v9224
    %9321 = vmatprep.subr.mxu0 0.0
    %9322 = vmatpush1.msra.mxu0 %v9226
    %9323 = vmatprep.subr.mxu0 0.0
    %9324 = vmatpush1.msra.mxu0 %v9228
    %9325 = vmatprep.subr.mxu0 0.0
    %9326 = vmatpush1.msra.mxu0 %v9230
    %9327 = vmatprep.subr.mxu0 0.0
    %9328 = vmatpush1.msra.mxu0 %v9232
    %9329 = vmatprep.subr.mxu0 0.0
    %9330 = vmatpush1.msra.mxu0 %v9234
    %9331 = vmatprep.subr.mxu0 0.0
    %9332 = vmatpush1.msra.mxu0 %v9236
    %9333 = vmatprep.subr.mxu0 0.0
    %9334 = vmatpush1.msra.mxu0 %v9238
    %9335 = vmatprep.subr.mxu0 0.0
    %9336 = vmatpush1.msra.mxu0 %v9240
    %9337 = vmatprep.subr.mxu0 0.0
    %9338 = vmatpush1.msra.mxu0 %v9242
    %9339 = vmatprep.subr.mxu0 0.0
    %9340 = vmatpush1.msra.mxu0 %v9244
    %9341 = vmatprep.subr.mxu0 0.0
    %9342 = vmatpush1.msra.mxu0 %v9246
    %9343 = vmatprep.subr.mxu0 0.0
    %9344 = vmatpush1.msra.mxu0 %v9248
    %9345 = vmatprep.subr.mxu0 0.0
    %9346 = vmatpush1.msra.mxu0 %v9250
    %9347 = vmatprep.subr.mxu0 0.0
    %9348 = vmatpush1.msra.mxu0 %v9252
    %9349 = vmatprep.subr.mxu0 0.0
    %9350 = vmatpush1.msra.mxu0 %v9254
    %9351 = vmatprep.subr.mxu0 0.0
    %9352 = vmatpush1.msra.mxu0 %v9256
    %9353 = vmatprep.subr.mxu0 0.0
    %9354 = vmatpush1.msra.mxu0 %v9258
    %9355 = vmatprep.subr.mxu0 0.0
    %9356 = vmatpush1.msra.mxu0 %v9260
    %9357 = vmatprep.subr.mxu0 0.0
    %9358 = vmatpush1.msra.mxu0 %v9262
    %9359 = vmatprep.subr.mxu0 0.0
    %9360 = vmatpush1.msra.mxu0 %v9264
    %9361 = vmatprep.subr.mxu0 0.0
    %9362 = vmatpush1.msra.mxu0 %v9266
    %9363 = vmatprep.subr.mxu0 0.0
    %9364 = vmatpush1.msra.mxu0 %v9268
    %9365 = vmatprep.subr.mxu0 0.0
    %9366 = vmatpush1.msra.mxu0 %v9270
    %9367 = vmatprep.subr.mxu0 0.0
    %9368 = vmatpush1.msra.mxu0 %v9272
    %9369 = vmatprep.subr.mxu0 0.0
    %9370 = vmatpush1.msra.mxu0 %v9274
    %9371 = vmatprep.subr.mxu0 0.0
    %9372 = vmatpush1.msra.mxu0 %v9276
    %9373 = vmatprep.subr.mxu0 0.0
    %9374 = vmatpush1.msra.mxu0 %v9278
    %9375 = vmatprep.subr.mxu0 0.0
    %9376 = vmatpush1.msra.mxu0 %v9280
    %9377 = vmatprep.subr.mxu0 0.0
    %9378 = vmatpush1.msra.mxu0 %v9282
    %9379 = vmatprep.mubr.f32.mxu0 %v9091
    %9380 = vmatmul.mubr.f32.gmra.mrb[0].mxu0 %v9090
    %v9381 = vpop.f32.mrb[0].mxu0
    %v9382 = vadd.f32 0.0, %v9381
    %v9383 = vpop.f32.mrb[0].mxu0
    %9384 = vmatprep.mubr.f32.mxu0 %v9093
    %9385 = vmatmul.mubr.f32.gmra.mrb[0].mxu0 %v9092
    %v9386 = vpop.f32.mrb[0].mxu0
    %v9387 = vadd.f32 0.0, %v9386
    %v9388 = vpop.f32.mrb[0].mxu0
    %9389 = vmatprep.mubr.f32.mxu0 %v9095
    %9390 = vmatmul.mubr.f32.gmra.mrb[0].mxu0 %v9094
    %v9391 = vpop.f32.mrb[0].mxu0
    %v9392 = vadd.f32 0.0, %v9391
    %v9393 = vpop.f32.mrb[0].mxu0
    %9394 = vmatprep.mubr.f32.mxu0 %v9097
    %9395 = vmatmul.mubr.f32.gmra.mrb[0].mxu0 %v9096
    %v9396 = vpop.f32.mrb[0].mxu0
    %v9397 = vadd.f32 0.0, %v9396
    %v9398 = vpop.f32.mrb[0].mxu0
    %9399 = vmatprep.mubr.f32.mxu0 %v9099
    %9400 = vmatmul.mubr.f32.gmra.mrb[0].mxu0 %v9098
    %v9401 = vpop.f32.mrb[0].mxu0
    %v9402 = vadd.f32 0.0, %v9401
    %v9403 = vpop.f32.mrb[0].mxu0
    %9404 = vmatprep.mubr.f32.mxu0 %v9101
    %9405 = vmatmul.mubr.f32.gmra.mrb[0].mxu0 %v9100
    %v9406 = vpop.f32.mrb[0].mxu0
    %v9407 = vadd.f32 0.0, %v9406
    %v9408 = vpop.f32.mrb[0].mxu0
    %9409 = vmatprep.mubr.f32.mxu0 %v9103
    %9410 = vmatmul.mubr.f32.gmra.mrb[0].mxu0 %v9102
    %v9411 = vpop.f32.mrb[0].mxu0
    %v9412 = vadd.f32 0.0, %v9411
    %v9413 = vpop.f32.mrb[0].mxu0
    %9414 = vmatprep.mubr.f32.mxu0 %v9105
    %9415 = vmatmul.mubr.f32.gmra.mrb[0].mxu0 %v9104
    %v9416 = vpop.f32.mrb[0].mxu0
    %v9417 = vadd.f32 0.0, %v9416
    %v9418 = vpop.f32.mrb[0].mxu0
    %9419 = vmatprep.mubr.f32.mxu0 %v9107
    %9420 = vmatmul.mubr.f32.gmra.mrb[0].mxu0 %v9106
    %v9421 = vpop.f32.mrb[0].mxu0
    %v9422 = vadd.f32 0.0, %v9421
    %v9423 = vpop.f32.mrb[0].mxu0
    %9424 = vmatprep.mubr.f32.mxu0 %v9109
    %9425 = vmatmul.mubr.f32.gmra.mrb[0].mxu0 %v9108
    %v9426 = vpop.f32.mrb[0].mxu0
    %v9427 = vadd.f32 0.0, %v9426
    %v9428 = vpop.f32.mrb[0].mxu0
    %9429 = vmatprep.mubr.f32.mxu0 %v9111
    %9430 = vmatmul.mubr.f32.gmra.mrb[0].mxu0 %v9110
    %v9431 = vpop.f32.mrb[0].mxu0
    %v9432 = vadd.f32 0.0, %v9431
    %v9433 = vpop.f32.mrb[0].mxu0
    %9434 = vmatprep.mubr.f32.mxu0 %v9113
    %9435 = vmatmul.mubr.f32.gmra.mrb[0].mxu0 %v9112
    %v9436 = vpop.f32.mrb[0].mxu0
    %v9437 = vadd.f32 0.0, %v9436
    %v9438 = vpop.f32.mrb[0].mxu0
    %9439 = vmatprep.mubr.f32.mxu0 %v9115
    %9440 = vmatmul.mubr.f32.gmra.mrb[0].mxu0 %v9114
    %v9441 = vpop.f32.mrb[0].mxu0
    %v9442 = vadd.f32 0.0, %v9441
    %v9443 = vpop.f32.mrb[0].mxu0
    %9444 = vmatprep.mubr.f32.mxu0 %v9117
    %9445 = vmatmul.mubr.f32.gmra.mrb[0].mxu0 %v9116
    %v9446 = vpop.f32.mrb[0].mxu0
    %v9447 = vadd.f32 0.0, %v9446
    %v9448 = vpop.f32.mrb[0].mxu0
    %9449 = vmatprep.mubr.f32.mxu0 %v9119
    %9450 = vmatmul.mubr.f32.gmra.mrb[0].mxu0 %v9118
    %v9451 = vpop.f32.mrb[0].mxu0
    %v9452 = vadd.f32 0.0, %v9451
    %v9453 = vpop.f32.mrb[0].mxu0
    %9454 = vmatprep.mubr.f32.mxu0 %v9121
    %9455 = vmatmul.mubr.f32.gmra.mrb[0].mxu0 %v9120
    %v9456 = vpop.f32.mrb[0].mxu0
    %v9457 = vadd.f32 0.0, %v9456
    %v9458 = vpop.f32.mrb[0].mxu0
    %9459 = vdwg.mxu0
    %9460 = vmatprep.subr.mxu0 0.0
    %9461 = vmatpush1.msra.mxu0 %v9155
    %9462 = vmatprep.subr.mxu0 0.0
    %9463 = vmatpush1.msra.mxu0 %v9156
    %9464 = vmatprep.subr.mxu0 0.0
    %9465 = vmatpush1.msra.mxu0 %v9157
    %9466 = vmatprep.subr.mxu0 0.0
    %9467 = vmatpush1.msra.mxu0 %v9158
    %9468 = vmatprep.subr.mxu0 0.0
    %9469 = vmatpush1.msra.mxu0 %v9159
    %9470 = vmatprep.subr.mxu0 0.0
    %9471 = vmatpush1.msra.mxu0 %v9160
    %9472 = vmatprep.subr.mxu0 0.0
    %9473 = vmatpush1.msra.mxu0 %v9161
    %9474 = vmatprep.subr.mxu0 0.0
    %9475 = vmatpush1.msra.mxu0 %v9162
    %9476 = vmatprep.subr.mxu0 0.0
    %9477 = vmatpush1.msra.mxu0 %v9163
    %9478 = vmatprep.subr.mxu0 0.0
    %9479 = vmatpush1.msra.mxu0 %v9164
    %9480 = vmatprep.subr.mxu0 0.0
    %9481 = vmatpush1.msra.mxu0 %v9165
    %9482 = vmatprep.subr.mxu0 0.0
    %9483 = vmatpush1.msra.mxu0 %v9166
    %9484 = vmatprep.subr.mxu0 0.0
    %9485 = vmatpush1.msra.mxu0 %v9167
    %9486 = vmatprep.subr.mxu0 0.0
    %9487 = vmatpush1.msra.mxu0 %v9168
    %9488 = vmatprep.subr.mxu0 0.0
    %9489 = vmatpush1.msra.mxu0 %v9169
    %9490 = vmatprep.subr.mxu0 0.0
    %9491 = vmatpush1.msra.mxu0 %v9170
    %9492 = vmatprep.subr.mxu0 0.0
    %9493 = vmatpush1.msra.mxu0 %v9171
    %9494 = vmatprep.subr.mxu0 0.0
    %9495 = vmatpush1.msra.mxu0 %v9172
    %9496 = vmatprep.subr.mxu0 0.0
    %9497 = vmatpush1.msra.mxu0 %v9173
    %9498 = vmatprep.subr.mxu0 0.0
    %9499 = vmatpush1.msra.mxu0 %v9174
    %9500 = vmatprep.subr.mxu0 0.0
    %9501 = vmatpush1.msra.mxu0 %v9175
    %9502 = vmatprep.subr.mxu0 0.0
    %9503 = vmatpush1.msra.mxu0 %v9176
    %9504 = vmatprep.subr.mxu0 0.0
    %9505 = vmatpush1.msra.mxu0 %v9177
    %9506 = vmatprep.subr.mxu0 0.0
    %9507 = vmatpush1.msra.mxu0 %v9178
    %9508 = vmatprep.subr.mxu0 0.0
    %9509 = vmatpush1.msra.mxu0 %v9179
    %9510 = vmatprep.subr.mxu0 0.0
    %9511 = vmatpush1.msra.mxu0 %v9180
    %9512 = vmatprep.subr.mxu0 0.0
    %9513 = vmatpush1.msra.mxu0 %v9181
    %9514 = vmatprep.subr.mxu0 0.0
    %9515 = vmatpush1.msra.mxu0 %v9182
    %9516 = vmatprep.subr.mxu0 0.0
    %9517 = vmatpush1.msra.mxu0 %v9183
    %9518 = vmatprep.subr.mxu0 0.0
    %9519 = vmatpush1.msra.mxu0 %v9184
    %9520 = vmatprep.subr.mxu0 0.0
    %9521 = vmatpush1.msra.mxu0 %v9185
    %9522 = vmatprep.subr.mxu0 0.0
    %9523 = vmatpush1.msra.mxu0 %v9186
    %9524 = vmatprep.mubr.f32.mxu0 %v9058
    %9525 = vmatmul.mubr.f32.gmra.mrb[0].mxu0 %v9057
    %v9526 = vpop.f32.mrb[0].mxu0
    %v9527 = vadd.f32 %v9382, %v9526
    %v9528 = vpop.f32.mrb[0].mxu0
    %9529 = vmatprep.mubr.f32.mxu0 %v9060
    %9530 = vmatmul.mubr.f32.gmra.mrb[0].mxu0 %v9059
    %v9531 = vpop.f32.mrb[0].mxu0
    %v9532 = vadd.f32 %v9387, %v9531
    %v9533 = vpop.f32.mrb[0].mxu0
    %9534 = vmatprep.mubr.f32.mxu0 %v9062
    %9535 = vmatmul.mubr.f32.gmra.mrb[0].mxu0 %v9061
    %v9536 = vpop.f32.mrb[0].mxu0
    %v9537 = vadd.f32 %v9392, %v9536
    %v9538 = vpop.f32.mrb[0].mxu0
    %9539 = vmatprep.mubr.f32.mxu0 %v9064
    %9540 = vmatmul.mubr.f32.gmra.mrb[0].mxu0 %v9063
    %v9541 = vpop.f32.mrb[0].mxu0
    %v9542 = vadd.f32 %v9397, %v9541
    %v9543 = vpop.f32.mrb[0].mxu0
    %9544 = vmatprep.mubr.f32.mxu0 %v9066
    %9545 = vmatmul.mubr.f32.gmra.mrb[0].mxu0 %v9065
    %v9546 = vpop.f32.mrb[0].mxu0
    %v9547 = vadd.f32 %v9402, %v9546
    %v9548 = vpop.f32.mrb[0].mxu0
    %9549 = vmatprep.mubr.f32.mxu0 %v9068
    %9550 = vmatmul.mubr.f32.gmra.mrb[0].mxu0 %v9067
    %v9551 = vpop.f32.mrb[0].mxu0
    %v9552 = vadd.f32 %v9407, %v9551
    %v9553 = vpop.f32.mrb[0].mxu0
    %9554 = vmatprep.mubr.f32.mxu0 %v9070
    %9555 = vmatmul.mubr.f32.gmra.mrb[0].mxu0 %v9069
    %v9556 = vpop.f32.mrb[0].mxu0
    %v9557 = vadd.f32 %v9412, %v9556
    %v9558 = vpop.f32.mrb[0].mxu0
    %9559 = vmatprep.mubr.f32.mxu0 %v9072
    %9560 = vmatmul.mubr.f32.gmra.mrb[0].mxu0 %v9071
    %v9561 = vpop.f32.mrb[0].mxu0
    %v9562 = vadd.f32 %v9417, %v9561
    %v9563 = vpop.f32.mrb[0].mxu0
    %9564 = vmatprep.mubr.f32.mxu0 %v9074
    %9565 = vmatmul.mubr.f32.gmra.mrb[0].mxu0 %v9073
    %v9566 = vpop.f32.mrb[0].mxu0
    %v9567 = vadd.f32 %v9422, %v9566
    %v9568 = vpop.f32.mrb[0].mxu0
    %9569 = vmatprep.mubr.f32.mxu0 %v9076
    %9570 = vmatmul.mubr.f32.gmra.mrb[0].mxu0 %v9075
    %v9571 = vpop.f32.mrb[0].mxu0
    %v9572 = vadd.f32 %v9427, %v9571
    %v9573 = vpop.f32.mrb[0].mxu0
    %9574 = vmatprep.mubr.f32.mxu0 %v9078
    %9575 = vmatmul.mubr.f32.gmra.mrb[0].mxu0 %v9077
    %v9576 = vpop.f32.mrb[0].mxu0
    %v9577 = vadd.f32 %v9432, %v9576
    %v9578 = vpop.f32.mrb[0].mxu0
    %9579 = vmatprep.mubr.f32.mxu0 %v9080
    %9580 = vmatmul.mubr.f32.gmra.mrb[0].mxu0 %v9079
    %v9581 = vpop.f32.mrb[0].mxu0
    %v9582 = vadd.f32 %v9437, %v9581
    %v9583 = vpop.f32.mrb[0].mxu0
    %9584 = vmatprep.mubr.f32.mxu0 %v9082
    %9585 = vmatmul.mubr.f32.gmra.mrb[0].mxu0 %v9081
    %v9586 = vpop.f32.mrb[0].mxu0
    %v9587 = vadd.f32 %v9442, %v9586
    %v9588 = vpop.f32.mrb[0].mxu0
    %9589 = vmatprep.mubr.f32.mxu0 %v9084
    %9590 = vmatmul.mubr.f32.gmra.mrb[0].mxu0 %v9083
    %v9591 = vpop.f32.mrb[0].mxu0
    %v9592 = vadd.f32 %v9447, %v9591
    %v9593 = vpop.f32.mrb[0].mxu0
    %9594 = vmatprep.mubr.f32.mxu0 %v9086
    %9595 = vmatmul.mubr.f32.gmra.mrb[0].mxu0 %v9085
    %v9596 = vpop.f32.mrb[0].mxu0
    %v9597 = vadd.f32 %v9452, %v9596
    %v9598 = vpop.f32.mrb[0].mxu0
    %9599 = vmatprep.mubr.f32.mxu0 %v9088
    %9600 = vmatmul.mubr.f32.gmra.mrb[0].mxu0 %v9087
    %v9601 = vpop.f32.mrb[0].mxu0
    %v9602 = vadd.f32 %v9457, %v9601
    %v9603 = vpop.f32.mrb[0].mxu0
    %9604 = vdwg.mxu0
    %9605 = vrot.lane.b32.xlu0 %v9155, 126
    %v9606 = vpop.permute.xlu0 %9605
    %9607 = vrot.lane.b32.xlu0 %v9156, 126
    %v9608 = vpop.permute.xlu0 %9607
    %9609 = vrot.lane.b32.xlu0 %v9157, 126
    %v9610 = vpop.permute.xlu0 %9609
    %9611 = vrot.lane.b32.xlu0 %v9158, 126
    %v9612 = vpop.permute.xlu0 %9611
    %9613 = vrot.lane.b32.xlu0 %v9159, 126
    %v9614 = vpop.permute.xlu0 %9613
    %9615 = vrot.lane.b32.xlu0 %v9160, 126
    %v9616 = vpop.permute.xlu0 %9615
    %9617 = vrot.lane.b32.xlu0 %v9161, 126
    %v9618 = vpop.permute.xlu0 %9617
    %9619 = vrot.lane.b32.xlu0 %v9162, 126
    %v9620 = vpop.permute.xlu0 %9619
    %9621 = vrot.lane.b32.xlu0 %v9163, 126
    %v9622 = vpop.permute.xlu0 %9621
    %9623 = vrot.lane.b32.xlu0 %v9164, 126
    %v9624 = vpop.permute.xlu0 %9623
    %9625 = vrot.lane.b32.xlu0 %v9165, 126
    %v9626 = vpop.permute.xlu0 %9625
    %9627 = vrot.lane.b32.xlu0 %v9166, 126
    %v9628 = vpop.permute.xlu0 %9627
    %9629 = vrot.lane.b32.xlu0 %v9167, 126
    %v9630 = vpop.permute.xlu0 %9629
    %9631 = vrot.lane.b32.xlu0 %v9168, 126
    %v9632 = vpop.permute.xlu0 %9631
    %9633 = vrot.lane.b32.xlu0 %v9169, 126
    %v9634 = vpop.permute.xlu0 %9633
    %9635 = vrot.lane.b32.xlu0 %v9170, 126
    %v9636 = vpop.permute.xlu0 %9635
    %9637 = vrot.lane.b32.xlu0 %v9171, 126
    %v9638 = vpop.permute.xlu0 %9637
    %9639 = vrot.lane.b32.xlu0 %v9172, 126
    %v9640 = vpop.permute.xlu0 %9639
    %9641 = vrot.lane.b32.xlu0 %v9173, 126
    %v9642 = vpop.permute.xlu0 %9641
    %9643 = vrot.lane.b32.xlu0 %v9174, 126
    %v9644 = vpop.permute.xlu0 %9643
    %9645 = vrot.lane.b32.xlu0 %v9175, 126
    %v9646 = vpop.permute.xlu0 %9645
    %9647 = vrot.lane.b32.xlu0 %v9176, 126
    %v9648 = vpop.permute.xlu0 %9647
    %9649 = vrot.lane.b32.xlu0 %v9177, 126
    %v9650 = vpop.permute.xlu0 %9649
    %9651 = vrot.lane.b32.xlu0 %v9178, 126
    %v9652 = vpop.permute.xlu0 %9651
    %9653 = vrot.lane.b32.xlu0 %v9179, 126
    %v9654 = vpop.permute.xlu0 %9653
    %9655 = vrot.lane.b32.xlu0 %v9180, 126
    %v9656 = vpop.permute.xlu0 %9655
    %9657 = vrot.lane.b32.xlu0 %v9181, 126
    %v9658 = vpop.permute.xlu0 %9657
    %9659 = vrot.lane.b32.xlu0 %v9182, 126
    %v9660 = vpop.permute.xlu0 %9659
    %9661 = vrot.lane.b32.xlu0 %v9183, 126
    %v9662 = vpop.permute.xlu0 %9661
    %9663 = vrot.lane.b32.xlu0 %v9184, 126
    %v9664 = vpop.permute.xlu0 %9663
    %9665 = vrot.lane.b32.xlu0 %v9185, 126
    %v9666 = vpop.permute.xlu0 %9665
    %9667 = vrot.lane.b32.xlu0 %v9186, 126
    %v9668 = vpop.permute.xlu0 %9667
    %9701 = vmatprep.subr.mxu0 0.0
    %9702 = vmatpush1.msra.mxu0 %v9606
    %9703 = vmatprep.subr.mxu0 0.0
    %9704 = vmatpush1.msra.mxu0 %v9608
    %9705 = vmatprep.subr.mxu0 0.0
    %9706 = vmatpush1.msra.mxu0 %v9610
    %9707 = vmatprep.subr.mxu0 0.0
    %9708 = vmatpush1.msra.mxu0 %v9612
    %9709 = vmatprep.subr.mxu0 0.0
    %9710 = vmatpush1.msra.mxu0 %v9614
    %9711 = vmatprep.subr.mxu0 0.0
    %9712 = vmatpush1.msra.mxu0 %v9616
    %9713 = vmatprep.subr.mxu0 0.0
    %9714 = vmatpush1.msra.mxu0 %v9618
    %9715 = vmatprep.subr.mxu0 0.0
    %9716 = vmatpush1.msra.mxu0 %v9620
    %9717 = vmatprep.subr.mxu0 0.0
    %9718 = vmatpush1.msra.mxu0 %v9622
    %9719 = vmatprep.subr.mxu0 0.0
    %9720 = vmatpush1.msra.mxu0 %v9624
    %9721 = vmatprep.subr.mxu0 0.0
    %9722 = vmatpush1.msra.mxu0 %v9626
    %9723 = vmatprep.subr.mxu0 0.0
    %9724 = vmatpush1.msra.mxu0 %v9628
    %9725 = vmatprep.subr.mxu0 0.0
    %9726 = vmatpush1.msra.mxu0 %v9630
    %9727 = vmatprep.subr.mxu0 0.0
    %9728 = vmatpush1.msra.mxu0 %v9632
    %9729 = vmatprep.subr.mxu0 0.0
    %9730 = vmatpush1.msra.mxu0 %v9634
    %9731 = vmatprep.subr.mxu0 0.0
    %9732 = vmatpush1.msra.mxu0 %v9636
    %9733 = vmatprep.subr.mxu0 0.0
    %9734 = vmatpush1.msra.mxu0 %v9638
    %9735 = vmatprep.subr.mxu0 0.0
    %9736 = vmatpush1.msra.mxu0 %v9640
    %9737 = vmatprep.subr.mxu0 0.0
    %9738 = vmatpush1.msra.mxu0 %v9642
    %9739 = vmatprep.subr.mxu0 0.0
    %9740 = vmatpush1.msra.mxu0 %v9644
    %9741 = vmatprep.subr.mxu0 0.0
    %9742 = vmatpush1.msra.mxu0 %v9646
    %9743 = vmatprep.subr.mxu0 0.0
    %9744 = vmatpush1.msra.mxu0 %v9648
    %9745 = vmatprep.subr.mxu0 0.0
    %9746 = vmatpush1.msra.mxu0 %v9650
    %9747 = vmatprep.subr.mxu0 0.0
    %9748 = vmatpush1.msra.mxu0 %v9652
    %9749 = vmatprep.subr.mxu0 0.0
    %9750 = vmatpush1.msra.mxu0 %v9654
    %9751 = vmatprep.subr.mxu0 0.0
    %9752 = vmatpush1.msra.mxu0 %v9656
    %9753 = vmatprep.subr.mxu0 0.0
    %9754 = vmatpush1.msra.mxu0 %v9658
    %9755 = vmatprep.subr.mxu0 0.0
    %9756 = vmatpush1.msra.mxu0 %v9660
    %9757 = vmatprep.subr.mxu0 0.0
    %9758 = vmatpush1.msra.mxu0 %v9662
    %9759 = vmatprep.subr.mxu0 0.0
    %9760 = vmatpush1.msra.mxu0 %v9664
    %9761 = vmatprep.subr.mxu0 0.0
    %9762 = vmatpush1.msra.mxu0 %v9666
    %9763 = vmatprep.subr.mxu0 0.0
    %9764 = vmatpush1.msra.mxu0 %v9668
    %9765 = vmatprep.mubr.f32.mxu0 %v9124
    %9766 = vmatmul.mubr.f32.gmra.mrb[0].mxu0 %v9123
    %v9767 = vpop.f32.mrb[0].mxu0
    %v9768 = vadd.f32 0.0, %v9767
    %v9769 = vpop.f32.mrb[0].mxu0
    %9770 = vmatprep.mubr.f32.mxu0 %v9126
    %9771 = vmatmul.mubr.f32.gmra.mrb[0].mxu0 %v9125
    %v9772 = vpop.f32.mrb[0].mxu0
    %v9773 = vadd.f32 0.0, %v9772
    %v9774 = vpop.f32.mrb[0].mxu0
    %9775 = vmatprep.mubr.f32.mxu0 %v9128
    %9776 = vmatmul.mubr.f32.gmra.mrb[0].mxu0 %v9127
    %v9777 = vpop.f32.mrb[0].mxu0
    %v9778 = vadd.f32 0.0, %v9777
    %v9779 = vpop.f32.mrb[0].mxu0
    %9780 = vmatprep.mubr.f32.mxu0 %v9130
    %9781 = vmatmul.mubr.f32.gmra.mrb[0].mxu0 %v9129
    %v9782 = vpop.f32.mrb[0].mxu0
    %v9783 = vadd.f32 0.0, %v9782
    %v9784 = vpop.f32.mrb[0].mxu0
    %9785 = vmatprep.mubr.f32.mxu0 %v9132
    %9786 = vmatmul.mubr.f32.gmra.mrb[0].mxu0 %v9131
    %v9787 = vpop.f32.mrb[0].mxu0
    %v9788 = vadd.f32 0.0, %v9787
    %v9789 = vpop.f32.mrb[0].mxu0
    %9790 = vmatprep.mubr.f32.mxu0 %v9134
    %9791 = vmatmul.mubr.f32.gmra.mrb[0].mxu0 %v9133
    %v9792 = vpop.f32.mrb[0].mxu0
    %v9793 = vadd.f32 0.0, %v9792
    %v9794 = vpop.f32.mrb[0].mxu0
    %9795 = vmatprep.mubr.f32.mxu0 %v9136
    %9796 = vmatmul.mubr.f32.gmra.mrb[0].mxu0 %v9135
    %v9797 = vpop.f32.mrb[0].mxu0
    %v9798 = vadd.f32 0.0, %v9797
    %v9799 = vpop.f32.mrb[0].mxu0
    %9800 = vmatprep.mubr.f32.mxu0 %v9138
    %9801 = vmatmul.mubr.f32.gmra.mrb[0].mxu0 %v9137
    %v9802 = vpop.f32.mrb[0].mxu0
    %v9803 = vadd.f32 0.0, %v9802
    %v9804 = vpop.f32.mrb[0].mxu0
    %9805 = vmatprep.mubr.f32.mxu0 %v9140
    %9806 = vmatmul.mubr.f32.gmra.mrb[0].mxu0 %v9139
    %v9807 = vpop.f32.mrb[0].mxu0
    %v9808 = vadd.f32 0.0, %v9807
    %v9809 = vpop.f32.mrb[0].mxu0
    %9810 = vmatprep.mubr.f32.mxu0 %v9142
    %9811 = vmatmul.mubr.f32.gmra.mrb[0].mxu0 %v9141
    %v9812 = vpop.f32.mrb[0].mxu0
    %v9813 = vadd.f32 0.0, %v9812
    %v9814 = vpop.f32.mrb[0].mxu0
    %9815 = vmatprep.mubr.f32.mxu0 %v9144
    %9816 = vmatmul.mubr.f32.gmra.mrb[0].mxu0 %v9143
    %v9817 = vpop.f32.mrb[0].mxu0
    %v9818 = vadd.f32 0.0, %v9817
    %v9819 = vpop.f32.mrb[0].mxu0
    %9820 = vmatprep.mubr.f32.mxu0 %v9146
    %9821 = vmatmul.mubr.f32.gmra.mrb[0].mxu0 %v9145
    %v9822 = vpop.f32.mrb[0].mxu0
    %v9823 = vadd.f32 0.0, %v9822
    %v9824 = vpop.f32.mrb[0].mxu0
    %9825 = vmatprep.mubr.f32.mxu0 %v9148
    %9826 = vmatmul.mubr.f32.gmra.mrb[0].mxu0 %v9147
    %v9827 = vpop.f32.mrb[0].mxu0
    %v9828 = vadd.f32 0.0, %v9827
    %v9829 = vpop.f32.mrb[0].mxu0
    %9830 = vmatprep.mubr.f32.mxu0 %v9150
    %9831 = vmatmul.mubr.f32.gmra.mrb[0].mxu0 %v9149
    %v9832 = vpop.f32.mrb[0].mxu0
    %v9833 = vadd.f32 0.0, %v9832
    %v9834 = vpop.f32.mrb[0].mxu0
    %9835 = vmatprep.mubr.f32.mxu0 %v9152
    %9836 = vmatmul.mubr.f32.gmra.mrb[0].mxu0 %v9151
    %v9837 = vpop.f32.mrb[0].mxu0
    %v9838 = vadd.f32 0.0, %v9837
    %v9839 = vpop.f32.mrb[0].mxu0
    %9840 = vmatprep.mubr.f32.mxu0 %v9154
    %9841 = vmatmul.mubr.f32.gmra.mrb[0].mxu0 %v9153
    %v9842 = vpop.f32.mrb[0].mxu0
    %v9843 = vadd.f32 0.0, %v9842
    %v9844 = vpop.f32.mrb[0].mxu0
    %9845 = vdwg.mxu0
    %v9846 = vadd.f32 %v9527, %v9768
    %v9847 = vadd.f32 %v9532, %v9773
    %v9848 = vadd.f32 %v9537, %v9778
    %v9849 = vadd.f32 %v9542, %v9783
    %v9850 = vadd.f32 %v9547, %v9788
    %v9851 = vadd.f32 %v9552, %v9793
    %v9852 = vadd.f32 %v9557, %v9798
    %v9853 = vadd.f32 %v9562, %v9803
    %v9854 = vadd.f32 %v9567, %v9808
    %v9855 = vadd.f32 %v9572, %v9813
    %v9856 = vadd.f32 %v9577, %v9818
    %v9857 = vadd.f32 %v9582, %v9823
    %v9858 = vadd.f32 %v9587, %v9828
    %v9859 = vadd.f32 %v9592, %v9833
    %v9860 = vadd.f32 %v9597, %v9838
    %v9861 = vadd.f32 %v9602, %v9843
    %v9862 = vld [vmem:[%s9024] sm:$0xff]
    %v9863 = vld [vmem:[%s9024 + $0x8] sm:$0xff]
    %v9864 = vld [vmem:[%s9024 + $0x10] sm:$0xff]
    %v9865 = vld [vmem:[%s9024 + $0x18] sm:$0xff]
    %v9866 = vld [vmem:[%s9024 + $0x20] sm:$0xff]
    %v9867 = vld [vmem:[%s9024 + $0x28] sm:$0xff]
    %v9868 = vld [vmem:[%s9024 + $0x30] sm:$0xff]
    %v9869 = vld [vmem:[%s9024 + $0x38] sm:$0xff]
    %v9870 = vld [vmem:[%s9024 + $0x40] sm:$0xff]
    %v9871 = vld [vmem:[%s9024 + $0x48] sm:$0xff]
    %v9872 = vld [vmem:[%s9024 + $0x50] sm:$0xff]
    %v9873 = vld [vmem:[%s9024 + $0x58] sm:$0xff]
    %v9874 = vld [vmem:[%s9024 + $0x60] sm:$0xff]
    %v9875 = vld [vmem:[%s9024 + $0x68] sm:$0xff]
    %v9876 = vld [vmem:[%s9024 + $0x70] sm:$0xff]
    %v9877 = vld [vmem:[%s9024 + $0x78] sm:$0xff]
    %v9878 = vld [vmem:[%s9024 + $0x80] sm:$0xff]
    %v9879 = vld [vmem:[%s9024 + $0x88] sm:$0xff]
    %v9880 = vld [vmem:[%s9024 + $0x90] sm:$0xff]
    %v9881 = vld [vmem:[%s9024 + $0x98] sm:$0xff]
    %v9882 = vld [vmem:[%s9024 + $0xa0] sm:$0xff]
    %v9883 = vld [vmem:[%s9024 + $0xa8] sm:$0xff]
    %v9884 = vld [vmem:[%s9024 + $0xb0] sm:$0xff]
    %v9885 = vld [vmem:[%s9024 + $0xb8] sm:$0xff]
    %v9886 = vld [vmem:[%s9024 + $0xc0] sm:$0xff]
    %v9887 = vld [vmem:[%s9024 + $0xc8] sm:$0xff]
    %v9888 = vld [vmem:[%s9024 + $0xd0] sm:$0xff]
    %v9889 = vld [vmem:[%s9024 + $0xd8] sm:$0xff]
    %v9890 = vld [vmem:[%s9024 + $0xe0] sm:$0xff]
    %v9891 = vld [vmem:[%s9024 + $0xe8] sm:$0xff]
    %v9892 = vld [vmem:[%s9024 + $0xf0] sm:$0xff]
    %v9893 = vld [vmem:[%s9024 + $0xf8] sm:$0xff]
    %9926 = vrot.lane.b32.xlu0 %v9862, 127
    %v9927 = vpop.permute.xlu0 %9926
    %9928 = vrot.lane.b32.xlu0 %v9863, 127
    %v9929 = vpop.permute.xlu0 %9928
    %9930 = vrot.lane.b32.xlu0 %v9864, 127
    %v9931 = vpop.permute.xlu0 %9930
    %9932 = vrot.lane.b32.xlu0 %v9865, 127
    %v9933 = vpop.permute.xlu0 %9932
    %9934 = vrot.lane.b32.xlu0 %v9866, 127
    %v9935 = vpop.permute.xlu0 %9934
    %9936 = vrot.lane.b32.xlu0 %v9867, 127
    %v9937 = vpop.permute.xlu0 %9936
    %9938 = vrot.lane.b32.xlu0 %v9868, 127
    %v9939 = vpop.permute.xlu0 %9938
    %9940 = vrot.lane.b32.xlu0 %v9869, 127
    %v9941 = vpop.permute.xlu0 %9940
    %9942 = vrot.lane.b32.xlu0 %v9870, 127
    %v9943 = vpop.permute.xlu0 %9942
    %9944 = vrot.lane.b32.xlu0 %v9871, 127
    %v9945 = vpop.permute.xlu0 %9944
    %9946 = vrot.lane.b32.xlu0 %v9872, 127
    %v9947 = vpop.permute.xlu0 %9946
    %9948 = vrot.lane.b32.xlu0 %v9873, 127
    %v9949 = vpop.permute.xlu0 %9948
    %9950 = vrot.lane.b32.xlu0 %v9874, 127
    %v9951 = vpop.permute.xlu0 %9950
    %9952 = vrot.lane.b32.xlu0 %v9875, 127
    %v9953 = vpop.permute.xlu0 %9952
    %9954 = vrot.lane.b32.xlu0 %v9876, 127
    %v9955 = vpop.permute.xlu0 %9954
    %9956 = vrot.lane.b32.xlu0 %v9877, 127
    %v9957 = vpop.permute.xlu0 %9956
    %9958 = vrot.lane.b32.xlu0 %v9878, 127
    %v9959 = vpop.permute.xlu0 %9958
    %9960 = vrot.lane.b32.xlu0 %v9879, 127
    %v9961 = vpop.permute.xlu0 %9960
    %9962 = vrot.lane.b32.xlu0 %v9880, 127
    %v9963 = vpop.permute.xlu0 %9962
    %9964 = vrot.lane.b32.xlu0 %v9881, 127
    %v9965 = vpop.permute.xlu0 %9964
    %9966 = vrot.lane.b32.xlu0 %v9882, 127
    %v9967 = vpop.permute.xlu0 %9966
    %9968 = vrot.lane.b32.xlu0 %v9883, 127
    %v9969 = vpop.permute.xlu0 %9968
    %9970 = vrot.lane.b32.xlu0 %v9884, 127
    %v9971 = vpop.permute.xlu0 %9970
    %9972 = vrot.lane.b32.xlu0 %v9885, 127
    %v9973 = vpop.permute.xlu0 %9972
    %9974 = vrot.lane.b32.xlu0 %v9886, 127
    %v9975 = vpop.permute.xlu0 %9974
    %9976 = vrot.lane.b32.xlu0 %v9887, 127
    %v9977 = vpop.permute.xlu0 %9976
    %9978 = vrot.lane.b32.xlu0 %v9888, 127
    %v9979 = vpop.permute.xlu0 %9978
    %9980 = vrot.lane.b32.xlu0 %v9889, 127
    %v9981 = vpop.permute.xlu0 %9980
    %9982 = vrot.lane.b32.xlu0 %v9890, 127
    %v9983 = vpop.permute.xlu0 %9982
    %9984 = vrot.lane.b32.xlu0 %v9891, 127
    %v9985 = vpop.permute.xlu0 %9984
    %9986 = vrot.lane.b32.xlu0 %v9892, 127
    %v9987 = vpop.permute.xlu0 %9986
    %9988 = vrot.lane.b32.xlu0 %v9893, 127
    %v9989 = vpop.permute.xlu0 %9988
    %10022 = vmatprep.subr.mxu0 0.0
    %10023 = vmatpush1.msra.mxu0 %v9927
    %10024 = vmatprep.subr.mxu0 0.0
    %10025 = vmatpush1.msra.mxu0 %v9929
    %10026 = vmatprep.subr.mxu0 0.0
    %10027 = vmatpush1.msra.mxu0 %v9931
    %10028 = vmatprep.subr.mxu0 0.0
    %10029 = vmatpush1.msra.mxu0 %v9933
    %10030 = vmatprep.subr.mxu0 0.0
    %10031 = vmatpush1.msra.mxu0 %v9935
    %10032 = vmatprep.subr.mxu0 0.0
    %10033 = vmatpush1.msra.mxu0 %v9937
    %10034 = vmatprep.subr.mxu0 0.0
    %10035 = vmatpush1.msra.mxu0 %v9939
    %10036 = vmatprep.subr.mxu0 0.0
    %10037 = vmatpush1.msra.mxu0 %v9941
    %10038 = vmatprep.subr.mxu0 0.0
    %10039 = vmatpush1.msra.mxu0 %v9943
    %10040 = vmatprep.subr.mxu0 0.0
    %10041 = vmatpush1.msra.mxu0 %v9945
    %10042 = vmatprep.subr.mxu0 0.0
    %10043 = vmatpush1.msra.mxu0 %v9947
    %10044 = vmatprep.subr.mxu0 0.0
    %10045 = vmatpush1.msra.mxu0 %v9949
    %10046 = vmatprep.subr.mxu0 0.0
    %10047 = vmatpush1.msra.mxu0 %v9951
    %10048 = vmatprep.subr.mxu0 0.0
    %10049 = vmatpush1.msra.mxu0 %v9953
    %10050 = vmatprep.subr.mxu0 0.0
    %10051 = vmatpush1.msra.mxu0 %v9955
    %10052 = vmatprep.subr.mxu0 0.0
    %10053 = vmatpush1.msra.mxu0 %v9957
    %10054 = vmatprep.subr.mxu0 0.0
    %10055 = vmatpush1.msra.mxu0 %v9959
    %10056 = vmatprep.subr.mxu0 0.0
    %10057 = vmatpush1.msra.mxu0 %v9961
    %10058 = vmatprep.subr.mxu0 0.0
    %10059 = vmatpush1.msra.mxu0 %v9963
    %10060 = vmatprep.subr.mxu0 0.0
    %10061 = vmatpush1.msra.mxu0 %v9965
    %10062 = vmatprep.subr.mxu0 0.0
    %10063 = vmatpush1.msra.mxu0 %v9967
    %10064 = vmatprep.subr.mxu0 0.0
    %10065 = vmatpush1.msra.mxu0 %v9969
    %10066 = vmatprep.subr.mxu0 0.0
    %10067 = vmatpush1.msra.mxu0 %v9971
    %10068 = vmatprep.subr.mxu0 0.0
    %10069 = vmatpush1.msra.mxu0 %v9973
    %10070 = vmatprep.subr.mxu0 0.0
    %10071 = vmatpush1.msra.mxu0 %v9975
    %10072 = vmatprep.subr.mxu0 0.0
    %10073 = vmatpush1.msra.mxu0 %v9977
    %10074 = vmatprep.subr.mxu0 0.0
    %10075 = vmatpush1.msra.mxu0 %v9979
    %10076 = vmatprep.subr.mxu0 0.0
    %10077 = vmatpush1.msra.mxu0 %v9981
    %10078 = vmatprep.subr.mxu0 0.0
    %10079 = vmatpush1.msra.mxu0 %v9983
    %10080 = vmatprep.subr.mxu0 0.0
    %10081 = vmatpush1.msra.mxu0 %v9985
    %10082 = vmatprep.subr.mxu0 0.0
    %10083 = vmatpush1.msra.mxu0 %v9987
    %10084 = vmatprep.subr.mxu0 0.0
    %10085 = vmatpush1.msra.mxu0 %v9989
    %10086 = vmatprep.mubr.f32.mxu0 %v9091
    %10087 = vmatmul.mubr.f32.gmra.mrb[0].mxu0 %v9090
    %v10088 = vpop.f32.mrb[0].mxu0
    %v10089 = vadd.f32 0.0, %v10088
    %v10090 = vpop.f32.mrb[0].mxu0
    %10091 = vmatprep.mubr.f32.mxu0 %v9093
    %10092 = vmatmul.mubr.f32.gmra.mrb[0].mxu0 %v9092
    %v10093 = vpop.f32.mrb[0].mxu0
    %v10094 = vadd.f32 0.0, %v10093
    %v10095 = vpop.f32.mrb[0].mxu0
    %10096 = vmatprep.mubr.f32.mxu0 %v9095
    %10097 = vmatmul.mubr.f32.gmra.mrb[0].mxu0 %v9094
    %v10098 = vpop.f32.mrb[0].mxu0
    %v10099 = vadd.f32 0.0, %v10098
    %v10100 = vpop.f32.mrb[0].mxu0
    %10101 = vmatprep.mubr.f32.mxu0 %v9097
    %10102 = vmatmul.mubr.f32.gmra.mrb[0].mxu0 %v9096
    %v10103 = vpop.f32.mrb[0].mxu0
    %v10104 = vadd.f32 0.0, %v10103
    %v10105 = vpop.f32.mrb[0].mxu0
    %10106 = vmatprep.mubr.f32.mxu0 %v9099
    %10107 = vmatmul.mubr.f32.gmra.mrb[0].mxu0 %v9098
    %v10108 = vpop.f32.mrb[0].mxu0
    %v10109 = vadd.f32 0.0, %v10108
    %v10110 = vpop.f32.mrb[0].mxu0
    %10111 = vmatprep.mubr.f32.mxu0 %v9101
    %10112 = vmatmul.mubr.f32.gmra.mrb[0].mxu0 %v9100
    %v10113 = vpop.f32.mrb[0].mxu0
    %v10114 = vadd.f32 0.0, %v10113
    %v10115 = vpop.f32.mrb[0].mxu0
    %10116 = vmatprep.mubr.f32.mxu0 %v9103
    %10117 = vmatmul.mubr.f32.gmra.mrb[0].mxu0 %v9102
    %v10118 = vpop.f32.mrb[0].mxu0
    %v10119 = vadd.f32 0.0, %v10118
    %v10120 = vpop.f32.mrb[0].mxu0
    %10121 = vmatprep.mubr.f32.mxu0 %v9105
    %10122 = vmatmul.mubr.f32.gmra.mrb[0].mxu0 %v9104
    %v10123 = vpop.f32.mrb[0].mxu0
    %v10124 = vadd.f32 0.0, %v10123
    %v10125 = vpop.f32.mrb[0].mxu0
    %10126 = vmatprep.mubr.f32.mxu0 %v9107
    %10127 = vmatmul.mubr.f32.gmra.mrb[0].mxu0 %v9106
    %v10128 = vpop.f32.mrb[0].mxu0
    %v10129 = vadd.f32 0.0, %v10128
    %v10130 = vpop.f32.mrb[0].mxu0
    %10131 = vmatprep.mubr.f32.mxu0 %v9109
    %10132 = vmatmul.mubr.f32.gmra.mrb[0].mxu0 %v9108
    %v10133 = vpop.f32.mrb[0].mxu0
    %v10134 = vadd.f32 0.0, %v10133
    %v10135 = vpop.f32.mrb[0].mxu0
    %10136 = vmatprep.mubr.f32.mxu0 %v9111
    %10137 = vmatmul.mubr.f32.gmra.mrb[0].mxu0 %v9110
    %v10138 = vpop.f32.mrb[0].mxu0
    %v10139 = vadd.f32 0.0, %v10138
    %v10140 = vpop.f32.mrb[0].mxu0
    %10141 = vmatprep.mubr.f32.mxu0 %v9113
    %10142 = vmatmul.mubr.f32.gmra.mrb[0].mxu0 %v9112
    %v10143 = vpop.f32.mrb[0].mxu0
    %v10144 = vadd.f32 0.0, %v10143
    %v10145 = vpop.f32.mrb[0].mxu0
    %10146 = vmatprep.mubr.f32.mxu0 %v9115
    %10147 = vmatmul.mubr.f32.gmra.mrb[0].mxu0 %v9114
    %v10148 = vpop.f32.mrb[0].mxu0
    %v10149 = vadd.f32 0.0, %v10148
    %v10150 = vpop.f32.mrb[0].mxu0
    %10151 = vmatprep.mubr.f32.mxu0 %v9117
    %10152 = vmatmul.mubr.f32.gmra.mrb[0].mxu0 %v9116
    %v10153 = vpop.f32.mrb[0].mxu0
    %v10154 = vadd.f32 0.0, %v10153
    %v10155 = vpop.f32.mrb[0].mxu0
    %10156 = vmatprep.mubr.f32.mxu0 %v9119
    %10157 = vmatmul.mubr.f32.gmra.mrb[0].mxu0 %v9118
    %v10158 = vpop.f32.mrb[0].mxu0
    %v10159 = vadd.f32 0.0, %v10158
    %v10160 = vpop.f32.mrb[0].mxu0
    %10161 = vmatprep.mubr.f32.mxu0 %v9121
    %10162 = vmatmul.mubr.f32.gmra.mrb[0].mxu0 %v9120
    %v10163 = vpop.f32.mrb[0].mxu0
    %v10164 = vadd.f32 0.0, %v10163
    %v10165 = vpop.f32.mrb[0].mxu0
    %10166 = vdwg.mxu0
    %10167 = vmatprep.subr.mxu0 0.0
    %10168 = vmatpush1.msra.mxu0 %v9862
    %10169 = vmatprep.subr.mxu0 0.0
    %10170 = vmatpush1.msra.mxu0 %v9863
    %10171 = vmatprep.subr.mxu0 0.0
    %10172 = vmatpush1.msra.mxu0 %v9864
    %10173 = vmatprep.subr.mxu0 0.0
    %10174 = vmatpush1.msra.mxu0 %v9865
    %10175 = vmatprep.subr.mxu0 0.0
    %10176 = vmatpush1.msra.mxu0 %v9866
    %10177 = vmatprep.subr.mxu0 0.0
    %10178 = vmatpush1.msra.mxu0 %v9867
    %10179 = vmatprep.subr.mxu0 0.0
    %10180 = vmatpush1.msra.mxu0 %v9868
    %10181 = vmatprep.subr.mxu0 0.0
    %10182 = vmatpush1.msra.mxu0 %v9869
    %10183 = vmatprep.subr.mxu0 0.0
    %10184 = vmatpush1.msra.mxu0 %v9870
    %10185 = vmatprep.subr.mxu0 0.0
    %10186 = vmatpush1.msra.mxu0 %v9871
    %10187 = vmatprep.subr.mxu0 0.0
    %10188 = vmatpush1.msra.mxu0 %v9872
    %10189 = vmatprep.subr.mxu0 0.0
    %10190 = vmatpush1.msra.mxu0 %v9873
    %10191 = vmatprep.subr.mxu0 0.0
    %10192 = vmatpush1.msra.mxu0 %v9874
    %10193 = vmatprep.subr.mxu0 0.0
    %10194 = vmatpush1.msra.mxu0 %v9875
    %10195 = vmatprep.subr.mxu0 0.0
    %10196 = vmatpush1.msra.mxu0 %v9876
    %10197 = vmatprep.subr.mxu0 0.0
    %10198 = vmatpush1.msra.mxu0 %v9877
    %10199 = vmatprep.subr.mxu0 0.0
    %10200 = vmatpush1.msra.mxu0 %v9878
    %10201 = vmatprep.subr.mxu0 0.0
    %10202 = vmatpush1.msra.mxu0 %v9879
    %10203 = vmatprep.subr.mxu0 0.0
    %10204 = vmatpush1.msra.mxu0 %v9880
    %10205 = vmatprep.subr.mxu0 0.0
    %10206 = vmatpush1.msra.mxu0 %v9881
    %10207 = vmatprep.subr.mxu0 0.0
    %10208 = vmatpush1.msra.mxu0 %v9882
    %10209 = vmatprep.subr.mxu0 0.0
    %10210 = vmatpush1.msra.mxu0 %v9883
    %10211 = vmatprep.subr.mxu0 0.0
    %10212 = vmatpush1.msra.mxu0 %v9884
    %10213 = vmatprep.subr.mxu0 0.0
    %10214 = vmatpush1.msra.mxu0 %v9885
    %10215 = vmatprep.subr.mxu0 0.0
    %10216 = vmatpush1.msra.mxu0 %v9886
    %10217 = vmatprep.subr.mxu0 0.0
    %10218 = vmatpush1.msra.mxu0 %v9887
    %10219 = vmatprep.subr.mxu0 0.0
    %10220 = vmatpush1.msra.mxu0 %v9888
    %10221 = vmatprep.subr.mxu0 0.0
    %10222 = vmatpush1.msra.mxu0 %v9889
    %10223 = vmatprep.subr.mxu0 0.0
    %10224 = vmatpush1.msra.mxu0 %v9890
    %10225 = vmatprep.subr.mxu0 0.0
    %10226 = vmatpush1.msra.mxu0 %v9891
    %10227 = vmatprep.subr.mxu0 0.0
    %10228 = vmatpush1.msra.mxu0 %v9892
    %10229 = vmatprep.subr.mxu0 0.0
    %10230 = vmatpush1.msra.mxu0 %v9893
    %10231 = vmatprep.mubr.f32.mxu0 %v9058
    %10232 = vmatmul.mubr.f32.gmra.mrb[0].mxu0 %v9057
    %v10233 = vpop.f32.mrb[0].mxu0
    %v10234 = vadd.f32 %v10089, %v10233
    %v10235 = vpop.f32.mrb[0].mxu0
    %10236 = vmatprep.mubr.f32.mxu0 %v9060
    %10237 = vmatmul.mubr.f32.gmra.mrb[0].mxu0 %v9059
    %v10238 = vpop.f32.mrb[0].mxu0
    %v10239 = vadd.f32 %v10094, %v10238
    %v10240 = vpop.f32.mrb[0].mxu0
    %10241 = vmatprep.mubr.f32.mxu0 %v9062
    %10242 = vmatmul.mubr.f32.gmra.mrb[0].mxu0 %v9061
    %v10243 = vpop.f32.mrb[0].mxu0
    %v10244 = vadd.f32 %v10099, %v10243
    %v10245 = vpop.f32.mrb[0].mxu0
    %10246 = vmatprep.mubr.f32.mxu0 %v9064
    %10247 = vmatmul.mubr.f32.gmra.mrb[0].mxu0 %v9063
    %v10248 = vpop.f32.mrb[0].mxu0
    %v10249 = vadd.f32 %v10104, %v10248
    %v10250 = vpop.f32.mrb[0].mxu0
    %10251 = vmatprep.mubr.f32.mxu0 %v9066
    %10252 = vmatmul.mubr.f32.gmra.mrb[0].mxu0 %v9065
    %v10253 = vpop.f32.mrb[0].mxu0
    %v10254 = vadd.f32 %v10109, %v10253
    %v10255 = vpop.f32.mrb[0].mxu0
    %10256 = vmatprep.mubr.f32.mxu0 %v9068
    %10257 = vmatmul.mubr.f32.gmra.mrb[0].mxu0 %v9067
    %v10258 = vpop.f32.mrb[0].mxu0
    %v10259 = vadd.f32 %v10114, %v10258
    %v10260 = vpop.f32.mrb[0].mxu0
    %10261 = vmatprep.mubr.f32.mxu0 %v9070
    %10262 = vmatmul.mubr.f32.gmra.mrb[0].mxu0 %v9069
    %v10263 = vpop.f32.mrb[0].mxu0
    %v10264 = vadd.f32 %v10119, %v10263
    %v10265 = vpop.f32.mrb[0].mxu0
    %10266 = vmatprep.mubr.f32.mxu0 %v9072
    %10267 = vmatmul.mubr.f32.gmra.mrb[0].mxu0 %v9071
    %v10268 = vpop.f32.mrb[0].mxu0
    %v10269 = vadd.f32 %v10124, %v10268
    %v10270 = vpop.f32.mrb[0].mxu0
    %10271 = vmatprep.mubr.f32.mxu0 %v9074
    %10272 = vmatmul.mubr.f32.gmra.mrb[0].mxu0 %v9073
    %v10273 = vpop.f32.mrb[0].mxu0
    %v10274 = vadd.f32 %v10129, %v10273
    %v10275 = vpop.f32.mrb[0].mxu0
    %10276 = vmatprep.mubr.f32.mxu0 %v9076
    %10277 = vmatmul.mubr.f32.gmra.mrb[0].mxu0 %v9075
    %v10278 = vpop.f32.mrb[0].mxu0
    %v10279 = vadd.f32 %v10134, %v10278
    %v10280 = vpop.f32.mrb[0].mxu0
    %10281 = vmatprep.mubr.f32.mxu0 %v9078
    %10282 = vmatmul.mubr.f32.gmra.mrb[0].mxu0 %v9077
    %v10283 = vpop.f32.mrb[0].mxu0
    %v10284 = vadd.f32 %v10139, %v10283
    %v10285 = vpop.f32.mrb[0].mxu0
    %10286 = vmatprep.mubr.f32.mxu0 %v9080
    %10287 = vmatmul.mubr.f32.gmra.mrb[0].mxu0 %v9079
    %v10288 = vpop.f32.mrb[0].mxu0
    %v10289 = vadd.f32 %v10144, %v10288
    %v10290 = vpop.f32.mrb[0].mxu0
    %10291 = vmatprep.mubr.f32.mxu0 %v9082
    %10292 = vmatmul.mubr.f32.gmra.mrb[0].mxu0 %v9081
    %v10293 = vpop.f32.mrb[0].mxu0
    %v10294 = vadd.f32 %v10149, %v10293
    %v10295 = vpop.f32.mrb[0].mxu0
    %10296 = vmatprep.mubr.f32.mxu0 %v9084
    %10297 = vmatmul.mubr.f32.gmra.mrb[0].mxu0 %v9083
    %v10298 = vpop.f32.mrb[0].mxu0
    %v10299 = vadd.f32 %v10154, %v10298
    %v10300 = vpop.f32.mrb[0].mxu0
    %10301 = vmatprep.mubr.f32.mxu0 %v9086
    %10302 = vmatmul.mubr.f32.gmra.mrb[0].mxu0 %v9085
    %v10303 = vpop.f32.mrb[0].mxu0
    %v10304 = vadd.f32 %v10159, %v10303
    %v10305 = vpop.f32.mrb[0].mxu0
    %10306 = vmatprep.mubr.f32.mxu0 %v9088
    %10307 = vmatmul.mubr.f32.gmra.mrb[0].mxu0 %v9087
    %v10308 = vpop.f32.mrb[0].mxu0
    %v10309 = vadd.f32 %v10164, %v10308
    %v10310 = vpop.f32.mrb[0].mxu0
    %10311 = vdwg.mxu0
    %10312 = vrot.lane.b32.xlu0 %v9862, 126
    %v10313 = vpop.permute.xlu0 %10312
    %10314 = vrot.lane.b32.xlu0 %v9863, 126
    %v10315 = vpop.permute.xlu0 %10314
    %10316 = vrot.lane.b32.xlu0 %v9864, 126
    %v10317 = vpop.permute.xlu0 %10316
    %10318 = vrot.lane.b32.xlu0 %v9865, 126
    %v10319 = vpop.permute.xlu0 %10318
    %10320 = vrot.lane.b32.xlu0 %v9866, 126
    %v10321 = vpop.permute.xlu0 %10320
    %10322 = vrot.lane.b32.xlu0 %v9867, 126
    %v10323 = vpop.permute.xlu0 %10322
    %10324 = vrot.lane.b32.xlu0 %v9868, 126
    %v10325 = vpop.permute.xlu0 %10324
    %10326 = vrot.lane.b32.xlu0 %v9869, 126
    %v10327 = vpop.permute.xlu0 %10326
    %10328 = vrot.lane.b32.xlu0 %v9870, 126
    %v10329 = vpop.permute.xlu0 %10328
    %10330 = vrot.lane.b32.xlu0 %v9871, 126
    %v10331 = vpop.permute.xlu0 %10330
    %10332 = vrot.lane.b32.xlu0 %v9872, 126
    %v10333 = vpop.permute.xlu0 %10332
    %10334 = vrot.lane.b32.xlu0 %v9873, 126
    %v10335 = vpop.permute.xlu0 %10334
    %10336 = vrot.lane.b32.xlu0 %v9874, 126
    %v10337 = vpop.permute.xlu0 %10336
    %10338 = vrot.lane.b32.xlu0 %v9875, 126
    %v10339 = vpop.permute.xlu0 %10338
    %10340 = vrot.lane.b32.xlu0 %v9876, 126
    %v10341 = vpop.permute.xlu0 %10340
    %10342 = vrot.lane.b32.xlu0 %v9877, 126
    %v10343 = vpop.permute.xlu0 %10342
    %10344 = vrot.lane.b32.xlu0 %v9878, 126
    %v10345 = vpop.permute.xlu0 %10344
    %10346 = vrot.lane.b32.xlu0 %v9879, 126
    %v10347 = vpop.permute.xlu0 %10346
    %10348 = vrot.lane.b32.xlu0 %v9880, 126
    %v10349 = vpop.permute.xlu0 %10348
    %10350 = vrot.lane.b32.xlu0 %v9881, 126
    %v10351 = vpop.permute.xlu0 %10350
    %10352 = vrot.lane.b32.xlu0 %v9882, 126
    %v10353 = vpop.permute.xlu0 %10352
    %10354 = vrot.lane.b32.xlu0 %v9883, 126
    %v10355 = vpop.permute.xlu0 %10354
    %10356 = vrot.lane.b32.xlu0 %v9884, 126
    %v10357 = vpop.permute.xlu0 %10356
    %10358 = vrot.lane.b32.xlu0 %v9885, 126
    %v10359 = vpop.permute.xlu0 %10358
    %10360 = vrot.lane.b32.xlu0 %v9886, 126
    %v10361 = vpop.permute.xlu0 %10360
    %10362 = vrot.lane.b32.xlu0 %v9887, 126
    %v10363 = vpop.permute.xlu0 %10362
    %10364 = vrot.lane.b32.xlu0 %v9888, 126
    %v10365 = vpop.permute.xlu0 %10364
    %10366 = vrot.lane.b32.xlu0 %v9889, 126
    %v10367 = vpop.permute.xlu0 %10366
    %10368 = vrot.lane.b32.xlu0 %v9890, 126
    %v10369 = vpop.permute.xlu0 %10368
    %10370 = vrot.lane.b32.xlu0 %v9891, 126
    %v10371 = vpop.permute.xlu0 %10370
    %10372 = vrot.lane.b32.xlu0 %v9892, 126
    %v10373 = vpop.permute.xlu0 %10372
    %10374 = vrot.lane.b32.xlu0 %v9893, 126
    %v10375 = vpop.permute.xlu0 %10374
    %10408 = vmatprep.subr.mxu0 0.0
    %10409 = vmatpush1.msra.mxu0 %v10313
    %10410 = vmatprep.subr.mxu0 0.0
    %10411 = vmatpush1.msra.mxu0 %v10315
    %10412 = vmatprep.subr.mxu0 0.0
    %10413 = vmatpush1.msra.mxu0 %v10317
    %10414 = vmatprep.subr.mxu0 0.0
    %10415 = vmatpush1.msra.mxu0 %v10319
    %10416 = vmatprep.subr.mxu0 0.0
    %10417 = vmatpush1.msra.mxu0 %v10321
    %10418 = vmatprep.subr.mxu0 0.0
    %10419 = vmatpush1.msra.mxu0 %v10323
    %10420 = vmatprep.subr.mxu0 0.0
    %10421 = vmatpush1.msra.mxu0 %v10325
    %10422 = vmatprep.subr.mxu0 0.0
    %10423 = vmatpush1.msra.mxu0 %v10327
    %10424 = vmatprep.subr.mxu0 0.0
    %10425 = vmatpush1.msra.mxu0 %v10329
    %10426 = vmatprep.subr.mxu0 0.0
    %10427 = vmatpush1.msra.mxu0 %v10331
    %10428 = vmatprep.subr.mxu0 0.0
    %10429 = vmatpush1.msra.mxu0 %v10333
    %10430 = vmatprep.subr.mxu0 0.0
    %10431 = vmatpush1.msra.mxu0 %v10335
    %10432 = vmatprep.subr.mxu0 0.0
    %10433 = vmatpush1.msra.mxu0 %v10337
    %10434 = vmatprep.subr.mxu0 0.0
    %10435 = vmatpush1.msra.mxu0 %v10339
    %10436 = vmatprep.subr.mxu0 0.0
    %10437 = vmatpush1.msra.mxu0 %v10341
    %10438 = vmatprep.subr.mxu0 0.0
    %10439 = vmatpush1.msra.mxu0 %v10343
    %10440 = vmatprep.subr.mxu0 0.0
    %10441 = vmatpush1.msra.mxu0 %v10345
    %10442 = vmatprep.subr.mxu0 0.0
    %10443 = vmatpush1.msra.mxu0 %v10347
    %10444 = vmatprep.subr.mxu0 0.0
    %10445 = vmatpush1.msra.mxu0 %v10349
    %10446 = vmatprep.subr.mxu0 0.0
    %10447 = vmatpush1.msra.mxu0 %v10351
    %10448 = vmatprep.subr.mxu0 0.0
    %10449 = vmatpush1.msra.mxu0 %v10353
    %10450 = vmatprep.subr.mxu0 0.0
    %10451 = vmatpush1.msra.mxu0 %v10355
    %10452 = vmatprep.subr.mxu0 0.0
    %10453 = vmatpush1.msra.mxu0 %v10357
    %10454 = vmatprep.subr.mxu0 0.0
    %10455 = vmatpush1.msra.mxu0 %v10359
    %10456 = vmatprep.subr.mxu0 0.0
    %10457 = vmatpush1.msra.mxu0 %v10361
    %10458 = vmatprep.subr.mxu0 0.0
    %10459 = vmatpush1.msra.mxu0 %v10363
    %10460 = vmatprep.subr.mxu0 0.0
    %10461 = vmatpush1.msra.mxu0 %v10365
    %10462 = vmatprep.subr.mxu0 0.0
    %10463 = vmatpush1.msra.mxu0 %v10367
    %10464 = vmatprep.subr.mxu0 0.0
    %10465 = vmatpush1.msra.mxu0 %v10369
    %10466 = vmatprep.subr.mxu0 0.0
    %10467 = vmatpush1.msra.mxu0 %v10371
    %10468 = vmatprep.subr.mxu0 0.0
    %10469 = vmatpush1.msra.mxu0 %v10373
    %10470 = vmatprep.subr.mxu0 0.0
    %10471 = vmatpush1.msra.mxu0 %v10375
    %10472 = vmatprep.mubr.f32.mxu0 %v9124
    %10473 = vmatmul.mubr.f32.gmra.mrb[0].mxu0 %v9123
    %v10474 = vpop.f32.mrb[0].mxu0
    %v10475 = vadd.f32 0.0, %v10474
    %v10476 = vpop.f32.mrb[0].mxu0
    %10477 = vmatprep.mubr.f32.mxu0 %v9126
    %10478 = vmatmul.mubr.f32.gmra.mrb[0].mxu0 %v9125
    %v10479 = vpop.f32.mrb[0].mxu0
    %v10480 = vadd.f32 0.0, %v10479
    %v10481 = vpop.f32.mrb[0].mxu0
    %10482 = vmatprep.mubr.f32.mxu0 %v9128
    %10483 = vmatmul.mubr.f32.gmra.mrb[0].mxu0 %v9127
    %v10484 = vpop.f32.mrb[0].mxu0
    %v10485 = vadd.f32 0.0, %v10484
    %v10486 = vpop.f32.mrb[0].mxu0
    %10487 = vmatprep.mubr.f32.mxu0 %v9130
    %10488 = vmatmul.mubr.f32.gmra.mrb[0].mxu0 %v9129
    %v10489 = vpop.f32.mrb[0].mxu0
    %v10490 = vadd.f32 0.0, %v10489
    %v10491 = vpop.f32.mrb[0].mxu0
    %10492 = vmatprep.mubr.f32.mxu0 %v9132
    %10493 = vmatmul.mubr.f32.gmra.mrb[0].mxu0 %v9131
    %v10494 = vpop.f32.mrb[0].mxu0
    %v10495 = vadd.f32 0.0, %v10494
    %v10496 = vpop.f32.mrb[0].mxu0
    %10497 = vmatprep.mubr.f32.mxu0 %v9134
    %10498 = vmatmul.mubr.f32.gmra.mrb[0].mxu0 %v9133
    %v10499 = vpop.f32.mrb[0].mxu0
    %v10500 = vadd.f32 0.0, %v10499
    %v10501 = vpop.f32.mrb[0].mxu0
    %10502 = vmatprep.mubr.f32.mxu0 %v9136
    %10503 = vmatmul.mubr.f32.gmra.mrb[0].mxu0 %v9135
    %v10504 = vpop.f32.mrb[0].mxu0
    %v10505 = vadd.f32 0.0, %v10504
    %v10506 = vpop.f32.mrb[0].mxu0
    %10507 = vmatprep.mubr.f32.mxu0 %v9138
    %10508 = vmatmul.mubr.f32.gmra.mrb[0].mxu0 %v9137
    %v10509 = vpop.f32.mrb[0].mxu0
    %v10510 = vadd.f32 0.0, %v10509
    %v10511 = vpop.f32.mrb[0].mxu0
    %10512 = vmatprep.mubr.f32.mxu0 %v9140
    %10513 = vmatmul.mubr.f32.gmra.mrb[0].mxu0 %v9139
    %v10514 = vpop.f32.mrb[0].mxu0
    %v10515 = vadd.f32 0.0, %v10514
    %v10516 = vpop.f32.mrb[0].mxu0
    %10517 = vmatprep.mubr.f32.mxu0 %v9142
    %10518 = vmatmul.mubr.f32.gmra.mrb[0].mxu0 %v9141
    %v10519 = vpop.f32.mrb[0].mxu0
    %v10520 = vadd.f32 0.0, %v10519
    %v10521 = vpop.f32.mrb[0].mxu0
    %10522 = vmatprep.mubr.f32.mxu0 %v9144
    %10523 = vmatmul.mubr.f32.gmra.mrb[0].mxu0 %v9143
    %v10524 = vpop.f32.mrb[0].mxu0
    %v10525 = vadd.f32 0.0, %v10524
    %v10526 = vpop.f32.mrb[0].mxu0
    %10527 = vmatprep.mubr.f32.mxu0 %v9146
    %10528 = vmatmul.mubr.f32.gmra.mrb[0].mxu0 %v9145
    %v10529 = vpop.f32.mrb[0].mxu0
    %v10530 = vadd.f32 0.0, %v10529
    %v10531 = vpop.f32.mrb[0].mxu0
    %10532 = vmatprep.mubr.f32.mxu0 %v9148
    %10533 = vmatmul.mubr.f32.gmra.mrb[0].mxu0 %v9147
    %v10534 = vpop.f32.mrb[0].mxu0
    %v10535 = vadd.f32 0.0, %v10534
    %v10536 = vpop.f32.mrb[0].mxu0
    %10537 = vmatprep.mubr.f32.mxu0 %v9150
    %10538 = vmatmul.mubr.f32.gmra.mrb[0].mxu0 %v9149
    %v10539 = vpop.f32.mrb[0].mxu0
    %v10540 = vadd.f32 0.0, %v10539
    %v10541 = vpop.f32.mrb[0].mxu0
    %10542 = vmatprep.mubr.f32.mxu0 %v9152
    %10543 = vmatmul.mubr.f32.gmra.mrb[0].mxu0 %v9151
    %v10544 = vpop.f32.mrb[0].mxu0
    %v10545 = vadd.f32 0.0, %v10544
    %v10546 = vpop.f32.mrb[0].mxu0
    %10547 = vmatprep.mubr.f32.mxu0 %v9154
    %10548 = vmatmul.mubr.f32.gmra.mrb[0].mxu0 %v9153
    %v10549 = vpop.f32.mrb[0].mxu0
    %v10550 = vadd.f32 0.0, %v10549
    %v10551 = vpop.f32.mrb[0].mxu0
    %10552 = vdwg.mxu0
    %v10553 = vadd.f32 %v10234, %v10475
    %v10554 = vadd.f32 %v10239, %v10480
    %v10555 = vadd.f32 %v10244, %v10485
    %v10556 = vadd.f32 %v10249, %v10490
    %v10557 = vadd.f32 %v10254, %v10495
    %v10558 = vadd.f32 %v10259, %v10500
    %v10559 = vadd.f32 %v10264, %v10505
    %v10560 = vadd.f32 %v10269, %v10510
    %v10561 = vadd.f32 %v10274, %v10515
    %v10562 = vadd.f32 %v10279, %v10520
    %v10563 = vadd.f32 %v10284, %v10525
    %v10564 = vadd.f32 %v10289, %v10530
    %v10565 = vadd.f32 %v10294, %v10535
    %v10566 = vadd.f32 %v10299, %v10540
    %v10567 = vadd.f32 %v10304, %v10545
    %v10568 = vadd.f32 %v10309, %v10550
    %vm10569 = vcmask 130048
    %v10570 = vsel %vm10569, %v9846, 0.0
    %10571 = vadd.xlane.f32.xlu0 %v10570
    %v10572 = vpop.xlane.xlu0 %10571
    %v10573 = vsel %vm10569, %v9847, 0.0
    %10574 = vadd.xlane.f32.xlu0 %v10573
    %v10575 = vpop.xlane.xlu0 %10574
    %v10576 = vsel %vm10569, %v9848, 0.0
    %10577 = vadd.xlane.f32.xlu0 %v10576
    %v10578 = vpop.xlane.xlu0 %10577
    %v10579 = vsel %vm10569, %v9849, 0.0
    %10580 = vadd.xlane.f32.xlu0 %v10579
    %v10581 = vpop.xlane.xlu0 %10580
    %v10582 = vsel %vm10569, %v9850, 0.0
    %10583 = vadd.xlane.f32.xlu0 %v10582
    %v10584 = vpop.xlane.xlu0 %10583
    %v10585 = vsel %vm10569, %v9851, 0.0
    %10586 = vadd.xlane.f32.xlu0 %v10585
    %v10587 = vpop.xlane.xlu0 %10586
    %v10588 = vsel %vm10569, %v9852, 0.0
    %10589 = vadd.xlane.f32.xlu0 %v10588
    %v10590 = vpop.xlane.xlu0 %10589
    %v10591 = vsel %vm10569, %v9853, 0.0
    %10592 = vadd.xlane.f32.xlu0 %v10591
    %v10593 = vpop.xlane.xlu0 %10592
    %v10594 = vsel %vm10569, %v9854, 0.0
    %10595 = vadd.xlane.f32.xlu0 %v10594
    %v10596 = vpop.xlane.xlu0 %10595
    %v10597 = vsel %vm10569, %v9855, 0.0
    %10598 = vadd.xlane.f32.xlu0 %v10597
    %v10599 = vpop.xlane.xlu0 %10598
    %v10600 = vsel %vm10569, %v9856, 0.0
    %10601 = vadd.xlane.f32.xlu0 %v10600
    %v10602 = vpop.xlane.xlu0 %10601
    %v10603 = vsel %vm10569, %v9857, 0.0
    %10604 = vadd.xlane.f32.xlu0 %v10603
    %v10605 = vpop.xlane.xlu0 %10604
    %v10606 = vsel %vm10569, %v9858, 0.0
    %10607 = vadd.xlane.f32.xlu0 %v10606
    %v10608 = vpop.xlane.xlu0 %10607
    %v10609 = vsel %vm10569, %v9859, 0.0
    %10610 = vadd.xlane.f32.xlu0 %v10609
    %v10611 = vpop.xlane.xlu0 %10610
    %v10612 = vsel %vm10569, %v9860, 0.0
    %10613 = vadd.xlane.f32.xlu0 %v10612
    %v10614 = vpop.xlane.xlu0 %10613
    %v10615 = vsel %vm10569, %v9861, 0.0
    %10616 = vadd.xlane.f32.xlu0 %v10615
    %v10617 = vpop.xlane.xlu0 %10616
    %v10618 = vadd.f32 %v10572, 0.0
    %v10619 = vadd.f32 %v10575, 0.0
    %v10620 = vadd.f32 %v10578, 0.0
    %v10621 = vadd.f32 %v10581, 0.0
    %v10622 = vadd.f32 %v10584, 0.0
    %v10623 = vadd.f32 %v10587, 0.0
    %v10624 = vadd.f32 %v10590, 0.0
    %v10625 = vadd.f32 %v10593, 0.0
    %v10626 = vadd.f32 %v10596, 0.0
    %v10627 = vadd.f32 %v10599, 0.0
    %v10628 = vadd.f32 %v10602, 0.0
    %v10629 = vadd.f32 %v10605, 0.0
    %v10630 = vadd.f32 %v10608, 0.0
    %v10631 = vadd.f32 %v10611, 0.0
    %v10632 = vadd.f32 %v10614, 0.0
    %v10633 = vadd.f32 %v10617, 0.0
    %v10634 = vsel %vm10569, %v10553, 0.0
    %10635 = vadd.xlane.f32.xlu0 %v10634
    %v10636 = vpop.xlane.xlu0 %10635
    %v10637 = vsel %vm10569, %v10554, 0.0
    %10638 = vadd.xlane.f32.xlu0 %v10637
    %v10639 = vpop.xlane.xlu0 %10638
    %v10640 = vsel %vm10569, %v10555, 0.0
    %10641 = vadd.xlane.f32.xlu0 %v10640
    %v10642 = vpop.xlane.xlu0 %10641
    %v10643 = vsel %vm10569, %v10556, 0.0
    %10644 = vadd.xlane.f32.xlu0 %v10643
    %v10645 = vpop.xlane.xlu0 %10644
    %v10646 = vsel %vm10569, %v10557, 0.0
    %10647 = vadd.xlane.f32.xlu0 %v10646
    %v10648 = vpop.xlane.xlu0 %10647
    %v10649 = vsel %vm10569, %v10558, 0.0
    %10650 = vadd.xlane.f32.xlu0 %v10649
    %v10651 = vpop.xlane.xlu0 %10650
    %v10652 = vsel %vm10569, %v10559, 0.0
    %10653 = vadd.xlane.f32.xlu0 %v10652
    %v10654 = vpop.xlane.xlu0 %10653
    %v10655 = vsel %vm10569, %v10560, 0.0
    %10656 = vadd.xlane.f32.xlu0 %v10655
    %v10657 = vpop.xlane.xlu0 %10656
    %v10658 = vsel %vm10569, %v10561, 0.0
    %10659 = vadd.xlane.f32.xlu0 %v10658
    %v10660 = vpop.xlane.xlu0 %10659
    %v10661 = vsel %vm10569, %v10562, 0.0
    %10662 = vadd.xlane.f32.xlu0 %v10661
    %v10663 = vpop.xlane.xlu0 %10662
    %v10664 = vsel %vm10569, %v10563, 0.0
    %10665 = vadd.xlane.f32.xlu0 %v10664
    %v10666 = vpop.xlane.xlu0 %10665
    %v10667 = vsel %vm10569, %v10564, 0.0
    %10668 = vadd.xlane.f32.xlu0 %v10667
    %v10669 = vpop.xlane.xlu0 %10668
    %v10670 = vsel %vm10569, %v10565, 0.0
    %10671 = vadd.xlane.f32.xlu0 %v10670
    %v10672 = vpop.xlane.xlu0 %10671
    %v10673 = vsel %vm10569, %v10566, 0.0
    %10674 = vadd.xlane.f32.xlu0 %v10673
    %v10675 = vpop.xlane.xlu0 %10674
    %v10676 = vsel %vm10569, %v10567, 0.0
    %10677 = vadd.xlane.f32.xlu0 %v10676
    %v10678 = vpop.xlane.xlu0 %10677
    %v10679 = vsel %vm10569, %v10568, 0.0
    %10680 = vadd.xlane.f32.xlu0 %v10679
    %v10681 = vpop.xlane.xlu0 %10680
    %v10682 = vadd.f32 %v10618, %v10636
    %v10683 = vadd.f32 %v10619, %v10639
    %v10684 = vadd.f32 %v10620, %v10642
    %v10685 = vadd.f32 %v10621, %v10645
    %v10686 = vadd.f32 %v10622, %v10648
    %v10687 = vadd.f32 %v10623, %v10651
    %v10688 = vadd.f32 %v10624, %v10654
    %v10689 = vadd.f32 %v10625, %v10657
    %v10690 = vadd.f32 %v10626, %v10660
    %v10691 = vadd.f32 %v10627, %v10663
    %v10692 = vadd.f32 %v10628, %v10666
    %v10693 = vadd.f32 %v10629, %v10669
    %v10694 = vadd.f32 %v10630, %v10672
    %v10695 = vadd.f32 %v10631, %v10675
    %v10696 = vadd.f32 %v10632, %v10678
    %v10697 = vadd.f32 %v10633, %v10681
    %v10698 = vrcp.pop 32.0
    %v10699 = vmul.f32 %v10682, %v10698
    %v10700 = vmul.f32 %v10683, %v10698
    %v10701 = vmul.f32 %v10684, %v10698
    %v10702 = vmul.f32 %v10685, %v10698
    %v10703 = vmul.f32 %v10686, %v10698
    %v10704 = vmul.f32 %v10687, %v10698
    %v10705 = vmul.f32 %v10688, %v10698
    %v10706 = vmul.f32 %v10689, %v10698
    %v10707 = vmul.f32 %v10690, %v10698
    %v10708 = vmul.f32 %v10691, %v10698
    %v10709 = vmul.f32 %v10692, %v10698
    %v10710 = vmul.f32 %v10693, %v10698
    %v10711 = vmul.f32 %v10694, %v10698
    %v10712 = vmul.f32 %v10695, %v10698
    %v10713 = vmul.f32 %v10696, %v10698
    %v10714 = vmul.f32 %v10697, %v10698
    %v10715 = vsub.f32 %v9846, %v10699
    %v10716 = vsub.f32 %v9847, %v10700
    %v10717 = vsub.f32 %v9848, %v10701
    %v10718 = vsub.f32 %v9849, %v10702
    %v10719 = vsub.f32 %v9850, %v10703
    %v10720 = vsub.f32 %v9851, %v10704
    %v10721 = vsub.f32 %v9852, %v10705
    %v10722 = vsub.f32 %v9853, %v10706
    %v10723 = vsub.f32 %v9854, %v10707
    %v10724 = vsub.f32 %v9855, %v10708
    %v10725 = vsub.f32 %v9856, %v10709
    %v10726 = vsub.f32 %v9857, %v10710
    %v10727 = vsub.f32 %v9858, %v10711
    %v10728 = vsub.f32 %v9859, %v10712
    %v10729 = vsub.f32 %v9860, %v10713
    %v10730 = vsub.f32 %v9861, %v10714
    %v10731 = vsub.f32 %v10553, %v10699
    %v10732 = vsub.f32 %v10554, %v10700
    %v10733 = vsub.f32 %v10555, %v10701
    %v10734 = vsub.f32 %v10556, %v10702
    %v10735 = vsub.f32 %v10557, %v10703
    %v10736 = vsub.f32 %v10558, %v10704
    %v10737 = vsub.f32 %v10559, %v10705
    %v10738 = vsub.f32 %v10560, %v10706
    %v10739 = vsub.f32 %v10561, %v10707
    %v10740 = vsub.f32 %v10562, %v10708
    %v10741 = vsub.f32 %v10563, %v10709
    %v10742 = vsub.f32 %v10564, %v10710
    %v10743 = vsub.f32 %v10565, %v10711
    %v10744 = vsub.f32 %v10566, %v10712
    %v10745 = vsub.f32 %v10567, %v10713
    %v10746 = vsub.f32 %v10568, %v10714
    %v10747 = vmul.f32 %v10715, %v10715
    %v10748 = vmul.f32 %v10716, %v10716
    %v10749 = vmul.f32 %v10717, %v10717
    %v10750 = vmul.f32 %v10718, %v10718
    %v10751 = vmul.f32 %v10719, %v10719
    %v10752 = vmul.f32 %v10720, %v10720
    %v10753 = vmul.f32 %v10721, %v10721
    %v10754 = vmul.f32 %v10722, %v10722
    %v10755 = vmul.f32 %v10723, %v10723
    %v10756 = vmul.f32 %v10724, %v10724
    %v10757 = vmul.f32 %v10725, %v10725
    %v10758 = vmul.f32 %v10726, %v10726
    %v10759 = vmul.f32 %v10727, %v10727
    %v10760 = vmul.f32 %v10728, %v10728
    %v10761 = vmul.f32 %v10729, %v10729
    %v10762 = vmul.f32 %v10730, %v10730
    %v10763 = vsel %vm10569, %v10747, 0.0
    %10764 = vadd.xlane.f32.xlu0 %v10763
    %v10765 = vpop.xlane.xlu0 %10764
    %v10766 = vsel %vm10569, %v10748, 0.0
    %10767 = vadd.xlane.f32.xlu0 %v10766
    %v10768 = vpop.xlane.xlu0 %10767
    %v10769 = vsel %vm10569, %v10749, 0.0
    %10770 = vadd.xlane.f32.xlu0 %v10769
    %v10771 = vpop.xlane.xlu0 %10770
    %v10772 = vsel %vm10569, %v10750, 0.0
    %10773 = vadd.xlane.f32.xlu0 %v10772
    %v10774 = vpop.xlane.xlu0 %10773
    %v10775 = vsel %vm10569, %v10751, 0.0
    %10776 = vadd.xlane.f32.xlu0 %v10775
    %v10777 = vpop.xlane.xlu0 %10776
    %v10778 = vsel %vm10569, %v10752, 0.0
    %10779 = vadd.xlane.f32.xlu0 %v10778
    %v10780 = vpop.xlane.xlu0 %10779
    %v10781 = vsel %vm10569, %v10753, 0.0
    %10782 = vadd.xlane.f32.xlu0 %v10781
    %v10783 = vpop.xlane.xlu0 %10782
    %v10784 = vsel %vm10569, %v10754, 0.0
    %10785 = vadd.xlane.f32.xlu0 %v10784
    %v10786 = vpop.xlane.xlu0 %10785
    %v10787 = vsel %vm10569, %v10755, 0.0
    %10788 = vadd.xlane.f32.xlu0 %v10787
    %v10789 = vpop.xlane.xlu0 %10788
    %v10790 = vsel %vm10569, %v10756, 0.0
    %10791 = vadd.xlane.f32.xlu0 %v10790
    %v10792 = vpop.xlane.xlu0 %10791
    %v10793 = vsel %vm10569, %v10757, 0.0
    %10794 = vadd.xlane.f32.xlu0 %v10793
    %v10795 = vpop.xlane.xlu0 %10794
    %v10796 = vsel %vm10569, %v10758, 0.0
    %10797 = vadd.xlane.f32.xlu0 %v10796
    %v10798 = vpop.xlane.xlu0 %10797
    %v10799 = vsel %vm10569, %v10759, 0.0
    %10800 = vadd.xlane.f32.xlu0 %v10799
    %v10801 = vpop.xlane.xlu0 %10800
    %v10802 = vsel %vm10569, %v10760, 0.0
    %10803 = vadd.xlane.f32.xlu0 %v10802
    %v10804 = vpop.xlane.xlu0 %10803
    %v10805 = vsel %vm10569, %v10761, 0.0
    %10806 = vadd.xlane.f32.xlu0 %v10805
    %v10807 = vpop.xlane.xlu0 %10806
    %v10808 = vsel %vm10569, %v10762, 0.0
    %10809 = vadd.xlane.f32.xlu0 %v10808
    %v10810 = vpop.xlane.xlu0 %10809
    %v10811 = vadd.f32 %v10765, 0.0
    %v10812 = vadd.f32 %v10768, 0.0
    %v10813 = vadd.f32 %v10771, 0.0
    %v10814 = vadd.f32 %v10774, 0.0
    %v10815 = vadd.f32 %v10777, 0.0
    %v10816 = vadd.f32 %v10780, 0.0
    %v10817 = vadd.f32 %v10783, 0.0
    %v10818 = vadd.f32 %v10786, 0.0
    %v10819 = vadd.f32 %v10789, 0.0
    %v10820 = vadd.f32 %v10792, 0.0
    %v10821 = vadd.f32 %v10795, 0.0
    %v10822 = vadd.f32 %v10798, 0.0
    %v10823 = vadd.f32 %v10801, 0.0
    %v10824 = vadd.f32 %v10804, 0.0
    %v10825 = vadd.f32 %v10807, 0.0
    %v10826 = vadd.f32 %v10810, 0.0
    %v10827 = vmul.f32 %v10731, %v10731
    %v10828 = vmul.f32 %v10732, %v10732
    %v10829 = vmul.f32 %v10733, %v10733
    %v10830 = vmul.f32 %v10734, %v10734
    %v10831 = vmul.f32 %v10735, %v10735
    %v10832 = vmul.f32 %v10736, %v10736
    %v10833 = vmul.f32 %v10737, %v10737
    %v10834 = vmul.f32 %v10738, %v10738
    %v10835 = vmul.f32 %v10739, %v10739
    %v10836 = vmul.f32 %v10740, %v10740
    %v10837 = vmul.f32 %v10741, %v10741
    %v10838 = vmul.f32 %v10742, %v10742
    %v10839 = vmul.f32 %v10743, %v10743
    %v10840 = vmul.f32 %v10744, %v10744
    %v10841 = vmul.f32 %v10745, %v10745
    %v10842 = vmul.f32 %v10746, %v10746
    %v10843 = vsel %vm10569, %v10827, 0.0
    %10844 = vadd.xlane.f32.xlu0 %v10843
    %v10845 = vpop.xlane.xlu0 %10844
    %v10846 = vsel %vm10569, %v10828, 0.0
    %10847 = vadd.xlane.f32.xlu0 %v10846
    %v10848 = vpop.xlane.xlu0 %10847
    %v10849 = vsel %vm10569, %v10829, 0.0
    %10850 = vadd.xlane.f32.xlu0 %v10849
    %v10851 = vpop.xlane.xlu0 %10850
    %v10852 = vsel %vm10569, %v10830, 0.0
    %10853 = vadd.xlane.f32.xlu0 %v10852
    %v10854 = vpop.xlane.xlu0 %10853
    %v10855 = vsel %vm10569, %v10831, 0.0
    %10856 = vadd.xlane.f32.xlu0 %v10855
    %v10857 = vpop.xlane.xlu0 %10856
    %v10858 = vsel %vm10569, %v10832, 0.0
    %10859 = vadd.xlane.f32.xlu0 %v10858
    %v10860 = vpop.xlane.xlu0 %10859
    %v10861 = vsel %vm10569, %v10833, 0.0
    %10862 = vadd.xlane.f32.xlu0 %v10861
    %v10863 = vpop.xlane.xlu0 %10862
    %v10864 = vsel %vm10569, %v10834, 0.0
    %10865 = vadd.xlane.f32.xlu0 %v10864
    %v10866 = vpop.xlane.xlu0 %10865
    %v10867 = vsel %vm10569, %v10835, 0.0
    %10868 = vadd.xlane.f32.xlu0 %v10867
    %v10869 = vpop.xlane.xlu0 %10868
    %v10870 = vsel %vm10569, %v10836, 0.0
    %10871 = vadd.xlane.f32.xlu0 %v10870
    %v10872 = vpop.xlane.xlu0 %10871
    %v10873 = vsel %vm10569, %v10837, 0.0
    %10874 = vadd.xlane.f32.xlu0 %v10873
    %v10875 = vpop.xlane.xlu0 %10874
    %v10876 = vsel %vm10569, %v10838, 0.0
    %10877 = vadd.xlane.f32.xlu0 %v10876
    %v10878 = vpop.xlane.xlu0 %10877
    %v10879 = vsel %vm10569, %v10839, 0.0
    %10880 = vadd.xlane.f32.xlu0 %v10879
    %v10881 = vpop.xlane.xlu0 %10880
    %v10882 = vsel %vm10569, %v10840, 0.0
    %10883 = vadd.xlane.f32.xlu0 %v10882
    %v10884 = vpop.xlane.xlu0 %10883
    %v10885 = vsel %vm10569, %v10841, 0.0
    %10886 = vadd.xlane.f32.xlu0 %v10885
    %v10887 = vpop.xlane.xlu0 %10886
    %v10888 = vsel %vm10569, %v10842, 0.0
    %10889 = vadd.xlane.f32.xlu0 %v10888
    %v10890 = vpop.xlane.xlu0 %10889
    %v10891 = vadd.f32 %v10811, %v10845
    %v10892 = vadd.f32 %v10812, %v10848
    %v10893 = vadd.f32 %v10813, %v10851
    %v10894 = vadd.f32 %v10814, %v10854
    %v10895 = vadd.f32 %v10815, %v10857
    %v10896 = vadd.f32 %v10816, %v10860
    %v10897 = vadd.f32 %v10817, %v10863
    %v10898 = vadd.f32 %v10818, %v10866
    %v10899 = vadd.f32 %v10819, %v10869
    %v10900 = vadd.f32 %v10820, %v10872
    %v10901 = vadd.f32 %v10821, %v10875
    %v10902 = vadd.f32 %v10822, %v10878
    %v10903 = vadd.f32 %v10823, %v10881
    %v10904 = vadd.f32 %v10824, %v10884
    %v10905 = vadd.f32 %v10825, %v10887
    %v10906 = vadd.f32 %v10826, %v10890
    %v10907 = vmul.f32 %v10891, %v10698
    %v10908 = vmul.f32 %v10892, %v10698
    %v10909 = vmul.f32 %v10893, %v10698
    %v10910 = vmul.f32 %v10894, %v10698
    %v10911 = vmul.f32 %v10895, %v10698
    %v10912 = vmul.f32 %v10896, %v10698
    %v10913 = vmul.f32 %v10897, %v10698
    %v10914 = vmul.f32 %v10898, %v10698
    %v10915 = vmul.f32 %v10899, %v10698
    %v10916 = vmul.f32 %v10900, %v10698
    %v10917 = vmul.f32 %v10901, %v10698
    %v10918 = vmul.f32 %v10902, %v10698
    %v10919 = vmul.f32 %v10903, %v10698
    %v10920 = vmul.f32 %v10904, %v10698
    %v10921 = vmul.f32 %v10905, %v10698
    %v10922 = vmul.f32 %v10906, %v10698
    %v10923 = vadd.f32 %v10907, 1e-05
    %v10924 = vadd.f32 %v10908, 1e-05
    %v10925 = vadd.f32 %v10909, 1e-05
    %v10926 = vadd.f32 %v10910, 1e-05
    %v10927 = vadd.f32 %v10911, 1e-05
    %v10928 = vadd.f32 %v10912, 1e-05
    %v10929 = vadd.f32 %v10913, 1e-05
    %v10930 = vadd.f32 %v10914, 1e-05
    %v10931 = vadd.f32 %v10915, 1e-05
    %v10932 = vadd.f32 %v10916, 1e-05
    %v10933 = vadd.f32 %v10917, 1e-05
    %v10934 = vadd.f32 %v10918, 1e-05
    %v10935 = vadd.f32 %v10919, 1e-05
    %v10936 = vadd.f32 %v10920, 1e-05
    %v10937 = vadd.f32 %v10921, 1e-05
    %v10938 = vadd.f32 %v10922, 1e-05
    %v10939 = vrsqrt.pop %v10923
    %v10940 = vrsqrt.pop %v10924
    %v10941 = vrsqrt.pop %v10925
    %v10942 = vrsqrt.pop %v10926
    %v10943 = vrsqrt.pop %v10927
    %v10944 = vrsqrt.pop %v10928
    %v10945 = vrsqrt.pop %v10929
    %v10946 = vrsqrt.pop %v10930
    %v10947 = vrsqrt.pop %v10931
    %v10948 = vrsqrt.pop %v10932
    %v10949 = vrsqrt.pop %v10933
    %v10950 = vrsqrt.pop %v10934
    %v10951 = vrsqrt.pop %v10935
    %v10952 = vrsqrt.pop %v10936
    %v10953 = vrsqrt.pop %v10937
    %v10954 = vrsqrt.pop %v10938
    %v10955 = vld [vmem:[%s8] sm:$0xff]
    %v10956 = vld [vmem:[%s8 + $0x8] sm:$0xff]
    %v10957 = vld [vmem:[%s8 + $0x10] sm:$0xff]
    %v10958 = vld [vmem:[%s8 + $0x18] sm:$0xff]
    %v10959 = vld [vmem:[%s8 + $0x20] sm:$0xff]
    %v10960 = vld [vmem:[%s8 + $0x28] sm:$0xff]
    %v10961 = vld [vmem:[%s8 + $0x30] sm:$0xff]
    %v10962 = vld [vmem:[%s8 + $0x38] sm:$0xff]
    %v10963 = vld [vmem:[%s8 + $0x40] sm:$0xff]
    %v10964 = vld [vmem:[%s8 + $0x48] sm:$0xff]
    %v10965 = vld [vmem:[%s8 + $0x50] sm:$0xff]
    %v10966 = vld [vmem:[%s8 + $0x58] sm:$0xff]
    %v10967 = vld [vmem:[%s8 + $0x60] sm:$0xff]
    %v10968 = vld [vmem:[%s8 + $0x68] sm:$0xff]
    %v10969 = vld [vmem:[%s8 + $0x70] sm:$0xff]
    %v10970 = vld [vmem:[%s8 + $0x78] sm:$0xff]
    %v10971 = vmul.f32 %v10939, %v10955
    %v10972 = vmul.f32 %v10940, %v10956
    %v10973 = vmul.f32 %v10941, %v10957
    %v10974 = vmul.f32 %v10942, %v10958
    %v10975 = vmul.f32 %v10943, %v10959
    %v10976 = vmul.f32 %v10944, %v10960
    %v10977 = vmul.f32 %v10945, %v10961
    %v10978 = vmul.f32 %v10946, %v10962
    %v10979 = vmul.f32 %v10947, %v10963
    %v10980 = vmul.f32 %v10948, %v10964
    %v10981 = vmul.f32 %v10949, %v10965
    %v10982 = vmul.f32 %v10950, %v10966
    %v10983 = vmul.f32 %v10951, %v10967
    %v10984 = vmul.f32 %v10952, %v10968
    %v10985 = vmul.f32 %v10953, %v10969
    %v10986 = vmul.f32 %v10954, %v10970
    %v10987 = vld [vmem:[%s9] sm:$0xff]
    %v10988 = vld [vmem:[%s9 + $0x8] sm:$0xff]
    %v10989 = vld [vmem:[%s9 + $0x10] sm:$0xff]
    %v10990 = vld [vmem:[%s9 + $0x18] sm:$0xff]
    %v10991 = vld [vmem:[%s9 + $0x20] sm:$0xff]
    %v10992 = vld [vmem:[%s9 + $0x28] sm:$0xff]
    %v10993 = vld [vmem:[%s9 + $0x30] sm:$0xff]
    %v10994 = vld [vmem:[%s9 + $0x38] sm:$0xff]
    %v10995 = vld [vmem:[%s9 + $0x40] sm:$0xff]
    %v10996 = vld [vmem:[%s9 + $0x48] sm:$0xff]
    %v10997 = vld [vmem:[%s9 + $0x50] sm:$0xff]
    %v10998 = vld [vmem:[%s9 + $0x58] sm:$0xff]
    %v10999 = vld [vmem:[%s9 + $0x60] sm:$0xff]
    %v11000 = vld [vmem:[%s9 + $0x68] sm:$0xff]
    %v11001 = vld [vmem:[%s9 + $0x70] sm:$0xff]
    %v11002 = vld [vmem:[%s9 + $0x78] sm:$0xff]
    %11004 = vset.pattern.permute.xlu0 0
    %11005 = vperm.xlu0 %11004, %v10971
    %v11006 = vpop.permute.xlu0 %11005
    %11009 = vset.pattern.permute.xlu0 0
    %11010 = vperm.xlu0 %11009, %v10972
    %v11011 = vpop.permute.xlu0 %11010
    %11014 = vset.pattern.permute.xlu0 0
    %11015 = vperm.xlu0 %11014, %v10973
    %v11016 = vpop.permute.xlu0 %11015
    %11019 = vset.pattern.permute.xlu0 0
    %11020 = vperm.xlu0 %11019, %v10974
    %v11021 = vpop.permute.xlu0 %11020
    %11024 = vset.pattern.permute.xlu0 0
    %11025 = vperm.xlu0 %11024, %v10975
    %v11026 = vpop.permute.xlu0 %11025
    %11029 = vset.pattern.permute.xlu0 0
    %11030 = vperm.xlu0 %11029, %v10976
    %v11031 = vpop.permute.xlu0 %11030
    %11034 = vset.pattern.permute.xlu0 0
    %11035 = vperm.xlu0 %11034, %v10977
    %v11036 = vpop.permute.xlu0 %11035
    %11039 = vset.pattern.permute.xlu0 0
    %11040 = vperm.xlu0 %11039, %v10978
    %v11041 = vpop.permute.xlu0 %11040
    %11044 = vset.pattern.permute.xlu0 0
    %11045 = vperm.xlu0 %11044, %v10979
    %v11046 = vpop.permute.xlu0 %11045
    %11049 = vset.pattern.permute.xlu0 0
    %11050 = vperm.xlu0 %11049, %v10980
    %v11051 = vpop.permute.xlu0 %11050
    %11054 = vset.pattern.permute.xlu0 0
    %11055 = vperm.xlu0 %11054, %v10981
    %v11056 = vpop.permute.xlu0 %11055
    %11059 = vset.pattern.permute.xlu0 0
    %11060 = vperm.xlu0 %11059, %v10982
    %v11061 = vpop.permute.xlu0 %11060
    %11064 = vset.pattern.permute.xlu0 0
    %11065 = vperm.xlu0 %11064, %v10983
    %v11066 = vpop.permute.xlu0 %11065
    %11069 = vset.pattern.permute.xlu0 0
    %11070 = vperm.xlu0 %11069, %v10984
    %v11071 = vpop.permute.xlu0 %11070
    %11074 = vset.pattern.permute.xlu0 0
    %11075 = vperm.xlu0 %11074, %v10985
    %v11076 = vpop.permute.xlu0 %11075
    %11079 = vset.pattern.permute.xlu0 0
    %11080 = vperm.xlu0 %11079, %v10986
    %v11081 = vpop.permute.xlu0 %11080
    %v11083 = vmul.f32 %v10715, %v11006
    %v11084 = vmul.f32 %v10716, %v11011
    %v11085 = vmul.f32 %v10717, %v11016
    %v11086 = vmul.f32 %v10718, %v11021
    %v11087 = vmul.f32 %v10719, %v11026
    %v11088 = vmul.f32 %v10720, %v11031
    %v11089 = vmul.f32 %v10721, %v11036
    %v11090 = vmul.f32 %v10722, %v11041
    %v11091 = vmul.f32 %v10723, %v11046
    %v11092 = vmul.f32 %v10724, %v11051
    %v11093 = vmul.f32 %v10725, %v11056
    %v11094 = vmul.f32 %v10726, %v11061
    %v11095 = vmul.f32 %v10727, %v11066
    %v11096 = vmul.f32 %v10728, %v11071
    %v11097 = vmul.f32 %v10729, %v11076
    %v11098 = vmul.f32 %v10730, %v11081
    %11100 = vset.pattern.permute.xlu0 0
    %11101 = vperm.xlu0 %11100, %v10987
    %v11102 = vpop.permute.xlu0 %11101
    %11105 = vset.pattern.permute.xlu0 0
    %11106 = vperm.xlu0 %11105, %v10988
    %v11107 = vpop.permute.xlu0 %11106
    %11110 = vset.pattern.permute.xlu0 0
    %11111 = vperm.xlu0 %11110, %v10989
    %v11112 = vpop.permute.xlu0 %11111
    %11115 = vset.pattern.permute.xlu0 0
    %11116 = vperm.xlu0 %11115, %v10990
    %v11117 = vpop.permute.xlu0 %11116
    %11120 = vset.pattern.permute.xlu0 0
    %11121 = vperm.xlu0 %11120, %v10991
    %v11122 = vpop.permute.xlu0 %11121
    %11125 = vset.pattern.permute.xlu0 0
    %11126 = vperm.xlu0 %11125, %v10992
    %v11127 = vpop.permute.xlu0 %11126
    %11130 = vset.pattern.permute.xlu0 0
    %11131 = vperm.xlu0 %11130, %v10993
    %v11132 = vpop.permute.xlu0 %11131
    %11135 = vset.pattern.permute.xlu0 0
    %11136 = vperm.xlu0 %11135, %v10994
    %v11137 = vpop.permute.xlu0 %11136
    %11140 = vset.pattern.permute.xlu0 0
    %11141 = vperm.xlu0 %11140, %v10995
    %v11142 = vpop.permute.xlu0 %11141
    %11145 = vset.pattern.permute.xlu0 0
    %11146 = vperm.xlu0 %11145, %v10996
    %v11147 = vpop.permute.xlu0 %11146
    %11150 = vset.pattern.permute.xlu0 0
    %11151 = vperm.xlu0 %11150, %v10997
    %v11152 = vpop.permute.xlu0 %11151
    %11155 = vset.pattern.permute.xlu0 0
    %11156 = vperm.xlu0 %11155, %v10998
    %v11157 = vpop.permute.xlu0 %11156
    %11160 = vset.pattern.permute.xlu0 0
    %11161 = vperm.xlu0 %11160, %v10999
    %v11162 = vpop.permute.xlu0 %11161
    %11165 = vset.pattern.permute.xlu0 0
    %11166 = vperm.xlu0 %11165, %v11000
    %v11167 = vpop.permute.xlu0 %11166
    %11170 = vset.pattern.permute.xlu0 0
    %11171 = vperm.xlu0 %11170, %v11001
    %v11172 = vpop.permute.xlu0 %11171
    %11175 = vset.pattern.permute.xlu0 0
    %11176 = vperm.xlu0 %11175, %v11002
    %v11177 = vpop.permute.xlu0 %11176
    %v11179 = vadd.f32 %v11083, %v11102
    %v11180 = vadd.f32 %v11084, %v11107
    %v11181 = vadd.f32 %v11085, %v11112
    %v11182 = vadd.f32 %v11086, %v11117
    %v11183 = vadd.f32 %v11087, %v11122
    %v11184 = vadd.f32 %v11088, %v11127
    %v11185 = vadd.f32 %v11089, %v11132
    %v11186 = vadd.f32 %v11090, %v11137
    %v11187 = vadd.f32 %v11091, %v11142
    %v11188 = vadd.f32 %v11092, %v11147
    %v11189 = vadd.f32 %v11093, %v11152
    %v11190 = vadd.f32 %v11094, %v11157
    %v11191 = vadd.f32 %v11095, %v11162
    %v11192 = vadd.f32 %v11096, %v11167
    %v11193 = vadd.f32 %v11097, %v11172
    %v11194 = vadd.f32 %v11098, %v11177
    %v11195 = vxor.u32 %v11179, 2147483648
    %v11196 = vxor.u32 %v11180, 2147483648
    %v11197 = vxor.u32 %v11181, 2147483648
    %v11198 = vxor.u32 %v11182, 2147483648
    %v11199 = vxor.u32 %v11183, 2147483648
    %v11200 = vxor.u32 %v11184, 2147483648
    %v11201 = vxor.u32 %v11185, 2147483648
    %v11202 = vxor.u32 %v11186, 2147483648
    %v11203 = vxor.u32 %v11187, 2147483648
    %v11204 = vxor.u32 %v11188, 2147483648
    %v11205 = vxor.u32 %v11189, 2147483648
    %v11206 = vxor.u32 %v11190, 2147483648
    %v11207 = vxor.u32 %v11191, 2147483648
    %v11208 = vxor.u32 %v11192, 2147483648
    %v11209 = vxor.u32 %v11193, 2147483648
    %v11210 = vxor.u32 %v11194, 2147483648
    %v11211 = vmul.f32 %v11195, 1.442695
    %v11212 = vpow.pop %v11211
    %v11213 = vmul.f32 %v11196, 1.442695
    %v11214 = vpow.pop %v11213
    %v11215 = vmul.f32 %v11197, 1.442695
    %v11216 = vpow.pop %v11215
    %v11217 = vmul.f32 %v11198, 1.442695
    %v11218 = vpow.pop %v11217
    %v11219 = vmul.f32 %v11199, 1.442695
    %v11220 = vpow.pop %v11219
    %v11221 = vmul.f32 %v11200, 1.442695
    %v11222 = vpow.pop %v11221
    %v11223 = vmul.f32 %v11201, 1.442695
    %v11224 = vpow.pop %v11223
    %v11225 = vmul.f32 %v11202, 1.442695
    %v11226 = vpow.pop %v11225
    %v11227 = vmul.f32 %v11203, 1.442695
    %v11228 = vpow.pop %v11227
    %v11229 = vmul.f32 %v11204, 1.442695
    %v11230 = vpow.pop %v11229
    %v11231 = vmul.f32 %v11205, 1.442695
    %v11232 = vpow.pop %v11231
    %v11233 = vmul.f32 %v11206, 1.442695
    %v11234 = vpow.pop %v11233
    %v11235 = vmul.f32 %v11207, 1.442695
    %v11236 = vpow.pop %v11235
    %v11237 = vmul.f32 %v11208, 1.442695
    %v11238 = vpow.pop %v11237
    %v11239 = vmul.f32 %v11209, 1.442695
    %v11240 = vpow.pop %v11239
    %v11241 = vmul.f32 %v11210, 1.442695
    %v11242 = vpow.pop %v11241
    %v11243 = vadd.f32 %v11212, 1.0
    %v11244 = vadd.f32 %v11214, 1.0
    %v11245 = vadd.f32 %v11216, 1.0
    %v11246 = vadd.f32 %v11218, 1.0
    %v11247 = vadd.f32 %v11220, 1.0
    %v11248 = vadd.f32 %v11222, 1.0
    %v11249 = vadd.f32 %v11224, 1.0
    %v11250 = vadd.f32 %v11226, 1.0
    %v11251 = vadd.f32 %v11228, 1.0
    %v11252 = vadd.f32 %v11230, 1.0
    %v11253 = vadd.f32 %v11232, 1.0
    %v11254 = vadd.f32 %v11234, 1.0
    %v11255 = vadd.f32 %v11236, 1.0
    %v11256 = vadd.f32 %v11238, 1.0
    %v11257 = vadd.f32 %v11240, 1.0
    %v11258 = vadd.f32 %v11242, 1.0
    %v11259 = vrcp.pop %v11243
    %v11260 = vmul.f32 1.0, %v11259
    %v11261 = vrcp.pop %v11244
    %v11262 = vmul.f32 1.0, %v11261
    %v11263 = vrcp.pop %v11245
    %v11264 = vmul.f32 1.0, %v11263
    %v11265 = vrcp.pop %v11246
    %v11266 = vmul.f32 1.0, %v11265
    %v11267 = vrcp.pop %v11247
    %v11268 = vmul.f32 1.0, %v11267
    %v11269 = vrcp.pop %v11248
    %v11270 = vmul.f32 1.0, %v11269
    %v11271 = vrcp.pop %v11249
    %v11272 = vmul.f32 1.0, %v11271
    %v11273 = vrcp.pop %v11250
    %v11274 = vmul.f32 1.0, %v11273
    %v11275 = vrcp.pop %v11251
    %v11276 = vmul.f32 1.0, %v11275
    %v11277 = vrcp.pop %v11252
    %v11278 = vmul.f32 1.0, %v11277
    %v11279 = vrcp.pop %v11253
    %v11280 = vmul.f32 1.0, %v11279
    %v11281 = vrcp.pop %v11254
    %v11282 = vmul.f32 1.0, %v11281
    %v11283 = vrcp.pop %v11255
    %v11284 = vmul.f32 1.0, %v11283
    %v11285 = vrcp.pop %v11256
    %v11286 = vmul.f32 1.0, %v11285
    %v11287 = vrcp.pop %v11257
    %v11288 = vmul.f32 1.0, %v11287
    %v11289 = vrcp.pop %v11258
    %v11290 = vmul.f32 1.0, %v11289
    %11291 = vst.msk [vmem:[%s14] sm:$0xff] %vm10569, %v11260
    %11292 = vst.msk [vmem:[%s14 + $0x8] sm:$0xff] %vm10569, %v11262
    %11293 = vst.msk [vmem:[%s14 + $0x10] sm:$0xff] %vm10569, %v11264
    %11294 = vst.msk [vmem:[%s14 + $0x18] sm:$0xff] %vm10569, %v11266
    %11295 = vst.msk [vmem:[%s14 + $0x20] sm:$0xff] %vm10569, %v11268
    %11296 = vst.msk [vmem:[%s14 + $0x28] sm:$0xff] %vm10569, %v11270
    %11297 = vst.msk [vmem:[%s14 + $0x30] sm:$0xff] %vm10569, %v11272
    %11298 = vst.msk [vmem:[%s14 + $0x38] sm:$0xff] %vm10569, %v11274
    %11299 = vst.msk [vmem:[%s14 + $0x40] sm:$0xff] %vm10569, %v11276
    %11300 = vst.msk [vmem:[%s14 + $0x48] sm:$0xff] %vm10569, %v11278
    %11301 = vst.msk [vmem:[%s14 + $0x50] sm:$0xff] %vm10569, %v11280
    %11302 = vst.msk [vmem:[%s14 + $0x58] sm:$0xff] %vm10569, %v11282
    %11303 = vst.msk [vmem:[%s14 + $0x60] sm:$0xff] %vm10569, %v11284
    %11304 = vst.msk [vmem:[%s14 + $0x68] sm:$0xff] %vm10569, %v11286
    %11305 = vst.msk [vmem:[%s14 + $0x70] sm:$0xff] %vm10569, %v11288
    %11306 = vst.msk [vmem:[%s14 + $0x78] sm:$0xff] %vm10569, %v11290
    %v11307 = vmul.f32 %v10731, %v11006
    %v11308 = vmul.f32 %v10732, %v11011
    %v11309 = vmul.f32 %v10733, %v11016
    %v11310 = vmul.f32 %v10734, %v11021
    %v11311 = vmul.f32 %v10735, %v11026
    %v11312 = vmul.f32 %v10736, %v11031
    %v11313 = vmul.f32 %v10737, %v11036
    %v11314 = vmul.f32 %v10738, %v11041
    %v11315 = vmul.f32 %v10739, %v11046
    %v11316 = vmul.f32 %v10740, %v11051
    %v11317 = vmul.f32 %v10741, %v11056
    %v11318 = vmul.f32 %v10742, %v11061
    %v11319 = vmul.f32 %v10743, %v11066
    %v11320 = vmul.f32 %v10744, %v11071
    %v11321 = vmul.f32 %v10745, %v11076
    %v11322 = vmul.f32 %v10746, %v11081
    %v11323 = vadd.f32 %v11307, %v11102
    %v11324 = vadd.f32 %v11308, %v11107
    %v11325 = vadd.f32 %v11309, %v11112
    %v11326 = vadd.f32 %v11310, %v11117
    %v11327 = vadd.f32 %v11311, %v11122
    %v11328 = vadd.f32 %v11312, %v11127
    %v11329 = vadd.f32 %v11313, %v11132
    %v11330 = vadd.f32 %v11314, %v11137
    %v11331 = vadd.f32 %v11315, %v11142
    %v11332 = vadd.f32 %v11316, %v11147
    %v11333 = vadd.f32 %v11317, %v11152
    %v11334 = vadd.f32 %v11318, %v11157
    %v11335 = vadd.f32 %v11319, %v11162
    %v11336 = vadd.f32 %v11320, %v11167
    %v11337 = vadd.f32 %v11321, %v11172
    %v11338 = vadd.f32 %v11322, %v11177
    %v11339 = vxor.u32 %v11323, 2147483648
    %v11340 = vxor.u32 %v11324, 2147483648
    %v11341 = vxor.u32 %v11325, 2147483648
    %v11342 = vxor.u32 %v11326, 2147483648
    %v11343 = vxor.u32 %v11327, 2147483648
    %v11344 = vxor.u32 %v11328, 2147483648
    %v11345 = vxor.u32 %v11329, 2147483648
    %v11346 = vxor.u32 %v11330, 2147483648
    %v11347 = vxor.u32 %v11331, 2147483648
    %v11348 = vxor.u32 %v11332, 2147483648
    %v11349 = vxor.u32 %v11333, 2147483648
    %v11350 = vxor.u32 %v11334, 2147483648
    %v11351 = vxor.u32 %v11335, 2147483648
    %v11352 = vxor.u32 %v11336, 2147483648
    %v11353 = vxor.u32 %v11337, 2147483648
    %v11354 = vxor.u32 %v11338, 2147483648
    %v11355 = vmul.f32 %v11339, 1.442695
    %v11356 = vpow.pop %v11355
    %v11357 = vmul.f32 %v11340, 1.442695
    %v11358 = vpow.pop %v11357
    %v11359 = vmul.f32 %v11341, 1.442695
    %v11360 = vpow.pop %v11359
    %v11361 = vmul.f32 %v11342, 1.442695
    %v11362 = vpow.pop %v11361
    %v11363 = vmul.f32 %v11343, 1.442695
    %v11364 = vpow.pop %v11363
    %v11365 = vmul.f32 %v11344, 1.442695
    %v11366 = vpow.pop %v11365
    %v11367 = vmul.f32 %v11345, 1.442695
    %v11368 = vpow.pop %v11367
    %v11369 = vmul.f32 %v11346, 1.442695
    %v11370 = vpow.pop %v11369
    %v11371 = vmul.f32 %v11347, 1.442695
    %v11372 = vpow.pop %v11371
    %v11373 = vmul.f32 %v11348, 1.442695
    %v11374 = vpow.pop %v11373
    %v11375 = vmul.f32 %v11349, 1.442695
    %v11376 = vpow.pop %v11375
    %v11377 = vmul.f32 %v11350, 1.442695
    %v11378 = vpow.pop %v11377
    %v11379 = vmul.f32 %v11351, 1.442695
    %v11380 = vpow.pop %v11379
    %v11381 = vmul.f32 %v11352, 1.442695
    %v11382 = vpow.pop %v11381
    %v11383 = vmul.f32 %v11353, 1.442695
    %v11384 = vpow.pop %v11383
    %v11385 = vmul.f32 %v11354, 1.442695
    %v11386 = vpow.pop %v11385
    %v11387 = vadd.f32 %v11356, 1.0
    %v11388 = vadd.f32 %v11358, 1.0
    %v11389 = vadd.f32 %v11360, 1.0
    %v11390 = vadd.f32 %v11362, 1.0
    %v11391 = vadd.f32 %v11364, 1.0
    %v11392 = vadd.f32 %v11366, 1.0
    %v11393 = vadd.f32 %v11368, 1.0
    %v11394 = vadd.f32 %v11370, 1.0
    %v11395 = vadd.f32 %v11372, 1.0
    %v11396 = vadd.f32 %v11374, 1.0
    %v11397 = vadd.f32 %v11376, 1.0
    %v11398 = vadd.f32 %v11378, 1.0
    %v11399 = vadd.f32 %v11380, 1.0
    %v11400 = vadd.f32 %v11382, 1.0
    %v11401 = vadd.f32 %v11384, 1.0
    %v11402 = vadd.f32 %v11386, 1.0
    %v11403 = vrcp.pop %v11387
    %v11404 = vmul.f32 1.0, %v11403
    %v11405 = vrcp.pop %v11388
    %v11406 = vmul.f32 1.0, %v11405
    %v11407 = vrcp.pop %v11389
    %v11408 = vmul.f32 1.0, %v11407
    %v11409 = vrcp.pop %v11390
    %v11410 = vmul.f32 1.0, %v11409
    %v11411 = vrcp.pop %v11391
    %v11412 = vmul.f32 1.0, %v11411
    %v11413 = vrcp.pop %v11392
    %v11414 = vmul.f32 1.0, %v11413
    %v11415 = vrcp.pop %v11393
    %v11416 = vmul.f32 1.0, %v11415
    %v11417 = vrcp.pop %v11394
    %v11418 = vmul.f32 1.0, %v11417
    %v11419 = vrcp.pop %v11395
    %v11420 = vmul.f32 1.0, %v11419
    %v11421 = vrcp.pop %v11396
    %v11422 = vmul.f32 1.0, %v11421
    %v11423 = vrcp.pop %v11397
    %v11424 = vmul.f32 1.0, %v11423
    %v11425 = vrcp.pop %v11398
    %v11426 = vmul.f32 1.0, %v11425
    %v11427 = vrcp.pop %v11399
    %v11428 = vmul.f32 1.0, %v11427
    %v11429 = vrcp.pop %v11400
    %v11430 = vmul.f32 1.0, %v11429
    %v11431 = vrcp.pop %v11401
    %v11432 = vmul.f32 1.0, %v11431
    %v11433 = vrcp.pop %v11402
    %v11434 = vmul.f32 1.0, %v11433
    %s11435 = scalar_lea.vmem %s14, 128
    %11436 = vst.msk [vmem:[%s11435] sm:$0xff] %vm10569, %v11404
    %11437 = vst.msk [vmem:[%s11435 + $0x8] sm:$0xff] %vm10569, %v11406
    %11438 = vst.msk [vmem:[%s11435 + $0x10] sm:$0xff] %vm10569, %v11408
    %11439 = vst.msk [vmem:[%s11435 + $0x18] sm:$0xff] %vm10569, %v11410
    %11440 = vst.msk [vmem:[%s11435 + $0x20] sm:$0xff] %vm10569, %v11412
    %11441 = vst.msk [vmem:[%s11435 + $0x28] sm:$0xff] %vm10569, %v11414
    %11442 = vst.msk [vmem:[%s11435 + $0x30] sm:$0xff] %vm10569, %v11416
    %11443 = vst.msk [vmem:[%s11435 + $0x38] sm:$0xff] %vm10569, %v11418
    %11444 = vst.msk [vmem:[%s11435 + $0x40] sm:$0xff] %vm10569, %v11420
    %11445 = vst.msk [vmem:[%s11435 + $0x48] sm:$0xff] %vm10569, %v11422
    %11446 = vst.msk [vmem:[%s11435 + $0x50] sm:$0xff] %vm10569, %v11424
    %11447 = vst.msk [vmem:[%s11435 + $0x58] sm:$0xff] %vm10569, %v11426
    %11448 = vst.msk [vmem:[%s11435 + $0x60] sm:$0xff] %vm10569, %v11428
    %11449 = vst.msk [vmem:[%s11435 + $0x68] sm:$0xff] %vm10569, %v11430
    %11450 = vst.msk [vmem:[%s11435 + $0x70] sm:$0xff] %vm10569, %v11432
    %11451 = vst.msk [vmem:[%s11435 + $0x78] sm:$0xff] %vm10569, %v11434
    %v11452 = vlaneseq
    %v11453 = vshrl.u32 %v11452, 7
    %v11455 = vsel %vm10569, 0.0625, 0
    %v11458 = vsel %vm10569, %v11260, 0
    %v11461 = vsel %vm10569, %v11262, 0
    %v11464 = vsel %vm10569, %v11264, 0
    %v11467 = vsel %vm10569, %v11266, 0
    %v11470 = vsel %vm10569, %v11268, 0
    %v11473 = vsel %vm10569, %v11270, 0
    %v11476 = vsel %vm10569, %v11272, 0
    %v11479 = vsel %vm10569, %v11274, 0
    %v11482 = vsel %vm10569, %v11276, 0
    %v11485 = vsel %vm10569, %v11278, 0
    %v11488 = vsel %vm10569, %v11280, 0
    %v11491 = vsel %vm10569, %v11282, 0
    %v11494 = vsel %vm10569, %v11284, 0
    %v11497 = vsel %vm10569, %v11286, 0
    %v11500 = vsel %vm10569, %v11288, 0
    %v11503 = vsel %vm10569, %v11290, 0
    %11505 = vmatprep.subr.mxu0 0.0
    %11506 = vmatpush1.xpose.msra.mxu0 %v11458
    %11507 = vmatprep.subr.mxu0 0.0
    %11508 = vmatpush1.xpose.msra.mxu0 %v11461
    %11509 = vmatprep.subr.mxu0 0.0
    %11510 = vmatpush1.xpose.msra.mxu0 %v11464
    %11511 = vmatprep.subr.mxu0 0.0
    %11512 = vmatpush1.xpose.msra.mxu0 %v11467
    %11513 = vmatprep.subr.mxu0 0.0
    %11514 = vmatpush1.xpose.msra.mxu0 %v11470
    %11515 = vmatprep.subr.mxu0 0.0
    %11516 = vmatpush1.xpose.msra.mxu0 %v11473
    %11517 = vmatprep.subr.mxu0 0.0
    %11518 = vmatpush1.xpose.msra.mxu0 %v11476
    %11519 = vmatprep.subr.mxu0 0.0
    %11520 = vmatpush1.xpose.msra.mxu0 %v11479
    %11521 = vmatprep.subr.mxu0 0.0
    %11522 = vmatpush1.xpose.msra.mxu0 %v11482
    %11523 = vmatprep.subr.mxu0 0.0
    %11524 = vmatpush1.xpose.msra.mxu0 %v11485
    %11525 = vmatprep.subr.mxu0 0.0
    %11526 = vmatpush1.xpose.msra.mxu0 %v11488
    %11527 = vmatprep.subr.mxu0 0.0
    %11528 = vmatpush1.xpose.msra.mxu0 %v11491
    %11529 = vmatprep.subr.mxu0 0.0
    %11530 = vmatpush1.xpose.msra.mxu0 %v11494
    %11531 = vmatprep.subr.mxu0 0.0
    %11532 = vmatpush1.xpose.msra.mxu0 %v11497
    %11533 = vmatprep.subr.mxu0 0.0
    %11534 = vmatpush1.xpose.msra.mxu0 %v11500
    %11535 = vmatprep.subr.mxu0 0.0
    %11536 = vmatpush1.xpose.msra.mxu0 %v11503
    %11537 = vmatprep.subr.mxu0 0.0
    %11538 = vmatpush1.xpose.msra.mxu0 0.0
    %11539 = vmatprep.subr.mxu0 0.0
    %11540 = vmatpush1.xpose.msra.mxu0 0.0
    %11541 = vmatprep.subr.mxu0 0.0
    %11542 = vmatpush1.xpose.msra.mxu0 0.0
    %11543 = vmatprep.subr.mxu0 0.0
    %11544 = vmatpush1.xpose.msra.mxu0 0.0
    %11545 = vmatprep.subr.mxu0 0.0
    %11546 = vmatpush1.xpose.msra.mxu0 0.0
    %11547 = vmatprep.subr.mxu0 0.0
    %11548 = vmatpush1.xpose.msra.mxu0 0.0
    %11549 = vmatprep.subr.mxu0 0.0
    %11550 = vmatpush1.xpose.msra.mxu0 0.0
    %11551 = vmatprep.subr.mxu0 0.0
    %11552 = vmatpush1.xpose.msra.mxu0 0.0
    %11553 = vmatprep.subr.mxu0 0.0
    %11554 = vmatpush1.xpose.msra.mxu0 0.0
    %11555 = vmatprep.subr.mxu0 0.0
    %11556 = vmatpush1.xpose.msra.mxu0 0.0
    %11557 = vmatprep.subr.mxu0 0.0
    %11558 = vmatpush1.xpose.msra.mxu0 0.0
    %11559 = vmatprep.subr.mxu0 0.0
    %11560 = vmatpush1.xpose.msra.mxu0 0.0
    %11561 = vmatprep.subr.mxu0 0.0
    %11562 = vmatpush1.xpose.msra.mxu0 0.0
    %11563 = vmatprep.subr.mxu0 0.0
    %11564 = vmatpush1.xpose.msra.mxu0 0.0
    %11565 = vmatprep.subr.mxu0 0.0
    %11566 = vmatpush1.xpose.msra.mxu0 0.0
    %11567 = vmatprep.subr.mxu0 0.0
    %11568 = vmatpush1.xpose.msra.mxu0 0.0
    %11569 = vmatprep.mubr.f32.mxu0 0.0
    %11570 = vmatmul.mubr.f32.gmra.mrb[0].mxu0 %v11455
    %v11571 = vpop.f32.mrb[0].mxu0
    %v11572 = vadd.f32 0.0, %v11571
    %v11573 = vpop.f32.mrb[0].mxu0
    %11574 = vdwg.mxu0
    %vm11575 = vcmp.eq.s32.totalorder %v11453, 0
    %v11576 = vlaneseq
    %v11577 = vshrl.u32 %v11576, 7
    %v11578 = vsub.s32 0, %v11577
    %v11579 = vrot.slane %v11572, %v11578
    %v11580 = vsel %vm11575, %v11579, 0.0
    %v11582 = vsel %vm10569, %v11404, 0
    %v11585 = vsel %vm10569, %v11406, 0
    %v11588 = vsel %vm10569, %v11408, 0
    %v11591 = vsel %vm10569, %v11410, 0
    %v11594 = vsel %vm10569, %v11412, 0
    %v11597 = vsel %vm10569, %v11414, 0
    %v11600 = vsel %vm10569, %v11416, 0
    %v11603 = vsel %vm10569, %v11418, 0
    %v11606 = vsel %vm10569, %v11420, 0
    %v11609 = vsel %vm10569, %v11422, 0
    %v11612 = vsel %vm10569, %v11424, 0
    %v11615 = vsel %vm10569, %v11426, 0
    %v11618 = vsel %vm10569, %v11428, 0
    %v11621 = vsel %vm10569, %v11430, 0
    %v11624 = vsel %vm10569, %v11432, 0
    %v11627 = vsel %vm10569, %v11434, 0
    %11629 = vmatprep.subr.mxu0 0.0
    %11630 = vmatpush1.xpose.msra.mxu0 %v11582
    %11631 = vmatprep.subr.mxu0 0.0
    %11632 = vmatpush1.xpose.msra.mxu0 %v11585
    %11633 = vmatprep.subr.mxu0 0.0
    %11634 = vmatpush1.xpose.msra.mxu0 %v11588
    %11635 = vmatprep.subr.mxu0 0.0
    %11636 = vmatpush1.xpose.msra.mxu0 %v11591
    %11637 = vmatprep.subr.mxu0 0.0
    %11638 = vmatpush1.xpose.msra.mxu0 %v11594
    %11639 = vmatprep.subr.mxu0 0.0
    %11640 = vmatpush1.xpose.msra.mxu0 %v11597
    %11641 = vmatprep.subr.mxu0 0.0
    %11642 = vmatpush1.xpose.msra.mxu0 %v11600
    %11643 = vmatprep.subr.mxu0 0.0
    %11644 = vmatpush1.xpose.msra.mxu0 %v11603
    %11645 = vmatprep.subr.mxu0 0.0
    %11646 = vmatpush1.xpose.msra.mxu0 %v11606
    %11647 = vmatprep.subr.mxu0 0.0
    %11648 = vmatpush1.xpose.msra.mxu0 %v11609
    %11649 = vmatprep.subr.mxu0 0.0
    %11650 = vmatpush1.xpose.msra.mxu0 %v11612
    %11651 = vmatprep.subr.mxu0 0.0
    %11652 = vmatpush1.xpose.msra.mxu0 %v11615
    %11653 = vmatprep.subr.mxu0 0.0
    %11654 = vmatpush1.xpose.msra.mxu0 %v11618
    %11655 = vmatprep.subr.mxu0 0.0
    %11656 = vmatpush1.xpose.msra.mxu0 %v11621
    %11657 = vmatprep.subr.mxu0 0.0
    %11658 = vmatpush1.xpose.msra.mxu0 %v11624
    %11659 = vmatprep.subr.mxu0 0.0
    %11660 = vmatpush1.xpose.msra.mxu0 %v11627
    %11661 = vmatprep.subr.mxu0 0.0
    %11662 = vmatpush1.xpose.msra.mxu0 0.0
    %11663 = vmatprep.subr.mxu0 0.0
    %11664 = vmatpush1.xpose.msra.mxu0 0.0
    %11665 = vmatprep.subr.mxu0 0.0
    %11666 = vmatpush1.xpose.msra.mxu0 0.0
    %11667 = vmatprep.subr.mxu0 0.0
    %11668 = vmatpush1.xpose.msra.mxu0 0.0
    %11669 = vmatprep.subr.mxu0 0.0
    %11670 = vmatpush1.xpose.msra.mxu0 0.0
    %11671 = vmatprep.subr.mxu0 0.0
    %11672 = vmatpush1.xpose.msra.mxu0 0.0
    %11673 = vmatprep.subr.mxu0 0.0
    %11674 = vmatpush1.xpose.msra.mxu0 0.0
    %11675 = vmatprep.subr.mxu0 0.0
    %11676 = vmatpush1.xpose.msra.mxu0 0.0
    %11677 = vmatprep.subr.mxu0 0.0
    %11678 = vmatpush1.xpose.msra.mxu0 0.0
    %11679 = vmatprep.subr.mxu0 0.0
    %11680 = vmatpush1.xpose.msra.mxu0 0.0
    %11681 = vmatprep.subr.mxu0 0.0
    %11682 = vmatpush1.xpose.msra.mxu0 0.0
    %11683 = vmatprep.subr.mxu0 0.0
    %11684 = vmatpush1.xpose.msra.mxu0 0.0
    %11685 = vmatprep.subr.mxu0 0.0
    %11686 = vmatpush1.xpose.msra.mxu0 0.0
    %11687 = vmatprep.subr.mxu0 0.0
    %11688 = vmatpush1.xpose.msra.mxu0 0.0
    %11689 = vmatprep.subr.mxu0 0.0
    %11690 = vmatpush1.xpose.msra.mxu0 0.0
    %11691 = vmatprep.subr.mxu0 0.0
    %11692 = vmatpush1.xpose.msra.mxu0 0.0
    %11693 = vmatprep.mubr.f32.mxu0 0.0
    %11694 = vmatmul.mubr.f32.gmra.mrb[0].mxu0 %v11455
    %v11695 = vpop.f32.mrb[0].mxu0
    %v11696 = vadd.f32 0.0, %v11695
    %v11697 = vpop.f32.mrb[0].mxu0
    %11698 = vdwg.mxu0
    %vm11699 = vcmp.eq.s32.totalorder %v11453, 1
    %v11700 = vlaneseq
    %v11701 = vshrl.u32 %v11700, 7
    %v11702 = vsub.s32 0, %v11701
    %v11703 = vrot.slane %v11696, %v11702
    %v11704 = vsel %vm11699, %v11703, 0.0
    %v11705 = vadd.f32 %v11580, %v11704
    %v11706 = vld [vmem:[%s10] sm:$0xff]
    %v11707 = vld [vmem:[%s10 + $0x8] sm:$0xff]
    %v11708 = vld [vmem:[%s10 + $0x10] sm:$0xff]
    %v11709 = vld [vmem:[%s10 + $0x18] sm:$0xff]
    %v11710 = vld [vmem:[%s10 + $0x20] sm:$0xff]
    %v11711 = vld [vmem:[%s10 + $0x28] sm:$0xff]
    %v11712 = vld [vmem:[%s10 + $0x30] sm:$0xff]
    %v11713 = vld [vmem:[%s10 + $0x38] sm:$0xff]
    %v11714 = vld [vmem:[%s10 + $0x40] sm:$0xff]
    %v11715 = vld [vmem:[%s10 + $0x48] sm:$0xff]
    %v11716 = vld [vmem:[%s10 + $0x50] sm:$0xff]
    %v11717 = vld [vmem:[%s10 + $0x58] sm:$0xff]
    %v11718 = vld [vmem:[%s10 + $0x60] sm:$0xff]
    %v11719 = vld [vmem:[%s10 + $0x68] sm:$0xff]
    %v11720 = vld [vmem:[%s10 + $0x70] sm:$0xff]
    %v11721 = vld [vmem:[%s10 + $0x78] sm:$0xff]
    %v11722 = vld [vmem:[%s11] sm:$0x1]
    %v11724 = vlaneseq
    %v11725 = vshrl.u32 %v11724, 7
    %v11726 = vsub.s32 0, %v11725
    %v11727 = vrot.slane %v11722, %v11726
    %11729 = vmatprep.subr.mxu0 0.0
    %11730 = vmatpush1.xpose.msra.mxu0 %v11706
    %11731 = vmatprep.subr.mxu0 0.0
    %11732 = vmatpush1.xpose.msra.mxu0 %v11707
    %11733 = vmatprep.subr.mxu0 0.0
    %11734 = vmatpush1.xpose.msra.mxu0 %v11708
    %11735 = vmatprep.subr.mxu0 0.0
    %11736 = vmatpush1.xpose.msra.mxu0 %v11709
    %11737 = vmatprep.subr.mxu0 0.0
    %11738 = vmatpush1.xpose.msra.mxu0 %v11710
    %11739 = vmatprep.subr.mxu0 0.0
    %11740 = vmatpush1.xpose.msra.mxu0 %v11711
    %11741 = vmatprep.subr.mxu0 0.0
    %11742 = vmatpush1.xpose.msra.mxu0 %v11712
    %11743 = vmatprep.subr.mxu0 0.0
    %11744 = vmatpush1.xpose.msra.mxu0 %v11713
    %11745 = vmatprep.subr.mxu0 0.0
    %11746 = vmatpush1.xpose.msra.mxu0 %v11714
    %11747 = vmatprep.subr.mxu0 0.0
    %11748 = vmatpush1.xpose.msra.mxu0 %v11715
    %11749 = vmatprep.subr.mxu0 0.0
    %11750 = vmatpush1.xpose.msra.mxu0 %v11716
    %11751 = vmatprep.subr.mxu0 0.0
    %11752 = vmatpush1.xpose.msra.mxu0 %v11717
    %11753 = vmatprep.subr.mxu0 0.0
    %11754 = vmatpush1.xpose.msra.mxu0 %v11718
    %11755 = vmatprep.subr.mxu0 0.0
    %11756 = vmatpush1.xpose.msra.mxu0 %v11719
    %11757 = vmatprep.subr.mxu0 0.0
    %11758 = vmatpush1.xpose.msra.mxu0 %v11720
    %11759 = vmatprep.subr.mxu0 0.0
    %11760 = vmatpush1.xpose.msra.mxu0 %v11721
    %11761 = vmatprep.subr.mxu0 0.0
    %11762 = vmatpush1.xpose.msra.mxu0 0.0
    %11763 = vmatprep.subr.mxu0 0.0
    %11764 = vmatpush1.xpose.msra.mxu0 0.0
    %11765 = vmatprep.subr.mxu0 0.0
    %11766 = vmatpush1.xpose.msra.mxu0 0.0
    %11767 = vmatprep.subr.mxu0 0.0
    %11768 = vmatpush1.xpose.msra.mxu0 0.0
    %11769 = vmatprep.subr.mxu0 0.0
    %11770 = vmatpush1.xpose.msra.mxu0 0.0
    %11771 = vmatprep.subr.mxu0 0.0
    %11772 = vmatpush1.xpose.msra.mxu0 0.0
    %11773 = vmatprep.subr.mxu0 0.0
    %11774 = vmatpush1.xpose.msra.mxu0 0.0
    %11775 = vmatprep.subr.mxu0 0.0
    %11776 = vmatpush1.xpose.msra.mxu0 0.0
    %11777 = vmatprep.subr.mxu0 0.0
    %11778 = vmatpush1.xpose.msra.mxu0 0.0
    %11779 = vmatprep.subr.mxu0 0.0
    %11780 = vmatpush1.xpose.msra.mxu0 0.0
    %11781 = vmatprep.subr.mxu0 0.0
    %11782 = vmatpush1.xpose.msra.mxu0 0.0
    %11783 = vmatprep.subr.mxu0 0.0
    %11784 = vmatpush1.xpose.msra.mxu0 0.0
    %11785 = vmatprep.subr.mxu0 0.0
    %11786 = vmatpush1.xpose.msra.mxu0 0.0
    %11787 = vmatprep.subr.mxu0 0.0
    %11788 = vmatpush1.xpose.msra.mxu0 0.0
    %11789 = vmatprep.subr.mxu0 0.0
    %11790 = vmatpush1.xpose.msra.mxu0 0.0
    %11791 = vmatprep.subr.mxu0 0.0
    %11792 = vmatpush1.xpose.msra.mxu0 0.0
    %11793 = vmatprep.mubr.f32.mxu0 0.0
    %11794 = vmatmul.mubr.f32.gmra.mrb[0].mxu0 %v11705
    %v11795 = vpop.f32.mrb[0].mxu0
    %v11796 = vadd.f32 %v11727, %v11795
    %v11797 = vpop.f32.mrb[0].mxu0
    %11798 = vdwg.mxu0
    %11799 = vst [vmem:[#allocation8] sm:$0x3] %v11796
    // Predicated region
    $region54: #{ordinary_kd_te_fcn_forward.1} parent=1 // pred_check
      _
    $region55: #{ordinary_kd_te_fcn_forward.1} parent=1 // pred_check_branch
      %11801 = sbr.rel (0) target = $region57
    $region56: #{ordinary_kd_te_fcn_forward.1} parent=1 // pred_region
      _
    $region57: #{ordinary_kd_te_fcn_forward.1} parent=1 // pred_fallthru
      _
    // Predicated region
    $region58: #{ordinary_kd_te_fcn_forward.1} parent=1 // pred_check
      _
    $region59: #{ordinary_kd_te_fcn_forward.1} parent=1 // pred_check_branch
      %11803 = sbr.rel (0) target = $region61
    $region60: #{ordinary_kd_te_fcn_forward.1} parent=1 // pred_region
      _
    $region61: #{ordinary_kd_te_fcn_forward.1} parent=1 // pred_fallthru
      _
    // Predicated region
    $region62: #{ordinary_kd_te_fcn_forward.1} parent=1 // pred_check
      _
    $region63: #{ordinary_kd_te_fcn_forward.1} parent=1 // pred_check_branch
      %11805 = sbr.rel (0) target = $region65
    $region64: #{ordinary_kd_te_fcn_forward.1} parent=1 // pred_region
      _
    $region65: #{ordinary_kd_te_fcn_forward.1} parent=1 // pred_fallthru
      _
    // Predicated region
    $region66: #{ordinary_kd_te_fcn_forward.1} parent=1 // pred_check
      _
    $region67: #{ordinary_kd_te_fcn_forward.1} parent=1 // pred_check_branch
      %11807 = sbr.rel (0) target = $region69
    $region68: #{ordinary_kd_te_fcn_forward.1} parent=1 // pred_region
      %s11809 = ssub.s32 32, 32
      %11810 = vsyncadd [#allocation7], %s11809
      %s11812 = sshll.u32 [#allocation8], 4
      %s11813 = int_to_ptr.vmem [resolvable:$true] %s11812
      %11815 = dma.vmem_to_hbm [thread:$0]  %s11813, 32, %s15, [#allocation7]
    $region69: #{ordinary_kd_te_fcn_forward.1} parent=1 // pred_fallthru
      _
    // Predicated region
    $region70: #{ordinary_kd_te_fcn_forward.1} parent=1 // pred_check
      _
    $region71: #{ordinary_kd_te_fcn_forward.1} parent=1 // pred_check_branch
      %11817 = sbr.rel (0) target = $region73
    $region72: #{ordinary_kd_te_fcn_forward.1} parent=1 // pred_region
      _
    $region73: #{ordinary_kd_te_fcn_forward.1} parent=1 // pred_fallthru
      _
    // Predicated region
    $region74: #{ordinary_kd_te_fcn_forward.1} parent=1 // pred_check
      _
    $region75: #{ordinary_kd_te_fcn_forward.1} parent=1 // pred_check_branch
      %11819 = sbr.rel (0) target = $region77
    $region76: #{ordinary_kd_te_fcn_forward.1} parent=1 // pred_region
      _
    $region77: #{ordinary_kd_te_fcn_forward.1} parent=1 // pred_fallthru
      _
    // Predicated region
    $region78: #{ordinary_kd_te_fcn_forward.1} parent=1 // pred_check
      _
    $region79: #{ordinary_kd_te_fcn_forward.1} parent=1 // pred_check_branch
      %11821 = sbr.rel (0) target = $region81
    $region80: #{ordinary_kd_te_fcn_forward.1} parent=1 // pred_region
      _
    $region81: #{ordinary_kd_te_fcn_forward.1} parent=1 // pred_fallthru
      _
    // Predicated region
    $region82: #{ordinary_kd_te_fcn_forward.1} parent=1 // pred_check
      _
    $region83: #{ordinary_kd_te_fcn_forward.1} parent=1 // pred_check_branch
      %11823 = sbr.rel (0) target = $region85
    $region84: #{ordinary_kd_te_fcn_forward.1} parent=1 // pred_region
      %11824 = dma.done [#allocation7], 32
    $region85: #{ordinary_kd_te_fcn_forward.1} parent=1 // pred_fallthru
      _
    %11825 = vsyncpa [#allocation6], 1
    %11826 = vsyncpa [#allocation7], 1

</llo_original>
